<compile_context>
chip_gen: v5e
topology: v5e:2x2
jax: 0.10.0
libtpu: 0.0.40
codegen_flags: <defaults>
</compile_context>

<pallas_src>
import functools

import numpy as np
import jax
import jax.numpy as jnp
from jax.experimental import pallas as pl
from jax.experimental.pallas import tpu as pltpu

BN_EPS = 0.8          # nn.BatchNorm1d(out_feat, 0.8) -> eps = 0.8
LEAK = 0.2            # LeakyReLU(0.2)
_HIDDEN = 1024        # last hidden width (fixed by the module)
_TN = 512             # head odim tile (lane-dense; avoids per-step grid overhead)
_BM_MAX = 512         # head batch tile cap (fits comfortably in VMEM on all gens)


def _round_up(x, m):
    return (x + m - 1) // m * m


@functools.lru_cache(maxsize=1)
def _vmem_limit_bytes():
    # Generation-aware scoped-VMEM budget: ~100 MiB on 128-MiB parts (v5e/v6e),
    # ~48 MiB on 64-MiB parts (v7x).  Fallback is the conservative 48 MiB.
    try:
        cap = int(pltpu.get_tpu_info().vmem_capacity_bytes)
    except Exception:
        cap = 64 * 1024 * 1024
    return int(min(cap - 16 * 1024 * 1024, 100 * 1024 * 1024))


def _leaky_relu(h):
    # max(h, 0.2*h) == LeakyReLU_{0.2}(h) for 0 < slope < 1; cheaper than where().
    return jnp.maximum(h, LEAK * h)


def _dot_bf16(a_f32, w_ref, b_ref):
    """bf16 MXU matmul with f32 accumulation + f32 bias (weights stored bf16)."""
    return jnp.dot(a_f32.astype(jnp.bfloat16), w_ref[...],
                   preferred_element_type=jnp.float32) + b_ref[...]


# --------------------------------------------------------------------------- #
# Kernel 1: "trunk" — Linear+LeakyReLU, then 3x (Linear + BatchNorm + LeakyReLU).
# Whole batch in one grid step (BatchNorm needs full-batch statistics).
# --------------------------------------------------------------------------- #
def trunk_kernel(x_ref,
                 w0_ref, b0_ref,
                 w1_ref, b1_ref, g1_ref, be1_ref,
                 w2_ref, b2_ref, g2_ref, be2_ref,
                 w3_ref, b3_ref, g3_ref, be3_ref,
                 h_ref):
    h = _leaky_relu(_dot_bf16(x_ref[...], w0_ref, b0_ref))

    def bn_block(h, w_ref, b_ref, g_ref, be_ref):
        z = _dot_bf16(h, w_ref, b_ref)                               # (B, N) f32
        mu = jnp.mean(z, axis=0, keepdims=True)                      # (1, N)
        # Single-pass biased variance E[z^2] - mu^2 (safe here: eps = 0.8 dominates).
        var = jnp.maximum(jnp.mean(z * z, axis=0, keepdims=True) - mu * mu, 0.0)
        scale = g_ref[...] * jax.lax.rsqrt(var + BN_EPS)             # fused affine
        shift = be_ref[...] - mu * scale
        return _leaky_relu(z * scale + shift)

    h = bn_block(h, w1_ref, b1_ref, g1_ref, be1_ref)
    h = bn_block(h, w2_ref, b2_ref, g2_ref, be2_ref)
    h = bn_block(h, w3_ref, b3_ref, g3_ref, be3_ref)
    h_ref[...] = h.astype(jnp.bfloat16)   # bf16 hand-off to the head kernel


# --------------------------------------------------------------------------- #
# Kernel 2: "head" — Linear(1024, odim) + tanh, tiled over (odim, batch).
# --------------------------------------------------------------------------- #
def head_kernel(h_ref, wl_ref, bl_ref, o_ref):
    acc = jnp.dot(h_ref[...], wl_ref[...], preferred_element_type=jnp.float32)
    o_ref[...] = jnp.tanh(acc + bl_ref[...]).astype(o_ref.dtype)


# --------------------------------------------------------------------------- #
# Wrapper
# --------------------------------------------------------------------------- #
def _full_spec(a):
    nd = a.ndim
    return pl.BlockSpec(a.shape, lambda i, _nd=nd: (0,) * _nd)


def prepare_params(params):
    """One-time weight prep, hoisted out of the per-call jitted forward:
    bf16 weight storage + lane-dense (multiple of 512) padding of Wl / bl."""
    (w0, b0,
     w1, b1, g1, be1,
     w2, b2, g2, be2,
     w3, b3, g3, be3,
     wl, bl) = params
    bf = jnp.bfloat16
    odim = wl.shape[1]
    odim_pad = _round_up(odim, _TN)
    pad = ((0, 0), (0, odim_pad - odim))
    return (w0.astype(bf), b0,
            w1.astype(bf), b1, g1, be1,
            w2.astype(bf), b2, g2, be2,
            w3.astype(bf), b3, g3, be3,
            jnp.pad(wl.astype(bf), pad), jnp.pad(bl, pad))


@functools.partial(jax.jit, static_argnums=(2, 3))
def generator_forward(x, prep_params, img_size, out_dtype=jnp.bfloat16):
    (w0b, b0,
     w1b, b1, g1, be1,
     w2b, b2, g2, be2,
     w3b, b3, g3, be3,
     wl_p, bl_p) = prep_params

    B = x.shape[0]
    odim = int(np.prod(img_size))
    odim_pad = wl_p.shape[1]
    vmem_limit = _vmem_limit_bytes()

    # ---- trunk: one grid step, full batch (BatchNorm over the real batch) ----
    trunk_args = [x, w0b, b0, w1b, b1, g1, be1, w2b, b2, g2, be2, w3b, b3, g3, be3]
    h = pl.pallas_call(
        trunk_kernel,
        out_shape=jax.ShapeDtypeStruct((B, _HIDDEN), jnp.bfloat16),
        grid=(1,),
        in_specs=[_full_spec(a) for a in trunk_args],
        out_specs=pl.BlockSpec((B, _HIDDEN), lambda i: (0, 0)),
        compiler_params=pltpu.CompilerParams(
            dimension_semantics=("arbitrary",),
            vmem_limit_bytes=vmem_limit),
    )(*trunk_args)

    # ---- head: (odim-outer, batch-inner) grid, big lane-dense tiles ----------
    tn = _TN                                  # odim_pad is a multiple of _TN
    bm = min(_BM_MAX, _round_up(B, 128))      # never collapse below 128 rows
    B_pad = _round_up(B, bm)

    # Zero rows are safe in the head (no BatchNorm there); skip copy if no padding.
    h_p = h if B_pad == B else jnp.pad(h, ((0, B_pad - B), (0, 0)))

    out_pad = pl.pallas_call(
        head_kernel,
        out_shape=jax.ShapeDtypeStruct((B_pad, odim_pad), out_dtype),
        # odim-outer grid: wl block index is constant over the inner batch loop,
        # so the large weight streams from HBM exactly once; the small h tile is
        # the re-fetched operand.
        grid=(odim_pad // tn, B_pad // bm),
        in_specs=[
            pl.BlockSpec((bm, _HIDDEN), lambda jn, ib: (ib, 0)),
            pl.BlockSpec((_HIDDEN, tn), lambda jn, ib: (0, jn)),
            pl.BlockSpec((1, tn), lambda jn, ib: (0, jn)),
        ],
        out_specs=pl.BlockSpec((bm, tn), lambda jn, ib: (ib, jn)),
        compiler_params=pltpu.CompilerParams(
            dimension_semantics=("parallel", "parallel"),
            vmem_limit_bytes=vmem_limit),
    )(h_p, wl_p, bl_p)

    out = out_pad if (B_pad == B and odim_pad == odim) else out_pad[:B, :odim]
    return out.reshape((B,) + tuple(img_size))


# --------------------------------------------------------------------------- #
# Deterministic synthetic parameters (shapes match the PyTorch module)
# --------------------------------------------------------------------------- #
def make_params(key, idim, odim):
    dims = [idim, 128, 256, 512, 1024]
    params = []
    ks = jax.random.split(key, 16)
    ki = 0

    def lin(kin, kout):
        nonlocal ki
        w = jax.random.normal(ks[ki], (kin, kout), jnp.float32) * 0.05
        b = jax.random.normal(ks[ki + 1], (1, kout), jnp.float32) * 0.05
        ki += 2
        return w, b

    w0, b0 = lin(dims[0], dims[1])
    params += [w0, b0]
    for i in range(1, 4):
        w, b = lin(dims[i], dims[i + 1])
        gamma = 1.0 + 0.1 * jax.random.normal(ks[ki], (1, dims[i + 1]), jnp.float32)
        beta = 0.1 * jax.random.normal(ks[ki + 1], (1, dims[i + 1]), jnp.float32)
        ki += 2
        params += [w, b, gamma, beta]
    wl, bl = lin(dims[4], odim)
    params += [wl, bl]
    return params


# --------------------------------------------------------------------------- #
# Pure-JAX reference.  compute_dtype=bf16 mirrors the kernel's matmul precision;
# compute_dtype=f32 is the exact PyTorch training-mode math.
# --------------------------------------------------------------------------- #
def generator_reference(x, params, img_size, compute_dtype=jnp.float32):
    (w0, b0,
     w1, b1, g1, be1,
     w2, b2, g2, be2,
     w3, b3, g3, be3,
     wl, bl) = params
    cd = compute_dtype

    def dot(a, w, b):
        return jnp.dot(a.astype(cd), w.astype(cd),
                       preferred_element_type=jnp.float32) + b

    def leaky(h):
        return jnp.maximum(h, LEAK * h)

    def bn_block(h, w, b, g, be):
        z = dot(h, w, b)
        mu = jnp.mean(z, axis=0, keepdims=True)
        var = jnp.mean((z - mu) ** 2, axis=0, keepdims=True)
        return leaky((z - mu) * jax.lax.rsqrt(var + BN_EPS) * g + be)

    h = leaky(dot(x, w0, b0))
    h = bn_block(h, w1, b1, g1, be1)
    h = bn_block(h, w2, b2, g2, be2)
    h = bn_block(h, w3, b3, g3, be3)
    o = jnp.tanh(dot(h, wl, bl))
    return o.reshape((x.shape[0],) + tuple(img_size))


if __name__ == "__main__":
    key = jax.random.PRNGKey(0)

    # Case 1: tiny smoke test (odim=128 -> padded to 512, B padded to 128).
    # Case 2: exercises odim padding + batch padding + slice-off path.
    cases = [(2, 32, (2, 8, 8)),
             (64, 32, (3, 10, 10))]

    for (B, idim, img_size) in cases:
        odim = int(np.prod(img_size))
        kx, kp = jax.random.split(jax.random.fold_in(key, B))
        x = jax.random.normal(kx, (B, idim), jnp.float32)
        params = make_params(kp, idim, odim)
        prep = prepare_params(params)   # one-time; amortized across a sampling loop

        out = jax.block_until_ready(
            generator_forward(x, prep, img_size, jnp.bfloat16))
        assert out.shape == (B,) + tuple(img_size), out.shape
        out_f32 = np.asarray(out.astype(jnp.float32))

        # Check vs. a reference that mirrors the kernel's bf16 matmul precision
        # (tolerance widened slightly for the bf16 output rounding).
        ref_bf16 = np.asarray(jax.block_until_ready(
            generator_reference(x, params, img_size, compute_dtype=jnp.bfloat16)))
        np.testing.assert_allclose(out_f32, ref_bf16, rtol=2e-2, atol=1e-2)

        # Sanity check vs. exact f32 semantics (bf16 weights/output => small abs error).
        ref_f32 = np.asarray(jax.block_until_ready(
            generator_reference(x, params, img_size, compute_dtype=jnp.float32)))
        np.testing.assert_allclose(out_f32, ref_f32, rtol=0.0, atol=6e-2)

    print("KERNEL_OK")
</pallas_src>

<mosaic_0001>
module attributes {stable_mosaic.version = 11 : i64} {
  func.func @trunk_kernel(%arg0: i32, %arg1: memref<2x32xf32, #tpu.memory_space<vmem>>, %arg2: memref<32x128xbf16, #tpu.memory_space<vmem>>, %arg3: memref<1x128xf32, #tpu.memory_space<vmem>>, %arg4: memref<128x256xbf16, #tpu.memory_space<vmem>>, %arg5: memref<1x256xf32, #tpu.memory_space<vmem>>, %arg6: memref<1x256xf32, #tpu.memory_space<vmem>>, %arg7: memref<1x256xf32, #tpu.memory_space<vmem>>, %arg8: memref<256x512xbf16, #tpu.memory_space<vmem>>, %arg9: memref<1x512xf32, #tpu.memory_space<vmem>>, %arg10: memref<1x512xf32, #tpu.memory_space<vmem>>, %arg11: memref<1x512xf32, #tpu.memory_space<vmem>>, %arg12: memref<512x1024xbf16, #tpu.memory_space<vmem>>, %arg13: memref<1x1024xf32, #tpu.memory_space<vmem>>, %arg14: memref<1x1024xf32, #tpu.memory_space<vmem>>, %arg15: memref<1x1024xf32, #tpu.memory_space<vmem>>, %arg16: memref<2x1024xbf16, #tpu.memory_space<vmem>>) attributes {dimension_semantics = [#tpu.dimension_semantics<arbitrary>], iteration_bounds = array<i64: 1>, scalar_prefetch = 0 : i64, scratch_operands = 0 : i64, tpu.core_type = #tpu.core_type<tc>, window_params = [{pipeline_mode = #tpu.pipeline_mode<synchronous>, transform_indices = @transform_0, window_bounds = array<i64: 2, 32>}, {pipeline_mode = #tpu.pipeline_mode<synchronous>, transform_indices = @transform_1, window_bounds = array<i64: 32, 128>}, {pipeline_mode = #tpu.pipeline_mode<synchronous>, transform_indices = @transform_2, window_bounds = array<i64: 1, 128>}, {pipeline_mode = #tpu.pipeline_mode<synchronous>, transform_indices = @transform_3, window_bounds = array<i64: 128, 256>}, {pipeline_mode = #tpu.pipeline_mode<synchronous>, transform_indices = @transform_4, window_bounds = array<i64: 1, 256>}, {pipeline_mode = #tpu.pipeline_mode<synchronous>, transform_indices = @transform_5, window_bounds = array<i64: 1, 256>}, {pipeline_mode = #tpu.pipeline_mode<synchronous>, transform_indices = @transform_6, window_bounds = array<i64: 1, 256>}, {pipeline_mode = #tpu.pipeline_mode<synchronous>, transform_indices = @transform_7, window_bounds = array<i64: 256, 512>}, {pipeline_mode = #tpu.pipeline_mode<synchronous>, transform_indices = @transform_8, window_bounds = array<i64: 1, 512>}, {pipeline_mode = #tpu.pipeline_mode<synchronous>, transform_indices = @transform_9, window_bounds = array<i64: 1, 512>}, {pipeline_mode = #tpu.pipeline_mode<synchronous>, transform_indices = @transform_10, window_bounds = array<i64: 1, 512>}, {pipeline_mode = #tpu.pipeline_mode<synchronous>, transform_indices = @transform_11, window_bounds = array<i64: 512, 1024>}, {pipeline_mode = #tpu.pipeline_mode<synchronous>, transform_indices = @transform_12, window_bounds = array<i64: 1, 1024>}, {pipeline_mode = #tpu.pipeline_mode<synchronous>, transform_indices = @transform_13, window_bounds = array<i64: 1, 1024>}, {pipeline_mode = #tpu.pipeline_mode<synchronous>, transform_indices = @transform_14, window_bounds = array<i64: 1, 1024>}, {pipeline_mode = #tpu.pipeline_mode<synchronous>, transform_indices = @transform_15, window_bounds = array<i64: 2, 1024>}]} {
    %c0 = arith.constant 0 : index
    %c0_0 = arith.constant 0 : index
    %0 = vector.load %arg1[%c0, %c0_0] : memref<2x32xf32, #tpu.memory_space<vmem>>, vector<2x32xf32>
    %1 = arith.truncf %0 : vector<2x32xf32> to vector<2x32xbf16>
    %c0_1 = arith.constant 0 : index
    %c0_2 = arith.constant 0 : index
    %2 = vector.load %arg2[%c0_1, %c0_2] : memref<32x128xbf16, #tpu.memory_space<vmem>>, vector<32x128xbf16>
    %cst = arith.constant dense<0.000000e+00> : vector<2x128xf32>
    %3 = tpu.matmul %1, %2, %cst {dimension_numbers = #tpu.dot_dimension_numbers<[1], [0], [0], [1], [0, 0, 1, 1], [], []>} : vector<2x32xbf16>, vector<32x128xbf16>, vector<2x128xf32> -> vector<2x128xf32>
    %c0_3 = arith.constant 0 : index
    %c0_4 = arith.constant 0 : index
    %4 = vector.load %arg3[%c0_3, %c0_4] : memref<1x128xf32, #tpu.memory_space<vmem>>, vector<1x128xf32>
    %5 = vector.broadcast %4 : vector<1x128xf32> to vector<2x128xf32>
    %6 = arith.addf %3, %5 : vector<2x128xf32>
    %cst_5 = arith.constant 2.000000e-01 : f32
    %7 = vector.broadcast %cst_5 : f32 to vector<2x128xf32>
    %8 = arith.mulf %7, %6 : vector<2x128xf32>
    %9 = arith.maximumf %6, %8 : vector<2x128xf32>
    %10 = arith.truncf %9 : vector<2x128xf32> to vector<2x128xbf16>
    %c0_6 = arith.constant 0 : index
    %c0_7 = arith.constant 0 : index
    %11 = vector.load %arg4[%c0_6, %c0_7] : memref<128x256xbf16, #tpu.memory_space<vmem>>, vector<128x256xbf16>
    %cst_8 = arith.constant dense<0.000000e+00> : vector<2x256xf32>
    %12 = tpu.matmul %10, %11, %cst_8 {dimension_numbers = #tpu.dot_dimension_numbers<[1], [0], [0], [1], [0, 0, 1, 1], [], []>} : vector<2x128xbf16>, vector<128x256xbf16>, vector<2x256xf32> -> vector<2x256xf32>
    %c0_9 = arith.constant 0 : index
    %c0_10 = arith.constant 0 : index
    %13 = vector.load %arg5[%c0_9, %c0_10] : memref<1x256xf32, #tpu.memory_space<vmem>>, vector<1x256xf32>
    %14 = vector.broadcast %13 : vector<1x256xf32> to vector<2x256xf32>
    %15 = arith.addf %12, %14 : vector<2x256xf32>
    %cst_11 = arith.constant dense<0.000000e+00> : vector<256xf32>
    %16 = vector.multi_reduction <add>, %15, %cst_11 [0] : vector<2x256xf32> to vector<256xf32>
    %17 = vector.shape_cast %16 : vector<256xf32> to vector<1x256xf32>
    %cst_12 = arith.constant 2.000000e+00 : f32
    %18 = vector.broadcast %cst_12 : f32 to vector<1x256xf32>
    %19 = arith.divf %17, %18 : vector<1x256xf32>
    %20 = arith.mulf %15, %15 : vector<2x256xf32>
    %cst_13 = arith.constant dense<0.000000e+00> : vector<256xf32>
    %21 = vector.multi_reduction <add>, %20, %cst_13 [0] : vector<2x256xf32> to vector<256xf32>
    %22 = vector.shape_cast %21 : vector<256xf32> to vector<1x256xf32>
    %cst_14 = arith.constant 2.000000e+00 : f32
    %23 = vector.broadcast %cst_14 : f32 to vector<1x256xf32>
    %24 = arith.divf %22, %23 : vector<1x256xf32>
    %25 = arith.mulf %19, %19 : vector<1x256xf32>
    %26 = arith.subf %24, %25 : vector<1x256xf32>
    %cst_15 = arith.constant 0.000000e+00 : f32
    %27 = vector.broadcast %cst_15 : f32 to vector<1x256xf32>
    %28 = arith.maximumf %26, %27 : vector<1x256xf32>
    %c0_16 = arith.constant 0 : index
    %c0_17 = arith.constant 0 : index
    %29 = vector.load %arg6[%c0_16, %c0_17] : memref<1x256xf32, #tpu.memory_space<vmem>>, vector<1x256xf32>
    %cst_18 = arith.constant 8.000000e-01 : f32
    %30 = vector.broadcast %cst_18 : f32 to vector<1x256xf32>
    %31 = arith.addf %28, %30 : vector<1x256xf32>
    %32 = math.rsqrt %31 : vector<1x256xf32>
    %33 = arith.mulf %29, %32 : vector<1x256xf32>
    %c0_19 = arith.constant 0 : index
    %c0_20 = arith.constant 0 : index
    %34 = vector.load %arg7[%c0_19, %c0_20] : memref<1x256xf32, #tpu.memory_space<vmem>>, vector<1x256xf32>
    %35 = arith.mulf %19, %33 : vector<1x256xf32>
    %36 = arith.subf %34, %35 : vector<1x256xf32>
    %37 = vector.broadcast %33 : vector<1x256xf32> to vector<2x256xf32>
    %38 = arith.mulf %15, %37 : vector<2x256xf32>
    %39 = vector.broadcast %36 : vector<1x256xf32> to vector<2x256xf32>
    %40 = arith.addf %38, %39 : vector<2x256xf32>
    %cst_21 = arith.constant 2.000000e-01 : f32
    %41 = vector.broadcast %cst_21 : f32 to vector<2x256xf32>
    %42 = arith.mulf %41, %40 : vector<2x256xf32>
    %43 = arith.maximumf %40, %42 : vector<2x256xf32>
    %44 = arith.truncf %43 : vector<2x256xf32> to vector<2x256xbf16>
    %c0_22 = arith.constant 0 : index
    %c0_23 = arith.constant 0 : index
    %45 = vector.load %arg8[%c0_22, %c0_23] : memref<256x512xbf16, #tpu.memory_space<vmem>>, vector<256x512xbf16>
    %cst_24 = arith.constant dense<0.000000e+00> : vector<2x512xf32>
    %46 = tpu.matmul %44, %45, %cst_24 {dimension_numbers = #tpu.dot_dimension_numbers<[1], [0], [0], [1], [0, 0, 1, 1], [], []>} : vector<2x256xbf16>, vector<256x512xbf16>, vector<2x512xf32> -> vector<2x512xf32>
    %c0_25 = arith.constant 0 : index
    %c0_26 = arith.constant 0 : index
    %47 = vector.load %arg9[%c0_25, %c0_26] : memref<1x512xf32, #tpu.memory_space<vmem>>, vector<1x512xf32>
    %48 = vector.broadcast %47 : vector<1x512xf32> to vector<2x512xf32>
    %49 = arith.addf %46, %48 : vector<2x512xf32>
    %cst_27 = arith.constant dense<0.000000e+00> : vector<512xf32>
    %50 = vector.multi_reduction <add>, %49, %cst_27 [0] : vector<2x512xf32> to vector<512xf32>
    %51 = vector.shape_cast %50 : vector<512xf32> to vector<1x512xf32>
    %cst_28 = arith.constant 2.000000e+00 : f32
    %52 = vector.broadcast %cst_28 : f32 to vector<1x512xf32>
    %53 = arith.divf %51, %52 : vector<1x512xf32>
    %54 = arith.mulf %49, %49 : vector<2x512xf32>
    %cst_29 = arith.constant dense<0.000000e+00> : vector<512xf32>
    %55 = vector.multi_reduction <add>, %54, %cst_29 [0] : vector<2x512xf32> to vector<512xf32>
    %56 = vector.shape_cast %55 : vector<512xf32> to vector<1x512xf32>
    %cst_30 = arith.constant 2.000000e+00 : f32
    %57 = vector.broadcast %cst_30 : f32 to vector<1x512xf32>
    %58 = arith.divf %56, %57 : vector<1x512xf32>
    %59 = arith.mulf %53, %53 : vector<1x512xf32>
    %60 = arith.subf %58, %59 : vector<1x512xf32>
    %cst_31 = arith.constant 0.000000e+00 : f32
    %61 = vector.broadcast %cst_31 : f32 to vector<1x512xf32>
    %62 = arith.maximumf %60, %61 : vector<1x512xf32>
    %c0_32 = arith.constant 0 : index
    %c0_33 = arith.constant 0 : index
    %63 = vector.load %arg10[%c0_32, %c0_33] : memref<1x512xf32, #tpu.memory_space<vmem>>, vector<1x512xf32>
    %cst_34 = arith.constant 8.000000e-01 : f32
    %64 = vector.broadcast %cst_34 : f32 to vector<1x512xf32>
    %65 = arith.addf %62, %64 : vector<1x512xf32>
    %66 = math.rsqrt %65 : vector<1x512xf32>
    %67 = arith.mulf %63, %66 : vector<1x512xf32>
    %c0_35 = arith.constant 0 : index
    %c0_36 = arith.constant 0 : index
    %68 = vector.load %arg11[%c0_35, %c0_36] : memref<1x512xf32, #tpu.memory_space<vmem>>, vector<1x512xf32>
    %69 = arith.mulf %53, %67 : vector<1x512xf32>
    %70 = arith.subf %68, %69 : vector<1x512xf32>
    %71 = vector.broadcast %67 : vector<1x512xf32> to vector<2x512xf32>
    %72 = arith.mulf %49, %71 : vector<2x512xf32>
    %73 = vector.broadcast %70 : vector<1x512xf32> to vector<2x512xf32>
    %74 = arith.addf %72, %73 : vector<2x512xf32>
    %cst_37 = arith.constant 2.000000e-01 : f32
    %75 = vector.broadcast %cst_37 : f32 to vector<2x512xf32>
    %76 = arith.mulf %75, %74 : vector<2x512xf32>
    %77 = arith.maximumf %74, %76 : vector<2x512xf32>
    %78 = arith.truncf %77 : vector<2x512xf32> to vector<2x512xbf16>
    %c0_38 = arith.constant 0 : index
    %c0_39 = arith.constant 0 : index
    %79 = vector.load %arg12[%c0_38, %c0_39] : memref<512x1024xbf16, #tpu.memory_space<vmem>>, vector<512x1024xbf16>
    %cst_40 = arith.constant dense<0.000000e+00> : vector<2x1024xf32>
    %80 = tpu.matmul %78, %79, %cst_40 {dimension_numbers = #tpu.dot_dimension_numbers<[1], [0], [0], [1], [0, 0, 1, 1], [], []>} : vector<2x512xbf16>, vector<512x1024xbf16>, vector<2x1024xf32> -> vector<2x1024xf32>
    %c0_41 = arith.constant 0 : index
    %c0_42 = arith.constant 0 : index
    %81 = vector.load %arg13[%c0_41, %c0_42] : memref<1x1024xf32, #tpu.memory_space<vmem>>, vector<1x1024xf32>
    %82 = vector.broadcast %81 : vector<1x1024xf32> to vector<2x1024xf32>
    %83 = arith.addf %80, %82 : vector<2x1024xf32>
    %cst_43 = arith.constant dense<0.000000e+00> : vector<1024xf32>
    %84 = vector.multi_reduction <add>, %83, %cst_43 [0] : vector<2x1024xf32> to vector<1024xf32>
    %85 = vector.shape_cast %84 : vector<1024xf32> to vector<1x1024xf32>
    %cst_44 = arith.constant 2.000000e+00 : f32
    %86 = vector.broadcast %cst_44 : f32 to vector<1x1024xf32>
    %87 = arith.divf %85, %86 : vector<1x1024xf32>
    %88 = arith.mulf %83, %83 : vector<2x1024xf32>
    %cst_45 = arith.constant dense<0.000000e+00> : vector<1024xf32>
    %89 = vector.multi_reduction <add>, %88, %cst_45 [0] : vector<2x1024xf32> to vector<1024xf32>
    %90 = vector.shape_cast %89 : vector<1024xf32> to vector<1x1024xf32>
    %cst_46 = arith.constant 2.000000e+00 : f32
    %91 = vector.broadcast %cst_46 : f32 to vector<1x1024xf32>
    %92 = arith.divf %90, %91 : vector<1x1024xf32>
    %93 = arith.mulf %87, %87 : vector<1x1024xf32>
    %94 = arith.subf %92, %93 : vector<1x1024xf32>
    %cst_47 = arith.constant 0.000000e+00 : f32
    %95 = vector.broadcast %cst_47 : f32 to vector<1x1024xf32>
    %96 = arith.maximumf %94, %95 : vector<1x1024xf32>
    %c0_48 = arith.constant 0 : index
    %c0_49 = arith.constant 0 : index
    %97 = vector.load %arg14[%c0_48, %c0_49] : memref<1x1024xf32, #tpu.memory_space<vmem>>, vector<1x1024xf32>
    %cst_50 = arith.constant 8.000000e-01 : f32
    %98 = vector.broadcast %cst_50 : f32 to vector<1x1024xf32>
    %99 = arith.addf %96, %98 : vector<1x1024xf32>
    %100 = math.rsqrt %99 : vector<1x1024xf32>
    %101 = arith.mulf %97, %100 : vector<1x1024xf32>
    %c0_51 = arith.constant 0 : index
    %c0_52 = arith.constant 0 : index
    %102 = vector.load %arg15[%c0_51, %c0_52] : memref<1x1024xf32, #tpu.memory_space<vmem>>, vector<1x1024xf32>
    %103 = arith.mulf %87, %101 : vector<1x1024xf32>
    %104 = arith.subf %102, %103 : vector<1x1024xf32>
    %105 = vector.broadcast %101 : vector<1x1024xf32> to vector<2x1024xf32>
    %106 = arith.mulf %83, %105 : vector<2x1024xf32>
    %107 = vector.broadcast %104 : vector<1x1024xf32> to vector<2x1024xf32>
    %108 = arith.addf %106, %107 : vector<2x1024xf32>
    %cst_53 = arith.constant 2.000000e-01 : f32
    %109 = vector.broadcast %cst_53 : f32 to vector<2x1024xf32>
    %110 = arith.mulf %109, %108 : vector<2x1024xf32>
    %111 = arith.maximumf %108, %110 : vector<2x1024xf32>
    %112 = arith.truncf %111 : vector<2x1024xf32> to vector<2x1024xbf16>
    %c0_54 = arith.constant 0 : index
    %c0_55 = arith.constant 0 : index
    %113 = vector.load %arg16[%c0_54, %c0_55] : memref<2x1024xbf16, #tpu.memory_space<vmem>>, vector<2x1024xbf16>
    tpu.vector_store %arg16[%c0_54, %c0_55], %112 {strides = array<i32>} : memref<2x1024xbf16, #tpu.memory_space<vmem>>, vector<2x1024xbf16>,
    return
  }
  func.func @transform_0(%arg0: i32) -> (i32, i32) {
    %c0_i32 = arith.constant 0 : i32
    %c0_i32_0 = arith.constant 0 : i32
    %c0_i32_1 = arith.constant 0 : i32
    return %c0_i32, %c0_i32_0 : i32, i32
  }
  func.func @transform_1(%arg0: i32) -> (i32, i32) {
    %c0_i32 = arith.constant 0 : i32
    %c0_i32_0 = arith.constant 0 : i32
    %c0_i32_1 = arith.constant 0 : i32
    return %c0_i32, %c0_i32_0 : i32, i32
  }
  func.func @transform_2(%arg0: i32) -> (i32, i32) {
    %c0_i32 = arith.constant 0 : i32
    %c0_i32_0 = arith.constant 0 : i32
    %c0_i32_1 = arith.constant 0 : i32
    return %c0_i32, %c0_i32_0 : i32, i32
  }
  func.func @transform_3(%arg0: i32) -> (i32, i32) {
    %c0_i32 = arith.constant 0 : i32
    %c0_i32_0 = arith.constant 0 : i32
    %c0_i32_1 = arith.constant 0 : i32
    return %c0_i32, %c0_i32_0 : i32, i32
  }
  func.func @transform_4(%arg0: i32) -> (i32, i32) {
    %c0_i32 = arith.constant 0 : i32
    %c0_i32_0 = arith.constant 0 : i32
    %c0_i32_1 = arith.constant 0 : i32
    return %c0_i32, %c0_i32_0 : i32, i32
  }
  func.func @transform_5(%arg0: i32) -> (i32, i32) {
    %c0_i32 = arith.constant 0 : i32
    %c0_i32_0 = arith.constant 0 : i32
    %c0_i32_1 = arith.constant 0 : i32
    return %c0_i32, %c0_i32_0 : i32, i32
  }
  func.func @transform_6(%arg0: i32) -> (i32, i32) {
    %c0_i32 = arith.constant 0 : i32
    %c0_i32_0 = arith.constant 0 : i32
    %c0_i32_1 = arith.constant 0 : i32
    return %c0_i32, %c0_i32_0 : i32, i32
  }
  func.func @transform_7(%arg0: i32) -> (i32, i32) {
    %c0_i32 = arith.constant 0 : i32
    %c0_i32_0 = arith.constant 0 : i32
    %c0_i32_1 = arith.constant 0 : i32
    return %c0_i32, %c0_i32_0 : i32, i32
  }
  func.func @transform_8(%arg0: i32) -> (i32, i32) {
    %c0_i32 = arith.constant 0 : i32
    %c0_i32_0 = arith.constant 0 : i32
    %c0_i32_1 = arith.constant 0 : i32
    return %c0_i32, %c0_i32_0 : i32, i32
  }
  func.func @transform_9(%arg0: i32) -> (i32, i32) {
    %c0_i32 = arith.constant 0 : i32
    %c0_i32_0 = arith.constant 0 : i32
    %c0_i32_1 = arith.constant 0 : i32
    return %c0_i32, %c0_i32_0 : i32, i32
  }
  func.func @transform_10(%arg0: i32) -> (i32, i32) {
    %c0_i32 = arith.constant 0 : i32
    %c0_i32_0 = arith.constant 0 : i32
    %c0_i32_1 = arith.constant 0 : i32
    return %c0_i32, %c0_i32_0 : i32, i32
  }
  func.func @transform_11(%arg0: i32) -> (i32, i32) {
    %c0_i32 = arith.constant 0 : i32
    %c0_i32_0 = arith.constant 0 : i32
    %c0_i32_1 = arith.constant 0 : i32
    return %c0_i32, %c0_i32_0 : i32, i32
  }
  func.func @transform_12(%arg0: i32) -> (i32, i32) {
    %c0_i32 = arith.constant 0 : i32
    %c0_i32_0 = arith.constant 0 : i32
    %c0_i32_1 = arith.constant 0 : i32
    return %c0_i32, %c0_i32_0 : i32, i32
  }
  func.func @transform_13(%arg0: i32) -> (i32, i32) {
    %c0_i32 = arith.constant 0 : i32
    %c0_i32_0 = arith.constant 0 : i32
    %c0_i32_1 = arith.constant 0 : i32
    return %c0_i32, %c0_i32_0 : i32, i32
  }
  func.func @transform_14(%arg0: i32) -> (i32, i32) {
    %c0_i32 = arith.constant 0 : i32
    %c0_i32_0 = arith.constant 0 : i32
    %c0_i32_1 = arith.constant 0 : i32
    return %c0_i32, %c0_i32_0 : i32, i32
  }
  func.func @transform_15(%arg0: i32) -> (i32, i32) {
    %c0_i32 = arith.constant 0 : i32
    %c0_i32_0 = arith.constant 0 : i32
    %c0_i32_1 = arith.constant 0 : i32
    return %c0_i32, %c0_i32_0 : i32, i32
  }
}

module attributes {stable_mosaic.version = 11 : i64} {
  func.func @head_kernel(%arg0: i32, %arg1: i32, %arg2: memref<128x1024xbf16, #tpu.memory_space<vmem>>, %arg3: memref<1024x512xbf16, #tpu.memory_space<vmem>>, %arg4: memref<1x512xf32, #tpu.memory_space<vmem>>, %arg5: memref<128x512xbf16, #tpu.memory_space<vmem>>) attributes {dimension_semantics = [#tpu.dimension_semantics<parallel>, #tpu.dimension_semantics<parallel>], iteration_bounds = array<i64: 1, 1>, scalar_prefetch = 0 : i64, scratch_operands = 0 : i64, tpu.core_type = #tpu.core_type<tc>, window_params = [{transform_indices = @transform_0, window_bounds = array<i64: 128, 1024>}, {transform_indices = @transform_1, window_bounds = array<i64: 1024, 512>}, {transform_indices = @transform_2, window_bounds = array<i64: 1, 512>}, {transform_indices = @transform_3, window_bounds = array<i64: 128, 512>}]} {
    %c0 = arith.constant 0 : index
    %c0_0 = arith.constant 0 : index
    %0 = vector.load %arg2[%c0, %c0_0] : memref<128x1024xbf16, #tpu.memory_space<vmem>>, vector<128x1024xbf16>
    %c0_1 = arith.constant 0 : index
    %c0_2 = arith.constant 0 : index
    %1 = vector.load %arg3[%c0_1, %c0_2] : memref<1024x512xbf16, #tpu.memory_space<vmem>>, vector<1024x512xbf16>
    %cst = arith.constant dense<0.000000e+00> : vector<128x512xf32>
    %2 = tpu.matmul %0, %1, %cst {dimension_numbers = #tpu.dot_dimension_numbers<[1], [0], [0], [1], [0, 0, 1, 1], [], []>} : vector<128x1024xbf16>, vector<1024x512xbf16>, vector<128x512xf32> -> vector<128x512xf32>
    %c0_3 = arith.constant 0 : index
    %c0_4 = arith.constant 0 : index
    %3 = vector.load %arg4[%c0_3, %c0_4] : memref<1x512xf32, #tpu.memory_space<vmem>>, vector<1x512xf32>
    %4 = vector.broadcast %3 : vector<1x512xf32> to vector<128x512xf32>
    %5 = arith.addf %2, %4 : vector<128x512xf32>
    %6 = math.tanh %5 : vector<128x512xf32>
    %7 = arith.truncf %6 : vector<128x512xf32> to vector<128x512xbf16>
    %c0_5 = arith.constant 0 : index
    %c0_6 = arith.constant 0 : index
    %8 = vector.load %arg5[%c0_5, %c0_6] : memref<128x512xbf16, #tpu.memory_space<vmem>>, vector<128x512xbf16>
    tpu.vector_store %arg5[%c0_5, %c0_6], %7 {strides = array<i32>} : memref<128x512xbf16, #tpu.memory_space<vmem>>, vector<128x512xbf16>,
    return
  }
  func.func @transform_0(%arg0: i32, %arg1: i32) -> (i32, i32) {
    %c0_i32 = arith.constant 0 : i32
    %c0_i32_0 = arith.constant 0 : i32
    return %arg1, %c0_i32 : i32, i32
  }
  func.func @transform_1(%arg0: i32, %arg1: i32) -> (i32, i32) {
    %c0_i32 = arith.constant 0 : i32
    %c0_i32_0 = arith.constant 0 : i32
    return %c0_i32, %arg0 : i32, i32
  }
  func.func @transform_2(%arg0: i32, %arg1: i32) -> (i32, i32) {
    %c0_i32 = arith.constant 0 : i32
    %c0_i32_0 = arith.constant 0 : i32
    return %c0_i32, %arg0 : i32, i32
  }
  func.func @transform_3(%arg0: i32, %arg1: i32) -> (i32, i32) {
    %c0_i32 = arith.constant 0 : i32
    return %arg1, %arg0 : i32, i32
  }
}

</mosaic_0001>

<llo_original>
// kernel: generator_forward.3
$region0: #{generator_forward.3}
  #allocation0 [shape = 'u32[]', space=smem, size = 0x4, offset = 0x4, fixed_abs, tag = 'smem constant byte address 0x4 - core index']
  #allocation1 [shape = 'u32[72,128]{1,0:T(1,128)}', space=vmem, size = 0x9000, scoped, tag = 'internal scratch']
  %s0 = inlined_call_operand.vmem [shape: bf16[128,1024], index: 0, kind: input, shape index: {}]
  %s1 = inlined_call_operand.hbm [shape: bf16[1024,512], index: 1, kind: input, shape index: {}]
  %s2 = inlined_call_operand.vmem [shape: f32[1,512], index: 2, kind: input, shape index: {}]
  %s3 = inlined_call_operand.vmem [shape: bf16[128,512], index: 3, kind: output, shape index: {}]
  %s4 = sld [smem:[#allocation0]]
  $region26: #{generator_forward.3} parent=0
    _
  %s6 = ssub.s32 1, %s4
  %s7 = scalar_select 0, %s6, %s4
  $region1: #{generator_forward.3} parent=0
    #allocation2 [shape = 'u8[1048576]{0}', space=vmem, size = 0x100000, scoped, tag = 'input window, operand 1, single buffered']
    #allocation3 [shape = 's32[1]{0}', space=sflag, size = 0x4, scoped, tag = 'scoped memory for generator_forward.3']
    %8 = vsyncpa [#allocation3], 0
    // Predicated region
    $region2: #{generator_forward.3} parent=1 // pred_check
      _
    $region3: #{generator_forward.3} parent=1 // pred_check_branch
      %10 = sbr.rel (0) target = $region5
    $region4: #{generator_forward.3} parent=1 // pred_region
      _
    $region5: #{generator_forward.3} parent=1 // pred_fallthru
      _
    // Predicated region
    $region6: #{generator_forward.3} parent=1 // pred_check
      _
    $region7: #{generator_forward.3} parent=1 // pred_check_branch
      %12 = sbr.rel (0) target = $region9
    $region8: #{generator_forward.3} parent=1 // pred_region
      %14 = vsyncadd [#allocation3], 0
      %s15 = sshll.u32 %s1, 4
      %s16 = int_to_ptr.hbm [resolvable:$true] %s15
      %s17 = sshll.u32 [#allocation2], 4
      %s18 = int_to_ptr.vmem [resolvable:$true] %s17
      %23 = dma.hbm_to_vmem [thread:$0]  %s16, 32768, %s18, [#allocation3], 256, 256, 16
    $region9: #{generator_forward.3} parent=1 // pred_fallthru
      _
    // Predicated region
    $region10: #{generator_forward.3} parent=1 // pred_check
      _
    $region11: #{generator_forward.3} parent=1 // pred_check_branch
      %25 = sbr.rel (0) target = $region13
    $region12: #{generator_forward.3} parent=1 // pred_region
      _
    $region13: #{generator_forward.3} parent=1 // pred_fallthru
      _
    // Predicated region
    $region14: #{generator_forward.3} parent=1 // pred_check
      _
    $region15: #{generator_forward.3} parent=1 // pred_check_branch
      %27 = sbr.rel (0) target = $region17
    $region16: #{generator_forward.3} parent=1 // pred_region
      %29 = dma.done [#allocation3], 32768
    $region17: #{generator_forward.3} parent=1 // pred_fallthru
      _
    %v30 = vld [vmem:[%s0] sm:$0xff]
    %v31 = vld [vmem:[%s0 + $0x8] sm:$0xff]
    %v32 = vld [vmem:[%s0 + $0x10] sm:$0xff]
    %v33 = vld [vmem:[%s0 + $0x18] sm:$0xff]
    %v34 = vld [vmem:[%s0 + $0x20] sm:$0xff]
    %v35 = vld [vmem:[%s0 + $0x28] sm:$0xff]
    %v36 = vld [vmem:[%s0 + $0x30] sm:$0xff]
    %v37 = vld [vmem:[%s0 + $0x38] sm:$0xff]
    %v38 = vld [vmem:[%s0 + $0x40] sm:$0xff]
    %v39 = vld [vmem:[%s0 + $0x48] sm:$0xff]
    %v40 = vld [vmem:[%s0 + $0x50] sm:$0xff]
    %v41 = vld [vmem:[%s0 + $0x58] sm:$0xff]
    %v42 = vld [vmem:[%s0 + $0x60] sm:$0xff]
    %v43 = vld [vmem:[%s0 + $0x68] sm:$0xff]
    %v44 = vld [vmem:[%s0 + $0x70] sm:$0xff]
    %v45 = vld [vmem:[%s0 + $0x78] sm:$0xff]
    %v46 = vld [vmem:[%s0 + $0x80] sm:$0xff]
    %v47 = vld [vmem:[%s0 + $0x88] sm:$0xff]
    %v48 = vld [vmem:[%s0 + $0x90] sm:$0xff]
    %v49 = vld [vmem:[%s0 + $0x98] sm:$0xff]
    %v50 = vld [vmem:[%s0 + $0xa0] sm:$0xff]
    %v51 = vld [vmem:[%s0 + $0xa8] sm:$0xff]
    %v52 = vld [vmem:[%s0 + $0xb0] sm:$0xff]
    %v53 = vld [vmem:[%s0 + $0xb8] sm:$0xff]
    %v54 = vld [vmem:[%s0 + $0xc0] sm:$0xff]
    %v55 = vld [vmem:[%s0 + $0xc8] sm:$0xff]
    %v56 = vld [vmem:[%s0 + $0xd0] sm:$0xff]
    %v57 = vld [vmem:[%s0 + $0xd8] sm:$0xff]
    %v58 = vld [vmem:[%s0 + $0xe0] sm:$0xff]
    %v59 = vld [vmem:[%s0 + $0xe8] sm:$0xff]
    %v60 = vld [vmem:[%s0 + $0xf0] sm:$0xff]
    %v61 = vld [vmem:[%s0 + $0xf8] sm:$0xff]
    %v62 = vld [vmem:[%s0 + $0x100] sm:$0xff]
    %v63 = vld [vmem:[%s0 + $0x108] sm:$0xff]
    %v64 = vld [vmem:[%s0 + $0x110] sm:$0xff]
    %v65 = vld [vmem:[%s0 + $0x118] sm:$0xff]
    %v66 = vld [vmem:[%s0 + $0x120] sm:$0xff]
    %v67 = vld [vmem:[%s0 + $0x128] sm:$0xff]
    %v68 = vld [vmem:[%s0 + $0x130] sm:$0xff]
    %v69 = vld [vmem:[%s0 + $0x138] sm:$0xff]
    %v70 = vld [vmem:[%s0 + $0x140] sm:$0xff]
    %v71 = vld [vmem:[%s0 + $0x148] sm:$0xff]
    %v72 = vld [vmem:[%s0 + $0x150] sm:$0xff]
    %v73 = vld [vmem:[%s0 + $0x158] sm:$0xff]
    %v74 = vld [vmem:[%s0 + $0x160] sm:$0xff]
    %v75 = vld [vmem:[%s0 + $0x168] sm:$0xff]
    %v76 = vld [vmem:[%s0 + $0x170] sm:$0xff]
    %v77 = vld [vmem:[%s0 + $0x178] sm:$0xff]
    %v78 = vld [vmem:[%s0 + $0x180] sm:$0xff]
    %v79 = vld [vmem:[%s0 + $0x188] sm:$0xff]
    %v80 = vld [vmem:[%s0 + $0x190] sm:$0xff]
    %v81 = vld [vmem:[%s0 + $0x198] sm:$0xff]
    %v82 = vld [vmem:[%s0 + $0x1a0] sm:$0xff]
    %v83 = vld [vmem:[%s0 + $0x1a8] sm:$0xff]
    %v84 = vld [vmem:[%s0 + $0x1b0] sm:$0xff]
    %v85 = vld [vmem:[%s0 + $0x1b8] sm:$0xff]
    %v86 = vld [vmem:[%s0 + $0x1c0] sm:$0xff]
    %v87 = vld [vmem:[%s0 + $0x1c8] sm:$0xff]
    %v88 = vld [vmem:[%s0 + $0x1d0] sm:$0xff]
    %v89 = vld [vmem:[%s0 + $0x1d8] sm:$0xff]
    %v90 = vld [vmem:[%s0 + $0x1e0] sm:$0xff]
    %v91 = vld [vmem:[%s0 + $0x1e8] sm:$0xff]
    %v92 = vld [vmem:[%s0 + $0x1f0] sm:$0xff]
    %v93 = vld [vmem:[%s0 + $0x1f8] sm:$0xff]
    %v94 = vld [vmem:[#allocation2] sm:$0xff]
    %v95 = vld [vmem:[#allocation2 + $0x8] sm:$0xff]
    %v96 = vld [vmem:[#allocation2 + $0x10] sm:$0xff]
    %v97 = vld [vmem:[#allocation2 + $0x18] sm:$0xff]
    %v98 = vld [vmem:[#allocation2 + $0x20] sm:$0xff]
    %v99 = vld [vmem:[#allocation2 + $0x28] sm:$0xff]
    %v100 = vld [vmem:[#allocation2 + $0x30] sm:$0xff]
    %v101 = vld [vmem:[#allocation2 + $0x38] sm:$0xff]
    %v102 = vld [vmem:[#allocation2 + $0x40] sm:$0xff]
    %v103 = vld [vmem:[#allocation2 + $0x48] sm:$0xff]
    %v104 = vld [vmem:[#allocation2 + $0x50] sm:$0xff]
    %v105 = vld [vmem:[#allocation2 + $0x58] sm:$0xff]
    %v106 = vld [vmem:[#allocation2 + $0x60] sm:$0xff]
    %v107 = vld [vmem:[#allocation2 + $0x68] sm:$0xff]
    %v108 = vld [vmem:[#allocation2 + $0x70] sm:$0xff]
    %v109 = vld [vmem:[#allocation2 + $0x78] sm:$0xff]
    %v110 = vld [vmem:[#allocation2 + $0x80] sm:$0xff]
    %v111 = vld [vmem:[#allocation2 + $0x88] sm:$0xff]
    %v112 = vld [vmem:[#allocation2 + $0x90] sm:$0xff]
    %v113 = vld [vmem:[#allocation2 + $0x98] sm:$0xff]
    %v114 = vld [vmem:[#allocation2 + $0xa0] sm:$0xff]
    %v115 = vld [vmem:[#allocation2 + $0xa8] sm:$0xff]
    %v116 = vld [vmem:[#allocation2 + $0xb0] sm:$0xff]
    %v117 = vld [vmem:[#allocation2 + $0xb8] sm:$0xff]
    %v118 = vld [vmem:[#allocation2 + $0xc0] sm:$0xff]
    %v119 = vld [vmem:[#allocation2 + $0xc8] sm:$0xff]
    %v120 = vld [vmem:[#allocation2 + $0xd0] sm:$0xff]
    %v121 = vld [vmem:[#allocation2 + $0xd8] sm:$0xff]
    %v122 = vld [vmem:[#allocation2 + $0xe0] sm:$0xff]
    %v123 = vld [vmem:[#allocation2 + $0xe8] sm:$0xff]
    %v124 = vld [vmem:[#allocation2 + $0xf0] sm:$0xff]
    %v125 = vld [vmem:[#allocation2 + $0xf8] sm:$0xff]
    %v126 = vld [vmem:[#allocation2 + $0x100] sm:$0xff]
    %v127 = vld [vmem:[#allocation2 + $0x108] sm:$0xff]
    %v128 = vld [vmem:[#allocation2 + $0x110] sm:$0xff]
    %v129 = vld [vmem:[#allocation2 + $0x118] sm:$0xff]
    %v130 = vld [vmem:[#allocation2 + $0x120] sm:$0xff]
    %v131 = vld [vmem:[#allocation2 + $0x128] sm:$0xff]
    %v132 = vld [vmem:[#allocation2 + $0x130] sm:$0xff]
    %v133 = vld [vmem:[#allocation2 + $0x138] sm:$0xff]
    %v134 = vld [vmem:[#allocation2 + $0x140] sm:$0xff]
    %v135 = vld [vmem:[#allocation2 + $0x148] sm:$0xff]
    %v136 = vld [vmem:[#allocation2 + $0x150] sm:$0xff]
    %v137 = vld [vmem:[#allocation2 + $0x158] sm:$0xff]
    %v138 = vld [vmem:[#allocation2 + $0x160] sm:$0xff]
    %v139 = vld [vmem:[#allocation2 + $0x168] sm:$0xff]
    %v140 = vld [vmem:[#allocation2 + $0x170] sm:$0xff]
    %v141 = vld [vmem:[#allocation2 + $0x178] sm:$0xff]
    %v142 = vld [vmem:[#allocation2 + $0x180] sm:$0xff]
    %v143 = vld [vmem:[#allocation2 + $0x188] sm:$0xff]
    %v144 = vld [vmem:[#allocation2 + $0x190] sm:$0xff]
    %v145 = vld [vmem:[#allocation2 + $0x198] sm:$0xff]
    %v146 = vld [vmem:[#allocation2 + $0x1a0] sm:$0xff]
    %v147 = vld [vmem:[#allocation2 + $0x1a8] sm:$0xff]
    %v148 = vld [vmem:[#allocation2 + $0x1b0] sm:$0xff]
    %v149 = vld [vmem:[#allocation2 + $0x1b8] sm:$0xff]
    %v150 = vld [vmem:[#allocation2 + $0x1c0] sm:$0xff]
    %v151 = vld [vmem:[#allocation2 + $0x1c8] sm:$0xff]
    %v152 = vld [vmem:[#allocation2 + $0x1d0] sm:$0xff]
    %v153 = vld [vmem:[#allocation2 + $0x1d8] sm:$0xff]
    %v154 = vld [vmem:[#allocation2 + $0x1e0] sm:$0xff]
    %v155 = vld [vmem:[#allocation2 + $0x1e8] sm:$0xff]
    %v156 = vld [vmem:[#allocation2 + $0x1f0] sm:$0xff]
    %v157 = vld [vmem:[#allocation2 + $0x1f8] sm:$0xff]
    %v158 = vld [vmem:[#allocation2 + $0x200] sm:$0xff]
    %v159 = vld [vmem:[#allocation2 + $0x208] sm:$0xff]
    %v160 = vld [vmem:[#allocation2 + $0x210] sm:$0xff]
    %v161 = vld [vmem:[#allocation2 + $0x218] sm:$0xff]
    %v162 = vld [vmem:[#allocation2 + $0x220] sm:$0xff]
    %v163 = vld [vmem:[#allocation2 + $0x228] sm:$0xff]
    %v164 = vld [vmem:[#allocation2 + $0x230] sm:$0xff]
    %v165 = vld [vmem:[#allocation2 + $0x238] sm:$0xff]
    %v166 = vld [vmem:[#allocation2 + $0x240] sm:$0xff]
    %v167 = vld [vmem:[#allocation2 + $0x248] sm:$0xff]
    %v168 = vld [vmem:[#allocation2 + $0x250] sm:$0xff]
    %v169 = vld [vmem:[#allocation2 + $0x258] sm:$0xff]
    %v170 = vld [vmem:[#allocation2 + $0x260] sm:$0xff]
    %v171 = vld [vmem:[#allocation2 + $0x268] sm:$0xff]
    %v172 = vld [vmem:[#allocation2 + $0x270] sm:$0xff]
    %v173 = vld [vmem:[#allocation2 + $0x278] sm:$0xff]
    %v174 = vld [vmem:[#allocation2 + $0x280] sm:$0xff]
    %v175 = vld [vmem:[#allocation2 + $0x288] sm:$0xff]
    %v176 = vld [vmem:[#allocation2 + $0x290] sm:$0xff]
    %v177 = vld [vmem:[#allocation2 + $0x298] sm:$0xff]
    %v178 = vld [vmem:[#allocation2 + $0x2a0] sm:$0xff]
    %v179 = vld [vmem:[#allocation2 + $0x2a8] sm:$0xff]
    %v180 = vld [vmem:[#allocation2 + $0x2b0] sm:$0xff]
    %v181 = vld [vmem:[#allocation2 + $0x2b8] sm:$0xff]
    %v182 = vld [vmem:[#allocation2 + $0x2c0] sm:$0xff]
    %v183 = vld [vmem:[#allocation2 + $0x2c8] sm:$0xff]
    %v184 = vld [vmem:[#allocation2 + $0x2d0] sm:$0xff]
    %v185 = vld [vmem:[#allocation2 + $0x2d8] sm:$0xff]
    %v186 = vld [vmem:[#allocation2 + $0x2e0] sm:$0xff]
    %v187 = vld [vmem:[#allocation2 + $0x2e8] sm:$0xff]
    %v188 = vld [vmem:[#allocation2 + $0x2f0] sm:$0xff]
    %v189 = vld [vmem:[#allocation2 + $0x2f8] sm:$0xff]
    %v190 = vld [vmem:[#allocation2 + $0x300] sm:$0xff]
    %v191 = vld [vmem:[#allocation2 + $0x308] sm:$0xff]
    %v192 = vld [vmem:[#allocation2 + $0x310] sm:$0xff]
    %v193 = vld [vmem:[#allocation2 + $0x318] sm:$0xff]
    %v194 = vld [vmem:[#allocation2 + $0x320] sm:$0xff]
    %v195 = vld [vmem:[#allocation2 + $0x328] sm:$0xff]
    %v196 = vld [vmem:[#allocation2 + $0x330] sm:$0xff]
    %v197 = vld [vmem:[#allocation2 + $0x338] sm:$0xff]
    %v198 = vld [vmem:[#allocation2 + $0x340] sm:$0xff]
    %v199 = vld [vmem:[#allocation2 + $0x348] sm:$0xff]
    %v200 = vld [vmem:[#allocation2 + $0x350] sm:$0xff]
    %v201 = vld [vmem:[#allocation2 + $0x358] sm:$0xff]
    %v202 = vld [vmem:[#allocation2 + $0x360] sm:$0xff]
    %v203 = vld [vmem:[#allocation2 + $0x368] sm:$0xff]
    %v204 = vld [vmem:[#allocation2 + $0x370] sm:$0xff]
    %v205 = vld [vmem:[#allocation2 + $0x378] sm:$0xff]
    %v206 = vld [vmem:[#allocation2 + $0x380] sm:$0xff]
    %v207 = vld [vmem:[#allocation2 + $0x388] sm:$0xff]
    %v208 = vld [vmem:[#allocation2 + $0x390] sm:$0xff]
    %v209 = vld [vmem:[#allocation2 + $0x398] sm:$0xff]
    %v210 = vld [vmem:[#allocation2 + $0x3a0] sm:$0xff]
    %v211 = vld [vmem:[#allocation2 + $0x3a8] sm:$0xff]
    %v212 = vld [vmem:[#allocation2 + $0x3b0] sm:$0xff]
    %v213 = vld [vmem:[#allocation2 + $0x3b8] sm:$0xff]
    %v214 = vld [vmem:[#allocation2 + $0x3c0] sm:$0xff]
    %v215 = vld [vmem:[#allocation2 + $0x3c8] sm:$0xff]
    %v216 = vld [vmem:[#allocation2 + $0x3d0] sm:$0xff]
    %v217 = vld [vmem:[#allocation2 + $0x3d8] sm:$0xff]
    %v218 = vld [vmem:[#allocation2 + $0x3e0] sm:$0xff]
    %v219 = vld [vmem:[#allocation2 + $0x3e8] sm:$0xff]
    %v220 = vld [vmem:[#allocation2 + $0x3f0] sm:$0xff]
    %v221 = vld [vmem:[#allocation2 + $0x3f8] sm:$0xff]
    %v222 = vld [vmem:[#allocation2 + $0x400] sm:$0xff]
    %v223 = vld [vmem:[#allocation2 + $0x408] sm:$0xff]
    %v224 = vld [vmem:[#allocation2 + $0x410] sm:$0xff]
    %v225 = vld [vmem:[#allocation2 + $0x418] sm:$0xff]
    %v226 = vld [vmem:[#allocation2 + $0x420] sm:$0xff]
    %v227 = vld [vmem:[#allocation2 + $0x428] sm:$0xff]
    %v228 = vld [vmem:[#allocation2 + $0x430] sm:$0xff]
    %v229 = vld [vmem:[#allocation2 + $0x438] sm:$0xff]
    %v230 = vld [vmem:[#allocation2 + $0x440] sm:$0xff]
    %v231 = vld [vmem:[#allocation2 + $0x448] sm:$0xff]
    %v232 = vld [vmem:[#allocation2 + $0x450] sm:$0xff]
    %v233 = vld [vmem:[#allocation2 + $0x458] sm:$0xff]
    %v234 = vld [vmem:[#allocation2 + $0x460] sm:$0xff]
    %v235 = vld [vmem:[#allocation2 + $0x468] sm:$0xff]
    %v236 = vld [vmem:[#allocation2 + $0x470] sm:$0xff]
    %v237 = vld [vmem:[#allocation2 + $0x478] sm:$0xff]
    %v238 = vld [vmem:[#allocation2 + $0x480] sm:$0xff]
    %v239 = vld [vmem:[#allocation2 + $0x488] sm:$0xff]
    %v240 = vld [vmem:[#allocation2 + $0x490] sm:$0xff]
    %v241 = vld [vmem:[#allocation2 + $0x498] sm:$0xff]
    %v242 = vld [vmem:[#allocation2 + $0x4a0] sm:$0xff]
    %v243 = vld [vmem:[#allocation2 + $0x4a8] sm:$0xff]
    %v244 = vld [vmem:[#allocation2 + $0x4b0] sm:$0xff]
    %v245 = vld [vmem:[#allocation2 + $0x4b8] sm:$0xff]
    %v246 = vld [vmem:[#allocation2 + $0x4c0] sm:$0xff]
    %v247 = vld [vmem:[#allocation2 + $0x4c8] sm:$0xff]
    %v248 = vld [vmem:[#allocation2 + $0x4d0] sm:$0xff]
    %v249 = vld [vmem:[#allocation2 + $0x4d8] sm:$0xff]
    %v250 = vld [vmem:[#allocation2 + $0x4e0] sm:$0xff]
    %v251 = vld [vmem:[#allocation2 + $0x4e8] sm:$0xff]
    %v252 = vld [vmem:[#allocation2 + $0x4f0] sm:$0xff]
    %v253 = vld [vmem:[#allocation2 + $0x4f8] sm:$0xff]
    %v254 = vld [vmem:[#allocation2 + $0x500] sm:$0xff]
    %v255 = vld [vmem:[#allocation2 + $0x508] sm:$0xff]
    %v256 = vld [vmem:[#allocation2 + $0x510] sm:$0xff]
    %v257 = vld [vmem:[#allocation2 + $0x518] sm:$0xff]
    %v258 = vld [vmem:[#allocation2 + $0x520] sm:$0xff]
    %v259 = vld [vmem:[#allocation2 + $0x528] sm:$0xff]
    %v260 = vld [vmem:[#allocation2 + $0x530] sm:$0xff]
    %v261 = vld [vmem:[#allocation2 + $0x538] sm:$0xff]
    %v262 = vld [vmem:[#allocation2 + $0x540] sm:$0xff]
    %v263 = vld [vmem:[#allocation2 + $0x548] sm:$0xff]
    %v264 = vld [vmem:[#allocation2 + $0x550] sm:$0xff]
    %v265 = vld [vmem:[#allocation2 + $0x558] sm:$0xff]
    %v266 = vld [vmem:[#allocation2 + $0x560] sm:$0xff]
    %v267 = vld [vmem:[#allocation2 + $0x568] sm:$0xff]
    %v268 = vld [vmem:[#allocation2 + $0x570] sm:$0xff]
    %v269 = vld [vmem:[#allocation2 + $0x578] sm:$0xff]
    %v270 = vld [vmem:[#allocation2 + $0x580] sm:$0xff]
    %v271 = vld [vmem:[#allocation2 + $0x588] sm:$0xff]
    %v272 = vld [vmem:[#allocation2 + $0x590] sm:$0xff]
    %v273 = vld [vmem:[#allocation2 + $0x598] sm:$0xff]
    %v274 = vld [vmem:[#allocation2 + $0x5a0] sm:$0xff]
    %v275 = vld [vmem:[#allocation2 + $0x5a8] sm:$0xff]
    %v276 = vld [vmem:[#allocation2 + $0x5b0] sm:$0xff]
    %v277 = vld [vmem:[#allocation2 + $0x5b8] sm:$0xff]
    %v278 = vld [vmem:[#allocation2 + $0x5c0] sm:$0xff]
    %v279 = vld [vmem:[#allocation2 + $0x5c8] sm:$0xff]
    %v280 = vld [vmem:[#allocation2 + $0x5d0] sm:$0xff]
    %v281 = vld [vmem:[#allocation2 + $0x5d8] sm:$0xff]
    %v282 = vld [vmem:[#allocation2 + $0x5e0] sm:$0xff]
    %v283 = vld [vmem:[#allocation2 + $0x5e8] sm:$0xff]
    %v284 = vld [vmem:[#allocation2 + $0x5f0] sm:$0xff]
    %v285 = vld [vmem:[#allocation2 + $0x5f8] sm:$0xff]
    %v286 = vld [vmem:[#allocation2 + $0x600] sm:$0xff]
    %v287 = vld [vmem:[#allocation2 + $0x608] sm:$0xff]
    %v288 = vld [vmem:[#allocation2 + $0x610] sm:$0xff]
    %v289 = vld [vmem:[#allocation2 + $0x618] sm:$0xff]
    %v290 = vld [vmem:[#allocation2 + $0x620] sm:$0xff]
    %v291 = vld [vmem:[#allocation2 + $0x628] sm:$0xff]
    %v292 = vld [vmem:[#allocation2 + $0x630] sm:$0xff]
    %v293 = vld [vmem:[#allocation2 + $0x638] sm:$0xff]
    %v294 = vld [vmem:[#allocation2 + $0x640] sm:$0xff]
    %v295 = vld [vmem:[#allocation2 + $0x648] sm:$0xff]
    %v296 = vld [vmem:[#allocation2 + $0x650] sm:$0xff]
    %v297 = vld [vmem:[#allocation2 + $0x658] sm:$0xff]
    %v298 = vld [vmem:[#allocation2 + $0x660] sm:$0xff]
    %v299 = vld [vmem:[#allocation2 + $0x668] sm:$0xff]
    %v300 = vld [vmem:[#allocation2 + $0x670] sm:$0xff]
    %v301 = vld [vmem:[#allocation2 + $0x678] sm:$0xff]
    %v302 = vld [vmem:[#allocation2 + $0x680] sm:$0xff]
    %v303 = vld [vmem:[#allocation2 + $0x688] sm:$0xff]
    %v304 = vld [vmem:[#allocation2 + $0x690] sm:$0xff]
    %v305 = vld [vmem:[#allocation2 + $0x698] sm:$0xff]
    %v306 = vld [vmem:[#allocation2 + $0x6a0] sm:$0xff]
    %v307 = vld [vmem:[#allocation2 + $0x6a8] sm:$0xff]
    %v308 = vld [vmem:[#allocation2 + $0x6b0] sm:$0xff]
    %v309 = vld [vmem:[#allocation2 + $0x6b8] sm:$0xff]
    %v310 = vld [vmem:[#allocation2 + $0x6c0] sm:$0xff]
    %v311 = vld [vmem:[#allocation2 + $0x6c8] sm:$0xff]
    %v312 = vld [vmem:[#allocation2 + $0x6d0] sm:$0xff]
    %v313 = vld [vmem:[#allocation2 + $0x6d8] sm:$0xff]
    %v314 = vld [vmem:[#allocation2 + $0x6e0] sm:$0xff]
    %v315 = vld [vmem:[#allocation2 + $0x6e8] sm:$0xff]
    %v316 = vld [vmem:[#allocation2 + $0x6f0] sm:$0xff]
    %v317 = vld [vmem:[#allocation2 + $0x6f8] sm:$0xff]
    %v318 = vld [vmem:[#allocation2 + $0x700] sm:$0xff]
    %v319 = vld [vmem:[#allocation2 + $0x708] sm:$0xff]
    %v320 = vld [vmem:[#allocation2 + $0x710] sm:$0xff]
    %v321 = vld [vmem:[#allocation2 + $0x718] sm:$0xff]
    %v322 = vld [vmem:[#allocation2 + $0x720] sm:$0xff]
    %v323 = vld [vmem:[#allocation2 + $0x728] sm:$0xff]
    %v324 = vld [vmem:[#allocation2 + $0x730] sm:$0xff]
    %v325 = vld [vmem:[#allocation2 + $0x738] sm:$0xff]
    %v326 = vld [vmem:[#allocation2 + $0x740] sm:$0xff]
    %v327 = vld [vmem:[#allocation2 + $0x748] sm:$0xff]
    %v328 = vld [vmem:[#allocation2 + $0x750] sm:$0xff]
    %v329 = vld [vmem:[#allocation2 + $0x758] sm:$0xff]
    %v330 = vld [vmem:[#allocation2 + $0x760] sm:$0xff]
    %v331 = vld [vmem:[#allocation2 + $0x768] sm:$0xff]
    %v332 = vld [vmem:[#allocation2 + $0x770] sm:$0xff]
    %v333 = vld [vmem:[#allocation2 + $0x778] sm:$0xff]
    %v334 = vld [vmem:[#allocation2 + $0x780] sm:$0xff]
    %v335 = vld [vmem:[#allocation2 + $0x788] sm:$0xff]
    %v336 = vld [vmem:[#allocation2 + $0x790] sm:$0xff]
    %v337 = vld [vmem:[#allocation2 + $0x798] sm:$0xff]
    %v338 = vld [vmem:[#allocation2 + $0x7a0] sm:$0xff]
    %v339 = vld [vmem:[#allocation2 + $0x7a8] sm:$0xff]
    %v340 = vld [vmem:[#allocation2 + $0x7b0] sm:$0xff]
    %v341 = vld [vmem:[#allocation2 + $0x7b8] sm:$0xff]
    %v342 = vld [vmem:[#allocation2 + $0x7c0] sm:$0xff]
    %v343 = vld [vmem:[#allocation2 + $0x7c8] sm:$0xff]
    %v344 = vld [vmem:[#allocation2 + $0x7d0] sm:$0xff]
    %v345 = vld [vmem:[#allocation2 + $0x7d8] sm:$0xff]
    %v346 = vld [vmem:[#allocation2 + $0x7e0] sm:$0xff]
    %v347 = vld [vmem:[#allocation2 + $0x7e8] sm:$0xff]
    %v348 = vld [vmem:[#allocation2 + $0x7f0] sm:$0xff]
    %v349 = vld [vmem:[#allocation2 + $0x7f8] sm:$0xff]
    %v350 = vld [vmem:[%s2] sm:$0xf]
    %v352 = vperm.slane %v350, 0
    %v353 = vperm.slane %v350, 1
    %v354 = vperm.slane %v350, 2
    %v355 = vperm.slane %v350, 3
    %v424 = vunpack.c.l.b16 %v30
    %v425 = vunpack.c.h.b16 %v30
    %v426 = vunpack.c.l.b16 %v31
    %v427 = vunpack.c.h.b16 %v31
    %v428 = vunpack.c.l.b16 %v32
    %v429 = vunpack.c.h.b16 %v32
    %v430 = vunpack.c.l.b16 %v33
    %v431 = vunpack.c.h.b16 %v33
    %v432 = vunpack.c.l.b16 %v34
    %v433 = vunpack.c.h.b16 %v34
    %v434 = vunpack.c.l.b16 %v35
    %v435 = vunpack.c.h.b16 %v35
    %v436 = vunpack.c.l.b16 %v36
    %v437 = vunpack.c.h.b16 %v36
    %v438 = vunpack.c.l.b16 %v37
    %v439 = vunpack.c.h.b16 %v37
    %v440 = vunpack.c.l.b16 %v38
    %v441 = vunpack.c.h.b16 %v38
    %v442 = vunpack.c.l.b16 %v39
    %v443 = vunpack.c.h.b16 %v39
    %v444 = vunpack.c.l.b16 %v40
    %v445 = vunpack.c.h.b16 %v40
    %v446 = vunpack.c.l.b16 %v41
    %v447 = vunpack.c.h.b16 %v41
    %v448 = vunpack.c.l.b16 %v42
    %v449 = vunpack.c.h.b16 %v42
    %v450 = vunpack.c.l.b16 %v43
    %v451 = vunpack.c.h.b16 %v43
    %v452 = vunpack.c.l.b16 %v44
    %v453 = vunpack.c.h.b16 %v44
    %v454 = vunpack.c.l.b16 %v45
    %v455 = vunpack.c.h.b16 %v45
    %v456 = vunpack.c.l.b16 %v46
    %v457 = vunpack.c.h.b16 %v46
    %v458 = vunpack.c.l.b16 %v47
    %v459 = vunpack.c.h.b16 %v47
    %v460 = vunpack.c.l.b16 %v48
    %v461 = vunpack.c.h.b16 %v48
    %v462 = vunpack.c.l.b16 %v49
    %v463 = vunpack.c.h.b16 %v49
    %v464 = vunpack.c.l.b16 %v50
    %v465 = vunpack.c.h.b16 %v50
    %v466 = vunpack.c.l.b16 %v51
    %v467 = vunpack.c.h.b16 %v51
    %v468 = vunpack.c.l.b16 %v52
    %v469 = vunpack.c.h.b16 %v52
    %v470 = vunpack.c.l.b16 %v53
    %v471 = vunpack.c.h.b16 %v53
    %v472 = vunpack.c.l.b16 %v54
    %v473 = vunpack.c.h.b16 %v54
    %v474 = vunpack.c.l.b16 %v55
    %v475 = vunpack.c.h.b16 %v55
    %v476 = vunpack.c.l.b16 %v56
    %v477 = vunpack.c.h.b16 %v56
    %v478 = vunpack.c.l.b16 %v57
    %v479 = vunpack.c.h.b16 %v57
    %v480 = vunpack.c.l.b16 %v58
    %v481 = vunpack.c.h.b16 %v58
    %v482 = vunpack.c.l.b16 %v59
    %v483 = vunpack.c.h.b16 %v59
    %v484 = vunpack.c.l.b16 %v60
    %v485 = vunpack.c.h.b16 %v60
    %v486 = vunpack.c.l.b16 %v61
    %v487 = vunpack.c.h.b16 %v61
    %v488 = vunpack.c.l.b16 %v62
    %v489 = vunpack.c.h.b16 %v62
    %v490 = vunpack.c.l.b16 %v63
    %v491 = vunpack.c.h.b16 %v63
    %v492 = vunpack.c.l.b16 %v64
    %v493 = vunpack.c.h.b16 %v64
    %v494 = vunpack.c.l.b16 %v65
    %v495 = vunpack.c.h.b16 %v65
    %v496 = vunpack.c.l.b16 %v66
    %v497 = vunpack.c.h.b16 %v66
    %v498 = vunpack.c.l.b16 %v67
    %v499 = vunpack.c.h.b16 %v67
    %v500 = vunpack.c.l.b16 %v68
    %v501 = vunpack.c.h.b16 %v68
    %v502 = vunpack.c.l.b16 %v69
    %v503 = vunpack.c.h.b16 %v69
    %v504 = vunpack.c.l.b16 %v70
    %v505 = vunpack.c.h.b16 %v70
    %v506 = vunpack.c.l.b16 %v71
    %v507 = vunpack.c.h.b16 %v71
    %v508 = vunpack.c.l.b16 %v72
    %v509 = vunpack.c.h.b16 %v72
    %v510 = vunpack.c.l.b16 %v73
    %v511 = vunpack.c.h.b16 %v73
    %v512 = vunpack.c.l.b16 %v74
    %v513 = vunpack.c.h.b16 %v74
    %v514 = vunpack.c.l.b16 %v75
    %v515 = vunpack.c.h.b16 %v75
    %v516 = vunpack.c.l.b16 %v76
    %v517 = vunpack.c.h.b16 %v76
    %v518 = vunpack.c.l.b16 %v77
    %v519 = vunpack.c.h.b16 %v77
    %v520 = vunpack.c.l.b16 %v78
    %v521 = vunpack.c.h.b16 %v78
    %v522 = vunpack.c.l.b16 %v79
    %v523 = vunpack.c.h.b16 %v79
    %v524 = vunpack.c.l.b16 %v80
    %v525 = vunpack.c.h.b16 %v80
    %v526 = vunpack.c.l.b16 %v81
    %v527 = vunpack.c.h.b16 %v81
    %v528 = vunpack.c.l.b16 %v82
    %v529 = vunpack.c.h.b16 %v82
    %v530 = vunpack.c.l.b16 %v83
    %v531 = vunpack.c.h.b16 %v83
    %v532 = vunpack.c.l.b16 %v84
    %v533 = vunpack.c.h.b16 %v84
    %v534 = vunpack.c.l.b16 %v85
    %v535 = vunpack.c.h.b16 %v85
    %v536 = vunpack.c.l.b16 %v86
    %v537 = vunpack.c.h.b16 %v86
    %v538 = vunpack.c.l.b16 %v87
    %v539 = vunpack.c.h.b16 %v87
    %v540 = vunpack.c.l.b16 %v88
    %v541 = vunpack.c.h.b16 %v88
    %v542 = vunpack.c.l.b16 %v89
    %v543 = vunpack.c.h.b16 %v89
    %v544 = vunpack.c.l.b16 %v90
    %v545 = vunpack.c.h.b16 %v90
    %v546 = vunpack.c.l.b16 %v91
    %v547 = vunpack.c.h.b16 %v91
    %v548 = vunpack.c.l.b16 %v92
    %v549 = vunpack.c.h.b16 %v92
    %v550 = vunpack.c.l.b16 %v93
    %v551 = vunpack.c.h.b16 %v93
    %v552 = vpack.c.b16 %v432, %v424
    %v553 = vpack.c.b16 %v433, %v425
    %v554 = vpack.c.b16 %v434, %v426
    %v555 = vpack.c.b16 %v435, %v427
    %v556 = vpack.c.b16 %v436, %v428
    %v557 = vpack.c.b16 %v437, %v429
    %v558 = vpack.c.b16 %v438, %v430
    %v559 = vpack.c.b16 %v439, %v431
    %v560 = vpack.c.b16 %v448, %v440
    %v561 = vpack.c.b16 %v449, %v441
    %v562 = vpack.c.b16 %v450, %v442
    %v563 = vpack.c.b16 %v451, %v443
    %v564 = vpack.c.b16 %v452, %v444
    %v565 = vpack.c.b16 %v453, %v445
    %v566 = vpack.c.b16 %v454, %v446
    %v567 = vpack.c.b16 %v455, %v447
    %v568 = vpack.c.b16 %v464, %v456
    %v569 = vpack.c.b16 %v465, %v457
    %v570 = vpack.c.b16 %v466, %v458
    %v571 = vpack.c.b16 %v467, %v459
    %v572 = vpack.c.b16 %v468, %v460
    %v573 = vpack.c.b16 %v469, %v461
    %v574 = vpack.c.b16 %v470, %v462
    %v575 = vpack.c.b16 %v471, %v463
    %v576 = vpack.c.b16 %v480, %v472
    %v577 = vpack.c.b16 %v481, %v473
    %v578 = vpack.c.b16 %v482, %v474
    %v579 = vpack.c.b16 %v483, %v475
    %v580 = vpack.c.b16 %v484, %v476
    %v581 = vpack.c.b16 %v485, %v477
    %v582 = vpack.c.b16 %v486, %v478
    %v583 = vpack.c.b16 %v487, %v479
    %v584 = vpack.c.b16 %v496, %v488
    %v585 = vpack.c.b16 %v497, %v489
    %v586 = vpack.c.b16 %v498, %v490
    %v587 = vpack.c.b16 %v499, %v491
    %v588 = vpack.c.b16 %v500, %v492
    %v589 = vpack.c.b16 %v501, %v493
    %v590 = vpack.c.b16 %v502, %v494
    %v591 = vpack.c.b16 %v503, %v495
    %v592 = vpack.c.b16 %v512, %v504
    %v593 = vpack.c.b16 %v513, %v505
    %v594 = vpack.c.b16 %v514, %v506
    %v595 = vpack.c.b16 %v515, %v507
    %v596 = vpack.c.b16 %v516, %v508
    %v597 = vpack.c.b16 %v517, %v509
    %v598 = vpack.c.b16 %v518, %v510
    %v599 = vpack.c.b16 %v519, %v511
    %v600 = vpack.c.b16 %v528, %v520
    %v601 = vpack.c.b16 %v529, %v521
    %v602 = vpack.c.b16 %v530, %v522
    %v603 = vpack.c.b16 %v531, %v523
    %v604 = vpack.c.b16 %v532, %v524
    %v605 = vpack.c.b16 %v533, %v525
    %v606 = vpack.c.b16 %v534, %v526
    %v607 = vpack.c.b16 %v535, %v527
    %v608 = vpack.c.b16 %v544, %v536
    %v609 = vpack.c.b16 %v545, %v537
    %v610 = vpack.c.b16 %v546, %v538
    %v611 = vpack.c.b16 %v547, %v539
    %v612 = vpack.c.b16 %v548, %v540
    %v613 = vpack.c.b16 %v549, %v541
    %v614 = vpack.c.b16 %v550, %v542
    %v615 = vpack.c.b16 %v551, %v543
    %v936 = vunpack.c.l.b16 %v94
    %v937 = vunpack.c.h.b16 %v94
    %v938 = vunpack.c.l.b16 %v95
    %v939 = vunpack.c.h.b16 %v95
    %v940 = vunpack.c.l.b16 %v96
    %v941 = vunpack.c.h.b16 %v96
    %v942 = vunpack.c.l.b16 %v97
    %v943 = vunpack.c.h.b16 %v97
    %v944 = vunpack.c.l.b16 %v98
    %v945 = vunpack.c.h.b16 %v98
    %v946 = vunpack.c.l.b16 %v99
    %v947 = vunpack.c.h.b16 %v99
    %v948 = vunpack.c.l.b16 %v100
    %v949 = vunpack.c.h.b16 %v100
    %v950 = vunpack.c.l.b16 %v101
    %v951 = vunpack.c.h.b16 %v101
    %v952 = vunpack.c.l.b16 %v102
    %v953 = vunpack.c.h.b16 %v102
    %v954 = vunpack.c.l.b16 %v103
    %v955 = vunpack.c.h.b16 %v103
    %v956 = vunpack.c.l.b16 %v104
    %v957 = vunpack.c.h.b16 %v104
    %v958 = vunpack.c.l.b16 %v105
    %v959 = vunpack.c.h.b16 %v105
    %v960 = vunpack.c.l.b16 %v106
    %v961 = vunpack.c.h.b16 %v106
    %v962 = vunpack.c.l.b16 %v107
    %v963 = vunpack.c.h.b16 %v107
    %v964 = vunpack.c.l.b16 %v108
    %v965 = vunpack.c.h.b16 %v108
    %v966 = vunpack.c.l.b16 %v109
    %v967 = vunpack.c.h.b16 %v109
    %v968 = vunpack.c.l.b16 %v110
    %v969 = vunpack.c.h.b16 %v110
    %v970 = vunpack.c.l.b16 %v111
    %v971 = vunpack.c.h.b16 %v111
    %v972 = vunpack.c.l.b16 %v112
    %v973 = vunpack.c.h.b16 %v112
    %v974 = vunpack.c.l.b16 %v113
    %v975 = vunpack.c.h.b16 %v113
    %v976 = vunpack.c.l.b16 %v114
    %v977 = vunpack.c.h.b16 %v114
    %v978 = vunpack.c.l.b16 %v115
    %v979 = vunpack.c.h.b16 %v115
    %v980 = vunpack.c.l.b16 %v116
    %v981 = vunpack.c.h.b16 %v116
    %v982 = vunpack.c.l.b16 %v117
    %v983 = vunpack.c.h.b16 %v117
    %v984 = vunpack.c.l.b16 %v118
    %v985 = vunpack.c.h.b16 %v118
    %v986 = vunpack.c.l.b16 %v119
    %v987 = vunpack.c.h.b16 %v119
    %v988 = vunpack.c.l.b16 %v120
    %v989 = vunpack.c.h.b16 %v120
    %v990 = vunpack.c.l.b16 %v121
    %v991 = vunpack.c.h.b16 %v121
    %v992 = vunpack.c.l.b16 %v122
    %v993 = vunpack.c.h.b16 %v122
    %v994 = vunpack.c.l.b16 %v123
    %v995 = vunpack.c.h.b16 %v123
    %v996 = vunpack.c.l.b16 %v124
    %v997 = vunpack.c.h.b16 %v124
    %v998 = vunpack.c.l.b16 %v125
    %v999 = vunpack.c.h.b16 %v125
    %v1000 = vunpack.c.l.b16 %v126
    %v1001 = vunpack.c.h.b16 %v126
    %v1002 = vunpack.c.l.b16 %v127
    %v1003 = vunpack.c.h.b16 %v127
    %v1004 = vunpack.c.l.b16 %v128
    %v1005 = vunpack.c.h.b16 %v128
    %v1006 = vunpack.c.l.b16 %v129
    %v1007 = vunpack.c.h.b16 %v129
    %v1008 = vunpack.c.l.b16 %v130
    %v1009 = vunpack.c.h.b16 %v130
    %v1010 = vunpack.c.l.b16 %v131
    %v1011 = vunpack.c.h.b16 %v131
    %v1012 = vunpack.c.l.b16 %v132
    %v1013 = vunpack.c.h.b16 %v132
    %v1014 = vunpack.c.l.b16 %v133
    %v1015 = vunpack.c.h.b16 %v133
    %v1016 = vunpack.c.l.b16 %v134
    %v1017 = vunpack.c.h.b16 %v134
    %v1018 = vunpack.c.l.b16 %v135
    %v1019 = vunpack.c.h.b16 %v135
    %v1020 = vunpack.c.l.b16 %v136
    %v1021 = vunpack.c.h.b16 %v136
    %v1022 = vunpack.c.l.b16 %v137
    %v1023 = vunpack.c.h.b16 %v137
    %v1024 = vunpack.c.l.b16 %v138
    %v1025 = vunpack.c.h.b16 %v138
    %v1026 = vunpack.c.l.b16 %v139
    %v1027 = vunpack.c.h.b16 %v139
    %v1028 = vunpack.c.l.b16 %v140
    %v1029 = vunpack.c.h.b16 %v140
    %v1030 = vunpack.c.l.b16 %v141
    %v1031 = vunpack.c.h.b16 %v141
    %v1032 = vunpack.c.l.b16 %v142
    %v1033 = vunpack.c.h.b16 %v142
    %v1034 = vunpack.c.l.b16 %v143
    %v1035 = vunpack.c.h.b16 %v143
    %v1036 = vunpack.c.l.b16 %v144
    %v1037 = vunpack.c.h.b16 %v144
    %v1038 = vunpack.c.l.b16 %v145
    %v1039 = vunpack.c.h.b16 %v145
    %v1040 = vunpack.c.l.b16 %v146
    %v1041 = vunpack.c.h.b16 %v146
    %v1042 = vunpack.c.l.b16 %v147
    %v1043 = vunpack.c.h.b16 %v147
    %v1044 = vunpack.c.l.b16 %v148
    %v1045 = vunpack.c.h.b16 %v148
    %v1046 = vunpack.c.l.b16 %v149
    %v1047 = vunpack.c.h.b16 %v149
    %v1048 = vunpack.c.l.b16 %v150
    %v1049 = vunpack.c.h.b16 %v150
    %v1050 = vunpack.c.l.b16 %v151
    %v1051 = vunpack.c.h.b16 %v151
    %v1052 = vunpack.c.l.b16 %v152
    %v1053 = vunpack.c.h.b16 %v152
    %v1054 = vunpack.c.l.b16 %v153
    %v1055 = vunpack.c.h.b16 %v153
    %v1056 = vunpack.c.l.b16 %v154
    %v1057 = vunpack.c.h.b16 %v154
    %v1058 = vunpack.c.l.b16 %v155
    %v1059 = vunpack.c.h.b16 %v155
    %v1060 = vunpack.c.l.b16 %v156
    %v1061 = vunpack.c.h.b16 %v156
    %v1062 = vunpack.c.l.b16 %v157
    %v1063 = vunpack.c.h.b16 %v157
    %v1064 = vunpack.c.l.b16 %v158
    %v1065 = vunpack.c.h.b16 %v158
    %v1066 = vunpack.c.l.b16 %v159
    %v1067 = vunpack.c.h.b16 %v159
    %v1068 = vunpack.c.l.b16 %v160
    %v1069 = vunpack.c.h.b16 %v160
    %v1070 = vunpack.c.l.b16 %v161
    %v1071 = vunpack.c.h.b16 %v161
    %v1072 = vunpack.c.l.b16 %v162
    %v1073 = vunpack.c.h.b16 %v162
    %v1074 = vunpack.c.l.b16 %v163
    %v1075 = vunpack.c.h.b16 %v163
    %v1076 = vunpack.c.l.b16 %v164
    %v1077 = vunpack.c.h.b16 %v164
    %v1078 = vunpack.c.l.b16 %v165
    %v1079 = vunpack.c.h.b16 %v165
    %v1080 = vunpack.c.l.b16 %v166
    %v1081 = vunpack.c.h.b16 %v166
    %v1082 = vunpack.c.l.b16 %v167
    %v1083 = vunpack.c.h.b16 %v167
    %v1084 = vunpack.c.l.b16 %v168
    %v1085 = vunpack.c.h.b16 %v168
    %v1086 = vunpack.c.l.b16 %v169
    %v1087 = vunpack.c.h.b16 %v169
    %v1088 = vunpack.c.l.b16 %v170
    %v1089 = vunpack.c.h.b16 %v170
    %v1090 = vunpack.c.l.b16 %v171
    %v1091 = vunpack.c.h.b16 %v171
    %v1092 = vunpack.c.l.b16 %v172
    %v1093 = vunpack.c.h.b16 %v172
    %v1094 = vunpack.c.l.b16 %v173
    %v1095 = vunpack.c.h.b16 %v173
    %v1096 = vunpack.c.l.b16 %v174
    %v1097 = vunpack.c.h.b16 %v174
    %v1098 = vunpack.c.l.b16 %v175
    %v1099 = vunpack.c.h.b16 %v175
    %v1100 = vunpack.c.l.b16 %v176
    %v1101 = vunpack.c.h.b16 %v176
    %v1102 = vunpack.c.l.b16 %v177
    %v1103 = vunpack.c.h.b16 %v177
    %v1104 = vunpack.c.l.b16 %v178
    %v1105 = vunpack.c.h.b16 %v178
    %v1106 = vunpack.c.l.b16 %v179
    %v1107 = vunpack.c.h.b16 %v179
    %v1108 = vunpack.c.l.b16 %v180
    %v1109 = vunpack.c.h.b16 %v180
    %v1110 = vunpack.c.l.b16 %v181
    %v1111 = vunpack.c.h.b16 %v181
    %v1112 = vunpack.c.l.b16 %v182
    %v1113 = vunpack.c.h.b16 %v182
    %v1114 = vunpack.c.l.b16 %v183
    %v1115 = vunpack.c.h.b16 %v183
    %v1116 = vunpack.c.l.b16 %v184
    %v1117 = vunpack.c.h.b16 %v184
    %v1118 = vunpack.c.l.b16 %v185
    %v1119 = vunpack.c.h.b16 %v185
    %v1120 = vunpack.c.l.b16 %v186
    %v1121 = vunpack.c.h.b16 %v186
    %v1122 = vunpack.c.l.b16 %v187
    %v1123 = vunpack.c.h.b16 %v187
    %v1124 = vunpack.c.l.b16 %v188
    %v1125 = vunpack.c.h.b16 %v188
    %v1126 = vunpack.c.l.b16 %v189
    %v1127 = vunpack.c.h.b16 %v189
    %v1128 = vunpack.c.l.b16 %v190
    %v1129 = vunpack.c.h.b16 %v190
    %v1130 = vunpack.c.l.b16 %v191
    %v1131 = vunpack.c.h.b16 %v191
    %v1132 = vunpack.c.l.b16 %v192
    %v1133 = vunpack.c.h.b16 %v192
    %v1134 = vunpack.c.l.b16 %v193
    %v1135 = vunpack.c.h.b16 %v193
    %v1136 = vunpack.c.l.b16 %v194
    %v1137 = vunpack.c.h.b16 %v194
    %v1138 = vunpack.c.l.b16 %v195
    %v1139 = vunpack.c.h.b16 %v195
    %v1140 = vunpack.c.l.b16 %v196
    %v1141 = vunpack.c.h.b16 %v196
    %v1142 = vunpack.c.l.b16 %v197
    %v1143 = vunpack.c.h.b16 %v197
    %v1144 = vunpack.c.l.b16 %v198
    %v1145 = vunpack.c.h.b16 %v198
    %v1146 = vunpack.c.l.b16 %v199
    %v1147 = vunpack.c.h.b16 %v199
    %v1148 = vunpack.c.l.b16 %v200
    %v1149 = vunpack.c.h.b16 %v200
    %v1150 = vunpack.c.l.b16 %v201
    %v1151 = vunpack.c.h.b16 %v201
    %v1152 = vunpack.c.l.b16 %v202
    %v1153 = vunpack.c.h.b16 %v202
    %v1154 = vunpack.c.l.b16 %v203
    %v1155 = vunpack.c.h.b16 %v203
    %v1156 = vunpack.c.l.b16 %v204
    %v1157 = vunpack.c.h.b16 %v204
    %v1158 = vunpack.c.l.b16 %v205
    %v1159 = vunpack.c.h.b16 %v205
    %v1160 = vunpack.c.l.b16 %v206
    %v1161 = vunpack.c.h.b16 %v206
    %v1162 = vunpack.c.l.b16 %v207
    %v1163 = vunpack.c.h.b16 %v207
    %v1164 = vunpack.c.l.b16 %v208
    %v1165 = vunpack.c.h.b16 %v208
    %v1166 = vunpack.c.l.b16 %v209
    %v1167 = vunpack.c.h.b16 %v209
    %v1168 = vunpack.c.l.b16 %v210
    %v1169 = vunpack.c.h.b16 %v210
    %v1170 = vunpack.c.l.b16 %v211
    %v1171 = vunpack.c.h.b16 %v211
    %v1172 = vunpack.c.l.b16 %v212
    %v1173 = vunpack.c.h.b16 %v212
    %v1174 = vunpack.c.l.b16 %v213
    %v1175 = vunpack.c.h.b16 %v213
    %v1176 = vunpack.c.l.b16 %v214
    %v1177 = vunpack.c.h.b16 %v214
    %v1178 = vunpack.c.l.b16 %v215
    %v1179 = vunpack.c.h.b16 %v215
    %v1180 = vunpack.c.l.b16 %v216
    %v1181 = vunpack.c.h.b16 %v216
    %v1182 = vunpack.c.l.b16 %v217
    %v1183 = vunpack.c.h.b16 %v217
    %v1184 = vunpack.c.l.b16 %v218
    %v1185 = vunpack.c.h.b16 %v218
    %v1186 = vunpack.c.l.b16 %v219
    %v1187 = vunpack.c.h.b16 %v219
    %v1188 = vunpack.c.l.b16 %v220
    %v1189 = vunpack.c.h.b16 %v220
    %v1190 = vunpack.c.l.b16 %v221
    %v1191 = vunpack.c.h.b16 %v221
    %v1192 = vunpack.c.l.b16 %v222
    %v1193 = vunpack.c.h.b16 %v222
    %v1194 = vunpack.c.l.b16 %v223
    %v1195 = vunpack.c.h.b16 %v223
    %v1196 = vunpack.c.l.b16 %v224
    %v1197 = vunpack.c.h.b16 %v224
    %v1198 = vunpack.c.l.b16 %v225
    %v1199 = vunpack.c.h.b16 %v225
    %v1200 = vunpack.c.l.b16 %v226
    %v1201 = vunpack.c.h.b16 %v226
    %v1202 = vunpack.c.l.b16 %v227
    %v1203 = vunpack.c.h.b16 %v227
    %v1204 = vunpack.c.l.b16 %v228
    %v1205 = vunpack.c.h.b16 %v228
    %v1206 = vunpack.c.l.b16 %v229
    %v1207 = vunpack.c.h.b16 %v229
    %v1208 = vunpack.c.l.b16 %v230
    %v1209 = vunpack.c.h.b16 %v230
    %v1210 = vunpack.c.l.b16 %v231
    %v1211 = vunpack.c.h.b16 %v231
    %v1212 = vunpack.c.l.b16 %v232
    %v1213 = vunpack.c.h.b16 %v232
    %v1214 = vunpack.c.l.b16 %v233
    %v1215 = vunpack.c.h.b16 %v233
    %v1216 = vunpack.c.l.b16 %v234
    %v1217 = vunpack.c.h.b16 %v234
    %v1218 = vunpack.c.l.b16 %v235
    %v1219 = vunpack.c.h.b16 %v235
    %v1220 = vunpack.c.l.b16 %v236
    %v1221 = vunpack.c.h.b16 %v236
    %v1222 = vunpack.c.l.b16 %v237
    %v1223 = vunpack.c.h.b16 %v237
    %v1224 = vunpack.c.l.b16 %v238
    %v1225 = vunpack.c.h.b16 %v238
    %v1226 = vunpack.c.l.b16 %v239
    %v1227 = vunpack.c.h.b16 %v239
    %v1228 = vunpack.c.l.b16 %v240
    %v1229 = vunpack.c.h.b16 %v240
    %v1230 = vunpack.c.l.b16 %v241
    %v1231 = vunpack.c.h.b16 %v241
    %v1232 = vunpack.c.l.b16 %v242
    %v1233 = vunpack.c.h.b16 %v242
    %v1234 = vunpack.c.l.b16 %v243
    %v1235 = vunpack.c.h.b16 %v243
    %v1236 = vunpack.c.l.b16 %v244
    %v1237 = vunpack.c.h.b16 %v244
    %v1238 = vunpack.c.l.b16 %v245
    %v1239 = vunpack.c.h.b16 %v245
    %v1240 = vunpack.c.l.b16 %v246
    %v1241 = vunpack.c.h.b16 %v246
    %v1242 = vunpack.c.l.b16 %v247
    %v1243 = vunpack.c.h.b16 %v247
    %v1244 = vunpack.c.l.b16 %v248
    %v1245 = vunpack.c.h.b16 %v248
    %v1246 = vunpack.c.l.b16 %v249
    %v1247 = vunpack.c.h.b16 %v249
    %v1248 = vunpack.c.l.b16 %v250
    %v1249 = vunpack.c.h.b16 %v250
    %v1250 = vunpack.c.l.b16 %v251
    %v1251 = vunpack.c.h.b16 %v251
    %v1252 = vunpack.c.l.b16 %v252
    %v1253 = vunpack.c.h.b16 %v252
    %v1254 = vunpack.c.l.b16 %v253
    %v1255 = vunpack.c.h.b16 %v253
    %v1256 = vunpack.c.l.b16 %v254
    %v1257 = vunpack.c.h.b16 %v254
    %v1258 = vunpack.c.l.b16 %v255
    %v1259 = vunpack.c.h.b16 %v255
    %v1260 = vunpack.c.l.b16 %v256
    %v1261 = vunpack.c.h.b16 %v256
    %v1262 = vunpack.c.l.b16 %v257
    %v1263 = vunpack.c.h.b16 %v257
    %v1264 = vunpack.c.l.b16 %v258
    %v1265 = vunpack.c.h.b16 %v258
    %v1266 = vunpack.c.l.b16 %v259
    %v1267 = vunpack.c.h.b16 %v259
    %v1268 = vunpack.c.l.b16 %v260
    %v1269 = vunpack.c.h.b16 %v260
    %v1270 = vunpack.c.l.b16 %v261
    %v1271 = vunpack.c.h.b16 %v261
    %v1272 = vunpack.c.l.b16 %v262
    %v1273 = vunpack.c.h.b16 %v262
    %v1274 = vunpack.c.l.b16 %v263
    %v1275 = vunpack.c.h.b16 %v263
    %v1276 = vunpack.c.l.b16 %v264
    %v1277 = vunpack.c.h.b16 %v264
    %v1278 = vunpack.c.l.b16 %v265
    %v1279 = vunpack.c.h.b16 %v265
    %v1280 = vunpack.c.l.b16 %v266
    %v1281 = vunpack.c.h.b16 %v266
    %v1282 = vunpack.c.l.b16 %v267
    %v1283 = vunpack.c.h.b16 %v267
    %v1284 = vunpack.c.l.b16 %v268
    %v1285 = vunpack.c.h.b16 %v268
    %v1286 = vunpack.c.l.b16 %v269
    %v1287 = vunpack.c.h.b16 %v269
    %v1288 = vunpack.c.l.b16 %v270
    %v1289 = vunpack.c.h.b16 %v270
    %v1290 = vunpack.c.l.b16 %v271
    %v1291 = vunpack.c.h.b16 %v271
    %v1292 = vunpack.c.l.b16 %v272
    %v1293 = vunpack.c.h.b16 %v272
    %v1294 = vunpack.c.l.b16 %v273
    %v1295 = vunpack.c.h.b16 %v273
    %v1296 = vunpack.c.l.b16 %v274
    %v1297 = vunpack.c.h.b16 %v274
    %v1298 = vunpack.c.l.b16 %v275
    %v1299 = vunpack.c.h.b16 %v275
    %v1300 = vunpack.c.l.b16 %v276
    %v1301 = vunpack.c.h.b16 %v276
    %v1302 = vunpack.c.l.b16 %v277
    %v1303 = vunpack.c.h.b16 %v277
    %v1304 = vunpack.c.l.b16 %v278
    %v1305 = vunpack.c.h.b16 %v278
    %v1306 = vunpack.c.l.b16 %v279
    %v1307 = vunpack.c.h.b16 %v279
    %v1308 = vunpack.c.l.b16 %v280
    %v1309 = vunpack.c.h.b16 %v280
    %v1310 = vunpack.c.l.b16 %v281
    %v1311 = vunpack.c.h.b16 %v281
    %v1312 = vunpack.c.l.b16 %v282
    %v1313 = vunpack.c.h.b16 %v282
    %v1314 = vunpack.c.l.b16 %v283
    %v1315 = vunpack.c.h.b16 %v283
    %v1316 = vunpack.c.l.b16 %v284
    %v1317 = vunpack.c.h.b16 %v284
    %v1318 = vunpack.c.l.b16 %v285
    %v1319 = vunpack.c.h.b16 %v285
    %v1320 = vunpack.c.l.b16 %v286
    %v1321 = vunpack.c.h.b16 %v286
    %v1322 = vunpack.c.l.b16 %v287
    %v1323 = vunpack.c.h.b16 %v287
    %v1324 = vunpack.c.l.b16 %v288
    %v1325 = vunpack.c.h.b16 %v288
    %v1326 = vunpack.c.l.b16 %v289
    %v1327 = vunpack.c.h.b16 %v289
    %v1328 = vunpack.c.l.b16 %v290
    %v1329 = vunpack.c.h.b16 %v290
    %v1330 = vunpack.c.l.b16 %v291
    %v1331 = vunpack.c.h.b16 %v291
    %v1332 = vunpack.c.l.b16 %v292
    %v1333 = vunpack.c.h.b16 %v292
    %v1334 = vunpack.c.l.b16 %v293
    %v1335 = vunpack.c.h.b16 %v293
    %v1336 = vunpack.c.l.b16 %v294
    %v1337 = vunpack.c.h.b16 %v294
    %v1338 = vunpack.c.l.b16 %v295
    %v1339 = vunpack.c.h.b16 %v295
    %v1340 = vunpack.c.l.b16 %v296
    %v1341 = vunpack.c.h.b16 %v296
    %v1342 = vunpack.c.l.b16 %v297
    %v1343 = vunpack.c.h.b16 %v297
    %v1344 = vunpack.c.l.b16 %v298
    %v1345 = vunpack.c.h.b16 %v298
    %v1346 = vunpack.c.l.b16 %v299
    %v1347 = vunpack.c.h.b16 %v299
    %v1348 = vunpack.c.l.b16 %v300
    %v1349 = vunpack.c.h.b16 %v300
    %v1350 = vunpack.c.l.b16 %v301
    %v1351 = vunpack.c.h.b16 %v301
    %v1352 = vunpack.c.l.b16 %v302
    %v1353 = vunpack.c.h.b16 %v302
    %v1354 = vunpack.c.l.b16 %v303
    %v1355 = vunpack.c.h.b16 %v303
    %v1356 = vunpack.c.l.b16 %v304
    %v1357 = vunpack.c.h.b16 %v304
    %v1358 = vunpack.c.l.b16 %v305
    %v1359 = vunpack.c.h.b16 %v305
    %v1360 = vunpack.c.l.b16 %v306
    %v1361 = vunpack.c.h.b16 %v306
    %v1362 = vunpack.c.l.b16 %v307
    %v1363 = vunpack.c.h.b16 %v307
    %v1364 = vunpack.c.l.b16 %v308
    %v1365 = vunpack.c.h.b16 %v308
    %v1366 = vunpack.c.l.b16 %v309
    %v1367 = vunpack.c.h.b16 %v309
    %v1368 = vunpack.c.l.b16 %v310
    %v1369 = vunpack.c.h.b16 %v310
    %v1370 = vunpack.c.l.b16 %v311
    %v1371 = vunpack.c.h.b16 %v311
    %v1372 = vunpack.c.l.b16 %v312
    %v1373 = vunpack.c.h.b16 %v312
    %v1374 = vunpack.c.l.b16 %v313
    %v1375 = vunpack.c.h.b16 %v313
    %v1376 = vunpack.c.l.b16 %v314
    %v1377 = vunpack.c.h.b16 %v314
    %v1378 = vunpack.c.l.b16 %v315
    %v1379 = vunpack.c.h.b16 %v315
    %v1380 = vunpack.c.l.b16 %v316
    %v1381 = vunpack.c.h.b16 %v316
    %v1382 = vunpack.c.l.b16 %v317
    %v1383 = vunpack.c.h.b16 %v317
    %v1384 = vunpack.c.l.b16 %v318
    %v1385 = vunpack.c.h.b16 %v318
    %v1386 = vunpack.c.l.b16 %v319
    %v1387 = vunpack.c.h.b16 %v319
    %v1388 = vunpack.c.l.b16 %v320
    %v1389 = vunpack.c.h.b16 %v320
    %v1390 = vunpack.c.l.b16 %v321
    %v1391 = vunpack.c.h.b16 %v321
    %v1392 = vunpack.c.l.b16 %v322
    %v1393 = vunpack.c.h.b16 %v322
    %v1394 = vunpack.c.l.b16 %v323
    %v1395 = vunpack.c.h.b16 %v323
    %v1396 = vunpack.c.l.b16 %v324
    %v1397 = vunpack.c.h.b16 %v324
    %v1398 = vunpack.c.l.b16 %v325
    %v1399 = vunpack.c.h.b16 %v325
    %v1400 = vunpack.c.l.b16 %v326
    %v1401 = vunpack.c.h.b16 %v326
    %v1402 = vunpack.c.l.b16 %v327
    %v1403 = vunpack.c.h.b16 %v327
    %v1404 = vunpack.c.l.b16 %v328
    %v1405 = vunpack.c.h.b16 %v328
    %v1406 = vunpack.c.l.b16 %v329
    %v1407 = vunpack.c.h.b16 %v329
    %v1408 = vunpack.c.l.b16 %v330
    %v1409 = vunpack.c.h.b16 %v330
    %v1410 = vunpack.c.l.b16 %v331
    %v1411 = vunpack.c.h.b16 %v331
    %v1412 = vunpack.c.l.b16 %v332
    %v1413 = vunpack.c.h.b16 %v332
    %v1414 = vunpack.c.l.b16 %v333
    %v1415 = vunpack.c.h.b16 %v333
    %v1416 = vunpack.c.l.b16 %v334
    %v1417 = vunpack.c.h.b16 %v334
    %v1418 = vunpack.c.l.b16 %v335
    %v1419 = vunpack.c.h.b16 %v335
    %v1420 = vunpack.c.l.b16 %v336
    %v1421 = vunpack.c.h.b16 %v336
    %v1422 = vunpack.c.l.b16 %v337
    %v1423 = vunpack.c.h.b16 %v337
    %v1424 = vunpack.c.l.b16 %v338
    %v1425 = vunpack.c.h.b16 %v338
    %v1426 = vunpack.c.l.b16 %v339
    %v1427 = vunpack.c.h.b16 %v339
    %v1428 = vunpack.c.l.b16 %v340
    %v1429 = vunpack.c.h.b16 %v340
    %v1430 = vunpack.c.l.b16 %v341
    %v1431 = vunpack.c.h.b16 %v341
    %v1432 = vunpack.c.l.b16 %v342
    %v1433 = vunpack.c.h.b16 %v342
    %v1434 = vunpack.c.l.b16 %v343
    %v1435 = vunpack.c.h.b16 %v343
    %v1436 = vunpack.c.l.b16 %v344
    %v1437 = vunpack.c.h.b16 %v344
    %v1438 = vunpack.c.l.b16 %v345
    %v1439 = vunpack.c.h.b16 %v345
    %v1440 = vunpack.c.l.b16 %v346
    %v1441 = vunpack.c.h.b16 %v346
    %v1442 = vunpack.c.l.b16 %v347
    %v1443 = vunpack.c.h.b16 %v347
    %v1444 = vunpack.c.l.b16 %v348
    %v1445 = vunpack.c.h.b16 %v348
    %v1446 = vunpack.c.l.b16 %v349
    %v1447 = vunpack.c.h.b16 %v349
    %v1448 = vpack.c.b16 %v940, %v936
    %v1449 = vpack.c.b16 %v941, %v937
    %v1450 = vpack.c.b16 %v942, %v938
    %v1451 = vpack.c.b16 %v943, %v939
    %v1452 = vpack.c.b16 %v948, %v944
    %v1453 = vpack.c.b16 %v949, %v945
    %v1454 = vpack.c.b16 %v950, %v946
    %v1455 = vpack.c.b16 %v951, %v947
    %v1456 = vpack.c.b16 %v956, %v952
    %v1457 = vpack.c.b16 %v957, %v953
    %v1458 = vpack.c.b16 %v958, %v954
    %v1459 = vpack.c.b16 %v959, %v955
    %v1460 = vpack.c.b16 %v964, %v960
    %v1461 = vpack.c.b16 %v965, %v961
    %v1462 = vpack.c.b16 %v966, %v962
    %v1463 = vpack.c.b16 %v967, %v963
    %v1464 = vpack.c.b16 %v972, %v968
    %v1465 = vpack.c.b16 %v973, %v969
    %v1466 = vpack.c.b16 %v974, %v970
    %v1467 = vpack.c.b16 %v975, %v971
    %v1468 = vpack.c.b16 %v980, %v976
    %v1469 = vpack.c.b16 %v981, %v977
    %v1470 = vpack.c.b16 %v982, %v978
    %v1471 = vpack.c.b16 %v983, %v979
    %v1472 = vpack.c.b16 %v988, %v984
    %v1473 = vpack.c.b16 %v989, %v985
    %v1474 = vpack.c.b16 %v990, %v986
    %v1475 = vpack.c.b16 %v991, %v987
    %v1476 = vpack.c.b16 %v996, %v992
    %v1477 = vpack.c.b16 %v997, %v993
    %v1478 = vpack.c.b16 %v998, %v994
    %v1479 = vpack.c.b16 %v999, %v995
    %v1480 = vpack.c.b16 %v1004, %v1000
    %v1481 = vpack.c.b16 %v1005, %v1001
    %v1482 = vpack.c.b16 %v1006, %v1002
    %v1483 = vpack.c.b16 %v1007, %v1003
    %v1484 = vpack.c.b16 %v1012, %v1008
    %v1485 = vpack.c.b16 %v1013, %v1009
    %v1486 = vpack.c.b16 %v1014, %v1010
    %v1487 = vpack.c.b16 %v1015, %v1011
    %v1488 = vpack.c.b16 %v1020, %v1016
    %v1489 = vpack.c.b16 %v1021, %v1017
    %v1490 = vpack.c.b16 %v1022, %v1018
    %v1491 = vpack.c.b16 %v1023, %v1019
    %v1492 = vpack.c.b16 %v1028, %v1024
    %v1493 = vpack.c.b16 %v1029, %v1025
    %v1494 = vpack.c.b16 %v1030, %v1026
    %v1495 = vpack.c.b16 %v1031, %v1027
    %v1496 = vpack.c.b16 %v1036, %v1032
    %v1497 = vpack.c.b16 %v1037, %v1033
    %v1498 = vpack.c.b16 %v1038, %v1034
    %v1499 = vpack.c.b16 %v1039, %v1035
    %v1500 = vpack.c.b16 %v1044, %v1040
    %v1501 = vpack.c.b16 %v1045, %v1041
    %v1502 = vpack.c.b16 %v1046, %v1042
    %v1503 = vpack.c.b16 %v1047, %v1043
    %v1504 = vpack.c.b16 %v1052, %v1048
    %v1505 = vpack.c.b16 %v1053, %v1049
    %v1506 = vpack.c.b16 %v1054, %v1050
    %v1507 = vpack.c.b16 %v1055, %v1051
    %v1508 = vpack.c.b16 %v1060, %v1056
    %v1509 = vpack.c.b16 %v1061, %v1057
    %v1510 = vpack.c.b16 %v1062, %v1058
    %v1511 = vpack.c.b16 %v1063, %v1059
    %v1512 = vpack.c.b16 %v1068, %v1064
    %v1513 = vpack.c.b16 %v1069, %v1065
    %v1514 = vpack.c.b16 %v1070, %v1066
    %v1515 = vpack.c.b16 %v1071, %v1067
    %v1516 = vpack.c.b16 %v1076, %v1072
    %v1517 = vpack.c.b16 %v1077, %v1073
    %v1518 = vpack.c.b16 %v1078, %v1074
    %v1519 = vpack.c.b16 %v1079, %v1075
    %v1520 = vpack.c.b16 %v1084, %v1080
    %v1521 = vpack.c.b16 %v1085, %v1081
    %v1522 = vpack.c.b16 %v1086, %v1082
    %v1523 = vpack.c.b16 %v1087, %v1083
    %v1524 = vpack.c.b16 %v1092, %v1088
    %v1525 = vpack.c.b16 %v1093, %v1089
    %v1526 = vpack.c.b16 %v1094, %v1090
    %v1527 = vpack.c.b16 %v1095, %v1091
    %v1528 = vpack.c.b16 %v1100, %v1096
    %v1529 = vpack.c.b16 %v1101, %v1097
    %v1530 = vpack.c.b16 %v1102, %v1098
    %v1531 = vpack.c.b16 %v1103, %v1099
    %v1532 = vpack.c.b16 %v1108, %v1104
    %v1533 = vpack.c.b16 %v1109, %v1105
    %v1534 = vpack.c.b16 %v1110, %v1106
    %v1535 = vpack.c.b16 %v1111, %v1107
    %v1536 = vpack.c.b16 %v1116, %v1112
    %v1537 = vpack.c.b16 %v1117, %v1113
    %v1538 = vpack.c.b16 %v1118, %v1114
    %v1539 = vpack.c.b16 %v1119, %v1115
    %v1540 = vpack.c.b16 %v1124, %v1120
    %v1541 = vpack.c.b16 %v1125, %v1121
    %v1542 = vpack.c.b16 %v1126, %v1122
    %v1543 = vpack.c.b16 %v1127, %v1123
    %v1544 = vpack.c.b16 %v1132, %v1128
    %v1545 = vpack.c.b16 %v1133, %v1129
    %v1546 = vpack.c.b16 %v1134, %v1130
    %v1547 = vpack.c.b16 %v1135, %v1131
    %v1548 = vpack.c.b16 %v1140, %v1136
    %v1549 = vpack.c.b16 %v1141, %v1137
    %v1550 = vpack.c.b16 %v1142, %v1138
    %v1551 = vpack.c.b16 %v1143, %v1139
    %v1552 = vpack.c.b16 %v1148, %v1144
    %v1553 = vpack.c.b16 %v1149, %v1145
    %v1554 = vpack.c.b16 %v1150, %v1146
    %v1555 = vpack.c.b16 %v1151, %v1147
    %v1556 = vpack.c.b16 %v1156, %v1152
    %v1557 = vpack.c.b16 %v1157, %v1153
    %v1558 = vpack.c.b16 %v1158, %v1154
    %v1559 = vpack.c.b16 %v1159, %v1155
    %v1560 = vpack.c.b16 %v1164, %v1160
    %v1561 = vpack.c.b16 %v1165, %v1161
    %v1562 = vpack.c.b16 %v1166, %v1162
    %v1563 = vpack.c.b16 %v1167, %v1163
    %v1564 = vpack.c.b16 %v1172, %v1168
    %v1565 = vpack.c.b16 %v1173, %v1169
    %v1566 = vpack.c.b16 %v1174, %v1170
    %v1567 = vpack.c.b16 %v1175, %v1171
    %v1568 = vpack.c.b16 %v1180, %v1176
    %v1569 = vpack.c.b16 %v1181, %v1177
    %v1570 = vpack.c.b16 %v1182, %v1178
    %v1571 = vpack.c.b16 %v1183, %v1179
    %v1572 = vpack.c.b16 %v1188, %v1184
    %v1573 = vpack.c.b16 %v1189, %v1185
    %v1574 = vpack.c.b16 %v1190, %v1186
    %v1575 = vpack.c.b16 %v1191, %v1187
    %v1576 = vpack.c.b16 %v1196, %v1192
    %v1577 = vpack.c.b16 %v1197, %v1193
    %v1578 = vpack.c.b16 %v1198, %v1194
    %v1579 = vpack.c.b16 %v1199, %v1195
    %v1580 = vpack.c.b16 %v1204, %v1200
    %v1581 = vpack.c.b16 %v1205, %v1201
    %v1582 = vpack.c.b16 %v1206, %v1202
    %v1583 = vpack.c.b16 %v1207, %v1203
    %v1584 = vpack.c.b16 %v1212, %v1208
    %v1585 = vpack.c.b16 %v1213, %v1209
    %v1586 = vpack.c.b16 %v1214, %v1210
    %v1587 = vpack.c.b16 %v1215, %v1211
    %v1588 = vpack.c.b16 %v1220, %v1216
    %v1589 = vpack.c.b16 %v1221, %v1217
    %v1590 = vpack.c.b16 %v1222, %v1218
    %v1591 = vpack.c.b16 %v1223, %v1219
    %v1592 = vpack.c.b16 %v1228, %v1224
    %v1593 = vpack.c.b16 %v1229, %v1225
    %v1594 = vpack.c.b16 %v1230, %v1226
    %v1595 = vpack.c.b16 %v1231, %v1227
    %v1596 = vpack.c.b16 %v1236, %v1232
    %v1597 = vpack.c.b16 %v1237, %v1233
    %v1598 = vpack.c.b16 %v1238, %v1234
    %v1599 = vpack.c.b16 %v1239, %v1235
    %v1600 = vpack.c.b16 %v1244, %v1240
    %v1601 = vpack.c.b16 %v1245, %v1241
    %v1602 = vpack.c.b16 %v1246, %v1242
    %v1603 = vpack.c.b16 %v1247, %v1243
    %v1604 = vpack.c.b16 %v1252, %v1248
    %v1605 = vpack.c.b16 %v1253, %v1249
    %v1606 = vpack.c.b16 %v1254, %v1250
    %v1607 = vpack.c.b16 %v1255, %v1251
    %v1608 = vpack.c.b16 %v1260, %v1256
    %v1609 = vpack.c.b16 %v1261, %v1257
    %v1610 = vpack.c.b16 %v1262, %v1258
    %v1611 = vpack.c.b16 %v1263, %v1259
    %v1612 = vpack.c.b16 %v1268, %v1264
    %v1613 = vpack.c.b16 %v1269, %v1265
    %v1614 = vpack.c.b16 %v1270, %v1266
    %v1615 = vpack.c.b16 %v1271, %v1267
    %v1616 = vpack.c.b16 %v1276, %v1272
    %v1617 = vpack.c.b16 %v1277, %v1273
    %v1618 = vpack.c.b16 %v1278, %v1274
    %v1619 = vpack.c.b16 %v1279, %v1275
    %v1620 = vpack.c.b16 %v1284, %v1280
    %v1621 = vpack.c.b16 %v1285, %v1281
    %v1622 = vpack.c.b16 %v1286, %v1282
    %v1623 = vpack.c.b16 %v1287, %v1283
    %v1624 = vpack.c.b16 %v1292, %v1288
    %v1625 = vpack.c.b16 %v1293, %v1289
    %v1626 = vpack.c.b16 %v1294, %v1290
    %v1627 = vpack.c.b16 %v1295, %v1291
    %v1628 = vpack.c.b16 %v1300, %v1296
    %v1629 = vpack.c.b16 %v1301, %v1297
    %v1630 = vpack.c.b16 %v1302, %v1298
    %v1631 = vpack.c.b16 %v1303, %v1299
    %v1632 = vpack.c.b16 %v1308, %v1304
    %v1633 = vpack.c.b16 %v1309, %v1305
    %v1634 = vpack.c.b16 %v1310, %v1306
    %v1635 = vpack.c.b16 %v1311, %v1307
    %v1636 = vpack.c.b16 %v1316, %v1312
    %v1637 = vpack.c.b16 %v1317, %v1313
    %v1638 = vpack.c.b16 %v1318, %v1314
    %v1639 = vpack.c.b16 %v1319, %v1315
    %v1640 = vpack.c.b16 %v1324, %v1320
    %v1641 = vpack.c.b16 %v1325, %v1321
    %v1642 = vpack.c.b16 %v1326, %v1322
    %v1643 = vpack.c.b16 %v1327, %v1323
    %v1644 = vpack.c.b16 %v1332, %v1328
    %v1645 = vpack.c.b16 %v1333, %v1329
    %v1646 = vpack.c.b16 %v1334, %v1330
    %v1647 = vpack.c.b16 %v1335, %v1331
    %v1648 = vpack.c.b16 %v1340, %v1336
    %v1649 = vpack.c.b16 %v1341, %v1337
    %v1650 = vpack.c.b16 %v1342, %v1338
    %v1651 = vpack.c.b16 %v1343, %v1339
    %v1652 = vpack.c.b16 %v1348, %v1344
    %v1653 = vpack.c.b16 %v1349, %v1345
    %v1654 = vpack.c.b16 %v1350, %v1346
    %v1655 = vpack.c.b16 %v1351, %v1347
    %v1656 = vpack.c.b16 %v1356, %v1352
    %v1657 = vpack.c.b16 %v1357, %v1353
    %v1658 = vpack.c.b16 %v1358, %v1354
    %v1659 = vpack.c.b16 %v1359, %v1355
    %v1660 = vpack.c.b16 %v1364, %v1360
    %v1661 = vpack.c.b16 %v1365, %v1361
    %v1662 = vpack.c.b16 %v1366, %v1362
    %v1663 = vpack.c.b16 %v1367, %v1363
    %v1664 = vpack.c.b16 %v1372, %v1368
    %v1665 = vpack.c.b16 %v1373, %v1369
    %v1666 = vpack.c.b16 %v1374, %v1370
    %v1667 = vpack.c.b16 %v1375, %v1371
    %v1668 = vpack.c.b16 %v1380, %v1376
    %v1669 = vpack.c.b16 %v1381, %v1377
    %v1670 = vpack.c.b16 %v1382, %v1378
    %v1671 = vpack.c.b16 %v1383, %v1379
    %v1672 = vpack.c.b16 %v1388, %v1384
    %v1673 = vpack.c.b16 %v1389, %v1385
    %v1674 = vpack.c.b16 %v1390, %v1386
    %v1675 = vpack.c.b16 %v1391, %v1387
    %v1676 = vpack.c.b16 %v1396, %v1392
    %v1677 = vpack.c.b16 %v1397, %v1393
    %v1678 = vpack.c.b16 %v1398, %v1394
    %v1679 = vpack.c.b16 %v1399, %v1395
    %v1680 = vpack.c.b16 %v1404, %v1400
    %v1681 = vpack.c.b16 %v1405, %v1401
    %v1682 = vpack.c.b16 %v1406, %v1402
    %v1683 = vpack.c.b16 %v1407, %v1403
    %v1684 = vpack.c.b16 %v1412, %v1408
    %v1685 = vpack.c.b16 %v1413, %v1409
    %v1686 = vpack.c.b16 %v1414, %v1410
    %v1687 = vpack.c.b16 %v1415, %v1411
    %v1688 = vpack.c.b16 %v1420, %v1416
    %v1689 = vpack.c.b16 %v1421, %v1417
    %v1690 = vpack.c.b16 %v1422, %v1418
    %v1691 = vpack.c.b16 %v1423, %v1419
    %v1692 = vpack.c.b16 %v1428, %v1424
    %v1693 = vpack.c.b16 %v1429, %v1425
    %v1694 = vpack.c.b16 %v1430, %v1426
    %v1695 = vpack.c.b16 %v1431, %v1427
    %v1696 = vpack.c.b16 %v1436, %v1432
    %v1697 = vpack.c.b16 %v1437, %v1433
    %v1698 = vpack.c.b16 %v1438, %v1434
    %v1699 = vpack.c.b16 %v1439, %v1435
    %v1700 = vpack.c.b16 %v1444, %v1440
    %v1701 = vpack.c.b16 %v1445, %v1441
    %v1702 = vpack.c.b16 %v1446, %v1442
    %v1703 = vpack.c.b16 %v1447, %v1443
    %1960 = vmatpush.bf16.msra.mxu0 %v1476
    %1961 = vmatpush.bf16.msra.mxu0 %v1472
    %1962 = vmatpush.bf16.msra.mxu0 %v1468
    %1963 = vmatpush.bf16.msra.mxu0 %v1464
    %1964 = vmatpush.bf16.msra.mxu0 %v1460
    %1965 = vmatpush.bf16.msra.mxu0 %v1456
    %1966 = vmatpush.bf16.msra.mxu0 %v1452
    %1967 = vmatpush.bf16.msra.mxu0 %v1448
    %1968 = vmatmul.bf16.gmra.mxu0 %v552
    %v1969 = vpop.f32.mrf.mxu0
    %v1970 = vadd.f32 %v352, %v1969
    %v1971 = vpop.f32.mrf.mxu0
    %v1972 = vadd.f32 %v352, %v1971
    %1973 = vmatmul.bf16.gmra.mxu0 %v560
    %v1974 = vpop.f32.mrf.mxu0
    %v1975 = vadd.f32 %v352, %v1974
    %v1976 = vpop.f32.mrf.mxu0
    %v1977 = vadd.f32 %v352, %v1976
    %1978 = vmatmul.bf16.gmra.mxu0 %v568
    %v1979 = vpop.f32.mrf.mxu0
    %v1980 = vadd.f32 %v352, %v1979
    %v1981 = vpop.f32.mrf.mxu0
    %v1982 = vadd.f32 %v352, %v1981
    %1983 = vmatmul.bf16.gmra.mxu0 %v576
    %v1984 = vpop.f32.mrf.mxu0
    %v1985 = vadd.f32 %v352, %v1984
    %v1986 = vpop.f32.mrf.mxu0
    %v1987 = vadd.f32 %v352, %v1986
    %1988 = vmatmul.bf16.gmra.mxu0 %v584
    %v1989 = vpop.f32.mrf.mxu0
    %v1990 = vadd.f32 %v352, %v1989
    %v1991 = vpop.f32.mrf.mxu0
    %v1992 = vadd.f32 %v352, %v1991
    %1993 = vmatmul.bf16.gmra.mxu0 %v592
    %v1994 = vpop.f32.mrf.mxu0
    %v1995 = vadd.f32 %v352, %v1994
    %v1996 = vpop.f32.mrf.mxu0
    %v1997 = vadd.f32 %v352, %v1996
    %1998 = vmatmul.bf16.gmra.mxu0 %v600
    %v1999 = vpop.f32.mrf.mxu0
    %v2000 = vadd.f32 %v352, %v1999
    %v2001 = vpop.f32.mrf.mxu0
    %v2002 = vadd.f32 %v352, %v2001
    %2003 = vmatmul.bf16.gmra.mxu0 %v608
    %v2004 = vpop.f32.mrf.mxu0
    %v2005 = vadd.f32 %v352, %v2004
    %v2006 = vpop.f32.mrf.mxu0
    %v2007 = vadd.f32 %v352, %v2006
    %2008 = vdwg.mxu0
    %2009 = vmatpush.bf16.msra.mxu0 %v1508
    %2010 = vmatpush.bf16.msra.mxu0 %v1504
    %2011 = vmatpush.bf16.msra.mxu0 %v1500
    %2012 = vmatpush.bf16.msra.mxu0 %v1496
    %2013 = vmatpush.bf16.msra.mxu0 %v1492
    %2014 = vmatpush.bf16.msra.mxu0 %v1488
    %2015 = vmatpush.bf16.msra.mxu0 %v1484
    %2016 = vmatpush.bf16.msra.mxu0 %v1480
    %2017 = vmatmul.bf16.gmra.mxu0 %v553
    %v2018 = vpop.f32.mrf.mxu0
    %v2019 = vadd.f32 %v1970, %v2018
    %v2020 = vpop.f32.mrf.mxu0
    %v2021 = vadd.f32 %v1972, %v2020
    %2022 = vmatmul.bf16.gmra.mxu0 %v561
    %v2023 = vpop.f32.mrf.mxu0
    %v2024 = vadd.f32 %v1975, %v2023
    %v2025 = vpop.f32.mrf.mxu0
    %v2026 = vadd.f32 %v1977, %v2025
    %2027 = vmatmul.bf16.gmra.mxu0 %v569
    %v2028 = vpop.f32.mrf.mxu0
    %v2029 = vadd.f32 %v1980, %v2028
    %v2030 = vpop.f32.mrf.mxu0
    %v2031 = vadd.f32 %v1982, %v2030
    %2032 = vmatmul.bf16.gmra.mxu0 %v577
    %v2033 = vpop.f32.mrf.mxu0
    %v2034 = vadd.f32 %v1985, %v2033
    %v2035 = vpop.f32.mrf.mxu0
    %v2036 = vadd.f32 %v1987, %v2035
    %2037 = vmatmul.bf16.gmra.mxu0 %v585
    %v2038 = vpop.f32.mrf.mxu0
    %v2039 = vadd.f32 %v1990, %v2038
    %v2040 = vpop.f32.mrf.mxu0
    %v2041 = vadd.f32 %v1992, %v2040
    %2042 = vmatmul.bf16.gmra.mxu0 %v593
    %v2043 = vpop.f32.mrf.mxu0
    %v2044 = vadd.f32 %v1995, %v2043
    %v2045 = vpop.f32.mrf.mxu0
    %v2046 = vadd.f32 %v1997, %v2045
    %2047 = vmatmul.bf16.gmra.mxu0 %v601
    %v2048 = vpop.f32.mrf.mxu0
    %v2049 = vadd.f32 %v2000, %v2048
    %v2050 = vpop.f32.mrf.mxu0
    %v2051 = vadd.f32 %v2002, %v2050
    %2052 = vmatmul.bf16.gmra.mxu0 %v609
    %v2053 = vpop.f32.mrf.mxu0
    %v2054 = vadd.f32 %v2005, %v2053
    %v2055 = vpop.f32.mrf.mxu0
    %v2056 = vadd.f32 %v2007, %v2055
    %2057 = vdwg.mxu0
    %2058 = vmatpush.bf16.msra.mxu0 %v1540
    %2059 = vmatpush.bf16.msra.mxu0 %v1536
    %2060 = vmatpush.bf16.msra.mxu0 %v1532
    %2061 = vmatpush.bf16.msra.mxu0 %v1528
    %2062 = vmatpush.bf16.msra.mxu0 %v1524
    %2063 = vmatpush.bf16.msra.mxu0 %v1520
    %2064 = vmatpush.bf16.msra.mxu0 %v1516
    %2065 = vmatpush.bf16.msra.mxu0 %v1512
    %2066 = vmatmul.bf16.gmra.mxu0 %v554
    %v2067 = vpop.f32.mrf.mxu0
    %v2068 = vadd.f32 %v2019, %v2067
    %v2069 = vpop.f32.mrf.mxu0
    %v2070 = vadd.f32 %v2021, %v2069
    %2071 = vmatmul.bf16.gmra.mxu0 %v562
    %v2072 = vpop.f32.mrf.mxu0
    %v2073 = vadd.f32 %v2024, %v2072
    %v2074 = vpop.f32.mrf.mxu0
    %v2075 = vadd.f32 %v2026, %v2074
    %2076 = vmatmul.bf16.gmra.mxu0 %v570
    %v2077 = vpop.f32.mrf.mxu0
    %v2078 = vadd.f32 %v2029, %v2077
    %v2079 = vpop.f32.mrf.mxu0
    %v2080 = vadd.f32 %v2031, %v2079
    %2081 = vmatmul.bf16.gmra.mxu0 %v578
    %v2082 = vpop.f32.mrf.mxu0
    %v2083 = vadd.f32 %v2034, %v2082
    %v2084 = vpop.f32.mrf.mxu0
    %v2085 = vadd.f32 %v2036, %v2084
    %2086 = vmatmul.bf16.gmra.mxu0 %v586
    %v2087 = vpop.f32.mrf.mxu0
    %v2088 = vadd.f32 %v2039, %v2087
    %v2089 = vpop.f32.mrf.mxu0
    %v2090 = vadd.f32 %v2041, %v2089
    %2091 = vmatmul.bf16.gmra.mxu0 %v594
    %v2092 = vpop.f32.mrf.mxu0
    %v2093 = vadd.f32 %v2044, %v2092
    %v2094 = vpop.f32.mrf.mxu0
    %v2095 = vadd.f32 %v2046, %v2094
    %2096 = vmatmul.bf16.gmra.mxu0 %v602
    %v2097 = vpop.f32.mrf.mxu0
    %v2098 = vadd.f32 %v2049, %v2097
    %v2099 = vpop.f32.mrf.mxu0
    %v2100 = vadd.f32 %v2051, %v2099
    %2101 = vmatmul.bf16.gmra.mxu0 %v610
    %v2102 = vpop.f32.mrf.mxu0
    %v2103 = vadd.f32 %v2054, %v2102
    %v2104 = vpop.f32.mrf.mxu0
    %v2105 = vadd.f32 %v2056, %v2104
    %2106 = vdwg.mxu0
    %2107 = vmatpush.bf16.msra.mxu0 %v1572
    %2108 = vmatpush.bf16.msra.mxu0 %v1568
    %2109 = vmatpush.bf16.msra.mxu0 %v1564
    %2110 = vmatpush.bf16.msra.mxu0 %v1560
    %2111 = vmatpush.bf16.msra.mxu0 %v1556
    %2112 = vmatpush.bf16.msra.mxu0 %v1552
    %2113 = vmatpush.bf16.msra.mxu0 %v1548
    %2114 = vmatpush.bf16.msra.mxu0 %v1544
    %2115 = vmatmul.bf16.gmra.mxu0 %v555
    %v2116 = vpop.f32.mrf.mxu0
    %v2117 = vadd.f32 %v2068, %v2116
    %v2118 = vpop.f32.mrf.mxu0
    %v2119 = vadd.f32 %v2070, %v2118
    %2120 = vmatmul.bf16.gmra.mxu0 %v563
    %v2121 = vpop.f32.mrf.mxu0
    %v2122 = vadd.f32 %v2073, %v2121
    %v2123 = vpop.f32.mrf.mxu0
    %v2124 = vadd.f32 %v2075, %v2123
    %2125 = vmatmul.bf16.gmra.mxu0 %v571
    %v2126 = vpop.f32.mrf.mxu0
    %v2127 = vadd.f32 %v2078, %v2126
    %v2128 = vpop.f32.mrf.mxu0
    %v2129 = vadd.f32 %v2080, %v2128
    %2130 = vmatmul.bf16.gmra.mxu0 %v579
    %v2131 = vpop.f32.mrf.mxu0
    %v2132 = vadd.f32 %v2083, %v2131
    %v2133 = vpop.f32.mrf.mxu0
    %v2134 = vadd.f32 %v2085, %v2133
    %2135 = vmatmul.bf16.gmra.mxu0 %v587
    %v2136 = vpop.f32.mrf.mxu0
    %v2137 = vadd.f32 %v2088, %v2136
    %v2138 = vpop.f32.mrf.mxu0
    %v2139 = vadd.f32 %v2090, %v2138
    %2140 = vmatmul.bf16.gmra.mxu0 %v595
    %v2141 = vpop.f32.mrf.mxu0
    %v2142 = vadd.f32 %v2093, %v2141
    %v2143 = vpop.f32.mrf.mxu0
    %v2144 = vadd.f32 %v2095, %v2143
    %2145 = vmatmul.bf16.gmra.mxu0 %v603
    %v2146 = vpop.f32.mrf.mxu0
    %v2147 = vadd.f32 %v2098, %v2146
    %v2148 = vpop.f32.mrf.mxu0
    %v2149 = vadd.f32 %v2100, %v2148
    %2150 = vmatmul.bf16.gmra.mxu0 %v611
    %v2151 = vpop.f32.mrf.mxu0
    %v2152 = vadd.f32 %v2103, %v2151
    %v2153 = vpop.f32.mrf.mxu0
    %v2154 = vadd.f32 %v2105, %v2153
    %2155 = vdwg.mxu0
    %2156 = vmatpush.bf16.msra.mxu0 %v1604
    %2157 = vmatpush.bf16.msra.mxu0 %v1600
    %2158 = vmatpush.bf16.msra.mxu0 %v1596
    %2159 = vmatpush.bf16.msra.mxu0 %v1592
    %2160 = vmatpush.bf16.msra.mxu0 %v1588
    %2161 = vmatpush.bf16.msra.mxu0 %v1584
    %2162 = vmatpush.bf16.msra.mxu0 %v1580
    %2163 = vmatpush.bf16.msra.mxu0 %v1576
    %2164 = vmatmul.bf16.gmra.mxu0 %v556
    %v2165 = vpop.f32.mrf.mxu0
    %v2166 = vadd.f32 %v2117, %v2165
    %v2167 = vpop.f32.mrf.mxu0
    %v2168 = vadd.f32 %v2119, %v2167
    %2169 = vmatmul.bf16.gmra.mxu0 %v564
    %v2170 = vpop.f32.mrf.mxu0
    %v2171 = vadd.f32 %v2122, %v2170
    %v2172 = vpop.f32.mrf.mxu0
    %v2173 = vadd.f32 %v2124, %v2172
    %2174 = vmatmul.bf16.gmra.mxu0 %v572
    %v2175 = vpop.f32.mrf.mxu0
    %v2176 = vadd.f32 %v2127, %v2175
    %v2177 = vpop.f32.mrf.mxu0
    %v2178 = vadd.f32 %v2129, %v2177
    %2179 = vmatmul.bf16.gmra.mxu0 %v580
    %v2180 = vpop.f32.mrf.mxu0
    %v2181 = vadd.f32 %v2132, %v2180
    %v2182 = vpop.f32.mrf.mxu0
    %v2183 = vadd.f32 %v2134, %v2182
    %2184 = vmatmul.bf16.gmra.mxu0 %v588
    %v2185 = vpop.f32.mrf.mxu0
    %v2186 = vadd.f32 %v2137, %v2185
    %v2187 = vpop.f32.mrf.mxu0
    %v2188 = vadd.f32 %v2139, %v2187
    %2189 = vmatmul.bf16.gmra.mxu0 %v596
    %v2190 = vpop.f32.mrf.mxu0
    %v2191 = vadd.f32 %v2142, %v2190
    %v2192 = vpop.f32.mrf.mxu0
    %v2193 = vadd.f32 %v2144, %v2192
    %2194 = vmatmul.bf16.gmra.mxu0 %v604
    %v2195 = vpop.f32.mrf.mxu0
    %v2196 = vadd.f32 %v2147, %v2195
    %v2197 = vpop.f32.mrf.mxu0
    %v2198 = vadd.f32 %v2149, %v2197
    %2199 = vmatmul.bf16.gmra.mxu0 %v612
    %v2200 = vpop.f32.mrf.mxu0
    %v2201 = vadd.f32 %v2152, %v2200
    %v2202 = vpop.f32.mrf.mxu0
    %v2203 = vadd.f32 %v2154, %v2202
    %2204 = vdwg.mxu0
    %2205 = vmatpush.bf16.msra.mxu0 %v1636
    %2206 = vmatpush.bf16.msra.mxu0 %v1632
    %2207 = vmatpush.bf16.msra.mxu0 %v1628
    %2208 = vmatpush.bf16.msra.mxu0 %v1624
    %2209 = vmatpush.bf16.msra.mxu0 %v1620
    %2210 = vmatpush.bf16.msra.mxu0 %v1616
    %2211 = vmatpush.bf16.msra.mxu0 %v1612
    %2212 = vmatpush.bf16.msra.mxu0 %v1608
    %2213 = vmatmul.bf16.gmra.mxu0 %v557
    %v2214 = vpop.f32.mrf.mxu0
    %v2215 = vadd.f32 %v2166, %v2214
    %v2216 = vpop.f32.mrf.mxu0
    %v2217 = vadd.f32 %v2168, %v2216
    %2218 = vmatmul.bf16.gmra.mxu0 %v565
    %v2219 = vpop.f32.mrf.mxu0
    %v2220 = vadd.f32 %v2171, %v2219
    %v2221 = vpop.f32.mrf.mxu0
    %v2222 = vadd.f32 %v2173, %v2221
    %2223 = vmatmul.bf16.gmra.mxu0 %v573
    %v2224 = vpop.f32.mrf.mxu0
    %v2225 = vadd.f32 %v2176, %v2224
    %v2226 = vpop.f32.mrf.mxu0
    %v2227 = vadd.f32 %v2178, %v2226
    %2228 = vmatmul.bf16.gmra.mxu0 %v581
    %v2229 = vpop.f32.mrf.mxu0
    %v2230 = vadd.f32 %v2181, %v2229
    %v2231 = vpop.f32.mrf.mxu0
    %v2232 = vadd.f32 %v2183, %v2231
    %2233 = vmatmul.bf16.gmra.mxu0 %v589
    %v2234 = vpop.f32.mrf.mxu0
    %v2235 = vadd.f32 %v2186, %v2234
    %v2236 = vpop.f32.mrf.mxu0
    %v2237 = vadd.f32 %v2188, %v2236
    %2238 = vmatmul.bf16.gmra.mxu0 %v597
    %v2239 = vpop.f32.mrf.mxu0
    %v2240 = vadd.f32 %v2191, %v2239
    %v2241 = vpop.f32.mrf.mxu0
    %v2242 = vadd.f32 %v2193, %v2241
    %2243 = vmatmul.bf16.gmra.mxu0 %v605
    %v2244 = vpop.f32.mrf.mxu0
    %v2245 = vadd.f32 %v2196, %v2244
    %v2246 = vpop.f32.mrf.mxu0
    %v2247 = vadd.f32 %v2198, %v2246
    %2248 = vmatmul.bf16.gmra.mxu0 %v613
    %v2249 = vpop.f32.mrf.mxu0
    %v2250 = vadd.f32 %v2201, %v2249
    %v2251 = vpop.f32.mrf.mxu0
    %v2252 = vadd.f32 %v2203, %v2251
    %2253 = vdwg.mxu0
    %2254 = vmatpush.bf16.msra.mxu0 %v1668
    %2255 = vmatpush.bf16.msra.mxu0 %v1664
    %2256 = vmatpush.bf16.msra.mxu0 %v1660
    %2257 = vmatpush.bf16.msra.mxu0 %v1656
    %2258 = vmatpush.bf16.msra.mxu0 %v1652
    %2259 = vmatpush.bf16.msra.mxu0 %v1648
    %2260 = vmatpush.bf16.msra.mxu0 %v1644
    %2261 = vmatpush.bf16.msra.mxu0 %v1640
    %2262 = vmatmul.bf16.gmra.mxu0 %v558
    %v2263 = vpop.f32.mrf.mxu0
    %v2264 = vadd.f32 %v2215, %v2263
    %v2265 = vpop.f32.mrf.mxu0
    %v2266 = vadd.f32 %v2217, %v2265
    %2267 = vmatmul.bf16.gmra.mxu0 %v566
    %v2268 = vpop.f32.mrf.mxu0
    %v2269 = vadd.f32 %v2220, %v2268
    %v2270 = vpop.f32.mrf.mxu0
    %v2271 = vadd.f32 %v2222, %v2270
    %2272 = vmatmul.bf16.gmra.mxu0 %v574
    %v2273 = vpop.f32.mrf.mxu0
    %v2274 = vadd.f32 %v2225, %v2273
    %v2275 = vpop.f32.mrf.mxu0
    %v2276 = vadd.f32 %v2227, %v2275
    %2277 = vmatmul.bf16.gmra.mxu0 %v582
    %v2278 = vpop.f32.mrf.mxu0
    %v2279 = vadd.f32 %v2230, %v2278
    %v2280 = vpop.f32.mrf.mxu0
    %v2281 = vadd.f32 %v2232, %v2280
    %2282 = vmatmul.bf16.gmra.mxu0 %v590
    %v2283 = vpop.f32.mrf.mxu0
    %v2284 = vadd.f32 %v2235, %v2283
    %v2285 = vpop.f32.mrf.mxu0
    %v2286 = vadd.f32 %v2237, %v2285
    %2287 = vmatmul.bf16.gmra.mxu0 %v598
    %v2288 = vpop.f32.mrf.mxu0
    %v2289 = vadd.f32 %v2240, %v2288
    %v2290 = vpop.f32.mrf.mxu0
    %v2291 = vadd.f32 %v2242, %v2290
    %2292 = vmatmul.bf16.gmra.mxu0 %v606
    %v2293 = vpop.f32.mrf.mxu0
    %v2294 = vadd.f32 %v2245, %v2293
    %v2295 = vpop.f32.mrf.mxu0
    %v2296 = vadd.f32 %v2247, %v2295
    %2297 = vmatmul.bf16.gmra.mxu0 %v614
    %v2298 = vpop.f32.mrf.mxu0
    %v2299 = vadd.f32 %v2250, %v2298
    %v2300 = vpop.f32.mrf.mxu0
    %v2301 = vadd.f32 %v2252, %v2300
    %2302 = vdwg.mxu0
    %2303 = vmatpush.bf16.msra.mxu0 %v1700
    %2304 = vmatpush.bf16.msra.mxu0 %v1696
    %2305 = vmatpush.bf16.msra.mxu0 %v1692
    %2306 = vmatpush.bf16.msra.mxu0 %v1688
    %2307 = vmatpush.bf16.msra.mxu0 %v1684
    %2308 = vmatpush.bf16.msra.mxu0 %v1680
    %2309 = vmatpush.bf16.msra.mxu0 %v1676
    %2310 = vmatpush.bf16.msra.mxu0 %v1672
    %2311 = vmatmul.bf16.gmra.mxu0 %v559
    %v2312 = vpop.f32.mrf.mxu0
    %v2313 = vadd.f32 %v2264, %v2312
    %v2314 = vpop.f32.mrf.mxu0
    %v2315 = vadd.f32 %v2266, %v2314
    %2316 = vmatmul.bf16.gmra.mxu0 %v567
    %v2317 = vpop.f32.mrf.mxu0
    %v2318 = vadd.f32 %v2269, %v2317
    %v2319 = vpop.f32.mrf.mxu0
    %v2320 = vadd.f32 %v2271, %v2319
    %2321 = vmatmul.bf16.gmra.mxu0 %v575
    %v2322 = vpop.f32.mrf.mxu0
    %v2323 = vadd.f32 %v2274, %v2322
    %v2324 = vpop.f32.mrf.mxu0
    %v2325 = vadd.f32 %v2276, %v2324
    %2326 = vmatmul.bf16.gmra.mxu0 %v583
    %v2327 = vpop.f32.mrf.mxu0
    %v2328 = vadd.f32 %v2279, %v2327
    %v2329 = vpop.f32.mrf.mxu0
    %v2330 = vadd.f32 %v2281, %v2329
    %2331 = vmatmul.bf16.gmra.mxu0 %v591
    %v2332 = vpop.f32.mrf.mxu0
    %v2333 = vadd.f32 %v2284, %v2332
    %v2334 = vpop.f32.mrf.mxu0
    %v2335 = vadd.f32 %v2286, %v2334
    %2336 = vmatmul.bf16.gmra.mxu0 %v599
    %v2337 = vpop.f32.mrf.mxu0
    %v2338 = vadd.f32 %v2289, %v2337
    %v2339 = vpop.f32.mrf.mxu0
    %v2340 = vadd.f32 %v2291, %v2339
    %2341 = vmatmul.bf16.gmra.mxu0 %v607
    %v2342 = vpop.f32.mrf.mxu0
    %v2343 = vadd.f32 %v2294, %v2342
    %v2344 = vpop.f32.mrf.mxu0
    %v2345 = vadd.f32 %v2296, %v2344
    %2346 = vmatmul.bf16.gmra.mxu0 %v615
    %v2347 = vpop.f32.mrf.mxu0
    %v2348 = vadd.f32 %v2299, %v2347
    %v2349 = vpop.f32.mrf.mxu0
    %v2350 = vadd.f32 %v2301, %v2349
    %2351 = vdwg.mxu0
    %2352 = vmatpush.bf16.msra.mxu0 %v1477
    %2353 = vmatpush.bf16.msra.mxu0 %v1473
    %2354 = vmatpush.bf16.msra.mxu0 %v1469
    %2355 = vmatpush.bf16.msra.mxu0 %v1465
    %2356 = vmatpush.bf16.msra.mxu0 %v1461
    %2357 = vmatpush.bf16.msra.mxu0 %v1457
    %2358 = vmatpush.bf16.msra.mxu0 %v1453
    %2359 = vmatpush.bf16.msra.mxu0 %v1449
    %2360 = vmatmul.bf16.gmra.mxu0 %v552
    %v2361 = vpop.f32.mrf.mxu0
    %v2362 = vadd.f32 %v353, %v2361
    %v2363 = vpop.f32.mrf.mxu0
    %v2364 = vadd.f32 %v353, %v2363
    %2365 = vmatmul.bf16.gmra.mxu0 %v560
    %v2366 = vpop.f32.mrf.mxu0
    %v2367 = vadd.f32 %v353, %v2366
    %v2368 = vpop.f32.mrf.mxu0
    %v2369 = vadd.f32 %v353, %v2368
    %2370 = vmatmul.bf16.gmra.mxu0 %v568
    %v2371 = vpop.f32.mrf.mxu0
    %v2372 = vadd.f32 %v353, %v2371
    %v2373 = vpop.f32.mrf.mxu0
    %v2374 = vadd.f32 %v353, %v2373
    %2375 = vmatmul.bf16.gmra.mxu0 %v576
    %v2376 = vpop.f32.mrf.mxu0
    %v2377 = vadd.f32 %v353, %v2376
    %v2378 = vpop.f32.mrf.mxu0
    %v2379 = vadd.f32 %v353, %v2378
    %2380 = vmatmul.bf16.gmra.mxu0 %v584
    %v2381 = vpop.f32.mrf.mxu0
    %v2382 = vadd.f32 %v353, %v2381
    %v2383 = vpop.f32.mrf.mxu0
    %v2384 = vadd.f32 %v353, %v2383
    %2385 = vmatmul.bf16.gmra.mxu0 %v592
    %v2386 = vpop.f32.mrf.mxu0
    %v2387 = vadd.f32 %v353, %v2386
    %v2388 = vpop.f32.mrf.mxu0
    %v2389 = vadd.f32 %v353, %v2388
    %2390 = vmatmul.bf16.gmra.mxu0 %v600
    %v2391 = vpop.f32.mrf.mxu0
    %v2392 = vadd.f32 %v353, %v2391
    %v2393 = vpop.f32.mrf.mxu0
    %v2394 = vadd.f32 %v353, %v2393
    %2395 = vmatmul.bf16.gmra.mxu0 %v608
    %v2396 = vpop.f32.mrf.mxu0
    %v2397 = vadd.f32 %v353, %v2396
    %v2398 = vpop.f32.mrf.mxu0
    %v2399 = vadd.f32 %v353, %v2398
    %2400 = vdwg.mxu0
    %2401 = vmatpush.bf16.msra.mxu0 %v1509
    %2402 = vmatpush.bf16.msra.mxu0 %v1505
    %2403 = vmatpush.bf16.msra.mxu0 %v1501
    %2404 = vmatpush.bf16.msra.mxu0 %v1497
    %2405 = vmatpush.bf16.msra.mxu0 %v1493
    %2406 = vmatpush.bf16.msra.mxu0 %v1489
    %2407 = vmatpush.bf16.msra.mxu0 %v1485
    %2408 = vmatpush.bf16.msra.mxu0 %v1481
    %2409 = vmatmul.bf16.gmra.mxu0 %v553
    %v2410 = vpop.f32.mrf.mxu0
    %v2411 = vadd.f32 %v2362, %v2410
    %v2412 = vpop.f32.mrf.mxu0
    %v2413 = vadd.f32 %v2364, %v2412
    %2414 = vmatmul.bf16.gmra.mxu0 %v561
    %v2415 = vpop.f32.mrf.mxu0
    %v2416 = vadd.f32 %v2367, %v2415
    %v2417 = vpop.f32.mrf.mxu0
    %v2418 = vadd.f32 %v2369, %v2417
    %2419 = vmatmul.bf16.gmra.mxu0 %v569
    %v2420 = vpop.f32.mrf.mxu0
    %v2421 = vadd.f32 %v2372, %v2420
    %v2422 = vpop.f32.mrf.mxu0
    %v2423 = vadd.f32 %v2374, %v2422
    %2424 = vmatmul.bf16.gmra.mxu0 %v577
    %v2425 = vpop.f32.mrf.mxu0
    %v2426 = vadd.f32 %v2377, %v2425
    %v2427 = vpop.f32.mrf.mxu0
    %v2428 = vadd.f32 %v2379, %v2427
    %2429 = vmatmul.bf16.gmra.mxu0 %v585
    %v2430 = vpop.f32.mrf.mxu0
    %v2431 = vadd.f32 %v2382, %v2430
    %v2432 = vpop.f32.mrf.mxu0
    %v2433 = vadd.f32 %v2384, %v2432
    %2434 = vmatmul.bf16.gmra.mxu0 %v593
    %v2435 = vpop.f32.mrf.mxu0
    %v2436 = vadd.f32 %v2387, %v2435
    %v2437 = vpop.f32.mrf.mxu0
    %v2438 = vadd.f32 %v2389, %v2437
    %2439 = vmatmul.bf16.gmra.mxu0 %v601
    %v2440 = vpop.f32.mrf.mxu0
    %v2441 = vadd.f32 %v2392, %v2440
    %v2442 = vpop.f32.mrf.mxu0
    %v2443 = vadd.f32 %v2394, %v2442
    %2444 = vmatmul.bf16.gmra.mxu0 %v609
    %v2445 = vpop.f32.mrf.mxu0
    %v2446 = vadd.f32 %v2397, %v2445
    %v2447 = vpop.f32.mrf.mxu0
    %v2448 = vadd.f32 %v2399, %v2447
    %2449 = vdwg.mxu0
    %2450 = vmatpush.bf16.msra.mxu0 %v1541
    %2451 = vmatpush.bf16.msra.mxu0 %v1537
    %2452 = vmatpush.bf16.msra.mxu0 %v1533
    %2453 = vmatpush.bf16.msra.mxu0 %v1529
    %2454 = vmatpush.bf16.msra.mxu0 %v1525
    %2455 = vmatpush.bf16.msra.mxu0 %v1521
    %2456 = vmatpush.bf16.msra.mxu0 %v1517
    %2457 = vmatpush.bf16.msra.mxu0 %v1513
    %2458 = vmatmul.bf16.gmra.mxu0 %v554
    %v2459 = vpop.f32.mrf.mxu0
    %v2460 = vadd.f32 %v2411, %v2459
    %v2461 = vpop.f32.mrf.mxu0
    %v2462 = vadd.f32 %v2413, %v2461
    %2463 = vmatmul.bf16.gmra.mxu0 %v562
    %v2464 = vpop.f32.mrf.mxu0
    %v2465 = vadd.f32 %v2416, %v2464
    %v2466 = vpop.f32.mrf.mxu0
    %v2467 = vadd.f32 %v2418, %v2466
    %2468 = vmatmul.bf16.gmra.mxu0 %v570
    %v2469 = vpop.f32.mrf.mxu0
    %v2470 = vadd.f32 %v2421, %v2469
    %v2471 = vpop.f32.mrf.mxu0
    %v2472 = vadd.f32 %v2423, %v2471
    %2473 = vmatmul.bf16.gmra.mxu0 %v578
    %v2474 = vpop.f32.mrf.mxu0
    %v2475 = vadd.f32 %v2426, %v2474
    %v2476 = vpop.f32.mrf.mxu0
    %v2477 = vadd.f32 %v2428, %v2476
    %2478 = vmatmul.bf16.gmra.mxu0 %v586
    %v2479 = vpop.f32.mrf.mxu0
    %v2480 = vadd.f32 %v2431, %v2479
    %v2481 = vpop.f32.mrf.mxu0
    %v2482 = vadd.f32 %v2433, %v2481
    %2483 = vmatmul.bf16.gmra.mxu0 %v594
    %v2484 = vpop.f32.mrf.mxu0
    %v2485 = vadd.f32 %v2436, %v2484
    %v2486 = vpop.f32.mrf.mxu0
    %v2487 = vadd.f32 %v2438, %v2486
    %2488 = vmatmul.bf16.gmra.mxu0 %v602
    %v2489 = vpop.f32.mrf.mxu0
    %v2490 = vadd.f32 %v2441, %v2489
    %v2491 = vpop.f32.mrf.mxu0
    %v2492 = vadd.f32 %v2443, %v2491
    %2493 = vmatmul.bf16.gmra.mxu0 %v610
    %v2494 = vpop.f32.mrf.mxu0
    %v2495 = vadd.f32 %v2446, %v2494
    %v2496 = vpop.f32.mrf.mxu0
    %v2497 = vadd.f32 %v2448, %v2496
    %2498 = vdwg.mxu0
    %2499 = vmatpush.bf16.msra.mxu0 %v1573
    %2500 = vmatpush.bf16.msra.mxu0 %v1569
    %2501 = vmatpush.bf16.msra.mxu0 %v1565
    %2502 = vmatpush.bf16.msra.mxu0 %v1561
    %2503 = vmatpush.bf16.msra.mxu0 %v1557
    %2504 = vmatpush.bf16.msra.mxu0 %v1553
    %2505 = vmatpush.bf16.msra.mxu0 %v1549
    %2506 = vmatpush.bf16.msra.mxu0 %v1545
    %2507 = vmatmul.bf16.gmra.mxu0 %v555
    %v2508 = vpop.f32.mrf.mxu0
    %v2509 = vadd.f32 %v2460, %v2508
    %v2510 = vpop.f32.mrf.mxu0
    %v2511 = vadd.f32 %v2462, %v2510
    %2512 = vmatmul.bf16.gmra.mxu0 %v563
    %v2513 = vpop.f32.mrf.mxu0
    %v2514 = vadd.f32 %v2465, %v2513
    %v2515 = vpop.f32.mrf.mxu0
    %v2516 = vadd.f32 %v2467, %v2515
    %2517 = vmatmul.bf16.gmra.mxu0 %v571
    %v2518 = vpop.f32.mrf.mxu0
    %v2519 = vadd.f32 %v2470, %v2518
    %v2520 = vpop.f32.mrf.mxu0
    %v2521 = vadd.f32 %v2472, %v2520
    %2522 = vmatmul.bf16.gmra.mxu0 %v579
    %v2523 = vpop.f32.mrf.mxu0
    %v2524 = vadd.f32 %v2475, %v2523
    %v2525 = vpop.f32.mrf.mxu0
    %v2526 = vadd.f32 %v2477, %v2525
    %2527 = vmatmul.bf16.gmra.mxu0 %v587
    %v2528 = vpop.f32.mrf.mxu0
    %v2529 = vadd.f32 %v2480, %v2528
    %v2530 = vpop.f32.mrf.mxu0
    %v2531 = vadd.f32 %v2482, %v2530
    %2532 = vmatmul.bf16.gmra.mxu0 %v595
    %v2533 = vpop.f32.mrf.mxu0
    %v2534 = vadd.f32 %v2485, %v2533
    %v2535 = vpop.f32.mrf.mxu0
    %v2536 = vadd.f32 %v2487, %v2535
    %2537 = vmatmul.bf16.gmra.mxu0 %v603
    %v2538 = vpop.f32.mrf.mxu0
    %v2539 = vadd.f32 %v2490, %v2538
    %v2540 = vpop.f32.mrf.mxu0
    %v2541 = vadd.f32 %v2492, %v2540
    %2542 = vmatmul.bf16.gmra.mxu0 %v611
    %v2543 = vpop.f32.mrf.mxu0
    %v2544 = vadd.f32 %v2495, %v2543
    %v2545 = vpop.f32.mrf.mxu0
    %v2546 = vadd.f32 %v2497, %v2545
    %2547 = vdwg.mxu0
    %2548 = vmatpush.bf16.msra.mxu0 %v1605
    %2549 = vmatpush.bf16.msra.mxu0 %v1601
    %2550 = vmatpush.bf16.msra.mxu0 %v1597
    %2551 = vmatpush.bf16.msra.mxu0 %v1593
    %2552 = vmatpush.bf16.msra.mxu0 %v1589
    %2553 = vmatpush.bf16.msra.mxu0 %v1585
    %2554 = vmatpush.bf16.msra.mxu0 %v1581
    %2555 = vmatpush.bf16.msra.mxu0 %v1577
    %2556 = vmatmul.bf16.gmra.mxu0 %v556
    %v2557 = vpop.f32.mrf.mxu0
    %v2558 = vadd.f32 %v2509, %v2557
    %v2559 = vpop.f32.mrf.mxu0
    %v2560 = vadd.f32 %v2511, %v2559
    %2561 = vmatmul.bf16.gmra.mxu0 %v564
    %v2562 = vpop.f32.mrf.mxu0
    %v2563 = vadd.f32 %v2514, %v2562
    %v2564 = vpop.f32.mrf.mxu0
    %v2565 = vadd.f32 %v2516, %v2564
    %2566 = vmatmul.bf16.gmra.mxu0 %v572
    %v2567 = vpop.f32.mrf.mxu0
    %v2568 = vadd.f32 %v2519, %v2567
    %v2569 = vpop.f32.mrf.mxu0
    %v2570 = vadd.f32 %v2521, %v2569
    %2571 = vmatmul.bf16.gmra.mxu0 %v580
    %v2572 = vpop.f32.mrf.mxu0
    %v2573 = vadd.f32 %v2524, %v2572
    %v2574 = vpop.f32.mrf.mxu0
    %v2575 = vadd.f32 %v2526, %v2574
    %2576 = vmatmul.bf16.gmra.mxu0 %v588
    %v2577 = vpop.f32.mrf.mxu0
    %v2578 = vadd.f32 %v2529, %v2577
    %v2579 = vpop.f32.mrf.mxu0
    %v2580 = vadd.f32 %v2531, %v2579
    %2581 = vmatmul.bf16.gmra.mxu0 %v596
    %v2582 = vpop.f32.mrf.mxu0
    %v2583 = vadd.f32 %v2534, %v2582
    %v2584 = vpop.f32.mrf.mxu0
    %v2585 = vadd.f32 %v2536, %v2584
    %2586 = vmatmul.bf16.gmra.mxu0 %v604
    %v2587 = vpop.f32.mrf.mxu0
    %v2588 = vadd.f32 %v2539, %v2587
    %v2589 = vpop.f32.mrf.mxu0
    %v2590 = vadd.f32 %v2541, %v2589
    %2591 = vmatmul.bf16.gmra.mxu0 %v612
    %v2592 = vpop.f32.mrf.mxu0
    %v2593 = vadd.f32 %v2544, %v2592
    %v2594 = vpop.f32.mrf.mxu0
    %v2595 = vadd.f32 %v2546, %v2594
    %2596 = vdwg.mxu0
    %2597 = vmatpush.bf16.msra.mxu0 %v1637
    %2598 = vmatpush.bf16.msra.mxu0 %v1633
    %2599 = vmatpush.bf16.msra.mxu0 %v1629
    %2600 = vmatpush.bf16.msra.mxu0 %v1625
    %2601 = vmatpush.bf16.msra.mxu0 %v1621
    %2602 = vmatpush.bf16.msra.mxu0 %v1617
    %2603 = vmatpush.bf16.msra.mxu0 %v1613
    %2604 = vmatpush.bf16.msra.mxu0 %v1609
    %2605 = vmatmul.bf16.gmra.mxu0 %v557
    %v2606 = vpop.f32.mrf.mxu0
    %v2607 = vadd.f32 %v2558, %v2606
    %v2608 = vpop.f32.mrf.mxu0
    %v2609 = vadd.f32 %v2560, %v2608
    %2610 = vmatmul.bf16.gmra.mxu0 %v565
    %v2611 = vpop.f32.mrf.mxu0
    %v2612 = vadd.f32 %v2563, %v2611
    %v2613 = vpop.f32.mrf.mxu0
    %v2614 = vadd.f32 %v2565, %v2613
    %2615 = vmatmul.bf16.gmra.mxu0 %v573
    %v2616 = vpop.f32.mrf.mxu0
    %v2617 = vadd.f32 %v2568, %v2616
    %v2618 = vpop.f32.mrf.mxu0
    %v2619 = vadd.f32 %v2570, %v2618
    %2620 = vmatmul.bf16.gmra.mxu0 %v581
    %v2621 = vpop.f32.mrf.mxu0
    %v2622 = vadd.f32 %v2573, %v2621
    %v2623 = vpop.f32.mrf.mxu0
    %v2624 = vadd.f32 %v2575, %v2623
    %2625 = vmatmul.bf16.gmra.mxu0 %v589
    %v2626 = vpop.f32.mrf.mxu0
    %v2627 = vadd.f32 %v2578, %v2626
    %v2628 = vpop.f32.mrf.mxu0
    %v2629 = vadd.f32 %v2580, %v2628
    %2630 = vmatmul.bf16.gmra.mxu0 %v597
    %v2631 = vpop.f32.mrf.mxu0
    %v2632 = vadd.f32 %v2583, %v2631
    %v2633 = vpop.f32.mrf.mxu0
    %v2634 = vadd.f32 %v2585, %v2633
    %2635 = vmatmul.bf16.gmra.mxu0 %v605
    %v2636 = vpop.f32.mrf.mxu0
    %v2637 = vadd.f32 %v2588, %v2636
    %v2638 = vpop.f32.mrf.mxu0
    %v2639 = vadd.f32 %v2590, %v2638
    %2640 = vmatmul.bf16.gmra.mxu0 %v613
    %v2641 = vpop.f32.mrf.mxu0
    %v2642 = vadd.f32 %v2593, %v2641
    %v2643 = vpop.f32.mrf.mxu0
    %v2644 = vadd.f32 %v2595, %v2643
    %2645 = vdwg.mxu0
    %2646 = vmatpush.bf16.msra.mxu0 %v1669
    %2647 = vmatpush.bf16.msra.mxu0 %v1665
    %2648 = vmatpush.bf16.msra.mxu0 %v1661
    %2649 = vmatpush.bf16.msra.mxu0 %v1657
    %2650 = vmatpush.bf16.msra.mxu0 %v1653
    %2651 = vmatpush.bf16.msra.mxu0 %v1649
    %2652 = vmatpush.bf16.msra.mxu0 %v1645
    %2653 = vmatpush.bf16.msra.mxu0 %v1641
    %2654 = vmatmul.bf16.gmra.mxu0 %v558
    %v2655 = vpop.f32.mrf.mxu0
    %v2656 = vadd.f32 %v2607, %v2655
    %v2657 = vpop.f32.mrf.mxu0
    %v2658 = vadd.f32 %v2609, %v2657
    %2659 = vmatmul.bf16.gmra.mxu0 %v566
    %v2660 = vpop.f32.mrf.mxu0
    %v2661 = vadd.f32 %v2612, %v2660
    %v2662 = vpop.f32.mrf.mxu0
    %v2663 = vadd.f32 %v2614, %v2662
    %2664 = vmatmul.bf16.gmra.mxu0 %v574
    %v2665 = vpop.f32.mrf.mxu0
    %v2666 = vadd.f32 %v2617, %v2665
    %v2667 = vpop.f32.mrf.mxu0
    %v2668 = vadd.f32 %v2619, %v2667
    %2669 = vmatmul.bf16.gmra.mxu0 %v582
    %v2670 = vpop.f32.mrf.mxu0
    %v2671 = vadd.f32 %v2622, %v2670
    %v2672 = vpop.f32.mrf.mxu0
    %v2673 = vadd.f32 %v2624, %v2672
    %2674 = vmatmul.bf16.gmra.mxu0 %v590
    %v2675 = vpop.f32.mrf.mxu0
    %v2676 = vadd.f32 %v2627, %v2675
    %v2677 = vpop.f32.mrf.mxu0
    %v2678 = vadd.f32 %v2629, %v2677
    %2679 = vmatmul.bf16.gmra.mxu0 %v598
    %v2680 = vpop.f32.mrf.mxu0
    %v2681 = vadd.f32 %v2632, %v2680
    %v2682 = vpop.f32.mrf.mxu0
    %v2683 = vadd.f32 %v2634, %v2682
    %2684 = vmatmul.bf16.gmra.mxu0 %v606
    %v2685 = vpop.f32.mrf.mxu0
    %v2686 = vadd.f32 %v2637, %v2685
    %v2687 = vpop.f32.mrf.mxu0
    %v2688 = vadd.f32 %v2639, %v2687
    %2689 = vmatmul.bf16.gmra.mxu0 %v614
    %v2690 = vpop.f32.mrf.mxu0
    %v2691 = vadd.f32 %v2642, %v2690
    %v2692 = vpop.f32.mrf.mxu0
    %v2693 = vadd.f32 %v2644, %v2692
    %2694 = vdwg.mxu0
    %2695 = vmatpush.bf16.msra.mxu0 %v1701
    %2696 = vmatpush.bf16.msra.mxu0 %v1697
    %2697 = vmatpush.bf16.msra.mxu0 %v1693
    %2698 = vmatpush.bf16.msra.mxu0 %v1689
    %2699 = vmatpush.bf16.msra.mxu0 %v1685
    %2700 = vmatpush.bf16.msra.mxu0 %v1681
    %2701 = vmatpush.bf16.msra.mxu0 %v1677
    %2702 = vmatpush.bf16.msra.mxu0 %v1673
    %2703 = vmatmul.bf16.gmra.mxu0 %v559
    %v2704 = vpop.f32.mrf.mxu0
    %v2705 = vadd.f32 %v2656, %v2704
    %v2706 = vpop.f32.mrf.mxu0
    %v2707 = vadd.f32 %v2658, %v2706
    %2708 = vmatmul.bf16.gmra.mxu0 %v567
    %v2709 = vpop.f32.mrf.mxu0
    %v2710 = vadd.f32 %v2661, %v2709
    %v2711 = vpop.f32.mrf.mxu0
    %v2712 = vadd.f32 %v2663, %v2711
    %2713 = vmatmul.bf16.gmra.mxu0 %v575
    %v2714 = vpop.f32.mrf.mxu0
    %v2715 = vadd.f32 %v2666, %v2714
    %v2716 = vpop.f32.mrf.mxu0
    %v2717 = vadd.f32 %v2668, %v2716
    %2718 = vmatmul.bf16.gmra.mxu0 %v583
    %v2719 = vpop.f32.mrf.mxu0
    %v2720 = vadd.f32 %v2671, %v2719
    %v2721 = vpop.f32.mrf.mxu0
    %v2722 = vadd.f32 %v2673, %v2721
    %2723 = vmatmul.bf16.gmra.mxu0 %v591
    %v2724 = vpop.f32.mrf.mxu0
    %v2725 = vadd.f32 %v2676, %v2724
    %v2726 = vpop.f32.mrf.mxu0
    %v2727 = vadd.f32 %v2678, %v2726
    %2728 = vmatmul.bf16.gmra.mxu0 %v599
    %v2729 = vpop.f32.mrf.mxu0
    %v2730 = vadd.f32 %v2681, %v2729
    %v2731 = vpop.f32.mrf.mxu0
    %v2732 = vadd.f32 %v2683, %v2731
    %2733 = vmatmul.bf16.gmra.mxu0 %v607
    %v2734 = vpop.f32.mrf.mxu0
    %v2735 = vadd.f32 %v2686, %v2734
    %v2736 = vpop.f32.mrf.mxu0
    %v2737 = vadd.f32 %v2688, %v2736
    %2738 = vmatmul.bf16.gmra.mxu0 %v615
    %v2739 = vpop.f32.mrf.mxu0
    %v2740 = vadd.f32 %v2691, %v2739
    %v2741 = vpop.f32.mrf.mxu0
    %v2742 = vadd.f32 %v2693, %v2741
    %2743 = vdwg.mxu0
    %2744 = vmatpush.bf16.msra.mxu0 %v1478
    %2745 = vmatpush.bf16.msra.mxu0 %v1474
    %2746 = vmatpush.bf16.msra.mxu0 %v1470
    %2747 = vmatpush.bf16.msra.mxu0 %v1466
    %2748 = vmatpush.bf16.msra.mxu0 %v1462
    %2749 = vmatpush.bf16.msra.mxu0 %v1458
    %2750 = vmatpush.bf16.msra.mxu0 %v1454
    %2751 = vmatpush.bf16.msra.mxu0 %v1450
    %2752 = vmatmul.bf16.gmra.mxu0 %v552
    %v2753 = vpop.f32.mrf.mxu0
    %v2754 = vadd.f32 %v354, %v2753
    %v2755 = vpop.f32.mrf.mxu0
    %v2756 = vadd.f32 %v354, %v2755
    %2757 = vmatmul.bf16.gmra.mxu0 %v560
    %v2758 = vpop.f32.mrf.mxu0
    %v2759 = vadd.f32 %v354, %v2758
    %v2760 = vpop.f32.mrf.mxu0
    %v2761 = vadd.f32 %v354, %v2760
    %2762 = vmatmul.bf16.gmra.mxu0 %v568
    %v2763 = vpop.f32.mrf.mxu0
    %v2764 = vadd.f32 %v354, %v2763
    %v2765 = vpop.f32.mrf.mxu0
    %v2766 = vadd.f32 %v354, %v2765
    %2767 = vmatmul.bf16.gmra.mxu0 %v576
    %v2768 = vpop.f32.mrf.mxu0
    %v2769 = vadd.f32 %v354, %v2768
    %v2770 = vpop.f32.mrf.mxu0
    %v2771 = vadd.f32 %v354, %v2770
    %2772 = vmatmul.bf16.gmra.mxu0 %v584
    %v2773 = vpop.f32.mrf.mxu0
    %v2774 = vadd.f32 %v354, %v2773
    %v2775 = vpop.f32.mrf.mxu0
    %v2776 = vadd.f32 %v354, %v2775
    %2777 = vmatmul.bf16.gmra.mxu0 %v592
    %v2778 = vpop.f32.mrf.mxu0
    %v2779 = vadd.f32 %v354, %v2778
    %v2780 = vpop.f32.mrf.mxu0
    %v2781 = vadd.f32 %v354, %v2780
    %2782 = vmatmul.bf16.gmra.mxu0 %v600
    %v2783 = vpop.f32.mrf.mxu0
    %v2784 = vadd.f32 %v354, %v2783
    %v2785 = vpop.f32.mrf.mxu0
    %v2786 = vadd.f32 %v354, %v2785
    %2787 = vmatmul.bf16.gmra.mxu0 %v608
    %v2788 = vpop.f32.mrf.mxu0
    %v2789 = vadd.f32 %v354, %v2788
    %v2790 = vpop.f32.mrf.mxu0
    %v2791 = vadd.f32 %v354, %v2790
    %2792 = vdwg.mxu0
    %2793 = vmatpush.bf16.msra.mxu0 %v1510
    %2794 = vmatpush.bf16.msra.mxu0 %v1506
    %2795 = vmatpush.bf16.msra.mxu0 %v1502
    %2796 = vmatpush.bf16.msra.mxu0 %v1498
    %2797 = vmatpush.bf16.msra.mxu0 %v1494
    %2798 = vmatpush.bf16.msra.mxu0 %v1490
    %2799 = vmatpush.bf16.msra.mxu0 %v1486
    %2800 = vmatpush.bf16.msra.mxu0 %v1482
    %2801 = vmatmul.bf16.gmra.mxu0 %v553
    %v2802 = vpop.f32.mrf.mxu0
    %v2803 = vadd.f32 %v2754, %v2802
    %v2804 = vpop.f32.mrf.mxu0
    %v2805 = vadd.f32 %v2756, %v2804
    %2806 = vmatmul.bf16.gmra.mxu0 %v561
    %v2807 = vpop.f32.mrf.mxu0
    %v2808 = vadd.f32 %v2759, %v2807
    %v2809 = vpop.f32.mrf.mxu0
    %v2810 = vadd.f32 %v2761, %v2809
    %2811 = vmatmul.bf16.gmra.mxu0 %v569
    %v2812 = vpop.f32.mrf.mxu0
    %v2813 = vadd.f32 %v2764, %v2812
    %v2814 = vpop.f32.mrf.mxu0
    %v2815 = vadd.f32 %v2766, %v2814
    %2816 = vmatmul.bf16.gmra.mxu0 %v577
    %v2817 = vpop.f32.mrf.mxu0
    %v2818 = vadd.f32 %v2769, %v2817
    %v2819 = vpop.f32.mrf.mxu0
    %v2820 = vadd.f32 %v2771, %v2819
    %2821 = vmatmul.bf16.gmra.mxu0 %v585
    %v2822 = vpop.f32.mrf.mxu0
    %v2823 = vadd.f32 %v2774, %v2822
    %v2824 = vpop.f32.mrf.mxu0
    %v2825 = vadd.f32 %v2776, %v2824
    %2826 = vmatmul.bf16.gmra.mxu0 %v593
    %v2827 = vpop.f32.mrf.mxu0
    %v2828 = vadd.f32 %v2779, %v2827
    %v2829 = vpop.f32.mrf.mxu0
    %v2830 = vadd.f32 %v2781, %v2829
    %2831 = vmatmul.bf16.gmra.mxu0 %v601
    %v2832 = vpop.f32.mrf.mxu0
    %v2833 = vadd.f32 %v2784, %v2832
    %v2834 = vpop.f32.mrf.mxu0
    %v2835 = vadd.f32 %v2786, %v2834
    %2836 = vmatmul.bf16.gmra.mxu0 %v609
    %v2837 = vpop.f32.mrf.mxu0
    %v2838 = vadd.f32 %v2789, %v2837
    %v2839 = vpop.f32.mrf.mxu0
    %v2840 = vadd.f32 %v2791, %v2839
    %2841 = vdwg.mxu0
    %2842 = vmatpush.bf16.msra.mxu0 %v1542
    %2843 = vmatpush.bf16.msra.mxu0 %v1538
    %2844 = vmatpush.bf16.msra.mxu0 %v1534
    %2845 = vmatpush.bf16.msra.mxu0 %v1530
    %2846 = vmatpush.bf16.msra.mxu0 %v1526
    %2847 = vmatpush.bf16.msra.mxu0 %v1522
    %2848 = vmatpush.bf16.msra.mxu0 %v1518
    %2849 = vmatpush.bf16.msra.mxu0 %v1514
    %2850 = vmatmul.bf16.gmra.mxu0 %v554
    %v2851 = vpop.f32.mrf.mxu0
    %v2852 = vadd.f32 %v2803, %v2851
    %v2853 = vpop.f32.mrf.mxu0
    %v2854 = vadd.f32 %v2805, %v2853
    %2855 = vmatmul.bf16.gmra.mxu0 %v562
    %v2856 = vpop.f32.mrf.mxu0
    %v2857 = vadd.f32 %v2808, %v2856
    %v2858 = vpop.f32.mrf.mxu0
    %v2859 = vadd.f32 %v2810, %v2858
    %2860 = vmatmul.bf16.gmra.mxu0 %v570
    %v2861 = vpop.f32.mrf.mxu0
    %v2862 = vadd.f32 %v2813, %v2861
    %v2863 = vpop.f32.mrf.mxu0
    %v2864 = vadd.f32 %v2815, %v2863
    %2865 = vmatmul.bf16.gmra.mxu0 %v578
    %v2866 = vpop.f32.mrf.mxu0
    %v2867 = vadd.f32 %v2818, %v2866
    %v2868 = vpop.f32.mrf.mxu0
    %v2869 = vadd.f32 %v2820, %v2868
    %2870 = vmatmul.bf16.gmra.mxu0 %v586
    %v2871 = vpop.f32.mrf.mxu0
    %v2872 = vadd.f32 %v2823, %v2871
    %v2873 = vpop.f32.mrf.mxu0
    %v2874 = vadd.f32 %v2825, %v2873
    %2875 = vmatmul.bf16.gmra.mxu0 %v594
    %v2876 = vpop.f32.mrf.mxu0
    %v2877 = vadd.f32 %v2828, %v2876
    %v2878 = vpop.f32.mrf.mxu0
    %v2879 = vadd.f32 %v2830, %v2878
    %2880 = vmatmul.bf16.gmra.mxu0 %v602
    %v2881 = vpop.f32.mrf.mxu0
    %v2882 = vadd.f32 %v2833, %v2881
    %v2883 = vpop.f32.mrf.mxu0
    %v2884 = vadd.f32 %v2835, %v2883
    %2885 = vmatmul.bf16.gmra.mxu0 %v610
    %v2886 = vpop.f32.mrf.mxu0
    %v2887 = vadd.f32 %v2838, %v2886
    %v2888 = vpop.f32.mrf.mxu0
    %v2889 = vadd.f32 %v2840, %v2888
    %2890 = vdwg.mxu0
    %2891 = vmatpush.bf16.msra.mxu0 %v1574
    %2892 = vmatpush.bf16.msra.mxu0 %v1570
    %2893 = vmatpush.bf16.msra.mxu0 %v1566
    %2894 = vmatpush.bf16.msra.mxu0 %v1562
    %2895 = vmatpush.bf16.msra.mxu0 %v1558
    %2896 = vmatpush.bf16.msra.mxu0 %v1554
    %2897 = vmatpush.bf16.msra.mxu0 %v1550
    %2898 = vmatpush.bf16.msra.mxu0 %v1546
    %2899 = vmatmul.bf16.gmra.mxu0 %v555
    %v2900 = vpop.f32.mrf.mxu0
    %v2901 = vadd.f32 %v2852, %v2900
    %v2902 = vpop.f32.mrf.mxu0
    %v2903 = vadd.f32 %v2854, %v2902
    %2904 = vmatmul.bf16.gmra.mxu0 %v563
    %v2905 = vpop.f32.mrf.mxu0
    %v2906 = vadd.f32 %v2857, %v2905
    %v2907 = vpop.f32.mrf.mxu0
    %v2908 = vadd.f32 %v2859, %v2907
    %2909 = vmatmul.bf16.gmra.mxu0 %v571
    %v2910 = vpop.f32.mrf.mxu0
    %v2911 = vadd.f32 %v2862, %v2910
    %v2912 = vpop.f32.mrf.mxu0
    %v2913 = vadd.f32 %v2864, %v2912
    %2914 = vmatmul.bf16.gmra.mxu0 %v579
    %v2915 = vpop.f32.mrf.mxu0
    %v2916 = vadd.f32 %v2867, %v2915
    %v2917 = vpop.f32.mrf.mxu0
    %v2918 = vadd.f32 %v2869, %v2917
    %2919 = vmatmul.bf16.gmra.mxu0 %v587
    %v2920 = vpop.f32.mrf.mxu0
    %v2921 = vadd.f32 %v2872, %v2920
    %v2922 = vpop.f32.mrf.mxu0
    %v2923 = vadd.f32 %v2874, %v2922
    %2924 = vmatmul.bf16.gmra.mxu0 %v595
    %v2925 = vpop.f32.mrf.mxu0
    %v2926 = vadd.f32 %v2877, %v2925
    %v2927 = vpop.f32.mrf.mxu0
    %v2928 = vadd.f32 %v2879, %v2927
    %2929 = vmatmul.bf16.gmra.mxu0 %v603
    %v2930 = vpop.f32.mrf.mxu0
    %v2931 = vadd.f32 %v2882, %v2930
    %v2932 = vpop.f32.mrf.mxu0
    %v2933 = vadd.f32 %v2884, %v2932
    %2934 = vmatmul.bf16.gmra.mxu0 %v611
    %v2935 = vpop.f32.mrf.mxu0
    %v2936 = vadd.f32 %v2887, %v2935
    %v2937 = vpop.f32.mrf.mxu0
    %v2938 = vadd.f32 %v2889, %v2937
    %2939 = vdwg.mxu0
    %2940 = vmatpush.bf16.msra.mxu0 %v1606
    %2941 = vmatpush.bf16.msra.mxu0 %v1602
    %2942 = vmatpush.bf16.msra.mxu0 %v1598
    %2943 = vmatpush.bf16.msra.mxu0 %v1594
    %2944 = vmatpush.bf16.msra.mxu0 %v1590
    %2945 = vmatpush.bf16.msra.mxu0 %v1586
    %2946 = vmatpush.bf16.msra.mxu0 %v1582
    %2947 = vmatpush.bf16.msra.mxu0 %v1578
    %2948 = vmatmul.bf16.gmra.mxu0 %v556
    %v2949 = vpop.f32.mrf.mxu0
    %v2950 = vadd.f32 %v2901, %v2949
    %v2951 = vpop.f32.mrf.mxu0
    %v2952 = vadd.f32 %v2903, %v2951
    %2953 = vmatmul.bf16.gmra.mxu0 %v564
    %v2954 = vpop.f32.mrf.mxu0
    %v2955 = vadd.f32 %v2906, %v2954
    %v2956 = vpop.f32.mrf.mxu0
    %v2957 = vadd.f32 %v2908, %v2956
    %2958 = vmatmul.bf16.gmra.mxu0 %v572
    %v2959 = vpop.f32.mrf.mxu0
    %v2960 = vadd.f32 %v2911, %v2959
    %v2961 = vpop.f32.mrf.mxu0
    %v2962 = vadd.f32 %v2913, %v2961
    %2963 = vmatmul.bf16.gmra.mxu0 %v580
    %v2964 = vpop.f32.mrf.mxu0
    %v2965 = vadd.f32 %v2916, %v2964
    %v2966 = vpop.f32.mrf.mxu0
    %v2967 = vadd.f32 %v2918, %v2966
    %2968 = vmatmul.bf16.gmra.mxu0 %v588
    %v2969 = vpop.f32.mrf.mxu0
    %v2970 = vadd.f32 %v2921, %v2969
    %v2971 = vpop.f32.mrf.mxu0
    %v2972 = vadd.f32 %v2923, %v2971
    %2973 = vmatmul.bf16.gmra.mxu0 %v596
    %v2974 = vpop.f32.mrf.mxu0
    %v2975 = vadd.f32 %v2926, %v2974
    %v2976 = vpop.f32.mrf.mxu0
    %v2977 = vadd.f32 %v2928, %v2976
    %2978 = vmatmul.bf16.gmra.mxu0 %v604
    %v2979 = vpop.f32.mrf.mxu0
    %v2980 = vadd.f32 %v2931, %v2979
    %v2981 = vpop.f32.mrf.mxu0
    %v2982 = vadd.f32 %v2933, %v2981
    %2983 = vmatmul.bf16.gmra.mxu0 %v612
    %v2984 = vpop.f32.mrf.mxu0
    %v2985 = vadd.f32 %v2936, %v2984
    %v2986 = vpop.f32.mrf.mxu0
    %v2987 = vadd.f32 %v2938, %v2986
    %2988 = vdwg.mxu0
    %2989 = vmatpush.bf16.msra.mxu0 %v1638
    %2990 = vmatpush.bf16.msra.mxu0 %v1634
    %2991 = vmatpush.bf16.msra.mxu0 %v1630
    %2992 = vmatpush.bf16.msra.mxu0 %v1626
    %2993 = vmatpush.bf16.msra.mxu0 %v1622
    %2994 = vmatpush.bf16.msra.mxu0 %v1618
    %2995 = vmatpush.bf16.msra.mxu0 %v1614
    %2996 = vmatpush.bf16.msra.mxu0 %v1610
    %2997 = vmatmul.bf16.gmra.mxu0 %v557
    %v2998 = vpop.f32.mrf.mxu0
    %v2999 = vadd.f32 %v2950, %v2998
    %v3000 = vpop.f32.mrf.mxu0
    %v3001 = vadd.f32 %v2952, %v3000
    %3002 = vmatmul.bf16.gmra.mxu0 %v565
    %v3003 = vpop.f32.mrf.mxu0
    %v3004 = vadd.f32 %v2955, %v3003
    %v3005 = vpop.f32.mrf.mxu0
    %v3006 = vadd.f32 %v2957, %v3005
    %3007 = vmatmul.bf16.gmra.mxu0 %v573
    %v3008 = vpop.f32.mrf.mxu0
    %v3009 = vadd.f32 %v2960, %v3008
    %v3010 = vpop.f32.mrf.mxu0
    %v3011 = vadd.f32 %v2962, %v3010
    %3012 = vmatmul.bf16.gmra.mxu0 %v581
    %v3013 = vpop.f32.mrf.mxu0
    %v3014 = vadd.f32 %v2965, %v3013
    %v3015 = vpop.f32.mrf.mxu0
    %v3016 = vadd.f32 %v2967, %v3015
    %3017 = vmatmul.bf16.gmra.mxu0 %v589
    %v3018 = vpop.f32.mrf.mxu0
    %v3019 = vadd.f32 %v2970, %v3018
    %v3020 = vpop.f32.mrf.mxu0
    %v3021 = vadd.f32 %v2972, %v3020
    %3022 = vmatmul.bf16.gmra.mxu0 %v597
    %v3023 = vpop.f32.mrf.mxu0
    %v3024 = vadd.f32 %v2975, %v3023
    %v3025 = vpop.f32.mrf.mxu0
    %v3026 = vadd.f32 %v2977, %v3025
    %3027 = vmatmul.bf16.gmra.mxu0 %v605
    %v3028 = vpop.f32.mrf.mxu0
    %v3029 = vadd.f32 %v2980, %v3028
    %v3030 = vpop.f32.mrf.mxu0
    %v3031 = vadd.f32 %v2982, %v3030
    %3032 = vmatmul.bf16.gmra.mxu0 %v613
    %v3033 = vpop.f32.mrf.mxu0
    %v3034 = vadd.f32 %v2985, %v3033
    %v3035 = vpop.f32.mrf.mxu0
    %v3036 = vadd.f32 %v2987, %v3035
    %3037 = vdwg.mxu0
    %3038 = vmatpush.bf16.msra.mxu0 %v1670
    %3039 = vmatpush.bf16.msra.mxu0 %v1666
    %3040 = vmatpush.bf16.msra.mxu0 %v1662
    %3041 = vmatpush.bf16.msra.mxu0 %v1658
    %3042 = vmatpush.bf16.msra.mxu0 %v1654
    %3043 = vmatpush.bf16.msra.mxu0 %v1650
    %3044 = vmatpush.bf16.msra.mxu0 %v1646
    %3045 = vmatpush.bf16.msra.mxu0 %v1642
    %3046 = vmatmul.bf16.gmra.mxu0 %v558
    %v3047 = vpop.f32.mrf.mxu0
    %v3048 = vadd.f32 %v2999, %v3047
    %v3049 = vpop.f32.mrf.mxu0
    %v3050 = vadd.f32 %v3001, %v3049
    %3051 = vmatmul.bf16.gmra.mxu0 %v566
    %v3052 = vpop.f32.mrf.mxu0
    %v3053 = vadd.f32 %v3004, %v3052
    %v3054 = vpop.f32.mrf.mxu0
    %v3055 = vadd.f32 %v3006, %v3054
    %3056 = vmatmul.bf16.gmra.mxu0 %v574
    %v3057 = vpop.f32.mrf.mxu0
    %v3058 = vadd.f32 %v3009, %v3057
    %v3059 = vpop.f32.mrf.mxu0
    %v3060 = vadd.f32 %v3011, %v3059
    %3061 = vmatmul.bf16.gmra.mxu0 %v582
    %v3062 = vpop.f32.mrf.mxu0
    %v3063 = vadd.f32 %v3014, %v3062
    %v3064 = vpop.f32.mrf.mxu0
    %v3065 = vadd.f32 %v3016, %v3064
    %3066 = vmatmul.bf16.gmra.mxu0 %v590
    %v3067 = vpop.f32.mrf.mxu0
    %v3068 = vadd.f32 %v3019, %v3067
    %v3069 = vpop.f32.mrf.mxu0
    %v3070 = vadd.f32 %v3021, %v3069
    %3071 = vmatmul.bf16.gmra.mxu0 %v598
    %v3072 = vpop.f32.mrf.mxu0
    %v3073 = vadd.f32 %v3024, %v3072
    %v3074 = vpop.f32.mrf.mxu0
    %v3075 = vadd.f32 %v3026, %v3074
    %3076 = vmatmul.bf16.gmra.mxu0 %v606
    %v3077 = vpop.f32.mrf.mxu0
    %v3078 = vadd.f32 %v3029, %v3077
    %v3079 = vpop.f32.mrf.mxu0
    %v3080 = vadd.f32 %v3031, %v3079
    %3081 = vmatmul.bf16.gmra.mxu0 %v614
    %v3082 = vpop.f32.mrf.mxu0
    %v3083 = vadd.f32 %v3034, %v3082
    %v3084 = vpop.f32.mrf.mxu0
    %v3085 = vadd.f32 %v3036, %v3084
    %3086 = vdwg.mxu0
    %3087 = vmatpush.bf16.msra.mxu0 %v1702
    %3088 = vmatpush.bf16.msra.mxu0 %v1698
    %3089 = vmatpush.bf16.msra.mxu0 %v1694
    %3090 = vmatpush.bf16.msra.mxu0 %v1690
    %3091 = vmatpush.bf16.msra.mxu0 %v1686
    %3092 = vmatpush.bf16.msra.mxu0 %v1682
    %3093 = vmatpush.bf16.msra.mxu0 %v1678
    %3094 = vmatpush.bf16.msra.mxu0 %v1674
    %3095 = vmatmul.bf16.gmra.mxu0 %v559
    %v3096 = vpop.f32.mrf.mxu0
    %v3097 = vadd.f32 %v3048, %v3096
    %v3098 = vpop.f32.mrf.mxu0
    %v3099 = vadd.f32 %v3050, %v3098
    %3100 = vmatmul.bf16.gmra.mxu0 %v567
    %v3101 = vpop.f32.mrf.mxu0
    %v3102 = vadd.f32 %v3053, %v3101
    %v3103 = vpop.f32.mrf.mxu0
    %v3104 = vadd.f32 %v3055, %v3103
    %3105 = vmatmul.bf16.gmra.mxu0 %v575
    %v3106 = vpop.f32.mrf.mxu0
    %v3107 = vadd.f32 %v3058, %v3106
    %v3108 = vpop.f32.mrf.mxu0
    %v3109 = vadd.f32 %v3060, %v3108
    %3110 = vmatmul.bf16.gmra.mxu0 %v583
    %v3111 = vpop.f32.mrf.mxu0
    %v3112 = vadd.f32 %v3063, %v3111
    %v3113 = vpop.f32.mrf.mxu0
    %v3114 = vadd.f32 %v3065, %v3113
    %3115 = vmatmul.bf16.gmra.mxu0 %v591
    %v3116 = vpop.f32.mrf.mxu0
    %v3117 = vadd.f32 %v3068, %v3116
    %v3118 = vpop.f32.mrf.mxu0
    %v3119 = vadd.f32 %v3070, %v3118
    %3120 = vmatmul.bf16.gmra.mxu0 %v599
    %v3121 = vpop.f32.mrf.mxu0
    %v3122 = vadd.f32 %v3073, %v3121
    %v3123 = vpop.f32.mrf.mxu0
    %v3124 = vadd.f32 %v3075, %v3123
    %3125 = vmatmul.bf16.gmra.mxu0 %v607
    %v3126 = vpop.f32.mrf.mxu0
    %v3127 = vadd.f32 %v3078, %v3126
    %v3128 = vpop.f32.mrf.mxu0
    %v3129 = vadd.f32 %v3080, %v3128
    %3130 = vmatmul.bf16.gmra.mxu0 %v615
    %v3131 = vpop.f32.mrf.mxu0
    %v3132 = vadd.f32 %v3083, %v3131
    %v3133 = vpop.f32.mrf.mxu0
    %v3134 = vadd.f32 %v3085, %v3133
    %3135 = vdwg.mxu0
    %3136 = vmatpush.bf16.msra.mxu0 %v1479
    %3137 = vmatpush.bf16.msra.mxu0 %v1475
    %3138 = vmatpush.bf16.msra.mxu0 %v1471
    %3139 = vmatpush.bf16.msra.mxu0 %v1467
    %3140 = vmatpush.bf16.msra.mxu0 %v1463
    %3141 = vmatpush.bf16.msra.mxu0 %v1459
    %3142 = vmatpush.bf16.msra.mxu0 %v1455
    %3143 = vmatpush.bf16.msra.mxu0 %v1451
    %3144 = vmatmul.bf16.gmra.mxu0 %v552
    %v3145 = vpop.f32.mrf.mxu0
    %v3146 = vadd.f32 %v355, %v3145
    %v3147 = vpop.f32.mrf.mxu0
    %v3148 = vadd.f32 %v355, %v3147
    %3149 = vmatmul.bf16.gmra.mxu0 %v560
    %v3150 = vpop.f32.mrf.mxu0
    %v3151 = vadd.f32 %v355, %v3150
    %v3152 = vpop.f32.mrf.mxu0
    %v3153 = vadd.f32 %v355, %v3152
    %3154 = vmatmul.bf16.gmra.mxu0 %v568
    %v3155 = vpop.f32.mrf.mxu0
    %v3156 = vadd.f32 %v355, %v3155
    %v3157 = vpop.f32.mrf.mxu0
    %v3158 = vadd.f32 %v355, %v3157
    %3159 = vmatmul.bf16.gmra.mxu0 %v576
    %v3160 = vpop.f32.mrf.mxu0
    %v3161 = vadd.f32 %v355, %v3160
    %v3162 = vpop.f32.mrf.mxu0
    %v3163 = vadd.f32 %v355, %v3162
    %3164 = vmatmul.bf16.gmra.mxu0 %v584
    %v3165 = vpop.f32.mrf.mxu0
    %v3166 = vadd.f32 %v355, %v3165
    %v3167 = vpop.f32.mrf.mxu0
    %v3168 = vadd.f32 %v355, %v3167
    %3169 = vmatmul.bf16.gmra.mxu0 %v592
    %v3170 = vpop.f32.mrf.mxu0
    %v3171 = vadd.f32 %v355, %v3170
    %v3172 = vpop.f32.mrf.mxu0
    %v3173 = vadd.f32 %v355, %v3172
    %3174 = vmatmul.bf16.gmra.mxu0 %v600
    %v3175 = vpop.f32.mrf.mxu0
    %v3176 = vadd.f32 %v355, %v3175
    %v3177 = vpop.f32.mrf.mxu0
    %v3178 = vadd.f32 %v355, %v3177
    %3179 = vmatmul.bf16.gmra.mxu0 %v608
    %v3180 = vpop.f32.mrf.mxu0
    %v3181 = vadd.f32 %v355, %v3180
    %v3182 = vpop.f32.mrf.mxu0
    %v3183 = vadd.f32 %v355, %v3182
    %3184 = vdwg.mxu0
    %3185 = vmatpush.bf16.msra.mxu0 %v1511
    %3186 = vmatpush.bf16.msra.mxu0 %v1507
    %3187 = vmatpush.bf16.msra.mxu0 %v1503
    %3188 = vmatpush.bf16.msra.mxu0 %v1499
    %3189 = vmatpush.bf16.msra.mxu0 %v1495
    %3190 = vmatpush.bf16.msra.mxu0 %v1491
    %3191 = vmatpush.bf16.msra.mxu0 %v1487
    %3192 = vmatpush.bf16.msra.mxu0 %v1483
    %3193 = vmatmul.bf16.gmra.mxu0 %v553
    %v3194 = vpop.f32.mrf.mxu0
    %v3195 = vadd.f32 %v3146, %v3194
    %v3196 = vpop.f32.mrf.mxu0
    %v3197 = vadd.f32 %v3148, %v3196
    %3198 = vmatmul.bf16.gmra.mxu0 %v561
    %v3199 = vpop.f32.mrf.mxu0
    %v3200 = vadd.f32 %v3151, %v3199
    %v3201 = vpop.f32.mrf.mxu0
    %v3202 = vadd.f32 %v3153, %v3201
    %3203 = vmatmul.bf16.gmra.mxu0 %v569
    %v3204 = vpop.f32.mrf.mxu0
    %v3205 = vadd.f32 %v3156, %v3204
    %v3206 = vpop.f32.mrf.mxu0
    %v3207 = vadd.f32 %v3158, %v3206
    %3208 = vmatmul.bf16.gmra.mxu0 %v577
    %v3209 = vpop.f32.mrf.mxu0
    %v3210 = vadd.f32 %v3161, %v3209
    %v3211 = vpop.f32.mrf.mxu0
    %v3212 = vadd.f32 %v3163, %v3211
    %3213 = vmatmul.bf16.gmra.mxu0 %v585
    %v3214 = vpop.f32.mrf.mxu0
    %v3215 = vadd.f32 %v3166, %v3214
    %v3216 = vpop.f32.mrf.mxu0
    %v3217 = vadd.f32 %v3168, %v3216
    %3218 = vmatmul.bf16.gmra.mxu0 %v593
    %v3219 = vpop.f32.mrf.mxu0
    %v3220 = vadd.f32 %v3171, %v3219
    %v3221 = vpop.f32.mrf.mxu0
    %v3222 = vadd.f32 %v3173, %v3221
    %3223 = vmatmul.bf16.gmra.mxu0 %v601
    %v3224 = vpop.f32.mrf.mxu0
    %v3225 = vadd.f32 %v3176, %v3224
    %v3226 = vpop.f32.mrf.mxu0
    %v3227 = vadd.f32 %v3178, %v3226
    %3228 = vmatmul.bf16.gmra.mxu0 %v609
    %v3229 = vpop.f32.mrf.mxu0
    %v3230 = vadd.f32 %v3181, %v3229
    %v3231 = vpop.f32.mrf.mxu0
    %v3232 = vadd.f32 %v3183, %v3231
    %3233 = vdwg.mxu0
    %3234 = vmatpush.bf16.msra.mxu0 %v1543
    %3235 = vmatpush.bf16.msra.mxu0 %v1539
    %3236 = vmatpush.bf16.msra.mxu0 %v1535
    %3237 = vmatpush.bf16.msra.mxu0 %v1531
    %3238 = vmatpush.bf16.msra.mxu0 %v1527
    %3239 = vmatpush.bf16.msra.mxu0 %v1523
    %3240 = vmatpush.bf16.msra.mxu0 %v1519
    %3241 = vmatpush.bf16.msra.mxu0 %v1515
    %3242 = vmatmul.bf16.gmra.mxu0 %v554
    %v3243 = vpop.f32.mrf.mxu0
    %v3244 = vadd.f32 %v3195, %v3243
    %v3245 = vpop.f32.mrf.mxu0
    %v3246 = vadd.f32 %v3197, %v3245
    %3247 = vmatmul.bf16.gmra.mxu0 %v562
    %v3248 = vpop.f32.mrf.mxu0
    %v3249 = vadd.f32 %v3200, %v3248
    %v3250 = vpop.f32.mrf.mxu0
    %v3251 = vadd.f32 %v3202, %v3250
    %3252 = vmatmul.bf16.gmra.mxu0 %v570
    %v3253 = vpop.f32.mrf.mxu0
    %v3254 = vadd.f32 %v3205, %v3253
    %v3255 = vpop.f32.mrf.mxu0
    %v3256 = vadd.f32 %v3207, %v3255
    %3257 = vmatmul.bf16.gmra.mxu0 %v578
    %v3258 = vpop.f32.mrf.mxu0
    %v3259 = vadd.f32 %v3210, %v3258
    %v3260 = vpop.f32.mrf.mxu0
    %v3261 = vadd.f32 %v3212, %v3260
    %3262 = vmatmul.bf16.gmra.mxu0 %v586
    %v3263 = vpop.f32.mrf.mxu0
    %v3264 = vadd.f32 %v3215, %v3263
    %v3265 = vpop.f32.mrf.mxu0
    %v3266 = vadd.f32 %v3217, %v3265
    %3267 = vmatmul.bf16.gmra.mxu0 %v594
    %v3268 = vpop.f32.mrf.mxu0
    %v3269 = vadd.f32 %v3220, %v3268
    %v3270 = vpop.f32.mrf.mxu0
    %v3271 = vadd.f32 %v3222, %v3270
    %3272 = vmatmul.bf16.gmra.mxu0 %v602
    %v3273 = vpop.f32.mrf.mxu0
    %v3274 = vadd.f32 %v3225, %v3273
    %v3275 = vpop.f32.mrf.mxu0
    %v3276 = vadd.f32 %v3227, %v3275
    %3277 = vmatmul.bf16.gmra.mxu0 %v610
    %v3278 = vpop.f32.mrf.mxu0
    %v3279 = vadd.f32 %v3230, %v3278
    %v3280 = vpop.f32.mrf.mxu0
    %v3281 = vadd.f32 %v3232, %v3280
    %3282 = vdwg.mxu0
    %3283 = vmatpush.bf16.msra.mxu0 %v1575
    %3284 = vmatpush.bf16.msra.mxu0 %v1571
    %3285 = vmatpush.bf16.msra.mxu0 %v1567
    %3286 = vmatpush.bf16.msra.mxu0 %v1563
    %3287 = vmatpush.bf16.msra.mxu0 %v1559
    %3288 = vmatpush.bf16.msra.mxu0 %v1555
    %3289 = vmatpush.bf16.msra.mxu0 %v1551
    %3290 = vmatpush.bf16.msra.mxu0 %v1547
    %3291 = vmatmul.bf16.gmra.mxu0 %v555
    %v3292 = vpop.f32.mrf.mxu0
    %v3293 = vadd.f32 %v3244, %v3292
    %v3294 = vpop.f32.mrf.mxu0
    %v3295 = vadd.f32 %v3246, %v3294
    %3296 = vmatmul.bf16.gmra.mxu0 %v563
    %v3297 = vpop.f32.mrf.mxu0
    %v3298 = vadd.f32 %v3249, %v3297
    %v3299 = vpop.f32.mrf.mxu0
    %v3300 = vadd.f32 %v3251, %v3299
    %3301 = vmatmul.bf16.gmra.mxu0 %v571
    %v3302 = vpop.f32.mrf.mxu0
    %v3303 = vadd.f32 %v3254, %v3302
    %v3304 = vpop.f32.mrf.mxu0
    %v3305 = vadd.f32 %v3256, %v3304
    %3306 = vmatmul.bf16.gmra.mxu0 %v579
    %v3307 = vpop.f32.mrf.mxu0
    %v3308 = vadd.f32 %v3259, %v3307
    %v3309 = vpop.f32.mrf.mxu0
    %v3310 = vadd.f32 %v3261, %v3309
    %3311 = vmatmul.bf16.gmra.mxu0 %v587
    %v3312 = vpop.f32.mrf.mxu0
    %v3313 = vadd.f32 %v3264, %v3312
    %v3314 = vpop.f32.mrf.mxu0
    %v3315 = vadd.f32 %v3266, %v3314
    %3316 = vmatmul.bf16.gmra.mxu0 %v595
    %v3317 = vpop.f32.mrf.mxu0
    %v3318 = vadd.f32 %v3269, %v3317
    %v3319 = vpop.f32.mrf.mxu0
    %v3320 = vadd.f32 %v3271, %v3319
    %3321 = vmatmul.bf16.gmra.mxu0 %v603
    %v3322 = vpop.f32.mrf.mxu0
    %v3323 = vadd.f32 %v3274, %v3322
    %v3324 = vpop.f32.mrf.mxu0
    %v3325 = vadd.f32 %v3276, %v3324
    %3326 = vmatmul.bf16.gmra.mxu0 %v611
    %v3327 = vpop.f32.mrf.mxu0
    %v3328 = vadd.f32 %v3279, %v3327
    %v3329 = vpop.f32.mrf.mxu0
    %v3330 = vadd.f32 %v3281, %v3329
    %3331 = vdwg.mxu0
    %3332 = vmatpush.bf16.msra.mxu0 %v1607
    %3333 = vmatpush.bf16.msra.mxu0 %v1603
    %3334 = vmatpush.bf16.msra.mxu0 %v1599
    %3335 = vmatpush.bf16.msra.mxu0 %v1595
    %3336 = vmatpush.bf16.msra.mxu0 %v1591
    %3337 = vmatpush.bf16.msra.mxu0 %v1587
    %3338 = vmatpush.bf16.msra.mxu0 %v1583
    %3339 = vmatpush.bf16.msra.mxu0 %v1579
    %3340 = vmatmul.bf16.gmra.mxu0 %v556
    %v3341 = vpop.f32.mrf.mxu0
    %v3342 = vadd.f32 %v3293, %v3341
    %v3343 = vpop.f32.mrf.mxu0
    %v3344 = vadd.f32 %v3295, %v3343
    %3345 = vmatmul.bf16.gmra.mxu0 %v564
    %v3346 = vpop.f32.mrf.mxu0
    %v3347 = vadd.f32 %v3298, %v3346
    %v3348 = vpop.f32.mrf.mxu0
    %v3349 = vadd.f32 %v3300, %v3348
    %3350 = vmatmul.bf16.gmra.mxu0 %v572
    %v3351 = vpop.f32.mrf.mxu0
    %v3352 = vadd.f32 %v3303, %v3351
    %v3353 = vpop.f32.mrf.mxu0
    %v3354 = vadd.f32 %v3305, %v3353
    %3355 = vmatmul.bf16.gmra.mxu0 %v580
    %v3356 = vpop.f32.mrf.mxu0
    %v3357 = vadd.f32 %v3308, %v3356
    %v3358 = vpop.f32.mrf.mxu0
    %v3359 = vadd.f32 %v3310, %v3358
    %3360 = vmatmul.bf16.gmra.mxu0 %v588
    %v3361 = vpop.f32.mrf.mxu0
    %v3362 = vadd.f32 %v3313, %v3361
    %v3363 = vpop.f32.mrf.mxu0
    %v3364 = vadd.f32 %v3315, %v3363
    %3365 = vmatmul.bf16.gmra.mxu0 %v596
    %v3366 = vpop.f32.mrf.mxu0
    %v3367 = vadd.f32 %v3318, %v3366
    %v3368 = vpop.f32.mrf.mxu0
    %v3369 = vadd.f32 %v3320, %v3368
    %3370 = vmatmul.bf16.gmra.mxu0 %v604
    %v3371 = vpop.f32.mrf.mxu0
    %v3372 = vadd.f32 %v3323, %v3371
    %v3373 = vpop.f32.mrf.mxu0
    %v3374 = vadd.f32 %v3325, %v3373
    %3375 = vmatmul.bf16.gmra.mxu0 %v612
    %v3376 = vpop.f32.mrf.mxu0
    %v3377 = vadd.f32 %v3328, %v3376
    %v3378 = vpop.f32.mrf.mxu0
    %v3379 = vadd.f32 %v3330, %v3378
    %3380 = vdwg.mxu0
    %3381 = vmatpush.bf16.msra.mxu0 %v1639
    %3382 = vmatpush.bf16.msra.mxu0 %v1635
    %3383 = vmatpush.bf16.msra.mxu0 %v1631
    %3384 = vmatpush.bf16.msra.mxu0 %v1627
    %3385 = vmatpush.bf16.msra.mxu0 %v1623
    %3386 = vmatpush.bf16.msra.mxu0 %v1619
    %3387 = vmatpush.bf16.msra.mxu0 %v1615
    %3388 = vmatpush.bf16.msra.mxu0 %v1611
    %3389 = vmatmul.bf16.gmra.mxu0 %v557
    %v3390 = vpop.f32.mrf.mxu0
    %v3391 = vadd.f32 %v3342, %v3390
    %v3392 = vpop.f32.mrf.mxu0
    %v3393 = vadd.f32 %v3344, %v3392
    %3394 = vmatmul.bf16.gmra.mxu0 %v565
    %v3395 = vpop.f32.mrf.mxu0
    %v3396 = vadd.f32 %v3347, %v3395
    %v3397 = vpop.f32.mrf.mxu0
    %v3398 = vadd.f32 %v3349, %v3397
    %3399 = vmatmul.bf16.gmra.mxu0 %v573
    %v3400 = vpop.f32.mrf.mxu0
    %v3401 = vadd.f32 %v3352, %v3400
    %v3402 = vpop.f32.mrf.mxu0
    %v3403 = vadd.f32 %v3354, %v3402
    %3404 = vmatmul.bf16.gmra.mxu0 %v581
    %v3405 = vpop.f32.mrf.mxu0
    %v3406 = vadd.f32 %v3357, %v3405
    %v3407 = vpop.f32.mrf.mxu0
    %v3408 = vadd.f32 %v3359, %v3407
    %3409 = vmatmul.bf16.gmra.mxu0 %v589
    %v3410 = vpop.f32.mrf.mxu0
    %v3411 = vadd.f32 %v3362, %v3410
    %v3412 = vpop.f32.mrf.mxu0
    %v3413 = vadd.f32 %v3364, %v3412
    %3414 = vmatmul.bf16.gmra.mxu0 %v597
    %v3415 = vpop.f32.mrf.mxu0
    %v3416 = vadd.f32 %v3367, %v3415
    %v3417 = vpop.f32.mrf.mxu0
    %v3418 = vadd.f32 %v3369, %v3417
    %3419 = vmatmul.bf16.gmra.mxu0 %v605
    %v3420 = vpop.f32.mrf.mxu0
    %v3421 = vadd.f32 %v3372, %v3420
    %v3422 = vpop.f32.mrf.mxu0
    %v3423 = vadd.f32 %v3374, %v3422
    %3424 = vmatmul.bf16.gmra.mxu0 %v613
    %v3425 = vpop.f32.mrf.mxu0
    %v3426 = vadd.f32 %v3377, %v3425
    %v3427 = vpop.f32.mrf.mxu0
    %v3428 = vadd.f32 %v3379, %v3427
    %3429 = vdwg.mxu0
    %3430 = vmatpush.bf16.msra.mxu0 %v1671
    %3431 = vmatpush.bf16.msra.mxu0 %v1667
    %3432 = vmatpush.bf16.msra.mxu0 %v1663
    %3433 = vmatpush.bf16.msra.mxu0 %v1659
    %3434 = vmatpush.bf16.msra.mxu0 %v1655
    %3435 = vmatpush.bf16.msra.mxu0 %v1651
    %3436 = vmatpush.bf16.msra.mxu0 %v1647
    %3437 = vmatpush.bf16.msra.mxu0 %v1643
    %3438 = vmatmul.bf16.gmra.mxu0 %v558
    %v3439 = vpop.f32.mrf.mxu0
    %v3440 = vadd.f32 %v3391, %v3439
    %v3441 = vpop.f32.mrf.mxu0
    %v3442 = vadd.f32 %v3393, %v3441
    %3443 = vmatmul.bf16.gmra.mxu0 %v566
    %v3444 = vpop.f32.mrf.mxu0
    %v3445 = vadd.f32 %v3396, %v3444
    %v3446 = vpop.f32.mrf.mxu0
    %v3447 = vadd.f32 %v3398, %v3446
    %3448 = vmatmul.bf16.gmra.mxu0 %v574
    %v3449 = vpop.f32.mrf.mxu0
    %v3450 = vadd.f32 %v3401, %v3449
    %v3451 = vpop.f32.mrf.mxu0
    %v3452 = vadd.f32 %v3403, %v3451
    %3453 = vmatmul.bf16.gmra.mxu0 %v582
    %v3454 = vpop.f32.mrf.mxu0
    %v3455 = vadd.f32 %v3406, %v3454
    %v3456 = vpop.f32.mrf.mxu0
    %v3457 = vadd.f32 %v3408, %v3456
    %3458 = vmatmul.bf16.gmra.mxu0 %v590
    %v3459 = vpop.f32.mrf.mxu0
    %v3460 = vadd.f32 %v3411, %v3459
    %v3461 = vpop.f32.mrf.mxu0
    %v3462 = vadd.f32 %v3413, %v3461
    %3463 = vmatmul.bf16.gmra.mxu0 %v598
    %v3464 = vpop.f32.mrf.mxu0
    %v3465 = vadd.f32 %v3416, %v3464
    %v3466 = vpop.f32.mrf.mxu0
    %v3467 = vadd.f32 %v3418, %v3466
    %3468 = vmatmul.bf16.gmra.mxu0 %v606
    %v3469 = vpop.f32.mrf.mxu0
    %v3470 = vadd.f32 %v3421, %v3469
    %v3471 = vpop.f32.mrf.mxu0
    %v3472 = vadd.f32 %v3423, %v3471
    %3473 = vmatmul.bf16.gmra.mxu0 %v614
    %v3474 = vpop.f32.mrf.mxu0
    %v3475 = vadd.f32 %v3426, %v3474
    %v3476 = vpop.f32.mrf.mxu0
    %v3477 = vadd.f32 %v3428, %v3476
    %3478 = vdwg.mxu0
    %3479 = vmatpush.bf16.msra.mxu0 %v1703
    %3480 = vmatpush.bf16.msra.mxu0 %v1699
    %3481 = vmatpush.bf16.msra.mxu0 %v1695
    %3482 = vmatpush.bf16.msra.mxu0 %v1691
    %3483 = vmatpush.bf16.msra.mxu0 %v1687
    %3484 = vmatpush.bf16.msra.mxu0 %v1683
    %3485 = vmatpush.bf16.msra.mxu0 %v1679
    %3486 = vmatpush.bf16.msra.mxu0 %v1675
    %3487 = vmatmul.bf16.gmra.mxu0 %v559
    %v3488 = vpop.f32.mrf.mxu0
    %v3489 = vadd.f32 %v3440, %v3488
    %v3490 = vpop.f32.mrf.mxu0
    %v3491 = vadd.f32 %v3442, %v3490
    %3492 = vmatmul.bf16.gmra.mxu0 %v567
    %v3493 = vpop.f32.mrf.mxu0
    %v3494 = vadd.f32 %v3445, %v3493
    %v3495 = vpop.f32.mrf.mxu0
    %v3496 = vadd.f32 %v3447, %v3495
    %3497 = vmatmul.bf16.gmra.mxu0 %v575
    %v3498 = vpop.f32.mrf.mxu0
    %v3499 = vadd.f32 %v3450, %v3498
    %v3500 = vpop.f32.mrf.mxu0
    %v3501 = vadd.f32 %v3452, %v3500
    %3502 = vmatmul.bf16.gmra.mxu0 %v583
    %v3503 = vpop.f32.mrf.mxu0
    %v3504 = vadd.f32 %v3455, %v3503
    %v3505 = vpop.f32.mrf.mxu0
    %v3506 = vadd.f32 %v3457, %v3505
    %3507 = vmatmul.bf16.gmra.mxu0 %v591
    %v3508 = vpop.f32.mrf.mxu0
    %v3509 = vadd.f32 %v3460, %v3508
    %v3510 = vpop.f32.mrf.mxu0
    %v3511 = vadd.f32 %v3462, %v3510
    %3512 = vmatmul.bf16.gmra.mxu0 %v599
    %v3513 = vpop.f32.mrf.mxu0
    %v3514 = vadd.f32 %v3465, %v3513
    %v3515 = vpop.f32.mrf.mxu0
    %v3516 = vadd.f32 %v3467, %v3515
    %3517 = vmatmul.bf16.gmra.mxu0 %v607
    %v3518 = vpop.f32.mrf.mxu0
    %v3519 = vadd.f32 %v3470, %v3518
    %v3520 = vpop.f32.mrf.mxu0
    %v3521 = vadd.f32 %v3472, %v3520
    %3522 = vmatmul.bf16.gmra.mxu0 %v615
    %v3523 = vpop.f32.mrf.mxu0
    %v3524 = vadd.f32 %v3475, %v3523
    %v3525 = vpop.f32.mrf.mxu0
    %v3526 = vadd.f32 %v3477, %v3525
    %3527 = vdwg.mxu0
    %v3528 = vtanh.pop %v2313
    %v3529 = vtanh.pop %v2705
    %v3530 = vtanh.pop %v3097
    %v3531 = vtanh.pop %v3489
    %v3532 = vtanh.pop %v2315
    %v3533 = vtanh.pop %v2707
    %v3534 = vtanh.pop %v3099
    %v3535 = vtanh.pop %v3491
    %v3536 = vtanh.pop %v2318
    %v3537 = vtanh.pop %v2710
    %v3538 = vtanh.pop %v3102
    %v3539 = vtanh.pop %v3494
    %v3540 = vtanh.pop %v2320
    %v3541 = vtanh.pop %v2712
    %v3542 = vtanh.pop %v3104
    %v3543 = vtanh.pop %v3496
    %v3544 = vtanh.pop %v2323
    %v3545 = vtanh.pop %v2715
    %v3546 = vtanh.pop %v3107
    %v3547 = vtanh.pop %v3499
    %v3548 = vtanh.pop %v2325
    %v3549 = vtanh.pop %v2717
    %v3550 = vtanh.pop %v3109
    %v3551 = vtanh.pop %v3501
    %v3552 = vtanh.pop %v2328
    %v3553 = vtanh.pop %v2720
    %v3554 = vtanh.pop %v3112
    %v3555 = vtanh.pop %v3504
    %v3556 = vtanh.pop %v2330
    %v3557 = vtanh.pop %v2722
    %v3558 = vtanh.pop %v3114
    %v3559 = vtanh.pop %v3506
    %v3560 = vtanh.pop %v2333
    %v3561 = vtanh.pop %v2725
    %v3562 = vtanh.pop %v3117
    %v3563 = vtanh.pop %v3509
    %v3564 = vtanh.pop %v2335
    %v3565 = vtanh.pop %v2727
    %v3566 = vtanh.pop %v3119
    %v3567 = vtanh.pop %v3511
    %v3568 = vtanh.pop %v2338
    %v3569 = vtanh.pop %v2730
    %v3570 = vtanh.pop %v3122
    %v3571 = vtanh.pop %v3514
    %v3572 = vtanh.pop %v2340
    %v3573 = vtanh.pop %v2732
    %v3574 = vtanh.pop %v3124
    %v3575 = vtanh.pop %v3516
    %v3576 = vtanh.pop %v2343
    %v3577 = vtanh.pop %v2735
    %v3578 = vtanh.pop %v3127
    %v3579 = vtanh.pop %v3519
    %v3580 = vtanh.pop %v2345
    %v3581 = vtanh.pop %v2737
    %v3582 = vtanh.pop %v3129
    %v3583 = vtanh.pop %v3521
    %v3584 = vtanh.pop %v2348
    %v3585 = vtanh.pop %v2740
    %v3586 = vtanh.pop %v3132
    %v3587 = vtanh.pop %v3524
    %v3588 = vtanh.pop %v2350
    %v3589 = vtanh.pop %v2742
    %v3590 = vtanh.pop %v3134
    %v3591 = vtanh.pop %v3526
    %v3592 = vpack.c.bf16 %v3529, %v3528
    %v3593 = vpack.c.bf16 %v3531, %v3530
    %v3594 = vpack.c.bf16 %v3533, %v3532
    %v3595 = vpack.c.bf16 %v3535, %v3534
    %v3596 = vpack.c.bf16 %v3537, %v3536
    %v3597 = vpack.c.bf16 %v3539, %v3538
    %v3598 = vpack.c.bf16 %v3541, %v3540
    %v3599 = vpack.c.bf16 %v3543, %v3542
    %v3600 = vpack.c.bf16 %v3545, %v3544
    %v3601 = vpack.c.bf16 %v3547, %v3546
    %v3602 = vpack.c.bf16 %v3549, %v3548
    %v3603 = vpack.c.bf16 %v3551, %v3550
    %v3604 = vpack.c.bf16 %v3553, %v3552
    %v3605 = vpack.c.bf16 %v3555, %v3554
    %v3606 = vpack.c.bf16 %v3557, %v3556
    %v3607 = vpack.c.bf16 %v3559, %v3558
    %v3608 = vpack.c.bf16 %v3561, %v3560
    %v3609 = vpack.c.bf16 %v3563, %v3562
    %v3610 = vpack.c.bf16 %v3565, %v3564
    %v3611 = vpack.c.bf16 %v3567, %v3566
    %v3612 = vpack.c.bf16 %v3569, %v3568
    %v3613 = vpack.c.bf16 %v3571, %v3570
    %v3614 = vpack.c.bf16 %v3573, %v3572
    %v3615 = vpack.c.bf16 %v3575, %v3574
    %v3616 = vpack.c.bf16 %v3577, %v3576
    %v3617 = vpack.c.bf16 %v3579, %v3578
    %v3618 = vpack.c.bf16 %v3581, %v3580
    %v3619 = vpack.c.bf16 %v3583, %v3582
    %v3620 = vpack.c.bf16 %v3585, %v3584
    %v3621 = vpack.c.bf16 %v3587, %v3586
    %v3622 = vpack.c.bf16 %v3589, %v3588
    %v3623 = vpack.c.bf16 %v3591, %v3590
    %3624 = vst [vmem:[%s3] sm:$0xff] %v3592
    %3625 = vst [vmem:[%s3 + $0x8] sm:$0xff] %v3593
    %3626 = vst [vmem:[%s3 + $0x10] sm:$0xff] %v3594
    %3627 = vst [vmem:[%s3 + $0x18] sm:$0xff] %v3595
    %3628 = vst [vmem:[%s3 + $0x20] sm:$0xff] %v3596
    %3629 = vst [vmem:[%s3 + $0x28] sm:$0xff] %v3597
    %3630 = vst [vmem:[%s3 + $0x30] sm:$0xff] %v3598
    %3631 = vst [vmem:[%s3 + $0x38] sm:$0xff] %v3599
    %3632 = vst [vmem:[%s3 + $0x40] sm:$0xff] %v3600
    %3633 = vst [vmem:[%s3 + $0x48] sm:$0xff] %v3601
    %3634 = vst [vmem:[%s3 + $0x50] sm:$0xff] %v3602
    %3635 = vst [vmem:[%s3 + $0x58] sm:$0xff] %v3603
    %3636 = vst [vmem:[%s3 + $0x60] sm:$0xff] %v3604
    %3637 = vst [vmem:[%s3 + $0x68] sm:$0xff] %v3605
    %3638 = vst [vmem:[%s3 + $0x70] sm:$0xff] %v3606
    %3639 = vst [vmem:[%s3 + $0x78] sm:$0xff] %v3607
    %3640 = vst [vmem:[%s3 + $0x80] sm:$0xff] %v3608
    %3641 = vst [vmem:[%s3 + $0x88] sm:$0xff] %v3609
    %3642 = vst [vmem:[%s3 + $0x90] sm:$0xff] %v3610
    %3643 = vst [vmem:[%s3 + $0x98] sm:$0xff] %v3611
    %3644 = vst [vmem:[%s3 + $0xa0] sm:$0xff] %v3612
    %3645 = vst [vmem:[%s3 + $0xa8] sm:$0xff] %v3613
    %3646 = vst [vmem:[%s3 + $0xb0] sm:$0xff] %v3614
    %3647 = vst [vmem:[%s3 + $0xb8] sm:$0xff] %v3615
    %3648 = vst [vmem:[%s3 + $0xc0] sm:$0xff] %v3616
    %3649 = vst [vmem:[%s3 + $0xc8] sm:$0xff] %v3617
    %3650 = vst [vmem:[%s3 + $0xd0] sm:$0xff] %v3618
    %3651 = vst [vmem:[%s3 + $0xd8] sm:$0xff] %v3619
    %3652 = vst [vmem:[%s3 + $0xe0] sm:$0xff] %v3620
    %3653 = vst [vmem:[%s3 + $0xe8] sm:$0xff] %v3621
    %3654 = vst [vmem:[%s3 + $0xf0] sm:$0xff] %v3622
    %3655 = vst [vmem:[%s3 + $0xf8] sm:$0xff] %v3623
    // Predicated region
    $region18: #{generator_forward.3} parent=1 // pred_check
      _
    $region19: #{generator_forward.3} parent=1 // pred_check_branch
      %3657 = sbr.rel (0) target = $region21
    $region20: #{generator_forward.3} parent=1 // pred_region
      _
    $region21: #{generator_forward.3} parent=1 // pred_fallthru
      _
    // Predicated region
    $region22: #{generator_forward.3} parent=1 // pred_check
      _
    $region23: #{generator_forward.3} parent=1 // pred_check_branch
      %3659 = sbr.rel (0) target = $region25
    $region24: #{generator_forward.3} parent=1 // pred_region
      _
    $region25: #{generator_forward.3} parent=1 // pred_fallthru
      _
    %3660 = vsyncpa [#allocation3], 1

// kernel: generator_forward.2
$region0: #{generator_forward.2}
  #allocation0 [shape = 'u32[]', space=smem, size = 0x4, offset = 0x4, fixed_abs, tag = 'smem constant byte address 0x4 - core index']
  #allocation1 [shape = 'u32[72,128]{1,0:T(1,128)}', space=vmem, size = 0x9000, scoped, tag = 'internal scratch']
  %s0 = inlined_call_operand.hbm [shape: f32[2,32], index: 0, kind: input, shape index: {}]
  %s1 = inlined_call_operand.hbm [shape: bf16[32,128], index: 1, kind: input, shape index: {}]
  %s2 = inlined_call_operand.vmem [shape: f32[1,128], index: 2, kind: input, shape index: {}]
  %s3 = inlined_call_operand.hbm [shape: bf16[128,256], index: 3, kind: input, shape index: {}]
  %s4 = inlined_call_operand.vmem [shape: f32[1,256], index: 4, kind: input, shape index: {}]
  %s5 = inlined_call_operand.hbm [shape: f32[1,256], index: 5, kind: input, shape index: {}]
  %s6 = inlined_call_operand.hbm [shape: f32[1,256], index: 6, kind: input, shape index: {}]
  %s7 = inlined_call_operand.hbm [shape: bf16[256,512], index: 7, kind: input, shape index: {}]
  %s8 = inlined_call_operand.hbm [shape: f32[1,512], index: 8, kind: input, shape index: {}]
  %s9 = inlined_call_operand.hbm [shape: f32[1,512], index: 9, kind: input, shape index: {}]
  %s10 = inlined_call_operand.hbm [shape: f32[1,512], index: 10, kind: input, shape index: {}]
  %s11 = inlined_call_operand.hbm [shape: bf16[512,1024], index: 11, kind: input, shape index: {}]
  %s12 = inlined_call_operand.vmem [shape: f32[1,1024], index: 12, kind: input, shape index: {}]
  %s13 = inlined_call_operand.hbm [shape: f32[1,1024], index: 13, kind: input, shape index: {}]
  %s14 = inlined_call_operand.hbm [shape: f32[1,1024], index: 14, kind: input, shape index: {}]
  %s15 = inlined_call_operand.vmem [shape: bf16[2,1024], index: 15, kind: output, shape index: {}]
  %s16 = sld [smem:[#allocation0]]
  $region118: #{generator_forward.2} parent=0
    _
  %s18 = ssub.s32 1, %s16
  %s19 = scalar_select 0, %s18, %s16
  $region1: #{generator_forward.2} parent=0
    #allocation2 [shape = 'u8[1024]{0}', space=vmem, size = 0x400, scoped, tag = 'input window, operand 0, single buffered']
    #allocation3 [shape = 's32[1]{0}', space=sflag, size = 0x4, scoped, tag = 'scoped memory for generator_forward.2']
    #allocation4 [shape = 'u8[8192]{0}', space=vmem, size = 0x2000, scoped, tag = 'input window, operand 1, single buffered']
    #allocation5 [shape = 's32[1]{0}', space=sflag, size = 0x4, scoped, tag = 'scoped memory for generator_forward.2']
    #allocation6 [shape = 'u8[65536]{0}', space=vmem, size = 0x10000, scoped, tag = 'input window, operand 3, single buffered']
    #allocation7 [shape = 'u8[1024]{0}', space=vmem, size = 0x400, scoped, tag = 'input window, operand 5, single buffered']
    #allocation8 [shape = 's32[1]{0}', space=sflag, size = 0x4, scoped, tag = 'scoped memory for generator_forward.2']
    #allocation9 [shape = 'u8[1024]{0}', space=vmem, size = 0x400, scoped, tag = 'input window, operand 6, single buffered']
    #allocation10 [shape = 'u8[262144]{0}', space=vmem, size = 0x40000, scoped, tag = 'input window, operand 7, single buffered']
    #allocation11 [shape = 's32[1]{0}', space=sflag, size = 0x4, scoped, tag = 'scoped memory for generator_forward.2']
    #allocation12 [shape = 'u8[2048]{0}', space=vmem, size = 0x800, scoped, tag = 'input window, operand 8, single buffered']
    #allocation13 [shape = 'u8[2048]{0}', space=vmem, size = 0x800, scoped, tag = 'input window, operand 9, single buffered']
    #allocation14 [shape = 's32[1]{0}', space=sflag, size = 0x4, scoped, tag = 'scoped memory for generator_forward.2']
    #allocation15 [shape = 'u8[2048]{0}', space=vmem, size = 0x800, scoped, tag = 'input window, operand 10, single buffered']
    #allocation16 [shape = 'u8[1048576]{0}', space=vmem, size = 0x100000, scoped, tag = 'input window, operand 11, single buffered']
    #allocation17 [shape = 's32[1]{0}', space=sflag, size = 0x4, scoped, tag = 'scoped memory for generator_forward.2']
    #allocation18 [shape = 'u8[4096]{0}', space=vmem, size = 0x1000, scoped, tag = 'input window, operand 13, single buffered']
    #allocation19 [shape = 'u8[4096]{0}', space=vmem, size = 0x1000, scoped, tag = 'input window, operand 14, single buffered']
    #allocation20 [shape = 's32[1]{0}', space=sflag, size = 0x4, scoped, tag = 'scoped memory for generator_forward.2']
    %20 = vsyncpa [#allocation3], 0
    %21 = vsyncpa [#allocation5], 0
    %22 = vsyncpa [#allocation8], 0
    %23 = vsyncpa [#allocation11], 0
    %24 = vsyncpa [#allocation14], 0
    %25 = vsyncpa [#allocation17], 0
    %26 = vsyncpa [#allocation20], 0
    // Predicated region
    $region2: #{generator_forward.2} parent=1 // pred_check
      _
    $region3: #{generator_forward.2} parent=1 // pred_check_branch
      %28 = sbr.rel (0) target = $region5
    $region4: #{generator_forward.2} parent=1 // pred_region
      %30 = vsyncadd [#allocation3], 0
      %s32 = sshll.u32 %s0, 4
      %s33 = int_to_ptr.hbm [resolvable:$true] %s32
      %s34 = sshll.u32 [#allocation2], 4
      %s35 = int_to_ptr.vmem [resolvable:$true] %s34
      %37 = dma.hbm_to_vmem [thread:$0]  %s33, 32, %s35, [#allocation3]
    $region5: #{generator_forward.2} parent=1 // pred_fallthru
      _
    // Predicated region
    $region6: #{generator_forward.2} parent=1 // pred_check
      _
    $region7: #{generator_forward.2} parent=1 // pred_check_branch
      %39 = sbr.rel (0) target = $region9
    $region8: #{generator_forward.2} parent=1 // pred_region
      %41 = vsyncadd [#allocation5], 0
      %s42 = sshll.u32 %s1, 4
      %s43 = int_to_ptr.hbm [resolvable:$true] %s42
      %s44 = sshll.u32 [#allocation4], 4
      %s45 = int_to_ptr.vmem [resolvable:$true] %s44
      %50 = dma.hbm_to_vmem [thread:$0]  %s43, 256, %s45, [#allocation5], 64, 64, 4
    $region9: #{generator_forward.2} parent=1 // pred_fallthru
      _
    // Predicated region
    $region10: #{generator_forward.2} parent=1 // pred_check
      _
    $region11: #{generator_forward.2} parent=1 // pred_check_branch
      %52 = sbr.rel (0) target = $region13
    $region12: #{generator_forward.2} parent=1 // pred_region
      _
    $region13: #{generator_forward.2} parent=1 // pred_fallthru
      _
    // Predicated region
    $region14: #{generator_forward.2} parent=1 // pred_check
      _
    $region15: #{generator_forward.2} parent=1 // pred_check_branch
      %54 = sbr.rel (0) target = $region17
    $region16: #{generator_forward.2} parent=1 // pred_region
      %56 = vsyncadd [#allocation5], 0
      %s57 = sshll.u32 %s3, 4
      %s58 = int_to_ptr.hbm [resolvable:$true] %s57
      %s59 = sshll.u32 [#allocation6], 4
      %s60 = int_to_ptr.vmem [resolvable:$true] %s59
      %65 = dma.hbm_to_vmem [thread:$0]  %s58, 2048, %s60, [#allocation5], 128, 128, 8
    $region17: #{generator_forward.2} parent=1 // pred_fallthru
      _
    // Predicated region
    $region18: #{generator_forward.2} parent=1 // pred_check
      _
    $region19: #{generator_forward.2} parent=1 // pred_check_branch
      %67 = sbr.rel (0) target = $region21
    $region20: #{generator_forward.2} parent=1 // pred_region
      _
    $region21: #{generator_forward.2} parent=1 // pred_fallthru
      _
    // Predicated region
    $region22: #{generator_forward.2} parent=1 // pred_check
      _
    $region23: #{generator_forward.2} parent=1 // pred_check_branch
      %69 = sbr.rel (0) target = $region25
    $region24: #{generator_forward.2} parent=1 // pred_region
      %71 = vsyncadd [#allocation8], 0
      %s73 = sshll.u32 %s5, 4
      %s74 = int_to_ptr.hbm [resolvable:$true] %s73
      %s75 = sshll.u32 [#allocation7], 4
      %s76 = int_to_ptr.vmem [resolvable:$true] %s75
      %78 = dma.hbm_to_vmem [thread:$0]  %s74, 32, %s76, [#allocation8]
    $region25: #{generator_forward.2} parent=1 // pred_fallthru
      _
    // Predicated region
    $region26: #{generator_forward.2} parent=1 // pred_check
      _
    $region27: #{generator_forward.2} parent=1 // pred_check_branch
      %80 = sbr.rel (0) target = $region29
    $region28: #{generator_forward.2} parent=1 // pred_region
      %82 = vsyncadd [#allocation8], 0
      %s84 = sshll.u32 %s6, 4
      %s85 = int_to_ptr.hbm [resolvable:$true] %s84
      %s86 = sshll.u32 [#allocation9], 4
      %s87 = int_to_ptr.vmem [resolvable:$true] %s86
      %89 = dma.hbm_to_vmem [thread:$0]  %s85, 32, %s87, [#allocation8]
    $region29: #{generator_forward.2} parent=1 // pred_fallthru
      _
    // Predicated region
    $region30: #{generator_forward.2} parent=1 // pred_check
      _
    $region31: #{generator_forward.2} parent=1 // pred_check_branch
      %91 = sbr.rel (0) target = $region33
    $region32: #{generator_forward.2} parent=1 // pred_region
      %93 = vsyncadd [#allocation11], 0
      %s94 = sshll.u32 %s7, 4
      %s95 = int_to_ptr.hbm [resolvable:$true] %s94
      %s96 = sshll.u32 [#allocation10], 4
      %s97 = int_to_ptr.vmem [resolvable:$true] %s96
      %102 = dma.hbm_to_vmem [thread:$0]  %s95, 8192, %s97, [#allocation11], 256, 256, 16
    $region33: #{generator_forward.2} parent=1 // pred_fallthru
      _
    // Predicated region
    $region34: #{generator_forward.2} parent=1 // pred_check
      _
    $region35: #{generator_forward.2} parent=1 // pred_check_branch
      %104 = sbr.rel (0) target = $region37
    $region36: #{generator_forward.2} parent=1 // pred_region
      %106 = vsyncadd [#allocation11], 0
      %s108 = sshll.u32 %s8, 4
      %s109 = int_to_ptr.hbm [resolvable:$true] %s108
      %s110 = sshll.u32 [#allocation12], 4
      %s111 = int_to_ptr.vmem [resolvable:$true] %s110
      %113 = dma.hbm_to_vmem [thread:$0]  %s109, 64, %s111, [#allocation11]
    $region37: #{generator_forward.2} parent=1 // pred_fallthru
      _
    // Predicated region
    $region38: #{generator_forward.2} parent=1 // pred_check
      _
    $region39: #{generator_forward.2} parent=1 // pred_check_branch
      %115 = sbr.rel (0) target = $region41
    $region40: #{generator_forward.2} parent=1 // pred_region
      %117 = vsyncadd [#allocation14], 0
      %s119 = sshll.u32 %s9, 4
      %s120 = int_to_ptr.hbm [resolvable:$true] %s119
      %s121 = sshll.u32 [#allocation13], 4
      %s122 = int_to_ptr.vmem [resolvable:$true] %s121
      %124 = dma.hbm_to_vmem [thread:$0]  %s120, 64, %s122, [#allocation14]
    $region41: #{generator_forward.2} parent=1 // pred_fallthru
      _
    // Predicated region
    $region42: #{generator_forward.2} parent=1 // pred_check
      _
    $region43: #{generator_forward.2} parent=1 // pred_check_branch
      %126 = sbr.rel (0) target = $region45
    $region44: #{generator_forward.2} parent=1 // pred_region
      %128 = vsyncadd [#allocation14], 0
      %s130 = sshll.u32 %s10, 4
      %s131 = int_to_ptr.hbm [resolvable:$true] %s130
      %s132 = sshll.u32 [#allocation15], 4
      %s133 = int_to_ptr.vmem [resolvable:$true] %s132
      %135 = dma.hbm_to_vmem [thread:$0]  %s131, 64, %s133, [#allocation14]
    $region45: #{generator_forward.2} parent=1 // pred_fallthru
      _
    // Predicated region
    $region46: #{generator_forward.2} parent=1 // pred_check
      _
    $region47: #{generator_forward.2} parent=1 // pred_check_branch
      %137 = sbr.rel (0) target = $region49
    $region48: #{generator_forward.2} parent=1 // pred_region
      %139 = vsyncadd [#allocation17], 0
      %s140 = sshll.u32 %s11, 4
      %s141 = int_to_ptr.hbm [resolvable:$true] %s140
      %s142 = sshll.u32 [#allocation16], 4
      %s143 = int_to_ptr.vmem [resolvable:$true] %s142
      %148 = dma.hbm_to_vmem [thread:$0]  %s141, 32768, %s143, [#allocation17], 512, 512, 32
    $region49: #{generator_forward.2} parent=1 // pred_fallthru
      _
    // Predicated region
    $region50: #{generator_forward.2} parent=1 // pred_check
      _
    $region51: #{generator_forward.2} parent=1 // pred_check_branch
      %150 = sbr.rel (0) target = $region53
    $region52: #{generator_forward.2} parent=1 // pred_region
      _
    $region53: #{generator_forward.2} parent=1 // pred_fallthru
      _
    // Predicated region
    $region54: #{generator_forward.2} parent=1 // pred_check
      _
    $region55: #{generator_forward.2} parent=1 // pred_check_branch
      %152 = sbr.rel (0) target = $region57
    $region56: #{generator_forward.2} parent=1 // pred_region
      %154 = vsyncadd [#allocation17], 0
      %s156 = sshll.u32 %s13, 4
      %s157 = int_to_ptr.hbm [resolvable:$true] %s156
      %s158 = sshll.u32 [#allocation18], 4
      %s159 = int_to_ptr.vmem [resolvable:$true] %s158
      %161 = dma.hbm_to_vmem [thread:$0]  %s157, 128, %s159, [#allocation17]
    $region57: #{generator_forward.2} parent=1 // pred_fallthru
      _
    // Predicated region
    $region58: #{generator_forward.2} parent=1 // pred_check
      _
    $region59: #{generator_forward.2} parent=1 // pred_check_branch
      %163 = sbr.rel (0) target = $region61
    $region60: #{generator_forward.2} parent=1 // pred_region
      %165 = vsyncadd [#allocation20], 0
      %s167 = sshll.u32 %s14, 4
      %s168 = int_to_ptr.hbm [resolvable:$true] %s167
      %s169 = sshll.u32 [#allocation19], 4
      %s170 = int_to_ptr.vmem [resolvable:$true] %s169
      %172 = dma.hbm_to_vmem [thread:$0]  %s168, 128, %s170, [#allocation20]
    $region61: #{generator_forward.2} parent=1 // pred_fallthru
      _
    // Predicated region
    $region62: #{generator_forward.2} parent=1 // pred_check
      _
    $region63: #{generator_forward.2} parent=1 // pred_check_branch
      %174 = sbr.rel (0) target = $region65
    $region64: #{generator_forward.2} parent=1 // pred_region
      %176 = dma.done [#allocation3], 32
    $region65: #{generator_forward.2} parent=1 // pred_fallthru
      _
    // Predicated region
    $region66: #{generator_forward.2} parent=1 // pred_check
      _
    $region67: #{generator_forward.2} parent=1 // pred_check_branch
      %178 = sbr.rel (0) target = $region69
    $region68: #{generator_forward.2} parent=1 // pred_region
      %180 = dma.done [#allocation5], 256
    $region69: #{generator_forward.2} parent=1 // pred_fallthru
      _
    // Predicated region
    $region70: #{generator_forward.2} parent=1 // pred_check
      _
    $region71: #{generator_forward.2} parent=1 // pred_check_branch
      %182 = sbr.rel (0) target = $region73
    $region72: #{generator_forward.2} parent=1 // pred_region
      %184 = dma.done [#allocation5], 2048
    $region73: #{generator_forward.2} parent=1 // pred_fallthru
      _
    // Predicated region
    $region74: #{generator_forward.2} parent=1 // pred_check
      _
    $region75: #{generator_forward.2} parent=1 // pred_check_branch
      %186 = sbr.rel (0) target = $region77
    $region76: #{generator_forward.2} parent=1 // pred_region
      %188 = dma.done [#allocation8], 32
    $region77: #{generator_forward.2} parent=1 // pred_fallthru
      _
    // Predicated region
    $region78: #{generator_forward.2} parent=1 // pred_check
      _
    $region79: #{generator_forward.2} parent=1 // pred_check_branch
      %190 = sbr.rel (0) target = $region81
    $region80: #{generator_forward.2} parent=1 // pred_region
      %192 = dma.done [#allocation8], 32
    $region81: #{generator_forward.2} parent=1 // pred_fallthru
      _
    // Predicated region
    $region82: #{generator_forward.2} parent=1 // pred_check
      _
    $region83: #{generator_forward.2} parent=1 // pred_check_branch
      %194 = sbr.rel (0) target = $region85
    $region84: #{generator_forward.2} parent=1 // pred_region
      %196 = dma.done [#allocation11], 8192
    $region85: #{generator_forward.2} parent=1 // pred_fallthru
      _
    // Predicated region
    $region86: #{generator_forward.2} parent=1 // pred_check
      _
    $region87: #{generator_forward.2} parent=1 // pred_check_branch
      %198 = sbr.rel (0) target = $region89
    $region88: #{generator_forward.2} parent=1 // pred_region
      %200 = dma.done [#allocation11], 64
    $region89: #{generator_forward.2} parent=1 // pred_fallthru
      _
    // Predicated region
    $region90: #{generator_forward.2} parent=1 // pred_check
      _
    $region91: #{generator_forward.2} parent=1 // pred_check_branch
      %202 = sbr.rel (0) target = $region93
    $region92: #{generator_forward.2} parent=1 // pred_region
      %204 = dma.done [#allocation14], 64
    $region93: #{generator_forward.2} parent=1 // pred_fallthru
      _
    // Predicated region
    $region94: #{generator_forward.2} parent=1 // pred_check
      _
    $region95: #{generator_forward.2} parent=1 // pred_check_branch
      %206 = sbr.rel (0) target = $region97
    $region96: #{generator_forward.2} parent=1 // pred_region
      %208 = dma.done [#allocation14], 64
    $region97: #{generator_forward.2} parent=1 // pred_fallthru
      _
    // Predicated region
    $region98: #{generator_forward.2} parent=1 // pred_check
      _
    $region99: #{generator_forward.2} parent=1 // pred_check_branch
      %210 = sbr.rel (0) target = $region101
    $region100: #{generator_forward.2} parent=1 // pred_region
      %212 = dma.done [#allocation17], 32768
    $region101: #{generator_forward.2} parent=1 // pred_fallthru
      _
    // Predicated region
    $region102: #{generator_forward.2} parent=1 // pred_check
      _
    $region103: #{generator_forward.2} parent=1 // pred_check_branch
      %214 = sbr.rel (0) target = $region105
    $region104: #{generator_forward.2} parent=1 // pred_region
      %216 = dma.done [#allocation17], 128
    $region105: #{generator_forward.2} parent=1 // pred_fallthru
      _
    // Predicated region
    $region106: #{generator_forward.2} parent=1 // pred_check
      _
    $region107: #{generator_forward.2} parent=1 // pred_check_branch
      %218 = sbr.rel (0) target = $region109
    $region108: #{generator_forward.2} parent=1 // pred_region
      %220 = dma.done [#allocation20], 128
    $region109: #{generator_forward.2} parent=1 // pred_fallthru
      _
    %v222 = vld [vmem:[#allocation2] sm:$0x3]
    %v223 = vpack.c.bf16 %v222, %v222
    %v224 = vld [vmem:[#allocation4] sm:$0xf]
    %v225 = vld [vmem:[#allocation4 + $0x4] sm:$0xf]
    %v226 = vld [vmem:[#allocation4 + $0x8] sm:$0xf]
    %v227 = vld [vmem:[#allocation4 + $0xc] sm:$0xf]
    %v228 = vld [vmem:[%s2] sm:$0x1]
    %v230 = vperm.slane %v228, 0
    %v236 = vunpack.c.l.b16 %v224
    %v237 = vunpack.c.l.b16 %v225
    %v238 = vunpack.c.l.b16 %v226
    %v239 = vunpack.c.l.b16 %v227
    %v240 = vpack.c.b16 %v237, %v236
    %v241 = vpack.c.b16 %v239, %v238
    %vm244 = vcmask 261120
    %v246 = vsel %vm244, %v223, 0
    %248 = vmatpush.bf16.msra.mxu0 0
    %249 = vmatpush.bf16.msra.mxu0 0
    %250 = vmatpush.bf16.msra.mxu0 0
    %251 = vmatpush.bf16.msra.mxu0 0
    %252 = vmatpush.bf16.msra.mxu0 0
    %253 = vmatpush.bf16.msra.mxu0 0
    %254 = vmatpush.bf16.msra.mxu0 %v241
    %255 = vmatpush.bf16.msra.mxu0 %v240
    %256 = vmatmul.bf16.gmra.mxu0 %v246
    %v257 = vpop.f32.mrf.mxu0
    %v258 = vadd.f32 %v230, %v257
    %v259 = vpop.f32.mrf.mxu0
    %260 = vdwg.mxu0
    %v261 = vmul.f32 %v258, 0.2
    %v262 = vmax.f32 %v258, %v261
    %v263 = vpack.c.bf16 %v262, %v262
    %v264 = vld [vmem:[#allocation6] sm:$0xff]
    %v265 = vld [vmem:[#allocation6 + $0x8] sm:$0xff]
    %v266 = vld [vmem:[#allocation6 + $0x10] sm:$0xff]
    %v267 = vld [vmem:[#allocation6 + $0x18] sm:$0xff]
    %v268 = vld [vmem:[#allocation6 + $0x20] sm:$0xff]
    %v269 = vld [vmem:[#allocation6 + $0x28] sm:$0xff]
    %v270 = vld [vmem:[#allocation6 + $0x30] sm:$0xff]
    %v271 = vld [vmem:[#allocation6 + $0x38] sm:$0xff]
    %v272 = vld [vmem:[#allocation6 + $0x40] sm:$0xff]
    %v273 = vld [vmem:[#allocation6 + $0x48] sm:$0xff]
    %v274 = vld [vmem:[#allocation6 + $0x50] sm:$0xff]
    %v275 = vld [vmem:[#allocation6 + $0x58] sm:$0xff]
    %v276 = vld [vmem:[#allocation6 + $0x60] sm:$0xff]
    %v277 = vld [vmem:[#allocation6 + $0x68] sm:$0xff]
    %v278 = vld [vmem:[#allocation6 + $0x70] sm:$0xff]
    %v279 = vld [vmem:[#allocation6 + $0x78] sm:$0xff]
    %v280 = vld [vmem:[%s4] sm:$0x3]
    %v282 = vperm.slane %v280, 0
    %v283 = vperm.slane %v280, 1
    %v302 = vunpack.c.l.b16 %v264
    %v303 = vunpack.c.h.b16 %v264
    %v304 = vunpack.c.l.b16 %v265
    %v305 = vunpack.c.h.b16 %v265
    %v306 = vunpack.c.l.b16 %v266
    %v307 = vunpack.c.h.b16 %v266
    %v308 = vunpack.c.l.b16 %v267
    %v309 = vunpack.c.h.b16 %v267
    %v310 = vunpack.c.l.b16 %v268
    %v311 = vunpack.c.h.b16 %v268
    %v312 = vunpack.c.l.b16 %v269
    %v313 = vunpack.c.h.b16 %v269
    %v314 = vunpack.c.l.b16 %v270
    %v315 = vunpack.c.h.b16 %v270
    %v316 = vunpack.c.l.b16 %v271
    %v317 = vunpack.c.h.b16 %v271
    %v318 = vunpack.c.l.b16 %v272
    %v319 = vunpack.c.h.b16 %v272
    %v320 = vunpack.c.l.b16 %v273
    %v321 = vunpack.c.h.b16 %v273
    %v322 = vunpack.c.l.b16 %v274
    %v323 = vunpack.c.h.b16 %v274
    %v324 = vunpack.c.l.b16 %v275
    %v325 = vunpack.c.h.b16 %v275
    %v326 = vunpack.c.l.b16 %v276
    %v327 = vunpack.c.h.b16 %v276
    %v328 = vunpack.c.l.b16 %v277
    %v329 = vunpack.c.h.b16 %v277
    %v330 = vunpack.c.l.b16 %v278
    %v331 = vunpack.c.h.b16 %v278
    %v332 = vunpack.c.l.b16 %v279
    %v333 = vunpack.c.h.b16 %v279
    %v334 = vpack.c.b16 %v304, %v302
    %v335 = vpack.c.b16 %v305, %v303
    %v336 = vpack.c.b16 %v308, %v306
    %v337 = vpack.c.b16 %v309, %v307
    %v338 = vpack.c.b16 %v312, %v310
    %v339 = vpack.c.b16 %v313, %v311
    %v340 = vpack.c.b16 %v316, %v314
    %v341 = vpack.c.b16 %v317, %v315
    %v342 = vpack.c.b16 %v320, %v318
    %v343 = vpack.c.b16 %v321, %v319
    %v344 = vpack.c.b16 %v324, %v322
    %v345 = vpack.c.b16 %v325, %v323
    %v346 = vpack.c.b16 %v328, %v326
    %v347 = vpack.c.b16 %v329, %v327
    %v348 = vpack.c.b16 %v332, %v330
    %v349 = vpack.c.b16 %v333, %v331
    %366 = vmatpush.bf16.msra.mxu0 %v348
    %367 = vmatpush.bf16.msra.mxu0 %v346
    %368 = vmatpush.bf16.msra.mxu0 %v344
    %369 = vmatpush.bf16.msra.mxu0 %v342
    %370 = vmatpush.bf16.msra.mxu0 %v340
    %371 = vmatpush.bf16.msra.mxu0 %v338
    %372 = vmatpush.bf16.msra.mxu0 %v336
    %373 = vmatpush.bf16.msra.mxu0 %v334
    %374 = vmatmul.bf16.gmra.mxu0 %v263
    %v375 = vpop.f32.mrf.mxu0
    %v376 = vadd.f32 %v282, %v375
    %v377 = vpop.f32.mrf.mxu0
    %378 = vdwg.mxu0
    %379 = vmatpush.bf16.msra.mxu0 %v349
    %380 = vmatpush.bf16.msra.mxu0 %v347
    %381 = vmatpush.bf16.msra.mxu0 %v345
    %382 = vmatpush.bf16.msra.mxu0 %v343
    %383 = vmatpush.bf16.msra.mxu0 %v341
    %384 = vmatpush.bf16.msra.mxu0 %v339
    %385 = vmatpush.bf16.msra.mxu0 %v337
    %386 = vmatpush.bf16.msra.mxu0 %v335
    %387 = vmatmul.bf16.gmra.mxu0 %v263
    %v388 = vpop.f32.mrf.mxu0
    %v389 = vadd.f32 %v283, %v388
    %v390 = vpop.f32.mrf.mxu0
    %391 = vdwg.mxu0
    %vm392 = vcmask 1041408
    %v393 = vsel %vm392, %v376, 0.0
    %v394 = vrot.slane %v393, 4
    %v395 = vadd.f32 %v393, %v394
    %v396 = vrot.slane %v395, 2
    %v397 = vadd.f32 %v395, %v396
    %v398 = vrot.slane %v397, 1
    %v399 = vadd.f32 %v397, %v398
    %v400 = vsel %vm392, %v389, 0.0
    %v401 = vrot.slane %v400, 4
    %v402 = vadd.f32 %v400, %v401
    %v403 = vrot.slane %v402, 2
    %v404 = vadd.f32 %v402, %v403
    %v405 = vrot.slane %v404, 1
    %v406 = vadd.f32 %v404, %v405
    %v407 = vrcp.pop 2.0
    %v408 = vmul.f32 2.0, %v407
    %v409 = vsub.f32 1.0, %v408
    %v410 = vmul.f32 %v407, %v409
    %v411 = vadd.f32 %v407, %v410
    %vm412 = vweird.f32 %v407
    %v413 = vsel %vm412, %v407, %v411
    %v414 = vmul.f32 %v399, %v413
    %v415 = vmul.f32 %v406, %v413
    %v416 = vmul.f32 %v376, %v376
    %v417 = vmul.f32 %v389, %v389
    %v418 = vsel %vm392, %v416, 0.0
    %v419 = vrot.slane %v418, 4
    %v420 = vadd.f32 %v418, %v419
    %v421 = vrot.slane %v420, 2
    %v422 = vadd.f32 %v420, %v421
    %v423 = vrot.slane %v422, 1
    %v424 = vadd.f32 %v422, %v423
    %v425 = vsel %vm392, %v417, 0.0
    %v426 = vrot.slane %v425, 4
    %v427 = vadd.f32 %v425, %v426
    %v428 = vrot.slane %v427, 2
    %v429 = vadd.f32 %v427, %v428
    %v430 = vrot.slane %v429, 1
    %v431 = vadd.f32 %v429, %v430
    %v432 = vmul.f32 %v424, %v413
    %v433 = vmul.f32 %v431, %v413
    %v434 = vmul.f32 %v414, %v414
    %v435 = vmul.f32 %v415, %v415
    %v436 = vsub.f32 %v432, %v434
    %v437 = vsub.f32 %v433, %v435
    %v438 = vmax.f32 %v436, 0.0
    %v439 = vmax.f32 %v437, 0.0
    %v440 = vld [vmem:[#allocation7] sm:$0x3]
    %v441 = vadd.f32 %v438, 0.8
    %v442 = vadd.f32 %v439, 0.8
    %v443 = vrsqrt.pop %v441
    %v444 = vmul.f32 %v443, %v441
    %v445 = vmul.f32 %v444, %v443
    %v446 = vmul.f32 0.5, %v445
    %v447 = vsub.f32 1.5, %v446
    %v448 = vmul.f32 %v443, %v447
    %vm449 = vweird.f32 %v441
    %vm450 = vweird.f32 %v443
    %vm451 = vmor %vm449, %vm450
    %v452 = vsel %vm451, %v443, %v448
    %v453 = vrsqrt.pop %v442
    %v454 = vmul.f32 %v453, %v442
    %v455 = vmul.f32 %v454, %v453
    %v456 = vmul.f32 0.5, %v455
    %v457 = vsub.f32 1.5, %v456
    %v458 = vmul.f32 %v453, %v457
    %vm459 = vweird.f32 %v442
    %vm460 = vweird.f32 %v453
    %vm461 = vmor %vm459, %vm460
    %v462 = vsel %vm461, %v453, %v458
    %v465 = vrot.slane %v462, 7
    %vm466 = vcmask 1040384
    %v467 = vsel %vm466, %v452, %v465
    %v469 = vmul.f32 %v440, %v467
    %v470 = vld [vmem:[#allocation9] sm:$0x3]
    %v472 = vperm.slane %v469, 0
    %v473 = vperm.slane %v469, 1
    %v476 = vmul.f32 %v414, %v472
    %v477 = vmul.f32 %v415, %v473
    %v480 = vrot.slane %v477, 7
    %v481 = vsel %vm466, %v476, %v480
    %v483 = vsub.f32 %v470, %v481
    %v484 = vmul.f32 %v376, %v472
    %v485 = vmul.f32 %v389, %v473
    %v487 = vperm.slane %v483, 0
    %v488 = vperm.slane %v483, 1
    %v491 = vadd.f32 %v484, %v487
    %v492 = vadd.f32 %v485, %v488
    %v493 = vmul.f32 %v491, 0.2
    %v494 = vmul.f32 %v492, 0.2
    %v495 = vmax.f32 %v491, %v493
    %v496 = vmax.f32 %v492, %v494
    %v497 = vpack.c.bf16 %v495, %v495
    %v498 = vpack.c.bf16 %v496, %v496
    %v499 = vld [vmem:[#allocation10] sm:$0xff]
    %v500 = vld [vmem:[#allocation10 + $0x8] sm:$0xff]
    %v501 = vld [vmem:[#allocation10 + $0x10] sm:$0xff]
    %v502 = vld [vmem:[#allocation10 + $0x18] sm:$0xff]
    %v503 = vld [vmem:[#allocation10 + $0x20] sm:$0xff]
    %v504 = vld [vmem:[#allocation10 + $0x28] sm:$0xff]
    %v505 = vld [vmem:[#allocation10 + $0x30] sm:$0xff]
    %v506 = vld [vmem:[#allocation10 + $0x38] sm:$0xff]
    %v507 = vld [vmem:[#allocation10 + $0x40] sm:$0xff]
    %v508 = vld [vmem:[#allocation10 + $0x48] sm:$0xff]
    %v509 = vld [vmem:[#allocation10 + $0x50] sm:$0xff]
    %v510 = vld [vmem:[#allocation10 + $0x58] sm:$0xff]
    %v511 = vld [vmem:[#allocation10 + $0x60] sm:$0xff]
    %v512 = vld [vmem:[#allocation10 + $0x68] sm:$0xff]
    %v513 = vld [vmem:[#allocation10 + $0x70] sm:$0xff]
    %v514 = vld [vmem:[#allocation10 + $0x78] sm:$0xff]
    %v515 = vld [vmem:[#allocation10 + $0x80] sm:$0xff]
    %v516 = vld [vmem:[#allocation10 + $0x88] sm:$0xff]
    %v517 = vld [vmem:[#allocation10 + $0x90] sm:$0xff]
    %v518 = vld [vmem:[#allocation10 + $0x98] sm:$0xff]
    %v519 = vld [vmem:[#allocation10 + $0xa0] sm:$0xff]
    %v520 = vld [vmem:[#allocation10 + $0xa8] sm:$0xff]
    %v521 = vld [vmem:[#allocation10 + $0xb0] sm:$0xff]
    %v522 = vld [vmem:[#allocation10 + $0xb8] sm:$0xff]
    %v523 = vld [vmem:[#allocation10 + $0xc0] sm:$0xff]
    %v524 = vld [vmem:[#allocation10 + $0xc8] sm:$0xff]
    %v525 = vld [vmem:[#allocation10 + $0xd0] sm:$0xff]
    %v526 = vld [vmem:[#allocation10 + $0xd8] sm:$0xff]
    %v527 = vld [vmem:[#allocation10 + $0xe0] sm:$0xff]
    %v528 = vld [vmem:[#allocation10 + $0xe8] sm:$0xff]
    %v529 = vld [vmem:[#allocation10 + $0xf0] sm:$0xff]
    %v530 = vld [vmem:[#allocation10 + $0xf8] sm:$0xff]
    %v531 = vld [vmem:[#allocation10 + $0x100] sm:$0xff]
    %v532 = vld [vmem:[#allocation10 + $0x108] sm:$0xff]
    %v533 = vld [vmem:[#allocation10 + $0x110] sm:$0xff]
    %v534 = vld [vmem:[#allocation10 + $0x118] sm:$0xff]
    %v535 = vld [vmem:[#allocation10 + $0x120] sm:$0xff]
    %v536 = vld [vmem:[#allocation10 + $0x128] sm:$0xff]
    %v537 = vld [vmem:[#allocation10 + $0x130] sm:$0xff]
    %v538 = vld [vmem:[#allocation10 + $0x138] sm:$0xff]
    %v539 = vld [vmem:[#allocation10 + $0x140] sm:$0xff]
    %v540 = vld [vmem:[#allocation10 + $0x148] sm:$0xff]
    %v541 = vld [vmem:[#allocation10 + $0x150] sm:$0xff]
    %v542 = vld [vmem:[#allocation10 + $0x158] sm:$0xff]
    %v543 = vld [vmem:[#allocation10 + $0x160] sm:$0xff]
    %v544 = vld [vmem:[#allocation10 + $0x168] sm:$0xff]
    %v545 = vld [vmem:[#allocation10 + $0x170] sm:$0xff]
    %v546 = vld [vmem:[#allocation10 + $0x178] sm:$0xff]
    %v547 = vld [vmem:[#allocation10 + $0x180] sm:$0xff]
    %v548 = vld [vmem:[#allocation10 + $0x188] sm:$0xff]
    %v549 = vld [vmem:[#allocation10 + $0x190] sm:$0xff]
    %v550 = vld [vmem:[#allocation10 + $0x198] sm:$0xff]
    %v551 = vld [vmem:[#allocation10 + $0x1a0] sm:$0xff]
    %v552 = vld [vmem:[#allocation10 + $0x1a8] sm:$0xff]
    %v553 = vld [vmem:[#allocation10 + $0x1b0] sm:$0xff]
    %v554 = vld [vmem:[#allocation10 + $0x1b8] sm:$0xff]
    %v555 = vld [vmem:[#allocation10 + $0x1c0] sm:$0xff]
    %v556 = vld [vmem:[#allocation10 + $0x1c8] sm:$0xff]
    %v557 = vld [vmem:[#allocation10 + $0x1d0] sm:$0xff]
    %v558 = vld [vmem:[#allocation10 + $0x1d8] sm:$0xff]
    %v559 = vld [vmem:[#allocation10 + $0x1e0] sm:$0xff]
    %v560 = vld [vmem:[#allocation10 + $0x1e8] sm:$0xff]
    %v561 = vld [vmem:[#allocation10 + $0x1f0] sm:$0xff]
    %v562 = vld [vmem:[#allocation10 + $0x1f8] sm:$0xff]
    %v563 = vld [vmem:[#allocation12] sm:$0xf]
    %v565 = vperm.slane %v563, 0
    %v566 = vperm.slane %v563, 1
    %v567 = vperm.slane %v563, 2
    %v568 = vperm.slane %v563, 3
    %v637 = vunpack.c.l.b16 %v499
    %v638 = vunpack.c.h.b16 %v499
    %v639 = vunpack.c.l.b16 %v500
    %v640 = vunpack.c.h.b16 %v500
    %v641 = vunpack.c.l.b16 %v501
    %v642 = vunpack.c.h.b16 %v501
    %v643 = vunpack.c.l.b16 %v502
    %v644 = vunpack.c.h.b16 %v502
    %v645 = vunpack.c.l.b16 %v503
    %v646 = vunpack.c.h.b16 %v503
    %v647 = vunpack.c.l.b16 %v504
    %v648 = vunpack.c.h.b16 %v504
    %v649 = vunpack.c.l.b16 %v505
    %v650 = vunpack.c.h.b16 %v505
    %v651 = vunpack.c.l.b16 %v506
    %v652 = vunpack.c.h.b16 %v506
    %v653 = vunpack.c.l.b16 %v507
    %v654 = vunpack.c.h.b16 %v507
    %v655 = vunpack.c.l.b16 %v508
    %v656 = vunpack.c.h.b16 %v508
    %v657 = vunpack.c.l.b16 %v509
    %v658 = vunpack.c.h.b16 %v509
    %v659 = vunpack.c.l.b16 %v510
    %v660 = vunpack.c.h.b16 %v510
    %v661 = vunpack.c.l.b16 %v511
    %v662 = vunpack.c.h.b16 %v511
    %v663 = vunpack.c.l.b16 %v512
    %v664 = vunpack.c.h.b16 %v512
    %v665 = vunpack.c.l.b16 %v513
    %v666 = vunpack.c.h.b16 %v513
    %v667 = vunpack.c.l.b16 %v514
    %v668 = vunpack.c.h.b16 %v514
    %v669 = vunpack.c.l.b16 %v515
    %v670 = vunpack.c.h.b16 %v515
    %v671 = vunpack.c.l.b16 %v516
    %v672 = vunpack.c.h.b16 %v516
    %v673 = vunpack.c.l.b16 %v517
    %v674 = vunpack.c.h.b16 %v517
    %v675 = vunpack.c.l.b16 %v518
    %v676 = vunpack.c.h.b16 %v518
    %v677 = vunpack.c.l.b16 %v519
    %v678 = vunpack.c.h.b16 %v519
    %v679 = vunpack.c.l.b16 %v520
    %v680 = vunpack.c.h.b16 %v520
    %v681 = vunpack.c.l.b16 %v521
    %v682 = vunpack.c.h.b16 %v521
    %v683 = vunpack.c.l.b16 %v522
    %v684 = vunpack.c.h.b16 %v522
    %v685 = vunpack.c.l.b16 %v523
    %v686 = vunpack.c.h.b16 %v523
    %v687 = vunpack.c.l.b16 %v524
    %v688 = vunpack.c.h.b16 %v524
    %v689 = vunpack.c.l.b16 %v525
    %v690 = vunpack.c.h.b16 %v525
    %v691 = vunpack.c.l.b16 %v526
    %v692 = vunpack.c.h.b16 %v526
    %v693 = vunpack.c.l.b16 %v527
    %v694 = vunpack.c.h.b16 %v527
    %v695 = vunpack.c.l.b16 %v528
    %v696 = vunpack.c.h.b16 %v528
    %v697 = vunpack.c.l.b16 %v529
    %v698 = vunpack.c.h.b16 %v529
    %v699 = vunpack.c.l.b16 %v530
    %v700 = vunpack.c.h.b16 %v530
    %v701 = vunpack.c.l.b16 %v531
    %v702 = vunpack.c.h.b16 %v531
    %v703 = vunpack.c.l.b16 %v532
    %v704 = vunpack.c.h.b16 %v532
    %v705 = vunpack.c.l.b16 %v533
    %v706 = vunpack.c.h.b16 %v533
    %v707 = vunpack.c.l.b16 %v534
    %v708 = vunpack.c.h.b16 %v534
    %v709 = vunpack.c.l.b16 %v535
    %v710 = vunpack.c.h.b16 %v535
    %v711 = vunpack.c.l.b16 %v536
    %v712 = vunpack.c.h.b16 %v536
    %v713 = vunpack.c.l.b16 %v537
    %v714 = vunpack.c.h.b16 %v537
    %v715 = vunpack.c.l.b16 %v538
    %v716 = vunpack.c.h.b16 %v538
    %v717 = vunpack.c.l.b16 %v539
    %v718 = vunpack.c.h.b16 %v539
    %v719 = vunpack.c.l.b16 %v540
    %v720 = vunpack.c.h.b16 %v540
    %v721 = vunpack.c.l.b16 %v541
    %v722 = vunpack.c.h.b16 %v541
    %v723 = vunpack.c.l.b16 %v542
    %v724 = vunpack.c.h.b16 %v542
    %v725 = vunpack.c.l.b16 %v543
    %v726 = vunpack.c.h.b16 %v543
    %v727 = vunpack.c.l.b16 %v544
    %v728 = vunpack.c.h.b16 %v544
    %v729 = vunpack.c.l.b16 %v545
    %v730 = vunpack.c.h.b16 %v545
    %v731 = vunpack.c.l.b16 %v546
    %v732 = vunpack.c.h.b16 %v546
    %v733 = vunpack.c.l.b16 %v547
    %v734 = vunpack.c.h.b16 %v547
    %v735 = vunpack.c.l.b16 %v548
    %v736 = vunpack.c.h.b16 %v548
    %v737 = vunpack.c.l.b16 %v549
    %v738 = vunpack.c.h.b16 %v549
    %v739 = vunpack.c.l.b16 %v550
    %v740 = vunpack.c.h.b16 %v550
    %v741 = vunpack.c.l.b16 %v551
    %v742 = vunpack.c.h.b16 %v551
    %v743 = vunpack.c.l.b16 %v552
    %v744 = vunpack.c.h.b16 %v552
    %v745 = vunpack.c.l.b16 %v553
    %v746 = vunpack.c.h.b16 %v553
    %v747 = vunpack.c.l.b16 %v554
    %v748 = vunpack.c.h.b16 %v554
    %v749 = vunpack.c.l.b16 %v555
    %v750 = vunpack.c.h.b16 %v555
    %v751 = vunpack.c.l.b16 %v556
    %v752 = vunpack.c.h.b16 %v556
    %v753 = vunpack.c.l.b16 %v557
    %v754 = vunpack.c.h.b16 %v557
    %v755 = vunpack.c.l.b16 %v558
    %v756 = vunpack.c.h.b16 %v558
    %v757 = vunpack.c.l.b16 %v559
    %v758 = vunpack.c.h.b16 %v559
    %v759 = vunpack.c.l.b16 %v560
    %v760 = vunpack.c.h.b16 %v560
    %v761 = vunpack.c.l.b16 %v561
    %v762 = vunpack.c.h.b16 %v561
    %v763 = vunpack.c.l.b16 %v562
    %v764 = vunpack.c.h.b16 %v562
    %v765 = vpack.c.b16 %v641, %v637
    %v766 = vpack.c.b16 %v642, %v638
    %v767 = vpack.c.b16 %v643, %v639
    %v768 = vpack.c.b16 %v644, %v640
    %v769 = vpack.c.b16 %v649, %v645
    %v770 = vpack.c.b16 %v650, %v646
    %v771 = vpack.c.b16 %v651, %v647
    %v772 = vpack.c.b16 %v652, %v648
    %v773 = vpack.c.b16 %v657, %v653
    %v774 = vpack.c.b16 %v658, %v654
    %v775 = vpack.c.b16 %v659, %v655
    %v776 = vpack.c.b16 %v660, %v656
    %v777 = vpack.c.b16 %v665, %v661
    %v778 = vpack.c.b16 %v666, %v662
    %v779 = vpack.c.b16 %v667, %v663
    %v780 = vpack.c.b16 %v668, %v664
    %v781 = vpack.c.b16 %v673, %v669
    %v782 = vpack.c.b16 %v674, %v670
    %v783 = vpack.c.b16 %v675, %v671
    %v784 = vpack.c.b16 %v676, %v672
    %v785 = vpack.c.b16 %v681, %v677
    %v786 = vpack.c.b16 %v682, %v678
    %v787 = vpack.c.b16 %v683, %v679
    %v788 = vpack.c.b16 %v684, %v680
    %v789 = vpack.c.b16 %v689, %v685
    %v790 = vpack.c.b16 %v690, %v686
    %v791 = vpack.c.b16 %v691, %v687
    %v792 = vpack.c.b16 %v692, %v688
    %v793 = vpack.c.b16 %v697, %v693
    %v794 = vpack.c.b16 %v698, %v694
    %v795 = vpack.c.b16 %v699, %v695
    %v796 = vpack.c.b16 %v700, %v696
    %v797 = vpack.c.b16 %v705, %v701
    %v798 = vpack.c.b16 %v706, %v702
    %v799 = vpack.c.b16 %v707, %v703
    %v800 = vpack.c.b16 %v708, %v704
    %v801 = vpack.c.b16 %v713, %v709
    %v802 = vpack.c.b16 %v714, %v710
    %v803 = vpack.c.b16 %v715, %v711
    %v804 = vpack.c.b16 %v716, %v712
    %v805 = vpack.c.b16 %v721, %v717
    %v806 = vpack.c.b16 %v722, %v718
    %v807 = vpack.c.b16 %v723, %v719
    %v808 = vpack.c.b16 %v724, %v720
    %v809 = vpack.c.b16 %v729, %v725
    %v810 = vpack.c.b16 %v730, %v726
    %v811 = vpack.c.b16 %v731, %v727
    %v812 = vpack.c.b16 %v732, %v728
    %v813 = vpack.c.b16 %v737, %v733
    %v814 = vpack.c.b16 %v738, %v734
    %v815 = vpack.c.b16 %v739, %v735
    %v816 = vpack.c.b16 %v740, %v736
    %v817 = vpack.c.b16 %v745, %v741
    %v818 = vpack.c.b16 %v746, %v742
    %v819 = vpack.c.b16 %v747, %v743
    %v820 = vpack.c.b16 %v748, %v744
    %v821 = vpack.c.b16 %v753, %v749
    %v822 = vpack.c.b16 %v754, %v750
    %v823 = vpack.c.b16 %v755, %v751
    %v824 = vpack.c.b16 %v756, %v752
    %v825 = vpack.c.b16 %v761, %v757
    %v826 = vpack.c.b16 %v762, %v758
    %v827 = vpack.c.b16 %v763, %v759
    %v828 = vpack.c.b16 %v764, %v760
    %893 = vmatpush.bf16.msra.mxu0 %v793
    %894 = vmatpush.bf16.msra.mxu0 %v789
    %895 = vmatpush.bf16.msra.mxu0 %v785
    %896 = vmatpush.bf16.msra.mxu0 %v781
    %897 = vmatpush.bf16.msra.mxu0 %v777
    %898 = vmatpush.bf16.msra.mxu0 %v773
    %899 = vmatpush.bf16.msra.mxu0 %v769
    %900 = vmatpush.bf16.msra.mxu0 %v765
    %901 = vmatmul.bf16.gmra.mxu0 %v497
    %v902 = vpop.f32.mrf.mxu0
    %v903 = vadd.f32 %v565, %v902
    %v904 = vpop.f32.mrf.mxu0
    %905 = vdwg.mxu0
    %906 = vmatpush.bf16.msra.mxu0 %v825
    %907 = vmatpush.bf16.msra.mxu0 %v821
    %908 = vmatpush.bf16.msra.mxu0 %v817
    %909 = vmatpush.bf16.msra.mxu0 %v813
    %910 = vmatpush.bf16.msra.mxu0 %v809
    %911 = vmatpush.bf16.msra.mxu0 %v805
    %912 = vmatpush.bf16.msra.mxu0 %v801
    %913 = vmatpush.bf16.msra.mxu0 %v797
    %914 = vmatmul.bf16.gmra.mxu0 %v498
    %v915 = vpop.f32.mrf.mxu0
    %v916 = vadd.f32 %v903, %v915
    %v917 = vpop.f32.mrf.mxu0
    %918 = vdwg.mxu0
    %919 = vmatpush.bf16.msra.mxu0 %v794
    %920 = vmatpush.bf16.msra.mxu0 %v790
    %921 = vmatpush.bf16.msra.mxu0 %v786
    %922 = vmatpush.bf16.msra.mxu0 %v782
    %923 = vmatpush.bf16.msra.mxu0 %v778
    %924 = vmatpush.bf16.msra.mxu0 %v774
    %925 = vmatpush.bf16.msra.mxu0 %v770
    %926 = vmatpush.bf16.msra.mxu0 %v766
    %927 = vmatmul.bf16.gmra.mxu0 %v497
    %v928 = vpop.f32.mrf.mxu0
    %v929 = vadd.f32 %v566, %v928
    %v930 = vpop.f32.mrf.mxu0
    %931 = vdwg.mxu0
    %932 = vmatpush.bf16.msra.mxu0 %v826
    %933 = vmatpush.bf16.msra.mxu0 %v822
    %934 = vmatpush.bf16.msra.mxu0 %v818
    %935 = vmatpush.bf16.msra.mxu0 %v814
    %936 = vmatpush.bf16.msra.mxu0 %v810
    %937 = vmatpush.bf16.msra.mxu0 %v806
    %938 = vmatpush.bf16.msra.mxu0 %v802
    %939 = vmatpush.bf16.msra.mxu0 %v798
    %940 = vmatmul.bf16.gmra.mxu0 %v498
    %v941 = vpop.f32.mrf.mxu0
    %v942 = vadd.f32 %v929, %v941
    %v943 = vpop.f32.mrf.mxu0
    %944 = vdwg.mxu0
    %945 = vmatpush.bf16.msra.mxu0 %v795
    %946 = vmatpush.bf16.msra.mxu0 %v791
    %947 = vmatpush.bf16.msra.mxu0 %v787
    %948 = vmatpush.bf16.msra.mxu0 %v783
    %949 = vmatpush.bf16.msra.mxu0 %v779
    %950 = vmatpush.bf16.msra.mxu0 %v775
    %951 = vmatpush.bf16.msra.mxu0 %v771
    %952 = vmatpush.bf16.msra.mxu0 %v767
    %953 = vmatmul.bf16.gmra.mxu0 %v497
    %v954 = vpop.f32.mrf.mxu0
    %v955 = vadd.f32 %v567, %v954
    %v956 = vpop.f32.mrf.mxu0
    %957 = vdwg.mxu0
    %958 = vmatpush.bf16.msra.mxu0 %v827
    %959 = vmatpush.bf16.msra.mxu0 %v823
    %960 = vmatpush.bf16.msra.mxu0 %v819
    %961 = vmatpush.bf16.msra.mxu0 %v815
    %962 = vmatpush.bf16.msra.mxu0 %v811
    %963 = vmatpush.bf16.msra.mxu0 %v807
    %964 = vmatpush.bf16.msra.mxu0 %v803
    %965 = vmatpush.bf16.msra.mxu0 %v799
    %966 = vmatmul.bf16.gmra.mxu0 %v498
    %v967 = vpop.f32.mrf.mxu0
    %v968 = vadd.f32 %v955, %v967
    %v969 = vpop.f32.mrf.mxu0
    %970 = vdwg.mxu0
    %971 = vmatpush.bf16.msra.mxu0 %v796
    %972 = vmatpush.bf16.msra.mxu0 %v792
    %973 = vmatpush.bf16.msra.mxu0 %v788
    %974 = vmatpush.bf16.msra.mxu0 %v784
    %975 = vmatpush.bf16.msra.mxu0 %v780
    %976 = vmatpush.bf16.msra.mxu0 %v776
    %977 = vmatpush.bf16.msra.mxu0 %v772
    %978 = vmatpush.bf16.msra.mxu0 %v768
    %979 = vmatmul.bf16.gmra.mxu0 %v497
    %v980 = vpop.f32.mrf.mxu0
    %v981 = vadd.f32 %v568, %v980
    %v982 = vpop.f32.mrf.mxu0
    %983 = vdwg.mxu0
    %984 = vmatpush.bf16.msra.mxu0 %v828
    %985 = vmatpush.bf16.msra.mxu0 %v824
    %986 = vmatpush.bf16.msra.mxu0 %v820
    %987 = vmatpush.bf16.msra.mxu0 %v816
    %988 = vmatpush.bf16.msra.mxu0 %v812
    %989 = vmatpush.bf16.msra.mxu0 %v808
    %990 = vmatpush.bf16.msra.mxu0 %v804
    %991 = vmatpush.bf16.msra.mxu0 %v800
    %992 = vmatmul.bf16.gmra.mxu0 %v498
    %v993 = vpop.f32.mrf.mxu0
    %v994 = vadd.f32 %v981, %v993
    %v995 = vpop.f32.mrf.mxu0
    %996 = vdwg.mxu0
    %v997 = vsel %vm392, %v916, 0.0
    %v998 = vrot.slane %v997, 4
    %v999 = vadd.f32 %v997, %v998
    %v1000 = vrot.slane %v999, 2
    %v1001 = vadd.f32 %v999, %v1000
    %v1002 = vrot.slane %v1001, 1
    %v1003 = vadd.f32 %v1001, %v1002
    %v1004 = vsel %vm392, %v942, 0.0
    %v1005 = vrot.slane %v1004, 4
    %v1006 = vadd.f32 %v1004, %v1005
    %v1007 = vrot.slane %v1006, 2
    %v1008 = vadd.f32 %v1006, %v1007
    %v1009 = vrot.slane %v1008, 1
    %v1010 = vadd.f32 %v1008, %v1009
    %v1011 = vsel %vm392, %v968, 0.0
    %v1012 = vrot.slane %v1011, 4
    %v1013 = vadd.f32 %v1011, %v1012
    %v1014 = vrot.slane %v1013, 2
    %v1015 = vadd.f32 %v1013, %v1014
    %v1016 = vrot.slane %v1015, 1
    %v1017 = vadd.f32 %v1015, %v1016
    %v1018 = vsel %vm392, %v994, 0.0
    %v1019 = vrot.slane %v1018, 4
    %v1020 = vadd.f32 %v1018, %v1019
    %v1021 = vrot.slane %v1020, 2
    %v1022 = vadd.f32 %v1020, %v1021
    %v1023 = vrot.slane %v1022, 1
    %v1024 = vadd.f32 %v1022, %v1023
    %v1025 = vmul.f32 %v1003, %v413
    %v1026 = vmul.f32 %v1010, %v413
    %v1027 = vmul.f32 %v1017, %v413
    %v1028 = vmul.f32 %v1024, %v413
    %v1029 = vmul.f32 %v916, %v916
    %v1030 = vmul.f32 %v942, %v942
    %v1031 = vmul.f32 %v968, %v968
    %v1032 = vmul.f32 %v994, %v994
    %v1033 = vsel %vm392, %v1029, 0.0
    %v1034 = vrot.slane %v1033, 4
    %v1035 = vadd.f32 %v1033, %v1034
    %v1036 = vrot.slane %v1035, 2
    %v1037 = vadd.f32 %v1035, %v1036
    %v1038 = vrot.slane %v1037, 1
    %v1039 = vadd.f32 %v1037, %v1038
    %v1040 = vsel %vm392, %v1030, 0.0
    %v1041 = vrot.slane %v1040, 4
    %v1042 = vadd.f32 %v1040, %v1041
    %v1043 = vrot.slane %v1042, 2
    %v1044 = vadd.f32 %v1042, %v1043
    %v1045 = vrot.slane %v1044, 1
    %v1046 = vadd.f32 %v1044, %v1045
    %v1047 = vsel %vm392, %v1031, 0.0
    %v1048 = vrot.slane %v1047, 4
    %v1049 = vadd.f32 %v1047, %v1048
    %v1050 = vrot.slane %v1049, 2
    %v1051 = vadd.f32 %v1049, %v1050
    %v1052 = vrot.slane %v1051, 1
    %v1053 = vadd.f32 %v1051, %v1052
    %v1054 = vsel %vm392, %v1032, 0.0
    %v1055 = vrot.slane %v1054, 4
    %v1056 = vadd.f32 %v1054, %v1055
    %v1057 = vrot.slane %v1056, 2
    %v1058 = vadd.f32 %v1056, %v1057
    %v1059 = vrot.slane %v1058, 1
    %v1060 = vadd.f32 %v1058, %v1059
    %v1061 = vmul.f32 %v1039, %v413
    %v1062 = vmul.f32 %v1046, %v413
    %v1063 = vmul.f32 %v1053, %v413
    %v1064 = vmul.f32 %v1060, %v413
    %v1065 = vmul.f32 %v1025, %v1025
    %v1066 = vmul.f32 %v1026, %v1026
    %v1067 = vmul.f32 %v1027, %v1027
    %v1068 = vmul.f32 %v1028, %v1028
    %v1069 = vsub.f32 %v1061, %v1065
    %v1070 = vsub.f32 %v1062, %v1066
    %v1071 = vsub.f32 %v1063, %v1067
    %v1072 = vsub.f32 %v1064, %v1068
    %v1073 = vmax.f32 %v1069, 0.0
    %v1074 = vmax.f32 %v1070, 0.0
    %v1075 = vmax.f32 %v1071, 0.0
    %v1076 = vmax.f32 %v1072, 0.0
    %v1077 = vld [vmem:[#allocation13] sm:$0xf]
    %v1078 = vadd.f32 %v1073, 0.8
    %v1079 = vadd.f32 %v1074, 0.8
    %v1080 = vadd.f32 %v1075, 0.8
    %v1081 = vadd.f32 %v1076, 0.8
    %v1082 = vrsqrt.pop %v1078
    %v1083 = vmul.f32 %v1082, %v1078
    %v1084 = vmul.f32 %v1083, %v1082
    %v1085 = vmul.f32 0.5, %v1084
    %v1086 = vsub.f32 1.5, %v1085
    %v1087 = vmul.f32 %v1082, %v1086
    %vm1088 = vweird.f32 %v1078
    %vm1089 = vweird.f32 %v1082
    %vm1090 = vmor %vm1088, %vm1089
    %v1091 = vsel %vm1090, %v1082, %v1087
    %v1092 = vrsqrt.pop %v1079
    %v1093 = vmul.f32 %v1092, %v1079
    %v1094 = vmul.f32 %v1093, %v1092
    %v1095 = vmul.f32 0.5, %v1094
    %v1096 = vsub.f32 1.5, %v1095
    %v1097 = vmul.f32 %v1092, %v1096
    %vm1098 = vweird.f32 %v1079
    %vm1099 = vweird.f32 %v1092
    %vm1100 = vmor %vm1098, %vm1099
    %v1101 = vsel %vm1100, %v1092, %v1097
    %v1102 = vrsqrt.pop %v1080
    %v1103 = vmul.f32 %v1102, %v1080
    %v1104 = vmul.f32 %v1103, %v1102
    %v1105 = vmul.f32 0.5, %v1104
    %v1106 = vsub.f32 1.5, %v1105
    %v1107 = vmul.f32 %v1102, %v1106
    %vm1108 = vweird.f32 %v1080
    %vm1109 = vweird.f32 %v1102
    %vm1110 = vmor %vm1108, %vm1109
    %v1111 = vsel %vm1110, %v1102, %v1107
    %v1112 = vrsqrt.pop %v1081
    %v1113 = vmul.f32 %v1112, %v1081
    %v1114 = vmul.f32 %v1113, %v1112
    %v1115 = vmul.f32 0.5, %v1114
    %v1116 = vsub.f32 1.5, %v1115
    %v1117 = vmul.f32 %v1112, %v1116
    %vm1118 = vweird.f32 %v1081
    %vm1119 = vweird.f32 %v1112
    %vm1120 = vmor %vm1118, %vm1119
    %v1121 = vsel %vm1120, %v1112, %v1117
    %v1126 = vrot.slane %v1101, 7
    %v1127 = vrot.slane %v1111, 6
    %v1128 = vrot.slane %v1121, 5
    %v1129 = vsel %vm466, %v1091, %v1126
    %vm1130 = vcmask 1042434
    %v1131 = vsel %vm1130, %v1127, %v1128
    %v1132 = vsel %vm392, %v1129, %v1131
    %v1134 = vmul.f32 %v1077, %v1132
    %v1135 = vld [vmem:[#allocation15] sm:$0xf]
    %v1137 = vperm.slane %v1134, 0
    %v1138 = vperm.slane %v1134, 1
    %v1139 = vperm.slane %v1134, 2
    %v1140 = vperm.slane %v1134, 3
    %v1145 = vmul.f32 %v1025, %v1137
    %v1146 = vmul.f32 %v1026, %v1138
    %v1147 = vmul.f32 %v1027, %v1139
    %v1148 = vmul.f32 %v1028, %v1140
    %v1153 = vrot.slane %v1146, 7
    %v1154 = vrot.slane %v1147, 6
    %v1155 = vrot.slane %v1148, 5
    %v1156 = vsel %vm466, %v1145, %v1153
    %v1157 = vsel %vm1130, %v1154, %v1155
    %v1158 = vsel %vm392, %v1156, %v1157
    %v1160 = vsub.f32 %v1135, %v1158
    %v1161 = vmul.f32 %v916, %v1137
    %v1162 = vmul.f32 %v942, %v1138
    %v1163 = vmul.f32 %v968, %v1139
    %v1164 = vmul.f32 %v994, %v1140
    %v1166 = vperm.slane %v1160, 0
    %v1167 = vperm.slane %v1160, 1
    %v1168 = vperm.slane %v1160, 2
    %v1169 = vperm.slane %v1160, 3
    %v1174 = vadd.f32 %v1161, %v1166
    %v1175 = vadd.f32 %v1162, %v1167
    %v1176 = vadd.f32 %v1163, %v1168
    %v1177 = vadd.f32 %v1164, %v1169
    %v1178 = vmul.f32 %v1174, 0.2
    %v1179 = vmul.f32 %v1175, 0.2
    %v1180 = vmul.f32 %v1176, 0.2
    %v1181 = vmul.f32 %v1177, 0.2
    %v1182 = vmax.f32 %v1174, %v1178
    %v1183 = vmax.f32 %v1175, %v1179
    %v1184 = vmax.f32 %v1176, %v1180
    %v1185 = vmax.f32 %v1177, %v1181
    %v1186 = vpack.c.bf16 %v1182, %v1182
    %v1187 = vpack.c.bf16 %v1183, %v1183
    %v1188 = vpack.c.bf16 %v1184, %v1184
    %v1189 = vpack.c.bf16 %v1185, %v1185
    %v1190 = vld [vmem:[#allocation16] sm:$0xff]
    %v1191 = vld [vmem:[#allocation16 + $0x8] sm:$0xff]
    %v1192 = vld [vmem:[#allocation16 + $0x10] sm:$0xff]
    %v1193 = vld [vmem:[#allocation16 + $0x18] sm:$0xff]
    %v1194 = vld [vmem:[#allocation16 + $0x20] sm:$0xff]
    %v1195 = vld [vmem:[#allocation16 + $0x28] sm:$0xff]
    %v1196 = vld [vmem:[#allocation16 + $0x30] sm:$0xff]
    %v1197 = vld [vmem:[#allocation16 + $0x38] sm:$0xff]
    %v1198 = vld [vmem:[#allocation16 + $0x40] sm:$0xff]
    %v1199 = vld [vmem:[#allocation16 + $0x48] sm:$0xff]
    %v1200 = vld [vmem:[#allocation16 + $0x50] sm:$0xff]
    %v1201 = vld [vmem:[#allocation16 + $0x58] sm:$0xff]
    %v1202 = vld [vmem:[#allocation16 + $0x60] sm:$0xff]
    %v1203 = vld [vmem:[#allocation16 + $0x68] sm:$0xff]
    %v1204 = vld [vmem:[#allocation16 + $0x70] sm:$0xff]
    %v1205 = vld [vmem:[#allocation16 + $0x78] sm:$0xff]
    %v1206 = vld [vmem:[#allocation16 + $0x80] sm:$0xff]
    %v1207 = vld [vmem:[#allocation16 + $0x88] sm:$0xff]
    %v1208 = vld [vmem:[#allocation16 + $0x90] sm:$0xff]
    %v1209 = vld [vmem:[#allocation16 + $0x98] sm:$0xff]
    %v1210 = vld [vmem:[#allocation16 + $0xa0] sm:$0xff]
    %v1211 = vld [vmem:[#allocation16 + $0xa8] sm:$0xff]
    %v1212 = vld [vmem:[#allocation16 + $0xb0] sm:$0xff]
    %v1213 = vld [vmem:[#allocation16 + $0xb8] sm:$0xff]
    %v1214 = vld [vmem:[#allocation16 + $0xc0] sm:$0xff]
    %v1215 = vld [vmem:[#allocation16 + $0xc8] sm:$0xff]
    %v1216 = vld [vmem:[#allocation16 + $0xd0] sm:$0xff]
    %v1217 = vld [vmem:[#allocation16 + $0xd8] sm:$0xff]
    %v1218 = vld [vmem:[#allocation16 + $0xe0] sm:$0xff]
    %v1219 = vld [vmem:[#allocation16 + $0xe8] sm:$0xff]
    %v1220 = vld [vmem:[#allocation16 + $0xf0] sm:$0xff]
    %v1221 = vld [vmem:[#allocation16 + $0xf8] sm:$0xff]
    %v1222 = vld [vmem:[#allocation16 + $0x100] sm:$0xff]
    %v1223 = vld [vmem:[#allocation16 + $0x108] sm:$0xff]
    %v1224 = vld [vmem:[#allocation16 + $0x110] sm:$0xff]
    %v1225 = vld [vmem:[#allocation16 + $0x118] sm:$0xff]
    %v1226 = vld [vmem:[#allocation16 + $0x120] sm:$0xff]
    %v1227 = vld [vmem:[#allocation16 + $0x128] sm:$0xff]
    %v1228 = vld [vmem:[#allocation16 + $0x130] sm:$0xff]
    %v1229 = vld [vmem:[#allocation16 + $0x138] sm:$0xff]
    %v1230 = vld [vmem:[#allocation16 + $0x140] sm:$0xff]
    %v1231 = vld [vmem:[#allocation16 + $0x148] sm:$0xff]
    %v1232 = vld [vmem:[#allocation16 + $0x150] sm:$0xff]
    %v1233 = vld [vmem:[#allocation16 + $0x158] sm:$0xff]
    %v1234 = vld [vmem:[#allocation16 + $0x160] sm:$0xff]
    %v1235 = vld [vmem:[#allocation16 + $0x168] sm:$0xff]
    %v1236 = vld [vmem:[#allocation16 + $0x170] sm:$0xff]
    %v1237 = vld [vmem:[#allocation16 + $0x178] sm:$0xff]
    %v1238 = vld [vmem:[#allocation16 + $0x180] sm:$0xff]
    %v1239 = vld [vmem:[#allocation16 + $0x188] sm:$0xff]
    %v1240 = vld [vmem:[#allocation16 + $0x190] sm:$0xff]
    %v1241 = vld [vmem:[#allocation16 + $0x198] sm:$0xff]
    %v1242 = vld [vmem:[#allocation16 + $0x1a0] sm:$0xff]
    %v1243 = vld [vmem:[#allocation16 + $0x1a8] sm:$0xff]
    %v1244 = vld [vmem:[#allocation16 + $0x1b0] sm:$0xff]
    %v1245 = vld [vmem:[#allocation16 + $0x1b8] sm:$0xff]
    %v1246 = vld [vmem:[#allocation16 + $0x1c0] sm:$0xff]
    %v1247 = vld [vmem:[#allocation16 + $0x1c8] sm:$0xff]
    %v1248 = vld [vmem:[#allocation16 + $0x1d0] sm:$0xff]
    %v1249 = vld [vmem:[#allocation16 + $0x1d8] sm:$0xff]
    %v1250 = vld [vmem:[#allocation16 + $0x1e0] sm:$0xff]
    %v1251 = vld [vmem:[#allocation16 + $0x1e8] sm:$0xff]
    %v1252 = vld [vmem:[#allocation16 + $0x1f0] sm:$0xff]
    %v1253 = vld [vmem:[#allocation16 + $0x1f8] sm:$0xff]
    %v1254 = vld [vmem:[#allocation16 + $0x200] sm:$0xff]
    %v1255 = vld [vmem:[#allocation16 + $0x208] sm:$0xff]
    %v1256 = vld [vmem:[#allocation16 + $0x210] sm:$0xff]
    %v1257 = vld [vmem:[#allocation16 + $0x218] sm:$0xff]
    %v1258 = vld [vmem:[#allocation16 + $0x220] sm:$0xff]
    %v1259 = vld [vmem:[#allocation16 + $0x228] sm:$0xff]
    %v1260 = vld [vmem:[#allocation16 + $0x230] sm:$0xff]
    %v1261 = vld [vmem:[#allocation16 + $0x238] sm:$0xff]
    %v1262 = vld [vmem:[#allocation16 + $0x240] sm:$0xff]
    %v1263 = vld [vmem:[#allocation16 + $0x248] sm:$0xff]
    %v1264 = vld [vmem:[#allocation16 + $0x250] sm:$0xff]
    %v1265 = vld [vmem:[#allocation16 + $0x258] sm:$0xff]
    %v1266 = vld [vmem:[#allocation16 + $0x260] sm:$0xff]
    %v1267 = vld [vmem:[#allocation16 + $0x268] sm:$0xff]
    %v1268 = vld [vmem:[#allocation16 + $0x270] sm:$0xff]
    %v1269 = vld [vmem:[#allocation16 + $0x278] sm:$0xff]
    %v1270 = vld [vmem:[#allocation16 + $0x280] sm:$0xff]
    %v1271 = vld [vmem:[#allocation16 + $0x288] sm:$0xff]
    %v1272 = vld [vmem:[#allocation16 + $0x290] sm:$0xff]
    %v1273 = vld [vmem:[#allocation16 + $0x298] sm:$0xff]
    %v1274 = vld [vmem:[#allocation16 + $0x2a0] sm:$0xff]
    %v1275 = vld [vmem:[#allocation16 + $0x2a8] sm:$0xff]
    %v1276 = vld [vmem:[#allocation16 + $0x2b0] sm:$0xff]
    %v1277 = vld [vmem:[#allocation16 + $0x2b8] sm:$0xff]
    %v1278 = vld [vmem:[#allocation16 + $0x2c0] sm:$0xff]
    %v1279 = vld [vmem:[#allocation16 + $0x2c8] sm:$0xff]
    %v1280 = vld [vmem:[#allocation16 + $0x2d0] sm:$0xff]
    %v1281 = vld [vmem:[#allocation16 + $0x2d8] sm:$0xff]
    %v1282 = vld [vmem:[#allocation16 + $0x2e0] sm:$0xff]
    %v1283 = vld [vmem:[#allocation16 + $0x2e8] sm:$0xff]
    %v1284 = vld [vmem:[#allocation16 + $0x2f0] sm:$0xff]
    %v1285 = vld [vmem:[#allocation16 + $0x2f8] sm:$0xff]
    %v1286 = vld [vmem:[#allocation16 + $0x300] sm:$0xff]
    %v1287 = vld [vmem:[#allocation16 + $0x308] sm:$0xff]
    %v1288 = vld [vmem:[#allocation16 + $0x310] sm:$0xff]
    %v1289 = vld [vmem:[#allocation16 + $0x318] sm:$0xff]
    %v1290 = vld [vmem:[#allocation16 + $0x320] sm:$0xff]
    %v1291 = vld [vmem:[#allocation16 + $0x328] sm:$0xff]
    %v1292 = vld [vmem:[#allocation16 + $0x330] sm:$0xff]
    %v1293 = vld [vmem:[#allocation16 + $0x338] sm:$0xff]
    %v1294 = vld [vmem:[#allocation16 + $0x340] sm:$0xff]
    %v1295 = vld [vmem:[#allocation16 + $0x348] sm:$0xff]
    %v1296 = vld [vmem:[#allocation16 + $0x350] sm:$0xff]
    %v1297 = vld [vmem:[#allocation16 + $0x358] sm:$0xff]
    %v1298 = vld [vmem:[#allocation16 + $0x360] sm:$0xff]
    %v1299 = vld [vmem:[#allocation16 + $0x368] sm:$0xff]
    %v1300 = vld [vmem:[#allocation16 + $0x370] sm:$0xff]
    %v1301 = vld [vmem:[#allocation16 + $0x378] sm:$0xff]
    %v1302 = vld [vmem:[#allocation16 + $0x380] sm:$0xff]
    %v1303 = vld [vmem:[#allocation16 + $0x388] sm:$0xff]
    %v1304 = vld [vmem:[#allocation16 + $0x390] sm:$0xff]
    %v1305 = vld [vmem:[#allocation16 + $0x398] sm:$0xff]
    %v1306 = vld [vmem:[#allocation16 + $0x3a0] sm:$0xff]
    %v1307 = vld [vmem:[#allocation16 + $0x3a8] sm:$0xff]
    %v1308 = vld [vmem:[#allocation16 + $0x3b0] sm:$0xff]
    %v1309 = vld [vmem:[#allocation16 + $0x3b8] sm:$0xff]
    %v1310 = vld [vmem:[#allocation16 + $0x3c0] sm:$0xff]
    %v1311 = vld [vmem:[#allocation16 + $0x3c8] sm:$0xff]
    %v1312 = vld [vmem:[#allocation16 + $0x3d0] sm:$0xff]
    %v1313 = vld [vmem:[#allocation16 + $0x3d8] sm:$0xff]
    %v1314 = vld [vmem:[#allocation16 + $0x3e0] sm:$0xff]
    %v1315 = vld [vmem:[#allocation16 + $0x3e8] sm:$0xff]
    %v1316 = vld [vmem:[#allocation16 + $0x3f0] sm:$0xff]
    %v1317 = vld [vmem:[#allocation16 + $0x3f8] sm:$0xff]
    %v1318 = vld [vmem:[#allocation16 + $0x400] sm:$0xff]
    %v1319 = vld [vmem:[#allocation16 + $0x408] sm:$0xff]
    %v1320 = vld [vmem:[#allocation16 + $0x410] sm:$0xff]
    %v1321 = vld [vmem:[#allocation16 + $0x418] sm:$0xff]
    %v1322 = vld [vmem:[#allocation16 + $0x420] sm:$0xff]
    %v1323 = vld [vmem:[#allocation16 + $0x428] sm:$0xff]
    %v1324 = vld [vmem:[#allocation16 + $0x430] sm:$0xff]
    %v1325 = vld [vmem:[#allocation16 + $0x438] sm:$0xff]
    %v1326 = vld [vmem:[#allocation16 + $0x440] sm:$0xff]
    %v1327 = vld [vmem:[#allocation16 + $0x448] sm:$0xff]
    %v1328 = vld [vmem:[#allocation16 + $0x450] sm:$0xff]
    %v1329 = vld [vmem:[#allocation16 + $0x458] sm:$0xff]
    %v1330 = vld [vmem:[#allocation16 + $0x460] sm:$0xff]
    %v1331 = vld [vmem:[#allocation16 + $0x468] sm:$0xff]
    %v1332 = vld [vmem:[#allocation16 + $0x470] sm:$0xff]
    %v1333 = vld [vmem:[#allocation16 + $0x478] sm:$0xff]
    %v1334 = vld [vmem:[#allocation16 + $0x480] sm:$0xff]
    %v1335 = vld [vmem:[#allocation16 + $0x488] sm:$0xff]
    %v1336 = vld [vmem:[#allocation16 + $0x490] sm:$0xff]
    %v1337 = vld [vmem:[#allocation16 + $0x498] sm:$0xff]
    %v1338 = vld [vmem:[#allocation16 + $0x4a0] sm:$0xff]
    %v1339 = vld [vmem:[#allocation16 + $0x4a8] sm:$0xff]
    %v1340 = vld [vmem:[#allocation16 + $0x4b0] sm:$0xff]
    %v1341 = vld [vmem:[#allocation16 + $0x4b8] sm:$0xff]
    %v1342 = vld [vmem:[#allocation16 + $0x4c0] sm:$0xff]
    %v1343 = vld [vmem:[#allocation16 + $0x4c8] sm:$0xff]
    %v1344 = vld [vmem:[#allocation16 + $0x4d0] sm:$0xff]
    %v1345 = vld [vmem:[#allocation16 + $0x4d8] sm:$0xff]
    %v1346 = vld [vmem:[#allocation16 + $0x4e0] sm:$0xff]
    %v1347 = vld [vmem:[#allocation16 + $0x4e8] sm:$0xff]
    %v1348 = vld [vmem:[#allocation16 + $0x4f0] sm:$0xff]
    %v1349 = vld [vmem:[#allocation16 + $0x4f8] sm:$0xff]
    %v1350 = vld [vmem:[#allocation16 + $0x500] sm:$0xff]
    %v1351 = vld [vmem:[#allocation16 + $0x508] sm:$0xff]
    %v1352 = vld [vmem:[#allocation16 + $0x510] sm:$0xff]
    %v1353 = vld [vmem:[#allocation16 + $0x518] sm:$0xff]
    %v1354 = vld [vmem:[#allocation16 + $0x520] sm:$0xff]
    %v1355 = vld [vmem:[#allocation16 + $0x528] sm:$0xff]
    %v1356 = vld [vmem:[#allocation16 + $0x530] sm:$0xff]
    %v1357 = vld [vmem:[#allocation16 + $0x538] sm:$0xff]
    %v1358 = vld [vmem:[#allocation16 + $0x540] sm:$0xff]
    %v1359 = vld [vmem:[#allocation16 + $0x548] sm:$0xff]
    %v1360 = vld [vmem:[#allocation16 + $0x550] sm:$0xff]
    %v1361 = vld [vmem:[#allocation16 + $0x558] sm:$0xff]
    %v1362 = vld [vmem:[#allocation16 + $0x560] sm:$0xff]
    %v1363 = vld [vmem:[#allocation16 + $0x568] sm:$0xff]
    %v1364 = vld [vmem:[#allocation16 + $0x570] sm:$0xff]
    %v1365 = vld [vmem:[#allocation16 + $0x578] sm:$0xff]
    %v1366 = vld [vmem:[#allocation16 + $0x580] sm:$0xff]
    %v1367 = vld [vmem:[#allocation16 + $0x588] sm:$0xff]
    %v1368 = vld [vmem:[#allocation16 + $0x590] sm:$0xff]
    %v1369 = vld [vmem:[#allocation16 + $0x598] sm:$0xff]
    %v1370 = vld [vmem:[#allocation16 + $0x5a0] sm:$0xff]
    %v1371 = vld [vmem:[#allocation16 + $0x5a8] sm:$0xff]
    %v1372 = vld [vmem:[#allocation16 + $0x5b0] sm:$0xff]
    %v1373 = vld [vmem:[#allocation16 + $0x5b8] sm:$0xff]
    %v1374 = vld [vmem:[#allocation16 + $0x5c0] sm:$0xff]
    %v1375 = vld [vmem:[#allocation16 + $0x5c8] sm:$0xff]
    %v1376 = vld [vmem:[#allocation16 + $0x5d0] sm:$0xff]
    %v1377 = vld [vmem:[#allocation16 + $0x5d8] sm:$0xff]
    %v1378 = vld [vmem:[#allocation16 + $0x5e0] sm:$0xff]
    %v1379 = vld [vmem:[#allocation16 + $0x5e8] sm:$0xff]
    %v1380 = vld [vmem:[#allocation16 + $0x5f0] sm:$0xff]
    %v1381 = vld [vmem:[#allocation16 + $0x5f8] sm:$0xff]
    %v1382 = vld [vmem:[#allocation16 + $0x600] sm:$0xff]
    %v1383 = vld [vmem:[#allocation16 + $0x608] sm:$0xff]
    %v1384 = vld [vmem:[#allocation16 + $0x610] sm:$0xff]
    %v1385 = vld [vmem:[#allocation16 + $0x618] sm:$0xff]
    %v1386 = vld [vmem:[#allocation16 + $0x620] sm:$0xff]
    %v1387 = vld [vmem:[#allocation16 + $0x628] sm:$0xff]
    %v1388 = vld [vmem:[#allocation16 + $0x630] sm:$0xff]
    %v1389 = vld [vmem:[#allocation16 + $0x638] sm:$0xff]
    %v1390 = vld [vmem:[#allocation16 + $0x640] sm:$0xff]
    %v1391 = vld [vmem:[#allocation16 + $0x648] sm:$0xff]
    %v1392 = vld [vmem:[#allocation16 + $0x650] sm:$0xff]
    %v1393 = vld [vmem:[#allocation16 + $0x658] sm:$0xff]
    %v1394 = vld [vmem:[#allocation16 + $0x660] sm:$0xff]
    %v1395 = vld [vmem:[#allocation16 + $0x668] sm:$0xff]
    %v1396 = vld [vmem:[#allocation16 + $0x670] sm:$0xff]
    %v1397 = vld [vmem:[#allocation16 + $0x678] sm:$0xff]
    %v1398 = vld [vmem:[#allocation16 + $0x680] sm:$0xff]
    %v1399 = vld [vmem:[#allocation16 + $0x688] sm:$0xff]
    %v1400 = vld [vmem:[#allocation16 + $0x690] sm:$0xff]
    %v1401 = vld [vmem:[#allocation16 + $0x698] sm:$0xff]
    %v1402 = vld [vmem:[#allocation16 + $0x6a0] sm:$0xff]
    %v1403 = vld [vmem:[#allocation16 + $0x6a8] sm:$0xff]
    %v1404 = vld [vmem:[#allocation16 + $0x6b0] sm:$0xff]
    %v1405 = vld [vmem:[#allocation16 + $0x6b8] sm:$0xff]
    %v1406 = vld [vmem:[#allocation16 + $0x6c0] sm:$0xff]
    %v1407 = vld [vmem:[#allocation16 + $0x6c8] sm:$0xff]
    %v1408 = vld [vmem:[#allocation16 + $0x6d0] sm:$0xff]
    %v1409 = vld [vmem:[#allocation16 + $0x6d8] sm:$0xff]
    %v1410 = vld [vmem:[#allocation16 + $0x6e0] sm:$0xff]
    %v1411 = vld [vmem:[#allocation16 + $0x6e8] sm:$0xff]
    %v1412 = vld [vmem:[#allocation16 + $0x6f0] sm:$0xff]
    %v1413 = vld [vmem:[#allocation16 + $0x6f8] sm:$0xff]
    %v1414 = vld [vmem:[#allocation16 + $0x700] sm:$0xff]
    %v1415 = vld [vmem:[#allocation16 + $0x708] sm:$0xff]
    %v1416 = vld [vmem:[#allocation16 + $0x710] sm:$0xff]
    %v1417 = vld [vmem:[#allocation16 + $0x718] sm:$0xff]
    %v1418 = vld [vmem:[#allocation16 + $0x720] sm:$0xff]
    %v1419 = vld [vmem:[#allocation16 + $0x728] sm:$0xff]
    %v1420 = vld [vmem:[#allocation16 + $0x730] sm:$0xff]
    %v1421 = vld [vmem:[#allocation16 + $0x738] sm:$0xff]
    %v1422 = vld [vmem:[#allocation16 + $0x740] sm:$0xff]
    %v1423 = vld [vmem:[#allocation16 + $0x748] sm:$0xff]
    %v1424 = vld [vmem:[#allocation16 + $0x750] sm:$0xff]
    %v1425 = vld [vmem:[#allocation16 + $0x758] sm:$0xff]
    %v1426 = vld [vmem:[#allocation16 + $0x760] sm:$0xff]
    %v1427 = vld [vmem:[#allocation16 + $0x768] sm:$0xff]
    %v1428 = vld [vmem:[#allocation16 + $0x770] sm:$0xff]
    %v1429 = vld [vmem:[#allocation16 + $0x778] sm:$0xff]
    %v1430 = vld [vmem:[#allocation16 + $0x780] sm:$0xff]
    %v1431 = vld [vmem:[#allocation16 + $0x788] sm:$0xff]
    %v1432 = vld [vmem:[#allocation16 + $0x790] sm:$0xff]
    %v1433 = vld [vmem:[#allocation16 + $0x798] sm:$0xff]
    %v1434 = vld [vmem:[#allocation16 + $0x7a0] sm:$0xff]
    %v1435 = vld [vmem:[#allocation16 + $0x7a8] sm:$0xff]
    %v1436 = vld [vmem:[#allocation16 + $0x7b0] sm:$0xff]
    %v1437 = vld [vmem:[#allocation16 + $0x7b8] sm:$0xff]
    %v1438 = vld [vmem:[#allocation16 + $0x7c0] sm:$0xff]
    %v1439 = vld [vmem:[#allocation16 + $0x7c8] sm:$0xff]
    %v1440 = vld [vmem:[#allocation16 + $0x7d0] sm:$0xff]
    %v1441 = vld [vmem:[#allocation16 + $0x7d8] sm:$0xff]
    %v1442 = vld [vmem:[#allocation16 + $0x7e0] sm:$0xff]
    %v1443 = vld [vmem:[#allocation16 + $0x7e8] sm:$0xff]
    %v1444 = vld [vmem:[#allocation16 + $0x7f0] sm:$0xff]
    %v1445 = vld [vmem:[#allocation16 + $0x7f8] sm:$0xff]
    %v1446 = vld [vmem:[%s12] sm:$0xff]
    %v1448 = vperm.slane %v1446, 0
    %v1449 = vperm.slane %v1446, 1
    %v1450 = vperm.slane %v1446, 2
    %v1451 = vperm.slane %v1446, 3
    %v1452 = vperm.slane %v1446, 4
    %v1453 = vperm.slane %v1446, 5
    %v1454 = vperm.slane %v1446, 6
    %v1455 = vperm.slane %v1446, 7
    %v1720 = vunpack.c.l.b16 %v1190
    %v1721 = vunpack.c.h.b16 %v1190
    %v1722 = vunpack.c.l.b16 %v1191
    %v1723 = vunpack.c.h.b16 %v1191
    %v1724 = vunpack.c.l.b16 %v1192
    %v1725 = vunpack.c.h.b16 %v1192
    %v1726 = vunpack.c.l.b16 %v1193
    %v1727 = vunpack.c.h.b16 %v1193
    %v1728 = vunpack.c.l.b16 %v1194
    %v1729 = vunpack.c.h.b16 %v1194
    %v1730 = vunpack.c.l.b16 %v1195
    %v1731 = vunpack.c.h.b16 %v1195
    %v1732 = vunpack.c.l.b16 %v1196
    %v1733 = vunpack.c.h.b16 %v1196
    %v1734 = vunpack.c.l.b16 %v1197
    %v1735 = vunpack.c.h.b16 %v1197
    %v1736 = vunpack.c.l.b16 %v1198
    %v1737 = vunpack.c.h.b16 %v1198
    %v1738 = vunpack.c.l.b16 %v1199
    %v1739 = vunpack.c.h.b16 %v1199
    %v1740 = vunpack.c.l.b16 %v1200
    %v1741 = vunpack.c.h.b16 %v1200
    %v1742 = vunpack.c.l.b16 %v1201
    %v1743 = vunpack.c.h.b16 %v1201
    %v1744 = vunpack.c.l.b16 %v1202
    %v1745 = vunpack.c.h.b16 %v1202
    %v1746 = vunpack.c.l.b16 %v1203
    %v1747 = vunpack.c.h.b16 %v1203
    %v1748 = vunpack.c.l.b16 %v1204
    %v1749 = vunpack.c.h.b16 %v1204
    %v1750 = vunpack.c.l.b16 %v1205
    %v1751 = vunpack.c.h.b16 %v1205
    %v1752 = vunpack.c.l.b16 %v1206
    %v1753 = vunpack.c.h.b16 %v1206
    %v1754 = vunpack.c.l.b16 %v1207
    %v1755 = vunpack.c.h.b16 %v1207
    %v1756 = vunpack.c.l.b16 %v1208
    %v1757 = vunpack.c.h.b16 %v1208
    %v1758 = vunpack.c.l.b16 %v1209
    %v1759 = vunpack.c.h.b16 %v1209
    %v1760 = vunpack.c.l.b16 %v1210
    %v1761 = vunpack.c.h.b16 %v1210
    %v1762 = vunpack.c.l.b16 %v1211
    %v1763 = vunpack.c.h.b16 %v1211
    %v1764 = vunpack.c.l.b16 %v1212
    %v1765 = vunpack.c.h.b16 %v1212
    %v1766 = vunpack.c.l.b16 %v1213
    %v1767 = vunpack.c.h.b16 %v1213
    %v1768 = vunpack.c.l.b16 %v1214
    %v1769 = vunpack.c.h.b16 %v1214
    %v1770 = vunpack.c.l.b16 %v1215
    %v1771 = vunpack.c.h.b16 %v1215
    %v1772 = vunpack.c.l.b16 %v1216
    %v1773 = vunpack.c.h.b16 %v1216
    %v1774 = vunpack.c.l.b16 %v1217
    %v1775 = vunpack.c.h.b16 %v1217
    %v1776 = vunpack.c.l.b16 %v1218
    %v1777 = vunpack.c.h.b16 %v1218
    %v1778 = vunpack.c.l.b16 %v1219
    %v1779 = vunpack.c.h.b16 %v1219
    %v1780 = vunpack.c.l.b16 %v1220
    %v1781 = vunpack.c.h.b16 %v1220
    %v1782 = vunpack.c.l.b16 %v1221
    %v1783 = vunpack.c.h.b16 %v1221
    %v1784 = vunpack.c.l.b16 %v1222
    %v1785 = vunpack.c.h.b16 %v1222
    %v1786 = vunpack.c.l.b16 %v1223
    %v1787 = vunpack.c.h.b16 %v1223
    %v1788 = vunpack.c.l.b16 %v1224
    %v1789 = vunpack.c.h.b16 %v1224
    %v1790 = vunpack.c.l.b16 %v1225
    %v1791 = vunpack.c.h.b16 %v1225
    %v1792 = vunpack.c.l.b16 %v1226
    %v1793 = vunpack.c.h.b16 %v1226
    %v1794 = vunpack.c.l.b16 %v1227
    %v1795 = vunpack.c.h.b16 %v1227
    %v1796 = vunpack.c.l.b16 %v1228
    %v1797 = vunpack.c.h.b16 %v1228
    %v1798 = vunpack.c.l.b16 %v1229
    %v1799 = vunpack.c.h.b16 %v1229
    %v1800 = vunpack.c.l.b16 %v1230
    %v1801 = vunpack.c.h.b16 %v1230
    %v1802 = vunpack.c.l.b16 %v1231
    %v1803 = vunpack.c.h.b16 %v1231
    %v1804 = vunpack.c.l.b16 %v1232
    %v1805 = vunpack.c.h.b16 %v1232
    %v1806 = vunpack.c.l.b16 %v1233
    %v1807 = vunpack.c.h.b16 %v1233
    %v1808 = vunpack.c.l.b16 %v1234
    %v1809 = vunpack.c.h.b16 %v1234
    %v1810 = vunpack.c.l.b16 %v1235
    %v1811 = vunpack.c.h.b16 %v1235
    %v1812 = vunpack.c.l.b16 %v1236
    %v1813 = vunpack.c.h.b16 %v1236
    %v1814 = vunpack.c.l.b16 %v1237
    %v1815 = vunpack.c.h.b16 %v1237
    %v1816 = vunpack.c.l.b16 %v1238
    %v1817 = vunpack.c.h.b16 %v1238
    %v1818 = vunpack.c.l.b16 %v1239
    %v1819 = vunpack.c.h.b16 %v1239
    %v1820 = vunpack.c.l.b16 %v1240
    %v1821 = vunpack.c.h.b16 %v1240
    %v1822 = vunpack.c.l.b16 %v1241
    %v1823 = vunpack.c.h.b16 %v1241
    %v1824 = vunpack.c.l.b16 %v1242
    %v1825 = vunpack.c.h.b16 %v1242
    %v1826 = vunpack.c.l.b16 %v1243
    %v1827 = vunpack.c.h.b16 %v1243
    %v1828 = vunpack.c.l.b16 %v1244
    %v1829 = vunpack.c.h.b16 %v1244
    %v1830 = vunpack.c.l.b16 %v1245
    %v1831 = vunpack.c.h.b16 %v1245
    %v1832 = vunpack.c.l.b16 %v1246
    %v1833 = vunpack.c.h.b16 %v1246
    %v1834 = vunpack.c.l.b16 %v1247
    %v1835 = vunpack.c.h.b16 %v1247
    %v1836 = vunpack.c.l.b16 %v1248
    %v1837 = vunpack.c.h.b16 %v1248
    %v1838 = vunpack.c.l.b16 %v1249
    %v1839 = vunpack.c.h.b16 %v1249
    %v1840 = vunpack.c.l.b16 %v1250
    %v1841 = vunpack.c.h.b16 %v1250
    %v1842 = vunpack.c.l.b16 %v1251
    %v1843 = vunpack.c.h.b16 %v1251
    %v1844 = vunpack.c.l.b16 %v1252
    %v1845 = vunpack.c.h.b16 %v1252
    %v1846 = vunpack.c.l.b16 %v1253
    %v1847 = vunpack.c.h.b16 %v1253
    %v1848 = vunpack.c.l.b16 %v1254
    %v1849 = vunpack.c.h.b16 %v1254
    %v1850 = vunpack.c.l.b16 %v1255
    %v1851 = vunpack.c.h.b16 %v1255
    %v1852 = vunpack.c.l.b16 %v1256
    %v1853 = vunpack.c.h.b16 %v1256
    %v1854 = vunpack.c.l.b16 %v1257
    %v1855 = vunpack.c.h.b16 %v1257
    %v1856 = vunpack.c.l.b16 %v1258
    %v1857 = vunpack.c.h.b16 %v1258
    %v1858 = vunpack.c.l.b16 %v1259
    %v1859 = vunpack.c.h.b16 %v1259
    %v1860 = vunpack.c.l.b16 %v1260
    %v1861 = vunpack.c.h.b16 %v1260
    %v1862 = vunpack.c.l.b16 %v1261
    %v1863 = vunpack.c.h.b16 %v1261
    %v1864 = vunpack.c.l.b16 %v1262
    %v1865 = vunpack.c.h.b16 %v1262
    %v1866 = vunpack.c.l.b16 %v1263
    %v1867 = vunpack.c.h.b16 %v1263
    %v1868 = vunpack.c.l.b16 %v1264
    %v1869 = vunpack.c.h.b16 %v1264
    %v1870 = vunpack.c.l.b16 %v1265
    %v1871 = vunpack.c.h.b16 %v1265
    %v1872 = vunpack.c.l.b16 %v1266
    %v1873 = vunpack.c.h.b16 %v1266
    %v1874 = vunpack.c.l.b16 %v1267
    %v1875 = vunpack.c.h.b16 %v1267
    %v1876 = vunpack.c.l.b16 %v1268
    %v1877 = vunpack.c.h.b16 %v1268
    %v1878 = vunpack.c.l.b16 %v1269
    %v1879 = vunpack.c.h.b16 %v1269
    %v1880 = vunpack.c.l.b16 %v1270
    %v1881 = vunpack.c.h.b16 %v1270
    %v1882 = vunpack.c.l.b16 %v1271
    %v1883 = vunpack.c.h.b16 %v1271
    %v1884 = vunpack.c.l.b16 %v1272
    %v1885 = vunpack.c.h.b16 %v1272
    %v1886 = vunpack.c.l.b16 %v1273
    %v1887 = vunpack.c.h.b16 %v1273
    %v1888 = vunpack.c.l.b16 %v1274
    %v1889 = vunpack.c.h.b16 %v1274
    %v1890 = vunpack.c.l.b16 %v1275
    %v1891 = vunpack.c.h.b16 %v1275
    %v1892 = vunpack.c.l.b16 %v1276
    %v1893 = vunpack.c.h.b16 %v1276
    %v1894 = vunpack.c.l.b16 %v1277
    %v1895 = vunpack.c.h.b16 %v1277
    %v1896 = vunpack.c.l.b16 %v1278
    %v1897 = vunpack.c.h.b16 %v1278
    %v1898 = vunpack.c.l.b16 %v1279
    %v1899 = vunpack.c.h.b16 %v1279
    %v1900 = vunpack.c.l.b16 %v1280
    %v1901 = vunpack.c.h.b16 %v1280
    %v1902 = vunpack.c.l.b16 %v1281
    %v1903 = vunpack.c.h.b16 %v1281
    %v1904 = vunpack.c.l.b16 %v1282
    %v1905 = vunpack.c.h.b16 %v1282
    %v1906 = vunpack.c.l.b16 %v1283
    %v1907 = vunpack.c.h.b16 %v1283
    %v1908 = vunpack.c.l.b16 %v1284
    %v1909 = vunpack.c.h.b16 %v1284
    %v1910 = vunpack.c.l.b16 %v1285
    %v1911 = vunpack.c.h.b16 %v1285
    %v1912 = vunpack.c.l.b16 %v1286
    %v1913 = vunpack.c.h.b16 %v1286
    %v1914 = vunpack.c.l.b16 %v1287
    %v1915 = vunpack.c.h.b16 %v1287
    %v1916 = vunpack.c.l.b16 %v1288
    %v1917 = vunpack.c.h.b16 %v1288
    %v1918 = vunpack.c.l.b16 %v1289
    %v1919 = vunpack.c.h.b16 %v1289
    %v1920 = vunpack.c.l.b16 %v1290
    %v1921 = vunpack.c.h.b16 %v1290
    %v1922 = vunpack.c.l.b16 %v1291
    %v1923 = vunpack.c.h.b16 %v1291
    %v1924 = vunpack.c.l.b16 %v1292
    %v1925 = vunpack.c.h.b16 %v1292
    %v1926 = vunpack.c.l.b16 %v1293
    %v1927 = vunpack.c.h.b16 %v1293
    %v1928 = vunpack.c.l.b16 %v1294
    %v1929 = vunpack.c.h.b16 %v1294
    %v1930 = vunpack.c.l.b16 %v1295
    %v1931 = vunpack.c.h.b16 %v1295
    %v1932 = vunpack.c.l.b16 %v1296
    %v1933 = vunpack.c.h.b16 %v1296
    %v1934 = vunpack.c.l.b16 %v1297
    %v1935 = vunpack.c.h.b16 %v1297
    %v1936 = vunpack.c.l.b16 %v1298
    %v1937 = vunpack.c.h.b16 %v1298
    %v1938 = vunpack.c.l.b16 %v1299
    %v1939 = vunpack.c.h.b16 %v1299
    %v1940 = vunpack.c.l.b16 %v1300
    %v1941 = vunpack.c.h.b16 %v1300
    %v1942 = vunpack.c.l.b16 %v1301
    %v1943 = vunpack.c.h.b16 %v1301
    %v1944 = vunpack.c.l.b16 %v1302
    %v1945 = vunpack.c.h.b16 %v1302
    %v1946 = vunpack.c.l.b16 %v1303
    %v1947 = vunpack.c.h.b16 %v1303
    %v1948 = vunpack.c.l.b16 %v1304
    %v1949 = vunpack.c.h.b16 %v1304
    %v1950 = vunpack.c.l.b16 %v1305
    %v1951 = vunpack.c.h.b16 %v1305
    %v1952 = vunpack.c.l.b16 %v1306
    %v1953 = vunpack.c.h.b16 %v1306
    %v1954 = vunpack.c.l.b16 %v1307
    %v1955 = vunpack.c.h.b16 %v1307
    %v1956 = vunpack.c.l.b16 %v1308
    %v1957 = vunpack.c.h.b16 %v1308
    %v1958 = vunpack.c.l.b16 %v1309
    %v1959 = vunpack.c.h.b16 %v1309
    %v1960 = vunpack.c.l.b16 %v1310
    %v1961 = vunpack.c.h.b16 %v1310
    %v1962 = vunpack.c.l.b16 %v1311
    %v1963 = vunpack.c.h.b16 %v1311
    %v1964 = vunpack.c.l.b16 %v1312
    %v1965 = vunpack.c.h.b16 %v1312
    %v1966 = vunpack.c.l.b16 %v1313
    %v1967 = vunpack.c.h.b16 %v1313
    %v1968 = vunpack.c.l.b16 %v1314
    %v1969 = vunpack.c.h.b16 %v1314
    %v1970 = vunpack.c.l.b16 %v1315
    %v1971 = vunpack.c.h.b16 %v1315
    %v1972 = vunpack.c.l.b16 %v1316
    %v1973 = vunpack.c.h.b16 %v1316
    %v1974 = vunpack.c.l.b16 %v1317
    %v1975 = vunpack.c.h.b16 %v1317
    %v1976 = vunpack.c.l.b16 %v1318
    %v1977 = vunpack.c.h.b16 %v1318
    %v1978 = vunpack.c.l.b16 %v1319
    %v1979 = vunpack.c.h.b16 %v1319
    %v1980 = vunpack.c.l.b16 %v1320
    %v1981 = vunpack.c.h.b16 %v1320
    %v1982 = vunpack.c.l.b16 %v1321
    %v1983 = vunpack.c.h.b16 %v1321
    %v1984 = vunpack.c.l.b16 %v1322
    %v1985 = vunpack.c.h.b16 %v1322
    %v1986 = vunpack.c.l.b16 %v1323
    %v1987 = vunpack.c.h.b16 %v1323
    %v1988 = vunpack.c.l.b16 %v1324
    %v1989 = vunpack.c.h.b16 %v1324
    %v1990 = vunpack.c.l.b16 %v1325
    %v1991 = vunpack.c.h.b16 %v1325
    %v1992 = vunpack.c.l.b16 %v1326
    %v1993 = vunpack.c.h.b16 %v1326
    %v1994 = vunpack.c.l.b16 %v1327
    %v1995 = vunpack.c.h.b16 %v1327
    %v1996 = vunpack.c.l.b16 %v1328
    %v1997 = vunpack.c.h.b16 %v1328
    %v1998 = vunpack.c.l.b16 %v1329
    %v1999 = vunpack.c.h.b16 %v1329
    %v2000 = vunpack.c.l.b16 %v1330
    %v2001 = vunpack.c.h.b16 %v1330
    %v2002 = vunpack.c.l.b16 %v1331
    %v2003 = vunpack.c.h.b16 %v1331
    %v2004 = vunpack.c.l.b16 %v1332
    %v2005 = vunpack.c.h.b16 %v1332
    %v2006 = vunpack.c.l.b16 %v1333
    %v2007 = vunpack.c.h.b16 %v1333
    %v2008 = vunpack.c.l.b16 %v1334
    %v2009 = vunpack.c.h.b16 %v1334
    %v2010 = vunpack.c.l.b16 %v1335
    %v2011 = vunpack.c.h.b16 %v1335
    %v2012 = vunpack.c.l.b16 %v1336
    %v2013 = vunpack.c.h.b16 %v1336
    %v2014 = vunpack.c.l.b16 %v1337
    %v2015 = vunpack.c.h.b16 %v1337
    %v2016 = vunpack.c.l.b16 %v1338
    %v2017 = vunpack.c.h.b16 %v1338
    %v2018 = vunpack.c.l.b16 %v1339
    %v2019 = vunpack.c.h.b16 %v1339
    %v2020 = vunpack.c.l.b16 %v1340
    %v2021 = vunpack.c.h.b16 %v1340
    %v2022 = vunpack.c.l.b16 %v1341
    %v2023 = vunpack.c.h.b16 %v1341
    %v2024 = vunpack.c.l.b16 %v1342
    %v2025 = vunpack.c.h.b16 %v1342
    %v2026 = vunpack.c.l.b16 %v1343
    %v2027 = vunpack.c.h.b16 %v1343
    %v2028 = vunpack.c.l.b16 %v1344
    %v2029 = vunpack.c.h.b16 %v1344
    %v2030 = vunpack.c.l.b16 %v1345
    %v2031 = vunpack.c.h.b16 %v1345
    %v2032 = vunpack.c.l.b16 %v1346
    %v2033 = vunpack.c.h.b16 %v1346
    %v2034 = vunpack.c.l.b16 %v1347
    %v2035 = vunpack.c.h.b16 %v1347
    %v2036 = vunpack.c.l.b16 %v1348
    %v2037 = vunpack.c.h.b16 %v1348
    %v2038 = vunpack.c.l.b16 %v1349
    %v2039 = vunpack.c.h.b16 %v1349
    %v2040 = vunpack.c.l.b16 %v1350
    %v2041 = vunpack.c.h.b16 %v1350
    %v2042 = vunpack.c.l.b16 %v1351
    %v2043 = vunpack.c.h.b16 %v1351
    %v2044 = vunpack.c.l.b16 %v1352
    %v2045 = vunpack.c.h.b16 %v1352
    %v2046 = vunpack.c.l.b16 %v1353
    %v2047 = vunpack.c.h.b16 %v1353
    %v2048 = vunpack.c.l.b16 %v1354
    %v2049 = vunpack.c.h.b16 %v1354
    %v2050 = vunpack.c.l.b16 %v1355
    %v2051 = vunpack.c.h.b16 %v1355
    %v2052 = vunpack.c.l.b16 %v1356
    %v2053 = vunpack.c.h.b16 %v1356
    %v2054 = vunpack.c.l.b16 %v1357
    %v2055 = vunpack.c.h.b16 %v1357
    %v2056 = vunpack.c.l.b16 %v1358
    %v2057 = vunpack.c.h.b16 %v1358
    %v2058 = vunpack.c.l.b16 %v1359
    %v2059 = vunpack.c.h.b16 %v1359
    %v2060 = vunpack.c.l.b16 %v1360
    %v2061 = vunpack.c.h.b16 %v1360
    %v2062 = vunpack.c.l.b16 %v1361
    %v2063 = vunpack.c.h.b16 %v1361
    %v2064 = vunpack.c.l.b16 %v1362
    %v2065 = vunpack.c.h.b16 %v1362
    %v2066 = vunpack.c.l.b16 %v1363
    %v2067 = vunpack.c.h.b16 %v1363
    %v2068 = vunpack.c.l.b16 %v1364
    %v2069 = vunpack.c.h.b16 %v1364
    %v2070 = vunpack.c.l.b16 %v1365
    %v2071 = vunpack.c.h.b16 %v1365
    %v2072 = vunpack.c.l.b16 %v1366
    %v2073 = vunpack.c.h.b16 %v1366
    %v2074 = vunpack.c.l.b16 %v1367
    %v2075 = vunpack.c.h.b16 %v1367
    %v2076 = vunpack.c.l.b16 %v1368
    %v2077 = vunpack.c.h.b16 %v1368
    %v2078 = vunpack.c.l.b16 %v1369
    %v2079 = vunpack.c.h.b16 %v1369
    %v2080 = vunpack.c.l.b16 %v1370
    %v2081 = vunpack.c.h.b16 %v1370
    %v2082 = vunpack.c.l.b16 %v1371
    %v2083 = vunpack.c.h.b16 %v1371
    %v2084 = vunpack.c.l.b16 %v1372
    %v2085 = vunpack.c.h.b16 %v1372
    %v2086 = vunpack.c.l.b16 %v1373
    %v2087 = vunpack.c.h.b16 %v1373
    %v2088 = vunpack.c.l.b16 %v1374
    %v2089 = vunpack.c.h.b16 %v1374
    %v2090 = vunpack.c.l.b16 %v1375
    %v2091 = vunpack.c.h.b16 %v1375
    %v2092 = vunpack.c.l.b16 %v1376
    %v2093 = vunpack.c.h.b16 %v1376
    %v2094 = vunpack.c.l.b16 %v1377
    %v2095 = vunpack.c.h.b16 %v1377
    %v2096 = vunpack.c.l.b16 %v1378
    %v2097 = vunpack.c.h.b16 %v1378
    %v2098 = vunpack.c.l.b16 %v1379
    %v2099 = vunpack.c.h.b16 %v1379
    %v2100 = vunpack.c.l.b16 %v1380
    %v2101 = vunpack.c.h.b16 %v1380
    %v2102 = vunpack.c.l.b16 %v1381
    %v2103 = vunpack.c.h.b16 %v1381
    %v2104 = vunpack.c.l.b16 %v1382
    %v2105 = vunpack.c.h.b16 %v1382
    %v2106 = vunpack.c.l.b16 %v1383
    %v2107 = vunpack.c.h.b16 %v1383
    %v2108 = vunpack.c.l.b16 %v1384
    %v2109 = vunpack.c.h.b16 %v1384
    %v2110 = vunpack.c.l.b16 %v1385
    %v2111 = vunpack.c.h.b16 %v1385
    %v2112 = vunpack.c.l.b16 %v1386
    %v2113 = vunpack.c.h.b16 %v1386
    %v2114 = vunpack.c.l.b16 %v1387
    %v2115 = vunpack.c.h.b16 %v1387
    %v2116 = vunpack.c.l.b16 %v1388
    %v2117 = vunpack.c.h.b16 %v1388
    %v2118 = vunpack.c.l.b16 %v1389
    %v2119 = vunpack.c.h.b16 %v1389
    %v2120 = vunpack.c.l.b16 %v1390
    %v2121 = vunpack.c.h.b16 %v1390
    %v2122 = vunpack.c.l.b16 %v1391
    %v2123 = vunpack.c.h.b16 %v1391
    %v2124 = vunpack.c.l.b16 %v1392
    %v2125 = vunpack.c.h.b16 %v1392
    %v2126 = vunpack.c.l.b16 %v1393
    %v2127 = vunpack.c.h.b16 %v1393
    %v2128 = vunpack.c.l.b16 %v1394
    %v2129 = vunpack.c.h.b16 %v1394
    %v2130 = vunpack.c.l.b16 %v1395
    %v2131 = vunpack.c.h.b16 %v1395
    %v2132 = vunpack.c.l.b16 %v1396
    %v2133 = vunpack.c.h.b16 %v1396
    %v2134 = vunpack.c.l.b16 %v1397
    %v2135 = vunpack.c.h.b16 %v1397
    %v2136 = vunpack.c.l.b16 %v1398
    %v2137 = vunpack.c.h.b16 %v1398
    %v2138 = vunpack.c.l.b16 %v1399
    %v2139 = vunpack.c.h.b16 %v1399
    %v2140 = vunpack.c.l.b16 %v1400
    %v2141 = vunpack.c.h.b16 %v1400
    %v2142 = vunpack.c.l.b16 %v1401
    %v2143 = vunpack.c.h.b16 %v1401
    %v2144 = vunpack.c.l.b16 %v1402
    %v2145 = vunpack.c.h.b16 %v1402
    %v2146 = vunpack.c.l.b16 %v1403
    %v2147 = vunpack.c.h.b16 %v1403
    %v2148 = vunpack.c.l.b16 %v1404
    %v2149 = vunpack.c.h.b16 %v1404
    %v2150 = vunpack.c.l.b16 %v1405
    %v2151 = vunpack.c.h.b16 %v1405
    %v2152 = vunpack.c.l.b16 %v1406
    %v2153 = vunpack.c.h.b16 %v1406
    %v2154 = vunpack.c.l.b16 %v1407
    %v2155 = vunpack.c.h.b16 %v1407
    %v2156 = vunpack.c.l.b16 %v1408
    %v2157 = vunpack.c.h.b16 %v1408
    %v2158 = vunpack.c.l.b16 %v1409
    %v2159 = vunpack.c.h.b16 %v1409
    %v2160 = vunpack.c.l.b16 %v1410
    %v2161 = vunpack.c.h.b16 %v1410
    %v2162 = vunpack.c.l.b16 %v1411
    %v2163 = vunpack.c.h.b16 %v1411
    %v2164 = vunpack.c.l.b16 %v1412
    %v2165 = vunpack.c.h.b16 %v1412
    %v2166 = vunpack.c.l.b16 %v1413
    %v2167 = vunpack.c.h.b16 %v1413
    %v2168 = vunpack.c.l.b16 %v1414
    %v2169 = vunpack.c.h.b16 %v1414
    %v2170 = vunpack.c.l.b16 %v1415
    %v2171 = vunpack.c.h.b16 %v1415
    %v2172 = vunpack.c.l.b16 %v1416
    %v2173 = vunpack.c.h.b16 %v1416
    %v2174 = vunpack.c.l.b16 %v1417
    %v2175 = vunpack.c.h.b16 %v1417
    %v2176 = vunpack.c.l.b16 %v1418
    %v2177 = vunpack.c.h.b16 %v1418
    %v2178 = vunpack.c.l.b16 %v1419
    %v2179 = vunpack.c.h.b16 %v1419
    %v2180 = vunpack.c.l.b16 %v1420
    %v2181 = vunpack.c.h.b16 %v1420
    %v2182 = vunpack.c.l.b16 %v1421
    %v2183 = vunpack.c.h.b16 %v1421
    %v2184 = vunpack.c.l.b16 %v1422
    %v2185 = vunpack.c.h.b16 %v1422
    %v2186 = vunpack.c.l.b16 %v1423
    %v2187 = vunpack.c.h.b16 %v1423
    %v2188 = vunpack.c.l.b16 %v1424
    %v2189 = vunpack.c.h.b16 %v1424
    %v2190 = vunpack.c.l.b16 %v1425
    %v2191 = vunpack.c.h.b16 %v1425
    %v2192 = vunpack.c.l.b16 %v1426
    %v2193 = vunpack.c.h.b16 %v1426
    %v2194 = vunpack.c.l.b16 %v1427
    %v2195 = vunpack.c.h.b16 %v1427
    %v2196 = vunpack.c.l.b16 %v1428
    %v2197 = vunpack.c.h.b16 %v1428
    %v2198 = vunpack.c.l.b16 %v1429
    %v2199 = vunpack.c.h.b16 %v1429
    %v2200 = vunpack.c.l.b16 %v1430
    %v2201 = vunpack.c.h.b16 %v1430
    %v2202 = vunpack.c.l.b16 %v1431
    %v2203 = vunpack.c.h.b16 %v1431
    %v2204 = vunpack.c.l.b16 %v1432
    %v2205 = vunpack.c.h.b16 %v1432
    %v2206 = vunpack.c.l.b16 %v1433
    %v2207 = vunpack.c.h.b16 %v1433
    %v2208 = vunpack.c.l.b16 %v1434
    %v2209 = vunpack.c.h.b16 %v1434
    %v2210 = vunpack.c.l.b16 %v1435
    %v2211 = vunpack.c.h.b16 %v1435
    %v2212 = vunpack.c.l.b16 %v1436
    %v2213 = vunpack.c.h.b16 %v1436
    %v2214 = vunpack.c.l.b16 %v1437
    %v2215 = vunpack.c.h.b16 %v1437
    %v2216 = vunpack.c.l.b16 %v1438
    %v2217 = vunpack.c.h.b16 %v1438
    %v2218 = vunpack.c.l.b16 %v1439
    %v2219 = vunpack.c.h.b16 %v1439
    %v2220 = vunpack.c.l.b16 %v1440
    %v2221 = vunpack.c.h.b16 %v1440
    %v2222 = vunpack.c.l.b16 %v1441
    %v2223 = vunpack.c.h.b16 %v1441
    %v2224 = vunpack.c.l.b16 %v1442
    %v2225 = vunpack.c.h.b16 %v1442
    %v2226 = vunpack.c.l.b16 %v1443
    %v2227 = vunpack.c.h.b16 %v1443
    %v2228 = vunpack.c.l.b16 %v1444
    %v2229 = vunpack.c.h.b16 %v1444
    %v2230 = vunpack.c.l.b16 %v1445
    %v2231 = vunpack.c.h.b16 %v1445
    %v2232 = vpack.c.b16 %v1728, %v1720
    %v2233 = vpack.c.b16 %v1729, %v1721
    %v2234 = vpack.c.b16 %v1730, %v1722
    %v2235 = vpack.c.b16 %v1731, %v1723
    %v2236 = vpack.c.b16 %v1732, %v1724
    %v2237 = vpack.c.b16 %v1733, %v1725
    %v2238 = vpack.c.b16 %v1734, %v1726
    %v2239 = vpack.c.b16 %v1735, %v1727
    %v2240 = vpack.c.b16 %v1744, %v1736
    %v2241 = vpack.c.b16 %v1745, %v1737
    %v2242 = vpack.c.b16 %v1746, %v1738
    %v2243 = vpack.c.b16 %v1747, %v1739
    %v2244 = vpack.c.b16 %v1748, %v1740
    %v2245 = vpack.c.b16 %v1749, %v1741
    %v2246 = vpack.c.b16 %v1750, %v1742
    %v2247 = vpack.c.b16 %v1751, %v1743
    %v2248 = vpack.c.b16 %v1760, %v1752
    %v2249 = vpack.c.b16 %v1761, %v1753
    %v2250 = vpack.c.b16 %v1762, %v1754
    %v2251 = vpack.c.b16 %v1763, %v1755
    %v2252 = vpack.c.b16 %v1764, %v1756
    %v2253 = vpack.c.b16 %v1765, %v1757
    %v2254 = vpack.c.b16 %v1766, %v1758
    %v2255 = vpack.c.b16 %v1767, %v1759
    %v2256 = vpack.c.b16 %v1776, %v1768
    %v2257 = vpack.c.b16 %v1777, %v1769
    %v2258 = vpack.c.b16 %v1778, %v1770
    %v2259 = vpack.c.b16 %v1779, %v1771
    %v2260 = vpack.c.b16 %v1780, %v1772
    %v2261 = vpack.c.b16 %v1781, %v1773
    %v2262 = vpack.c.b16 %v1782, %v1774
    %v2263 = vpack.c.b16 %v1783, %v1775
    %v2264 = vpack.c.b16 %v1792, %v1784
    %v2265 = vpack.c.b16 %v1793, %v1785
    %v2266 = vpack.c.b16 %v1794, %v1786
    %v2267 = vpack.c.b16 %v1795, %v1787
    %v2268 = vpack.c.b16 %v1796, %v1788
    %v2269 = vpack.c.b16 %v1797, %v1789
    %v2270 = vpack.c.b16 %v1798, %v1790
    %v2271 = vpack.c.b16 %v1799, %v1791
    %v2272 = vpack.c.b16 %v1808, %v1800
    %v2273 = vpack.c.b16 %v1809, %v1801
    %v2274 = vpack.c.b16 %v1810, %v1802
    %v2275 = vpack.c.b16 %v1811, %v1803
    %v2276 = vpack.c.b16 %v1812, %v1804
    %v2277 = vpack.c.b16 %v1813, %v1805
    %v2278 = vpack.c.b16 %v1814, %v1806
    %v2279 = vpack.c.b16 %v1815, %v1807
    %v2280 = vpack.c.b16 %v1824, %v1816
    %v2281 = vpack.c.b16 %v1825, %v1817
    %v2282 = vpack.c.b16 %v1826, %v1818
    %v2283 = vpack.c.b16 %v1827, %v1819
    %v2284 = vpack.c.b16 %v1828, %v1820
    %v2285 = vpack.c.b16 %v1829, %v1821
    %v2286 = vpack.c.b16 %v1830, %v1822
    %v2287 = vpack.c.b16 %v1831, %v1823
    %v2288 = vpack.c.b16 %v1840, %v1832
    %v2289 = vpack.c.b16 %v1841, %v1833
    %v2290 = vpack.c.b16 %v1842, %v1834
    %v2291 = vpack.c.b16 %v1843, %v1835
    %v2292 = vpack.c.b16 %v1844, %v1836
    %v2293 = vpack.c.b16 %v1845, %v1837
    %v2294 = vpack.c.b16 %v1846, %v1838
    %v2295 = vpack.c.b16 %v1847, %v1839
    %v2296 = vpack.c.b16 %v1856, %v1848
    %v2297 = vpack.c.b16 %v1857, %v1849
    %v2298 = vpack.c.b16 %v1858, %v1850
    %v2299 = vpack.c.b16 %v1859, %v1851
    %v2300 = vpack.c.b16 %v1860, %v1852
    %v2301 = vpack.c.b16 %v1861, %v1853
    %v2302 = vpack.c.b16 %v1862, %v1854
    %v2303 = vpack.c.b16 %v1863, %v1855
    %v2304 = vpack.c.b16 %v1872, %v1864
    %v2305 = vpack.c.b16 %v1873, %v1865
    %v2306 = vpack.c.b16 %v1874, %v1866
    %v2307 = vpack.c.b16 %v1875, %v1867
    %v2308 = vpack.c.b16 %v1876, %v1868
    %v2309 = vpack.c.b16 %v1877, %v1869
    %v2310 = vpack.c.b16 %v1878, %v1870
    %v2311 = vpack.c.b16 %v1879, %v1871
    %v2312 = vpack.c.b16 %v1888, %v1880
    %v2313 = vpack.c.b16 %v1889, %v1881
    %v2314 = vpack.c.b16 %v1890, %v1882
    %v2315 = vpack.c.b16 %v1891, %v1883
    %v2316 = vpack.c.b16 %v1892, %v1884
    %v2317 = vpack.c.b16 %v1893, %v1885
    %v2318 = vpack.c.b16 %v1894, %v1886
    %v2319 = vpack.c.b16 %v1895, %v1887
    %v2320 = vpack.c.b16 %v1904, %v1896
    %v2321 = vpack.c.b16 %v1905, %v1897
    %v2322 = vpack.c.b16 %v1906, %v1898
    %v2323 = vpack.c.b16 %v1907, %v1899
    %v2324 = vpack.c.b16 %v1908, %v1900
    %v2325 = vpack.c.b16 %v1909, %v1901
    %v2326 = vpack.c.b16 %v1910, %v1902
    %v2327 = vpack.c.b16 %v1911, %v1903
    %v2328 = vpack.c.b16 %v1920, %v1912
    %v2329 = vpack.c.b16 %v1921, %v1913
    %v2330 = vpack.c.b16 %v1922, %v1914
    %v2331 = vpack.c.b16 %v1923, %v1915
    %v2332 = vpack.c.b16 %v1924, %v1916
    %v2333 = vpack.c.b16 %v1925, %v1917
    %v2334 = vpack.c.b16 %v1926, %v1918
    %v2335 = vpack.c.b16 %v1927, %v1919
    %v2336 = vpack.c.b16 %v1936, %v1928
    %v2337 = vpack.c.b16 %v1937, %v1929
    %v2338 = vpack.c.b16 %v1938, %v1930
    %v2339 = vpack.c.b16 %v1939, %v1931
    %v2340 = vpack.c.b16 %v1940, %v1932
    %v2341 = vpack.c.b16 %v1941, %v1933
    %v2342 = vpack.c.b16 %v1942, %v1934
    %v2343 = vpack.c.b16 %v1943, %v1935
    %v2344 = vpack.c.b16 %v1952, %v1944
    %v2345 = vpack.c.b16 %v1953, %v1945
    %v2346 = vpack.c.b16 %v1954, %v1946
    %v2347 = vpack.c.b16 %v1955, %v1947
    %v2348 = vpack.c.b16 %v1956, %v1948
    %v2349 = vpack.c.b16 %v1957, %v1949
    %v2350 = vpack.c.b16 %v1958, %v1950
    %v2351 = vpack.c.b16 %v1959, %v1951
    %v2352 = vpack.c.b16 %v1968, %v1960
    %v2353 = vpack.c.b16 %v1969, %v1961
    %v2354 = vpack.c.b16 %v1970, %v1962
    %v2355 = vpack.c.b16 %v1971, %v1963
    %v2356 = vpack.c.b16 %v1972, %v1964
    %v2357 = vpack.c.b16 %v1973, %v1965
    %v2358 = vpack.c.b16 %v1974, %v1966
    %v2359 = vpack.c.b16 %v1975, %v1967
    %v2360 = vpack.c.b16 %v1984, %v1976
    %v2361 = vpack.c.b16 %v1985, %v1977
    %v2362 = vpack.c.b16 %v1986, %v1978
    %v2363 = vpack.c.b16 %v1987, %v1979
    %v2364 = vpack.c.b16 %v1988, %v1980
    %v2365 = vpack.c.b16 %v1989, %v1981
    %v2366 = vpack.c.b16 %v1990, %v1982
    %v2367 = vpack.c.b16 %v1991, %v1983
    %v2368 = vpack.c.b16 %v2000, %v1992
    %v2369 = vpack.c.b16 %v2001, %v1993
    %v2370 = vpack.c.b16 %v2002, %v1994
    %v2371 = vpack.c.b16 %v2003, %v1995
    %v2372 = vpack.c.b16 %v2004, %v1996
    %v2373 = vpack.c.b16 %v2005, %v1997
    %v2374 = vpack.c.b16 %v2006, %v1998
    %v2375 = vpack.c.b16 %v2007, %v1999
    %v2376 = vpack.c.b16 %v2016, %v2008
    %v2377 = vpack.c.b16 %v2017, %v2009
    %v2378 = vpack.c.b16 %v2018, %v2010
    %v2379 = vpack.c.b16 %v2019, %v2011
    %v2380 = vpack.c.b16 %v2020, %v2012
    %v2381 = vpack.c.b16 %v2021, %v2013
    %v2382 = vpack.c.b16 %v2022, %v2014
    %v2383 = vpack.c.b16 %v2023, %v2015
    %v2384 = vpack.c.b16 %v2032, %v2024
    %v2385 = vpack.c.b16 %v2033, %v2025
    %v2386 = vpack.c.b16 %v2034, %v2026
    %v2387 = vpack.c.b16 %v2035, %v2027
    %v2388 = vpack.c.b16 %v2036, %v2028
    %v2389 = vpack.c.b16 %v2037, %v2029
    %v2390 = vpack.c.b16 %v2038, %v2030
    %v2391 = vpack.c.b16 %v2039, %v2031
    %v2392 = vpack.c.b16 %v2048, %v2040
    %v2393 = vpack.c.b16 %v2049, %v2041
    %v2394 = vpack.c.b16 %v2050, %v2042
    %v2395 = vpack.c.b16 %v2051, %v2043
    %v2396 = vpack.c.b16 %v2052, %v2044
    %v2397 = vpack.c.b16 %v2053, %v2045
    %v2398 = vpack.c.b16 %v2054, %v2046
    %v2399 = vpack.c.b16 %v2055, %v2047
    %v2400 = vpack.c.b16 %v2064, %v2056
    %v2401 = vpack.c.b16 %v2065, %v2057
    %v2402 = vpack.c.b16 %v2066, %v2058
    %v2403 = vpack.c.b16 %v2067, %v2059
    %v2404 = vpack.c.b16 %v2068, %v2060
    %v2405 = vpack.c.b16 %v2069, %v2061
    %v2406 = vpack.c.b16 %v2070, %v2062
    %v2407 = vpack.c.b16 %v2071, %v2063
    %v2408 = vpack.c.b16 %v2080, %v2072
    %v2409 = vpack.c.b16 %v2081, %v2073
    %v2410 = vpack.c.b16 %v2082, %v2074
    %v2411 = vpack.c.b16 %v2083, %v2075
    %v2412 = vpack.c.b16 %v2084, %v2076
    %v2413 = vpack.c.b16 %v2085, %v2077
    %v2414 = vpack.c.b16 %v2086, %v2078
    %v2415 = vpack.c.b16 %v2087, %v2079
    %v2416 = vpack.c.b16 %v2096, %v2088
    %v2417 = vpack.c.b16 %v2097, %v2089
    %v2418 = vpack.c.b16 %v2098, %v2090
    %v2419 = vpack.c.b16 %v2099, %v2091
    %v2420 = vpack.c.b16 %v2100, %v2092
    %v2421 = vpack.c.b16 %v2101, %v2093
    %v2422 = vpack.c.b16 %v2102, %v2094
    %v2423 = vpack.c.b16 %v2103, %v2095
    %v2424 = vpack.c.b16 %v2112, %v2104
    %v2425 = vpack.c.b16 %v2113, %v2105
    %v2426 = vpack.c.b16 %v2114, %v2106
    %v2427 = vpack.c.b16 %v2115, %v2107
    %v2428 = vpack.c.b16 %v2116, %v2108
    %v2429 = vpack.c.b16 %v2117, %v2109
    %v2430 = vpack.c.b16 %v2118, %v2110
    %v2431 = vpack.c.b16 %v2119, %v2111
    %v2432 = vpack.c.b16 %v2128, %v2120
    %v2433 = vpack.c.b16 %v2129, %v2121
    %v2434 = vpack.c.b16 %v2130, %v2122
    %v2435 = vpack.c.b16 %v2131, %v2123
    %v2436 = vpack.c.b16 %v2132, %v2124
    %v2437 = vpack.c.b16 %v2133, %v2125
    %v2438 = vpack.c.b16 %v2134, %v2126
    %v2439 = vpack.c.b16 %v2135, %v2127
    %v2440 = vpack.c.b16 %v2144, %v2136
    %v2441 = vpack.c.b16 %v2145, %v2137
    %v2442 = vpack.c.b16 %v2146, %v2138
    %v2443 = vpack.c.b16 %v2147, %v2139
    %v2444 = vpack.c.b16 %v2148, %v2140
    %v2445 = vpack.c.b16 %v2149, %v2141
    %v2446 = vpack.c.b16 %v2150, %v2142
    %v2447 = vpack.c.b16 %v2151, %v2143
    %v2448 = vpack.c.b16 %v2160, %v2152
    %v2449 = vpack.c.b16 %v2161, %v2153
    %v2450 = vpack.c.b16 %v2162, %v2154
    %v2451 = vpack.c.b16 %v2163, %v2155
    %v2452 = vpack.c.b16 %v2164, %v2156
    %v2453 = vpack.c.b16 %v2165, %v2157
    %v2454 = vpack.c.b16 %v2166, %v2158
    %v2455 = vpack.c.b16 %v2167, %v2159
    %v2456 = vpack.c.b16 %v2176, %v2168
    %v2457 = vpack.c.b16 %v2177, %v2169
    %v2458 = vpack.c.b16 %v2178, %v2170
    %v2459 = vpack.c.b16 %v2179, %v2171
    %v2460 = vpack.c.b16 %v2180, %v2172
    %v2461 = vpack.c.b16 %v2181, %v2173
    %v2462 = vpack.c.b16 %v2182, %v2174
    %v2463 = vpack.c.b16 %v2183, %v2175
    %v2464 = vpack.c.b16 %v2192, %v2184
    %v2465 = vpack.c.b16 %v2193, %v2185
    %v2466 = vpack.c.b16 %v2194, %v2186
    %v2467 = vpack.c.b16 %v2195, %v2187
    %v2468 = vpack.c.b16 %v2196, %v2188
    %v2469 = vpack.c.b16 %v2197, %v2189
    %v2470 = vpack.c.b16 %v2198, %v2190
    %v2471 = vpack.c.b16 %v2199, %v2191
    %v2472 = vpack.c.b16 %v2208, %v2200
    %v2473 = vpack.c.b16 %v2209, %v2201
    %v2474 = vpack.c.b16 %v2210, %v2202
    %v2475 = vpack.c.b16 %v2211, %v2203
    %v2476 = vpack.c.b16 %v2212, %v2204
    %v2477 = vpack.c.b16 %v2213, %v2205
    %v2478 = vpack.c.b16 %v2214, %v2206
    %v2479 = vpack.c.b16 %v2215, %v2207
    %v2480 = vpack.c.b16 %v2224, %v2216
    %v2481 = vpack.c.b16 %v2225, %v2217
    %v2482 = vpack.c.b16 %v2226, %v2218
    %v2483 = vpack.c.b16 %v2227, %v2219
    %v2484 = vpack.c.b16 %v2228, %v2220
    %v2485 = vpack.c.b16 %v2229, %v2221
    %v2486 = vpack.c.b16 %v2230, %v2222
    %v2487 = vpack.c.b16 %v2231, %v2223
    %2744 = vmatpush.bf16.msra.mxu0 %v2288
    %2745 = vmatpush.bf16.msra.mxu0 %v2280
    %2746 = vmatpush.bf16.msra.mxu0 %v2272
    %2747 = vmatpush.bf16.msra.mxu0 %v2264
    %2748 = vmatpush.bf16.msra.mxu0 %v2256
    %2749 = vmatpush.bf16.msra.mxu0 %v2248
    %2750 = vmatpush.bf16.msra.mxu0 %v2240
    %2751 = vmatpush.bf16.msra.mxu0 %v2232
    %2752 = vmatmul.bf16.gmra.mxu0 %v1186
    %v2753 = vpop.f32.mrf.mxu0
    %v2754 = vadd.f32 %v1448, %v2753
    %v2755 = vpop.f32.mrf.mxu0
    %2756 = vdwg.mxu0
    %2757 = vmatpush.bf16.msra.mxu0 %v2352
    %2758 = vmatpush.bf16.msra.mxu0 %v2344
    %2759 = vmatpush.bf16.msra.mxu0 %v2336
    %2760 = vmatpush.bf16.msra.mxu0 %v2328
    %2761 = vmatpush.bf16.msra.mxu0 %v2320
    %2762 = vmatpush.bf16.msra.mxu0 %v2312
    %2763 = vmatpush.bf16.msra.mxu0 %v2304
    %2764 = vmatpush.bf16.msra.mxu0 %v2296
    %2765 = vmatmul.bf16.gmra.mxu0 %v1187
    %v2766 = vpop.f32.mrf.mxu0
    %v2767 = vadd.f32 %v2754, %v2766
    %v2768 = vpop.f32.mrf.mxu0
    %2769 = vdwg.mxu0
    %2770 = vmatpush.bf16.msra.mxu0 %v2416
    %2771 = vmatpush.bf16.msra.mxu0 %v2408
    %2772 = vmatpush.bf16.msra.mxu0 %v2400
    %2773 = vmatpush.bf16.msra.mxu0 %v2392
    %2774 = vmatpush.bf16.msra.mxu0 %v2384
    %2775 = vmatpush.bf16.msra.mxu0 %v2376
    %2776 = vmatpush.bf16.msra.mxu0 %v2368
    %2777 = vmatpush.bf16.msra.mxu0 %v2360
    %2778 = vmatmul.bf16.gmra.mxu0 %v1188
    %v2779 = vpop.f32.mrf.mxu0
    %v2780 = vadd.f32 %v2767, %v2779
    %v2781 = vpop.f32.mrf.mxu0
    %2782 = vdwg.mxu0
    %2783 = vmatpush.bf16.msra.mxu0 %v2480
    %2784 = vmatpush.bf16.msra.mxu0 %v2472
    %2785 = vmatpush.bf16.msra.mxu0 %v2464
    %2786 = vmatpush.bf16.msra.mxu0 %v2456
    %2787 = vmatpush.bf16.msra.mxu0 %v2448
    %2788 = vmatpush.bf16.msra.mxu0 %v2440
    %2789 = vmatpush.bf16.msra.mxu0 %v2432
    %2790 = vmatpush.bf16.msra.mxu0 %v2424
    %2791 = vmatmul.bf16.gmra.mxu0 %v1189
    %v2792 = vpop.f32.mrf.mxu0
    %v2793 = vadd.f32 %v2780, %v2792
    %v2794 = vpop.f32.mrf.mxu0
    %2795 = vdwg.mxu0
    %2796 = vmatpush.bf16.msra.mxu0 %v2289
    %2797 = vmatpush.bf16.msra.mxu0 %v2281
    %2798 = vmatpush.bf16.msra.mxu0 %v2273
    %2799 = vmatpush.bf16.msra.mxu0 %v2265
    %2800 = vmatpush.bf16.msra.mxu0 %v2257
    %2801 = vmatpush.bf16.msra.mxu0 %v2249
    %2802 = vmatpush.bf16.msra.mxu0 %v2241
    %2803 = vmatpush.bf16.msra.mxu0 %v2233
    %2804 = vmatmul.bf16.gmra.mxu0 %v1186
    %v2805 = vpop.f32.mrf.mxu0
    %v2806 = vadd.f32 %v1449, %v2805
    %v2807 = vpop.f32.mrf.mxu0
    %2808 = vdwg.mxu0
    %2809 = vmatpush.bf16.msra.mxu0 %v2353
    %2810 = vmatpush.bf16.msra.mxu0 %v2345
    %2811 = vmatpush.bf16.msra.mxu0 %v2337
    %2812 = vmatpush.bf16.msra.mxu0 %v2329
    %2813 = vmatpush.bf16.msra.mxu0 %v2321
    %2814 = vmatpush.bf16.msra.mxu0 %v2313
    %2815 = vmatpush.bf16.msra.mxu0 %v2305
    %2816 = vmatpush.bf16.msra.mxu0 %v2297
    %2817 = vmatmul.bf16.gmra.mxu0 %v1187
    %v2818 = vpop.f32.mrf.mxu0
    %v2819 = vadd.f32 %v2806, %v2818
    %v2820 = vpop.f32.mrf.mxu0
    %2821 = vdwg.mxu0
    %2822 = vmatpush.bf16.msra.mxu0 %v2417
    %2823 = vmatpush.bf16.msra.mxu0 %v2409
    %2824 = vmatpush.bf16.msra.mxu0 %v2401
    %2825 = vmatpush.bf16.msra.mxu0 %v2393
    %2826 = vmatpush.bf16.msra.mxu0 %v2385
    %2827 = vmatpush.bf16.msra.mxu0 %v2377
    %2828 = vmatpush.bf16.msra.mxu0 %v2369
    %2829 = vmatpush.bf16.msra.mxu0 %v2361
    %2830 = vmatmul.bf16.gmra.mxu0 %v1188
    %v2831 = vpop.f32.mrf.mxu0
    %v2832 = vadd.f32 %v2819, %v2831
    %v2833 = vpop.f32.mrf.mxu0
    %2834 = vdwg.mxu0
    %2835 = vmatpush.bf16.msra.mxu0 %v2481
    %2836 = vmatpush.bf16.msra.mxu0 %v2473
    %2837 = vmatpush.bf16.msra.mxu0 %v2465
    %2838 = vmatpush.bf16.msra.mxu0 %v2457
    %2839 = vmatpush.bf16.msra.mxu0 %v2449
    %2840 = vmatpush.bf16.msra.mxu0 %v2441
    %2841 = vmatpush.bf16.msra.mxu0 %v2433
    %2842 = vmatpush.bf16.msra.mxu0 %v2425
    %2843 = vmatmul.bf16.gmra.mxu0 %v1189
    %v2844 = vpop.f32.mrf.mxu0
    %v2845 = vadd.f32 %v2832, %v2844
    %v2846 = vpop.f32.mrf.mxu0
    %2847 = vdwg.mxu0
    %2848 = vmatpush.bf16.msra.mxu0 %v2290
    %2849 = vmatpush.bf16.msra.mxu0 %v2282
    %2850 = vmatpush.bf16.msra.mxu0 %v2274
    %2851 = vmatpush.bf16.msra.mxu0 %v2266
    %2852 = vmatpush.bf16.msra.mxu0 %v2258
    %2853 = vmatpush.bf16.msra.mxu0 %v2250
    %2854 = vmatpush.bf16.msra.mxu0 %v2242
    %2855 = vmatpush.bf16.msra.mxu0 %v2234
    %2856 = vmatmul.bf16.gmra.mxu0 %v1186
    %v2857 = vpop.f32.mrf.mxu0
    %v2858 = vadd.f32 %v1450, %v2857
    %v2859 = vpop.f32.mrf.mxu0
    %2860 = vdwg.mxu0
    %2861 = vmatpush.bf16.msra.mxu0 %v2354
    %2862 = vmatpush.bf16.msra.mxu0 %v2346
    %2863 = vmatpush.bf16.msra.mxu0 %v2338
    %2864 = vmatpush.bf16.msra.mxu0 %v2330
    %2865 = vmatpush.bf16.msra.mxu0 %v2322
    %2866 = vmatpush.bf16.msra.mxu0 %v2314
    %2867 = vmatpush.bf16.msra.mxu0 %v2306
    %2868 = vmatpush.bf16.msra.mxu0 %v2298
    %2869 = vmatmul.bf16.gmra.mxu0 %v1187
    %v2870 = vpop.f32.mrf.mxu0
    %v2871 = vadd.f32 %v2858, %v2870
    %v2872 = vpop.f32.mrf.mxu0
    %2873 = vdwg.mxu0
    %2874 = vmatpush.bf16.msra.mxu0 %v2418
    %2875 = vmatpush.bf16.msra.mxu0 %v2410
    %2876 = vmatpush.bf16.msra.mxu0 %v2402
    %2877 = vmatpush.bf16.msra.mxu0 %v2394
    %2878 = vmatpush.bf16.msra.mxu0 %v2386
    %2879 = vmatpush.bf16.msra.mxu0 %v2378
    %2880 = vmatpush.bf16.msra.mxu0 %v2370
    %2881 = vmatpush.bf16.msra.mxu0 %v2362
    %2882 = vmatmul.bf16.gmra.mxu0 %v1188
    %v2883 = vpop.f32.mrf.mxu0
    %v2884 = vadd.f32 %v2871, %v2883
    %v2885 = vpop.f32.mrf.mxu0
    %2886 = vdwg.mxu0
    %2887 = vmatpush.bf16.msra.mxu0 %v2482
    %2888 = vmatpush.bf16.msra.mxu0 %v2474
    %2889 = vmatpush.bf16.msra.mxu0 %v2466
    %2890 = vmatpush.bf16.msra.mxu0 %v2458
    %2891 = vmatpush.bf16.msra.mxu0 %v2450
    %2892 = vmatpush.bf16.msra.mxu0 %v2442
    %2893 = vmatpush.bf16.msra.mxu0 %v2434
    %2894 = vmatpush.bf16.msra.mxu0 %v2426
    %2895 = vmatmul.bf16.gmra.mxu0 %v1189
    %v2896 = vpop.f32.mrf.mxu0
    %v2897 = vadd.f32 %v2884, %v2896
    %v2898 = vpop.f32.mrf.mxu0
    %2899 = vdwg.mxu0
    %2900 = vmatpush.bf16.msra.mxu0 %v2291
    %2901 = vmatpush.bf16.msra.mxu0 %v2283
    %2902 = vmatpush.bf16.msra.mxu0 %v2275
    %2903 = vmatpush.bf16.msra.mxu0 %v2267
    %2904 = vmatpush.bf16.msra.mxu0 %v2259
    %2905 = vmatpush.bf16.msra.mxu0 %v2251
    %2906 = vmatpush.bf16.msra.mxu0 %v2243
    %2907 = vmatpush.bf16.msra.mxu0 %v2235
    %2908 = vmatmul.bf16.gmra.mxu0 %v1186
    %v2909 = vpop.f32.mrf.mxu0
    %v2910 = vadd.f32 %v1451, %v2909
    %v2911 = vpop.f32.mrf.mxu0
    %2912 = vdwg.mxu0
    %2913 = vmatpush.bf16.msra.mxu0 %v2355
    %2914 = vmatpush.bf16.msra.mxu0 %v2347
    %2915 = vmatpush.bf16.msra.mxu0 %v2339
    %2916 = vmatpush.bf16.msra.mxu0 %v2331
    %2917 = vmatpush.bf16.msra.mxu0 %v2323
    %2918 = vmatpush.bf16.msra.mxu0 %v2315
    %2919 = vmatpush.bf16.msra.mxu0 %v2307
    %2920 = vmatpush.bf16.msra.mxu0 %v2299
    %2921 = vmatmul.bf16.gmra.mxu0 %v1187
    %v2922 = vpop.f32.mrf.mxu0
    %v2923 = vadd.f32 %v2910, %v2922
    %v2924 = vpop.f32.mrf.mxu0
    %2925 = vdwg.mxu0
    %2926 = vmatpush.bf16.msra.mxu0 %v2419
    %2927 = vmatpush.bf16.msra.mxu0 %v2411
    %2928 = vmatpush.bf16.msra.mxu0 %v2403
    %2929 = vmatpush.bf16.msra.mxu0 %v2395
    %2930 = vmatpush.bf16.msra.mxu0 %v2387
    %2931 = vmatpush.bf16.msra.mxu0 %v2379
    %2932 = vmatpush.bf16.msra.mxu0 %v2371
    %2933 = vmatpush.bf16.msra.mxu0 %v2363
    %2934 = vmatmul.bf16.gmra.mxu0 %v1188
    %v2935 = vpop.f32.mrf.mxu0
    %v2936 = vadd.f32 %v2923, %v2935
    %v2937 = vpop.f32.mrf.mxu0
    %2938 = vdwg.mxu0
    %2939 = vmatpush.bf16.msra.mxu0 %v2483
    %2940 = vmatpush.bf16.msra.mxu0 %v2475
    %2941 = vmatpush.bf16.msra.mxu0 %v2467
    %2942 = vmatpush.bf16.msra.mxu0 %v2459
    %2943 = vmatpush.bf16.msra.mxu0 %v2451
    %2944 = vmatpush.bf16.msra.mxu0 %v2443
    %2945 = vmatpush.bf16.msra.mxu0 %v2435
    %2946 = vmatpush.bf16.msra.mxu0 %v2427
    %2947 = vmatmul.bf16.gmra.mxu0 %v1189
    %v2948 = vpop.f32.mrf.mxu0
    %v2949 = vadd.f32 %v2936, %v2948
    %v2950 = vpop.f32.mrf.mxu0
    %2951 = vdwg.mxu0
    %2952 = vmatpush.bf16.msra.mxu0 %v2292
    %2953 = vmatpush.bf16.msra.mxu0 %v2284
    %2954 = vmatpush.bf16.msra.mxu0 %v2276
    %2955 = vmatpush.bf16.msra.mxu0 %v2268
    %2956 = vmatpush.bf16.msra.mxu0 %v2260
    %2957 = vmatpush.bf16.msra.mxu0 %v2252
    %2958 = vmatpush.bf16.msra.mxu0 %v2244
    %2959 = vmatpush.bf16.msra.mxu0 %v2236
    %2960 = vmatmul.bf16.gmra.mxu0 %v1186
    %v2961 = vpop.f32.mrf.mxu0
    %v2962 = vadd.f32 %v1452, %v2961
    %v2963 = vpop.f32.mrf.mxu0
    %2964 = vdwg.mxu0
    %2965 = vmatpush.bf16.msra.mxu0 %v2356
    %2966 = vmatpush.bf16.msra.mxu0 %v2348
    %2967 = vmatpush.bf16.msra.mxu0 %v2340
    %2968 = vmatpush.bf16.msra.mxu0 %v2332
    %2969 = vmatpush.bf16.msra.mxu0 %v2324
    %2970 = vmatpush.bf16.msra.mxu0 %v2316
    %2971 = vmatpush.bf16.msra.mxu0 %v2308
    %2972 = vmatpush.bf16.msra.mxu0 %v2300
    %2973 = vmatmul.bf16.gmra.mxu0 %v1187
    %v2974 = vpop.f32.mrf.mxu0
    %v2975 = vadd.f32 %v2962, %v2974
    %v2976 = vpop.f32.mrf.mxu0
    %2977 = vdwg.mxu0
    %2978 = vmatpush.bf16.msra.mxu0 %v2420
    %2979 = vmatpush.bf16.msra.mxu0 %v2412
    %2980 = vmatpush.bf16.msra.mxu0 %v2404
    %2981 = vmatpush.bf16.msra.mxu0 %v2396
    %2982 = vmatpush.bf16.msra.mxu0 %v2388
    %2983 = vmatpush.bf16.msra.mxu0 %v2380
    %2984 = vmatpush.bf16.msra.mxu0 %v2372
    %2985 = vmatpush.bf16.msra.mxu0 %v2364
    %2986 = vmatmul.bf16.gmra.mxu0 %v1188
    %v2987 = vpop.f32.mrf.mxu0
    %v2988 = vadd.f32 %v2975, %v2987
    %v2989 = vpop.f32.mrf.mxu0
    %2990 = vdwg.mxu0
    %2991 = vmatpush.bf16.msra.mxu0 %v2484
    %2992 = vmatpush.bf16.msra.mxu0 %v2476
    %2993 = vmatpush.bf16.msra.mxu0 %v2468
    %2994 = vmatpush.bf16.msra.mxu0 %v2460
    %2995 = vmatpush.bf16.msra.mxu0 %v2452
    %2996 = vmatpush.bf16.msra.mxu0 %v2444
    %2997 = vmatpush.bf16.msra.mxu0 %v2436
    %2998 = vmatpush.bf16.msra.mxu0 %v2428
    %2999 = vmatmul.bf16.gmra.mxu0 %v1189
    %v3000 = vpop.f32.mrf.mxu0
    %v3001 = vadd.f32 %v2988, %v3000
    %v3002 = vpop.f32.mrf.mxu0
    %3003 = vdwg.mxu0
    %3004 = vmatpush.bf16.msra.mxu0 %v2293
    %3005 = vmatpush.bf16.msra.mxu0 %v2285
    %3006 = vmatpush.bf16.msra.mxu0 %v2277
    %3007 = vmatpush.bf16.msra.mxu0 %v2269
    %3008 = vmatpush.bf16.msra.mxu0 %v2261
    %3009 = vmatpush.bf16.msra.mxu0 %v2253
    %3010 = vmatpush.bf16.msra.mxu0 %v2245
    %3011 = vmatpush.bf16.msra.mxu0 %v2237
    %3012 = vmatmul.bf16.gmra.mxu0 %v1186
    %v3013 = vpop.f32.mrf.mxu0
    %v3014 = vadd.f32 %v1453, %v3013
    %v3015 = vpop.f32.mrf.mxu0
    %3016 = vdwg.mxu0
    %3017 = vmatpush.bf16.msra.mxu0 %v2357
    %3018 = vmatpush.bf16.msra.mxu0 %v2349
    %3019 = vmatpush.bf16.msra.mxu0 %v2341
    %3020 = vmatpush.bf16.msra.mxu0 %v2333
    %3021 = vmatpush.bf16.msra.mxu0 %v2325
    %3022 = vmatpush.bf16.msra.mxu0 %v2317
    %3023 = vmatpush.bf16.msra.mxu0 %v2309
    %3024 = vmatpush.bf16.msra.mxu0 %v2301
    %3025 = vmatmul.bf16.gmra.mxu0 %v1187
    %v3026 = vpop.f32.mrf.mxu0
    %v3027 = vadd.f32 %v3014, %v3026
    %v3028 = vpop.f32.mrf.mxu0
    %3029 = vdwg.mxu0
    %3030 = vmatpush.bf16.msra.mxu0 %v2421
    %3031 = vmatpush.bf16.msra.mxu0 %v2413
    %3032 = vmatpush.bf16.msra.mxu0 %v2405
    %3033 = vmatpush.bf16.msra.mxu0 %v2397
    %3034 = vmatpush.bf16.msra.mxu0 %v2389
    %3035 = vmatpush.bf16.msra.mxu0 %v2381
    %3036 = vmatpush.bf16.msra.mxu0 %v2373
    %3037 = vmatpush.bf16.msra.mxu0 %v2365
    %3038 = vmatmul.bf16.gmra.mxu0 %v1188
    %v3039 = vpop.f32.mrf.mxu0
    %v3040 = vadd.f32 %v3027, %v3039
    %v3041 = vpop.f32.mrf.mxu0
    %3042 = vdwg.mxu0
    %3043 = vmatpush.bf16.msra.mxu0 %v2485
    %3044 = vmatpush.bf16.msra.mxu0 %v2477
    %3045 = vmatpush.bf16.msra.mxu0 %v2469
    %3046 = vmatpush.bf16.msra.mxu0 %v2461
    %3047 = vmatpush.bf16.msra.mxu0 %v2453
    %3048 = vmatpush.bf16.msra.mxu0 %v2445
    %3049 = vmatpush.bf16.msra.mxu0 %v2437
    %3050 = vmatpush.bf16.msra.mxu0 %v2429
    %3051 = vmatmul.bf16.gmra.mxu0 %v1189
    %v3052 = vpop.f32.mrf.mxu0
    %v3053 = vadd.f32 %v3040, %v3052
    %v3054 = vpop.f32.mrf.mxu0
    %3055 = vdwg.mxu0
    %3056 = vmatpush.bf16.msra.mxu0 %v2294
    %3057 = vmatpush.bf16.msra.mxu0 %v2286
    %3058 = vmatpush.bf16.msra.mxu0 %v2278
    %3059 = vmatpush.bf16.msra.mxu0 %v2270
    %3060 = vmatpush.bf16.msra.mxu0 %v2262
    %3061 = vmatpush.bf16.msra.mxu0 %v2254
    %3062 = vmatpush.bf16.msra.mxu0 %v2246
    %3063 = vmatpush.bf16.msra.mxu0 %v2238
    %3064 = vmatmul.bf16.gmra.mxu0 %v1186
    %v3065 = vpop.f32.mrf.mxu0
    %v3066 = vadd.f32 %v1454, %v3065
    %v3067 = vpop.f32.mrf.mxu0
    %3068 = vdwg.mxu0
    %3069 = vmatpush.bf16.msra.mxu0 %v2358
    %3070 = vmatpush.bf16.msra.mxu0 %v2350
    %3071 = vmatpush.bf16.msra.mxu0 %v2342
    %3072 = vmatpush.bf16.msra.mxu0 %v2334
    %3073 = vmatpush.bf16.msra.mxu0 %v2326
    %3074 = vmatpush.bf16.msra.mxu0 %v2318
    %3075 = vmatpush.bf16.msra.mxu0 %v2310
    %3076 = vmatpush.bf16.msra.mxu0 %v2302
    %3077 = vmatmul.bf16.gmra.mxu0 %v1187
    %v3078 = vpop.f32.mrf.mxu0
    %v3079 = vadd.f32 %v3066, %v3078
    %v3080 = vpop.f32.mrf.mxu0
    %3081 = vdwg.mxu0
    %3082 = vmatpush.bf16.msra.mxu0 %v2422
    %3083 = vmatpush.bf16.msra.mxu0 %v2414
    %3084 = vmatpush.bf16.msra.mxu0 %v2406
    %3085 = vmatpush.bf16.msra.mxu0 %v2398
    %3086 = vmatpush.bf16.msra.mxu0 %v2390
    %3087 = vmatpush.bf16.msra.mxu0 %v2382
    %3088 = vmatpush.bf16.msra.mxu0 %v2374
    %3089 = vmatpush.bf16.msra.mxu0 %v2366
    %3090 = vmatmul.bf16.gmra.mxu0 %v1188
    %v3091 = vpop.f32.mrf.mxu0
    %v3092 = vadd.f32 %v3079, %v3091
    %v3093 = vpop.f32.mrf.mxu0
    %3094 = vdwg.mxu0
    %3095 = vmatpush.bf16.msra.mxu0 %v2486
    %3096 = vmatpush.bf16.msra.mxu0 %v2478
    %3097 = vmatpush.bf16.msra.mxu0 %v2470
    %3098 = vmatpush.bf16.msra.mxu0 %v2462
    %3099 = vmatpush.bf16.msra.mxu0 %v2454
    %3100 = vmatpush.bf16.msra.mxu0 %v2446
    %3101 = vmatpush.bf16.msra.mxu0 %v2438
    %3102 = vmatpush.bf16.msra.mxu0 %v2430
    %3103 = vmatmul.bf16.gmra.mxu0 %v1189
    %v3104 = vpop.f32.mrf.mxu0
    %v3105 = vadd.f32 %v3092, %v3104
    %v3106 = vpop.f32.mrf.mxu0
    %3107 = vdwg.mxu0
    %3108 = vmatpush.bf16.msra.mxu0 %v2295
    %3109 = vmatpush.bf16.msra.mxu0 %v2287
    %3110 = vmatpush.bf16.msra.mxu0 %v2279
    %3111 = vmatpush.bf16.msra.mxu0 %v2271
    %3112 = vmatpush.bf16.msra.mxu0 %v2263
    %3113 = vmatpush.bf16.msra.mxu0 %v2255
    %3114 = vmatpush.bf16.msra.mxu0 %v2247
    %3115 = vmatpush.bf16.msra.mxu0 %v2239
    %3116 = vmatmul.bf16.gmra.mxu0 %v1186
    %v3117 = vpop.f32.mrf.mxu0
    %v3118 = vadd.f32 %v1455, %v3117
    %v3119 = vpop.f32.mrf.mxu0
    %3120 = vdwg.mxu0
    %3121 = vmatpush.bf16.msra.mxu0 %v2359
    %3122 = vmatpush.bf16.msra.mxu0 %v2351
    %3123 = vmatpush.bf16.msra.mxu0 %v2343
    %3124 = vmatpush.bf16.msra.mxu0 %v2335
    %3125 = vmatpush.bf16.msra.mxu0 %v2327
    %3126 = vmatpush.bf16.msra.mxu0 %v2319
    %3127 = vmatpush.bf16.msra.mxu0 %v2311
    %3128 = vmatpush.bf16.msra.mxu0 %v2303
    %3129 = vmatmul.bf16.gmra.mxu0 %v1187
    %v3130 = vpop.f32.mrf.mxu0
    %v3131 = vadd.f32 %v3118, %v3130
    %v3132 = vpop.f32.mrf.mxu0
    %3133 = vdwg.mxu0
    %3134 = vmatpush.bf16.msra.mxu0 %v2423
    %3135 = vmatpush.bf16.msra.mxu0 %v2415
    %3136 = vmatpush.bf16.msra.mxu0 %v2407
    %3137 = vmatpush.bf16.msra.mxu0 %v2399
    %3138 = vmatpush.bf16.msra.mxu0 %v2391
    %3139 = vmatpush.bf16.msra.mxu0 %v2383
    %3140 = vmatpush.bf16.msra.mxu0 %v2375
    %3141 = vmatpush.bf16.msra.mxu0 %v2367
    %3142 = vmatmul.bf16.gmra.mxu0 %v1188
    %v3143 = vpop.f32.mrf.mxu0
    %v3144 = vadd.f32 %v3131, %v3143
    %v3145 = vpop.f32.mrf.mxu0
    %3146 = vdwg.mxu0
    %3147 = vmatpush.bf16.msra.mxu0 %v2487
    %3148 = vmatpush.bf16.msra.mxu0 %v2479
    %3149 = vmatpush.bf16.msra.mxu0 %v2471
    %3150 = vmatpush.bf16.msra.mxu0 %v2463
    %3151 = vmatpush.bf16.msra.mxu0 %v2455
    %3152 = vmatpush.bf16.msra.mxu0 %v2447
    %3153 = vmatpush.bf16.msra.mxu0 %v2439
    %3154 = vmatpush.bf16.msra.mxu0 %v2431
    %3155 = vmatmul.bf16.gmra.mxu0 %v1189
    %v3156 = vpop.f32.mrf.mxu0
    %v3157 = vadd.f32 %v3144, %v3156
    %v3158 = vpop.f32.mrf.mxu0
    %3159 = vdwg.mxu0
    %v3160 = vsel %vm392, %v2793, 0.0
    %v3161 = vrot.slane %v3160, 4
    %v3162 = vadd.f32 %v3160, %v3161
    %v3163 = vrot.slane %v3162, 2
    %v3164 = vadd.f32 %v3162, %v3163
    %v3165 = vrot.slane %v3164, 1
    %v3166 = vadd.f32 %v3164, %v3165
    %v3167 = vsel %vm392, %v2845, 0.0
    %v3168 = vrot.slane %v3167, 4
    %v3169 = vadd.f32 %v3167, %v3168
    %v3170 = vrot.slane %v3169, 2
    %v3171 = vadd.f32 %v3169, %v3170
    %v3172 = vrot.slane %v3171, 1
    %v3173 = vadd.f32 %v3171, %v3172
    %v3174 = vsel %vm392, %v2897, 0.0
    %v3175 = vrot.slane %v3174, 4
    %v3176 = vadd.f32 %v3174, %v3175
    %v3177 = vrot.slane %v3176, 2
    %v3178 = vadd.f32 %v3176, %v3177
    %v3179 = vrot.slane %v3178, 1
    %v3180 = vadd.f32 %v3178, %v3179
    %v3181 = vsel %vm392, %v2949, 0.0
    %v3182 = vrot.slane %v3181, 4
    %v3183 = vadd.f32 %v3181, %v3182
    %v3184 = vrot.slane %v3183, 2
    %v3185 = vadd.f32 %v3183, %v3184
    %v3186 = vrot.slane %v3185, 1
    %v3187 = vadd.f32 %v3185, %v3186
    %v3188 = vsel %vm392, %v3001, 0.0
    %v3189 = vrot.slane %v3188, 4
    %v3190 = vadd.f32 %v3188, %v3189
    %v3191 = vrot.slane %v3190, 2
    %v3192 = vadd.f32 %v3190, %v3191
    %v3193 = vrot.slane %v3192, 1
    %v3194 = vadd.f32 %v3192, %v3193
    %v3195 = vsel %vm392, %v3053, 0.0
    %v3196 = vrot.slane %v3195, 4
    %v3197 = vadd.f32 %v3195, %v3196
    %v3198 = vrot.slane %v3197, 2
    %v3199 = vadd.f32 %v3197, %v3198
    %v3200 = vrot.slane %v3199, 1
    %v3201 = vadd.f32 %v3199, %v3200
    %v3202 = vsel %vm392, %v3105, 0.0
    %v3203 = vrot.slane %v3202, 4
    %v3204 = vadd.f32 %v3202, %v3203
    %v3205 = vrot.slane %v3204, 2
    %v3206 = vadd.f32 %v3204, %v3205
    %v3207 = vrot.slane %v3206, 1
    %v3208 = vadd.f32 %v3206, %v3207
    %v3209 = vsel %vm392, %v3157, 0.0
    %v3210 = vrot.slane %v3209, 4
    %v3211 = vadd.f32 %v3209, %v3210
    %v3212 = vrot.slane %v3211, 2
    %v3213 = vadd.f32 %v3211, %v3212
    %v3214 = vrot.slane %v3213, 1
    %v3215 = vadd.f32 %v3213, %v3214
    %v3216 = vmul.f32 %v3166, %v413
    %v3217 = vmul.f32 %v3173, %v413
    %v3218 = vmul.f32 %v3180, %v413
    %v3219 = vmul.f32 %v3187, %v413
    %v3220 = vmul.f32 %v3194, %v413
    %v3221 = vmul.f32 %v3201, %v413
    %v3222 = vmul.f32 %v3208, %v413
    %v3223 = vmul.f32 %v3215, %v413
    %v3224 = vmul.f32 %v2793, %v2793
    %v3225 = vmul.f32 %v2845, %v2845
    %v3226 = vmul.f32 %v2897, %v2897
    %v3227 = vmul.f32 %v2949, %v2949
    %v3228 = vmul.f32 %v3001, %v3001
    %v3229 = vmul.f32 %v3053, %v3053
    %v3230 = vmul.f32 %v3105, %v3105
    %v3231 = vmul.f32 %v3157, %v3157
    %v3232 = vsel %vm392, %v3224, 0.0
    %v3233 = vrot.slane %v3232, 4
    %v3234 = vadd.f32 %v3232, %v3233
    %v3235 = vrot.slane %v3234, 2
    %v3236 = vadd.f32 %v3234, %v3235
    %v3237 = vrot.slane %v3236, 1
    %v3238 = vadd.f32 %v3236, %v3237
    %v3239 = vsel %vm392, %v3225, 0.0
    %v3240 = vrot.slane %v3239, 4
    %v3241 = vadd.f32 %v3239, %v3240
    %v3242 = vrot.slane %v3241, 2
    %v3243 = vadd.f32 %v3241, %v3242
    %v3244 = vrot.slane %v3243, 1
    %v3245 = vadd.f32 %v3243, %v3244
    %v3246 = vsel %vm392, %v3226, 0.0
    %v3247 = vrot.slane %v3246, 4
    %v3248 = vadd.f32 %v3246, %v3247
    %v3249 = vrot.slane %v3248, 2
    %v3250 = vadd.f32 %v3248, %v3249
    %v3251 = vrot.slane %v3250, 1
    %v3252 = vadd.f32 %v3250, %v3251
    %v3253 = vsel %vm392, %v3227, 0.0
    %v3254 = vrot.slane %v3253, 4
    %v3255 = vadd.f32 %v3253, %v3254
    %v3256 = vrot.slane %v3255, 2
    %v3257 = vadd.f32 %v3255, %v3256
    %v3258 = vrot.slane %v3257, 1
    %v3259 = vadd.f32 %v3257, %v3258
    %v3260 = vsel %vm392, %v3228, 0.0
    %v3261 = vrot.slane %v3260, 4
    %v3262 = vadd.f32 %v3260, %v3261
    %v3263 = vrot.slane %v3262, 2
    %v3264 = vadd.f32 %v3262, %v3263
    %v3265 = vrot.slane %v3264, 1
    %v3266 = vadd.f32 %v3264, %v3265
    %v3267 = vsel %vm392, %v3229, 0.0
    %v3268 = vrot.slane %v3267, 4
    %v3269 = vadd.f32 %v3267, %v3268
    %v3270 = vrot.slane %v3269, 2
    %v3271 = vadd.f32 %v3269, %v3270
    %v3272 = vrot.slane %v3271, 1
    %v3273 = vadd.f32 %v3271, %v3272
    %v3274 = vsel %vm392, %v3230, 0.0
    %v3275 = vrot.slane %v3274, 4
    %v3276 = vadd.f32 %v3274, %v3275
    %v3277 = vrot.slane %v3276, 2
    %v3278 = vadd.f32 %v3276, %v3277
    %v3279 = vrot.slane %v3278, 1
    %v3280 = vadd.f32 %v3278, %v3279
    %v3281 = vsel %vm392, %v3231, 0.0
    %v3282 = vrot.slane %v3281, 4
    %v3283 = vadd.f32 %v3281, %v3282
    %v3284 = vrot.slane %v3283, 2
    %v3285 = vadd.f32 %v3283, %v3284
    %v3286 = vrot.slane %v3285, 1
    %v3287 = vadd.f32 %v3285, %v3286
    %v3288 = vmul.f32 %v3238, %v413
    %v3289 = vmul.f32 %v3245, %v413
    %v3290 = vmul.f32 %v3252, %v413
    %v3291 = vmul.f32 %v3259, %v413
    %v3292 = vmul.f32 %v3266, %v413
    %v3293 = vmul.f32 %v3273, %v413
    %v3294 = vmul.f32 %v3280, %v413
    %v3295 = vmul.f32 %v3287, %v413
    %v3296 = vmul.f32 %v3216, %v3216
    %v3297 = vmul.f32 %v3217, %v3217
    %v3298 = vmul.f32 %v3218, %v3218
    %v3299 = vmul.f32 %v3219, %v3219
    %v3300 = vmul.f32 %v3220, %v3220
    %v3301 = vmul.f32 %v3221, %v3221
    %v3302 = vmul.f32 %v3222, %v3222
    %v3303 = vmul.f32 %v3223, %v3223
    %v3304 = vsub.f32 %v3288, %v3296
    %v3305 = vsub.f32 %v3289, %v3297
    %v3306 = vsub.f32 %v3290, %v3298
    %v3307 = vsub.f32 %v3291, %v3299
    %v3308 = vsub.f32 %v3292, %v3300
    %v3309 = vsub.f32 %v3293, %v3301
    %v3310 = vsub.f32 %v3294, %v3302
    %v3311 = vsub.f32 %v3295, %v3303
    %v3312 = vmax.f32 %v3304, 0.0
    %v3313 = vmax.f32 %v3305, 0.0
    %v3314 = vmax.f32 %v3306, 0.0
    %v3315 = vmax.f32 %v3307, 0.0
    %v3316 = vmax.f32 %v3308, 0.0
    %v3317 = vmax.f32 %v3309, 0.0
    %v3318 = vmax.f32 %v3310, 0.0
    %v3319 = vmax.f32 %v3311, 0.0
    %v3320 = vld [vmem:[#allocation18] sm:$0xff]
    %v3321 = vadd.f32 %v3312, 0.8
    %v3322 = vadd.f32 %v3313, 0.8
    %v3323 = vadd.f32 %v3314, 0.8
    %v3324 = vadd.f32 %v3315, 0.8
    %v3325 = vadd.f32 %v3316, 0.8
    %v3326 = vadd.f32 %v3317, 0.8
    %v3327 = vadd.f32 %v3318, 0.8
    %v3328 = vadd.f32 %v3319, 0.8
    %v3329 = vrsqrt.pop %v3321
    %v3330 = vmul.f32 %v3329, %v3321
    %v3331 = vmul.f32 %v3330, %v3329
    %v3332 = vmul.f32 0.5, %v3331
    %v3333 = vsub.f32 1.5, %v3332
    %v3334 = vmul.f32 %v3329, %v3333
    %vm3335 = vweird.f32 %v3321
    %vm3336 = vweird.f32 %v3329
    %vm3337 = vmor %vm3335, %vm3336
    %v3338 = vsel %vm3337, %v3329, %v3334
    %v3339 = vrsqrt.pop %v3322
    %v3340 = vmul.f32 %v3339, %v3322
    %v3341 = vmul.f32 %v3340, %v3339
    %v3342 = vmul.f32 0.5, %v3341
    %v3343 = vsub.f32 1.5, %v3342
    %v3344 = vmul.f32 %v3339, %v3343
    %vm3345 = vweird.f32 %v3322
    %vm3346 = vweird.f32 %v3339
    %vm3347 = vmor %vm3345, %vm3346
    %v3348 = vsel %vm3347, %v3339, %v3344
    %v3349 = vrsqrt.pop %v3323
    %v3350 = vmul.f32 %v3349, %v3323
    %v3351 = vmul.f32 %v3350, %v3349
    %v3352 = vmul.f32 0.5, %v3351
    %v3353 = vsub.f32 1.5, %v3352
    %v3354 = vmul.f32 %v3349, %v3353
    %vm3355 = vweird.f32 %v3323
    %vm3356 = vweird.f32 %v3349
    %vm3357 = vmor %vm3355, %vm3356
    %v3358 = vsel %vm3357, %v3349, %v3354
    %v3359 = vrsqrt.pop %v3324
    %v3360 = vmul.f32 %v3359, %v3324
    %v3361 = vmul.f32 %v3360, %v3359
    %v3362 = vmul.f32 0.5, %v3361
    %v3363 = vsub.f32 1.5, %v3362
    %v3364 = vmul.f32 %v3359, %v3363
    %vm3365 = vweird.f32 %v3324
    %vm3366 = vweird.f32 %v3359
    %vm3367 = vmor %vm3365, %vm3366
    %v3368 = vsel %vm3367, %v3359, %v3364
    %v3369 = vrsqrt.pop %v3325
    %v3370 = vmul.f32 %v3369, %v3325
    %v3371 = vmul.f32 %v3370, %v3369
    %v3372 = vmul.f32 0.5, %v3371
    %v3373 = vsub.f32 1.5, %v3372
    %v3374 = vmul.f32 %v3369, %v3373
    %vm3375 = vweird.f32 %v3325
    %vm3376 = vweird.f32 %v3369
    %vm3377 = vmor %vm3375, %vm3376
    %v3378 = vsel %vm3377, %v3369, %v3374
    %v3379 = vrsqrt.pop %v3326
    %v3380 = vmul.f32 %v3379, %v3326
    %v3381 = vmul.f32 %v3380, %v3379
    %v3382 = vmul.f32 0.5, %v3381
    %v3383 = vsub.f32 1.5, %v3382
    %v3384 = vmul.f32 %v3379, %v3383
    %vm3385 = vweird.f32 %v3326
    %vm3386 = vweird.f32 %v3379
    %vm3387 = vmor %vm3385, %vm3386
    %v3388 = vsel %vm3387, %v3379, %v3384
    %v3389 = vrsqrt.pop %v3327
    %v3390 = vmul.f32 %v3389, %v3327
    %v3391 = vmul.f32 %v3390, %v3389
    %v3392 = vmul.f32 0.5, %v3391
    %v3393 = vsub.f32 1.5, %v3392
    %v3394 = vmul.f32 %v3389, %v3393
    %vm3395 = vweird.f32 %v3327
    %vm3396 = vweird.f32 %v3389
    %vm3397 = vmor %vm3395, %vm3396
    %v3398 = vsel %vm3397, %v3389, %v3394
    %v3399 = vrsqrt.pop %v3328
    %v3400 = vmul.f32 %v3399, %v3328
    %v3401 = vmul.f32 %v3400, %v3399
    %v3402 = vmul.f32 0.5, %v3401
    %v3403 = vsub.f32 1.5, %v3402
    %v3404 = vmul.f32 %v3399, %v3403
    %vm3405 = vweird.f32 %v3328
    %vm3406 = vweird.f32 %v3399
    %vm3407 = vmor %vm3405, %vm3406
    %v3408 = vsel %vm3407, %v3399, %v3404
    %v3417 = vrot.slane %v3348, 7
    %v3418 = vrot.slane %v3358, 6
    %v3419 = vrot.slane %v3368, 5
    %v3420 = vrot.slane %v3378, 4
    %v3421 = vrot.slane %v3388, 3
    %v3422 = vrot.slane %v3398, 2
    %v3423 = vrot.slane %v3408, 1
    %v3424 = vsel %vm466, %v3338, %v3417
    %v3425 = vsel %vm1130, %v3418, %v3419
    %v3426 = vsel %vm392, %v3424, %v3425
    %vm3427 = vcmask 1044484
    %v3428 = vsel %vm3427, %v3420, %v3421
    %vm3429 = vcmask 1046534
    %v3430 = vsel %vm3429, %v3422, %v3423
    %vm3431 = vcmask 1045508
    %v3432 = vsel %vm3431, %v3428, %v3430
    %vm3433 = vcmask 1043456
    %v3434 = vsel %vm3433, %v3426, %v3432
    %v3436 = vmul.f32 %v3320, %v3434
    %v3437 = vld [vmem:[#allocation19] sm:$0xff]
    %v3439 = vperm.slane %v3436, 0
    %v3440 = vperm.slane %v3436, 1
    %v3441 = vperm.slane %v3436, 2
    %v3442 = vperm.slane %v3436, 3
    %v3443 = vperm.slane %v3436, 4
    %v3444 = vperm.slane %v3436, 5
    %v3445 = vperm.slane %v3436, 6
    %v3446 = vperm.slane %v3436, 7
    %v3455 = vmul.f32 %v3216, %v3439
    %v3456 = vmul.f32 %v3217, %v3440
    %v3457 = vmul.f32 %v3218, %v3441
    %v3458 = vmul.f32 %v3219, %v3442
    %v3459 = vmul.f32 %v3220, %v3443
    %v3460 = vmul.f32 %v3221, %v3444
    %v3461 = vmul.f32 %v3222, %v3445
    %v3462 = vmul.f32 %v3223, %v3446
    %v3471 = vrot.slane %v3456, 7
    %v3472 = vrot.slane %v3457, 6
    %v3473 = vrot.slane %v3458, 5
    %v3474 = vrot.slane %v3459, 4
    %v3475 = vrot.slane %v3460, 3
    %v3476 = vrot.slane %v3461, 2
    %v3477 = vrot.slane %v3462, 1
    %v3478 = vsel %vm466, %v3455, %v3471
    %v3479 = vsel %vm1130, %v3472, %v3473
    %v3480 = vsel %vm392, %v3478, %v3479
    %v3481 = vsel %vm3427, %v3474, %v3475
    %v3482 = vsel %vm3429, %v3476, %v3477
    %v3483 = vsel %vm3431, %v3481, %v3482
    %v3484 = vsel %vm3433, %v3480, %v3483
    %v3486 = vsub.f32 %v3437, %v3484
    %v3487 = vmul.f32 %v2793, %v3439
    %v3488 = vmul.f32 %v2845, %v3440
    %v3489 = vmul.f32 %v2897, %v3441
    %v3490 = vmul.f32 %v2949, %v3442
    %v3491 = vmul.f32 %v3001, %v3443
    %v3492 = vmul.f32 %v3053, %v3444
    %v3493 = vmul.f32 %v3105, %v3445
    %v3494 = vmul.f32 %v3157, %v3446
    %v3496 = vperm.slane %v3486, 0
    %v3497 = vperm.slane %v3486, 1
    %v3498 = vperm.slane %v3486, 2
    %v3499 = vperm.slane %v3486, 3
    %v3500 = vperm.slane %v3486, 4
    %v3501 = vperm.slane %v3486, 5
    %v3502 = vperm.slane %v3486, 6
    %v3503 = vperm.slane %v3486, 7
    %v3512 = vadd.f32 %v3487, %v3496
    %v3513 = vadd.f32 %v3488, %v3497
    %v3514 = vadd.f32 %v3489, %v3498
    %v3515 = vadd.f32 %v3490, %v3499
    %v3516 = vadd.f32 %v3491, %v3500
    %v3517 = vadd.f32 %v3492, %v3501
    %v3518 = vadd.f32 %v3493, %v3502
    %v3519 = vadd.f32 %v3494, %v3503
    %v3520 = vmul.f32 %v3512, 0.2
    %v3521 = vmul.f32 %v3513, 0.2
    %v3522 = vmul.f32 %v3514, 0.2
    %v3523 = vmul.f32 %v3515, 0.2
    %v3524 = vmul.f32 %v3516, 0.2
    %v3525 = vmul.f32 %v3517, 0.2
    %v3526 = vmul.f32 %v3518, 0.2
    %v3527 = vmul.f32 %v3519, 0.2
    %v3528 = vmax.f32 %v3512, %v3520
    %v3529 = vmax.f32 %v3513, %v3521
    %v3530 = vmax.f32 %v3514, %v3522
    %v3531 = vmax.f32 %v3515, %v3523
    %v3532 = vmax.f32 %v3516, %v3524
    %v3533 = vmax.f32 %v3517, %v3525
    %v3534 = vmax.f32 %v3518, %v3526
    %v3535 = vmax.f32 %v3519, %v3527
    %v3536 = vpack.c.bf16 %v3529, %v3528
    %v3537 = vpack.c.bf16 %v3531, %v3530
    %v3538 = vpack.c.bf16 %v3533, %v3532
    %v3539 = vpack.c.bf16 %v3535, %v3534
    %v3544 = vrot.slane %v3536, 3
    %v3545 = vrot.slane %v3537, 6
    %v3546 = vrot.slane %v3537, 1
    %v3547 = vrot.slane %v3538, 4
    %v3548 = vrot.slane %v3538, 7
    %v3549 = vrot.slane %v3539, 2
    %v3550 = vrot.slane %v3539, 5
    %v3553 = vsel %vm466, %v3536, %v3544
    %v3556 = vsel %vm1130, %v3545, %v3546
    %v3557 = vsel %vm392, %v3553, %v3556
    %v3560 = vsel %vm3427, %v3547, %v3548
    %v3563 = vsel %vm3429, %v3549, %v3550
    %v3564 = vsel %vm3431, %v3560, %v3563
    %v3565 = vsel %vm3433, %v3557, %v3564
    %3567 = vst [vmem:[%s15] sm:$0xff] %v3565
    // Predicated region
    $region110: #{generator_forward.2} parent=1 // pred_check
      _
    $region111: #{generator_forward.2} parent=1 // pred_check_branch
      %3569 = sbr.rel (0) target = $region113
    $region112: #{generator_forward.2} parent=1 // pred_region
      _
    $region113: #{generator_forward.2} parent=1 // pred_fallthru
      _
    // Predicated region
    $region114: #{generator_forward.2} parent=1 // pred_check
      _
    $region115: #{generator_forward.2} parent=1 // pred_check_branch
      %3571 = sbr.rel (0) target = $region117
    $region116: #{generator_forward.2} parent=1 // pred_region
      _
    $region117: #{generator_forward.2} parent=1 // pred_fallthru
      _
    %3572 = vsyncpa [#allocation3], 1
    %3573 = vsyncpa [#allocation5], 1
    %3574 = vsyncpa [#allocation8], 1
    %3575 = vsyncpa [#allocation11], 1
    %3576 = vsyncpa [#allocation14], 1
    %3577 = vsyncpa [#allocation17], 1
    %3578 = vsyncpa [#allocation20], 1

</llo_original>
